<compile_context>
chip_gen: v5e
topology: v5e:2x2
jax: 0.10.0
libtpu: 0.0.40
codegen_flags: <defaults>
</compile_context>

<pallas_src>
import math
from functools import partial

import jax
import jax.numpy as jnp
from jax.experimental import pallas as pl
from jax.experimental.pallas import tpu as pltpu


# ----------------------------- in-kernel helpers -----------------------------

def _ln(v, g, b, eps):
    """Row-wise LayerNorm (PyTorch semantics: biased variance, eps inside rsqrt)."""
    mu = jnp.mean(v, axis=-1, keepdims=True)
    var = jnp.mean((v - mu) ** 2, axis=-1, keepdims=True)
    return (v - mu) * jax.lax.rsqrt(var + eps) * g + b


def _attend(q, k, v, wo, bo, heads, scale, causal):
    """Multi-head attention core for one batch element.

    q: (Nq, dim), k/v: (Nk, dim) -- already projected, heads packed along lanes.
    wo: (dim, dim), bo: (1, dim).  Per-head scores / P@V use a static Python
    loop; head outputs are concatenated and projected with one MXU matmul.
    """
    dim = q.shape[-1]
    d = dim // heads
    outs = []
    for h in range(heads):
        sl = slice(h * d, (h + 1) * d)
        s = jax.lax.dot_general(q[:, sl], k[:, sl], (((1,), (1,)), ((), ())),
                                preferred_element_type=jnp.float32) * scale
        if causal:
            row = jax.lax.broadcasted_iota(jnp.int32, s.shape, 0)
            col = jax.lax.broadcasted_iota(jnp.int32, s.shape, 1)
            s = jnp.where(col <= row, s, -jnp.inf)
        s = s - jnp.max(s, axis=-1, keepdims=True)
        e = jnp.exp(s)
        p = e * pl.reciprocal(jnp.sum(e, axis=-1, keepdims=True), approx=False)
        outs.append(jnp.dot(p, v[:, sl], preferred_element_type=jnp.float32))
    o = jnp.concatenate(outs, axis=-1)                           # (Nq, dim)
    return jnp.dot(o, wo, preferred_element_type=jnp.float32) + bo


# ------------------------------- fused kernel --------------------------------

def _trajvivit_kernel(
        # per-batch inputs
        x_ref, tgt_ref, pe_row_ref,
        # patch embedding
        p_ln1g, p_ln1b, p_w, p_b, p_ln2g, p_ln2b, pe3d,
        # encoder stack (stacked over depth)
        e_wqkv, e_bqkv, e_wo, e_bo, e_ln1g, e_ln1b,
        e_w1, e_b1, e_w2, e_b2, e_ln2g, e_ln2b,
        # decoder prep
        c2e_w, c2e_b,
        # decoder stack (stacked over depth)
        ds_wqkv, ds_bqkv, ds_wo, ds_bo,
        dc_wq, dc_bq, dc_wkv, dc_bkv, dc_wo, dc_bo,
        d_ln1g, d_ln1b, d_ln2g, d_ln2b, d_ln3g, d_ln3b,
        d_w1, d_b1, d_w2, d_b2,
        # output
        o_ref,
        *, depth, heads, scale, eps, T):
    dim = p_w.shape[-1]

    # ---- patch embedding: LN -> Linear -> LN -> + 3-D sincos pos-emb ----
    x = _ln(x_ref[0], p_ln1g[...], p_ln1b[...], eps)
    x = jnp.dot(x, p_w[...], preferred_element_type=jnp.float32) + p_b[...]
    x = _ln(x, p_ln2g[...], p_ln2b[...], eps)
    x = x + pe3d[...]

    # ---- TransformerEncoder (post-LN, ReLU FFN, eval-mode dropout) ----
    for l in range(depth):
        qkv = jnp.dot(x, e_wqkv[l], preferred_element_type=jnp.float32) + e_bqkv[l]
        a = _attend(qkv[:, :dim], qkv[:, dim:2 * dim], qkv[:, 2 * dim:],
                    e_wo[l], e_bo[l], heads, scale, causal=False)
        x = _ln(x + a, e_ln1g[l], e_ln1b[l], eps)
        hid = jnp.maximum(
            jnp.dot(x, e_w1[l], preferred_element_type=jnp.float32) + e_b1[l], 0.0)
        ff = jnp.dot(hid, e_w2[l], preferred_element_type=jnp.float32) + e_b2[l]
        x = _ln(x + ff, e_ln2g[l], e_ln2b[l], eps)
    memory = x                                                   # (N, dim)

    # ---- generate_sequence prep: coord_to_emb + SOS row + PE (ref by-batch bug) ----
    emb = jnp.dot(tgt_ref[0], c2e_w[...], preferred_element_type=jnp.float32) + c2e_b[...]
    L = emb.shape[0]
    row = jax.lax.broadcasted_iota(jnp.int32, (L, dim), 0)
    y = jnp.where(row == 0, 1.0, emb) + pe_row_ref[0]            # SOS row = ones

    # ---- TransformerDecoder (post-LN) ----
    for l in range(depth):
        # masked self-attention
        qkv = jnp.dot(y, ds_wqkv[l], preferred_element_type=jnp.float32) + ds_bqkv[l]
        a = _attend(qkv[:, :dim], qkv[:, dim:2 * dim], qkv[:, 2 * dim:],
                    ds_wo[l], ds_bo[l], heads, scale, causal=True)
        y = _ln(y + a, d_ln1g[l], d_ln1b[l], eps)
        # cross-attention on encoder memory
        q = jnp.dot(y, dc_wq[l], preferred_element_type=jnp.float32) + dc_bq[l]
        kv = jnp.dot(memory, dc_wkv[l], preferred_element_type=jnp.float32) + dc_bkv[l]
        a = _attend(q, kv[:, :dim], kv[:, dim:],
                    dc_wo[l], dc_bo[l], heads, scale, causal=False)
        y = _ln(y + a, d_ln2g[l], d_ln2b[l], eps)
        # FFN
        hid = jnp.maximum(
            jnp.dot(y, d_w1[l], preferred_element_type=jnp.float32) + d_b1[l], 0.0)
        ff = jnp.dot(hid, d_w2[l], preferred_element_type=jnp.float32) + d_b2[l]
        y = _ln(y + ff, d_ln3g[l], d_ln3b[l], eps)

    # Lane-dense (T, dim) output slab; the dim->2 head projection is done in XLA.
    o_ref[0] = y[:T, :]


# ------------------------------- call wrapper ---------------------------------

def _fullspec(shape):
    n = len(shape)
    return pl.BlockSpec(shape, lambda b, n=n: (0,) * n)


def trajvivit_forward(params, consts, video, tgt, cfg):
    B, F, H, W = video.shape
    ph, pw = cfg["patch"]
    pf = cfg["frame_patch"]
    heads, dim, depth = cfg["heads"], cfg["dim"], cfg["depth"]
    f, h, w = F // pf, H // ph, W // pw
    patch_dim = ph * pw * pf                                     # channels = 1
    n_tok = f * h * w
    T = tgt.shape[1]
    L = T + 1
    d = dim // heads

    # Rearrange 'b (f pf) (h p1) (w p2) -> b (f h w) (p1 p2 pf)' (XLA data movement only)
    x = video.reshape(B, f, pf, h, ph, w, pw)
    x = x.transpose(0, 1, 3, 5, 4, 6, 2).reshape(B, n_tok, patch_dim)

    # Dummy SOS slot (zeros); replaced by ones in-kernel after coord_to_emb.
    tgt_ext = jnp.concatenate([jnp.zeros((B, 1, 2), jnp.float32), tgt], axis=1)

    # Reference PositionalEncoding bug: seq-first table indexed by batch index.
    pe_rows = consts["pe_table"][:B].reshape(B, 1, dim)

    args = (x, tgt_ext, pe_rows,
            params["patch_ln1_g"], params["patch_ln1_b"], params["patch_w"], params["patch_b"],
            params["patch_ln2_g"], params["patch_ln2_b"], consts["pe3d"],
            params["e_wqkv"], params["e_bqkv"], params["e_wo"], params["e_bo"],
            params["e_ln1_g"], params["e_ln1_b"],
            params["e_w1"], params["e_b1"], params["e_w2"], params["e_b2"],
            params["e_ln2_g"], params["e_ln2_b"],
            params["c2e_w"], params["c2e_b"],
            params["ds_wqkv"], params["ds_bqkv"], params["ds_wo"], params["ds_bo"],
            params["dc_wq"], params["dc_bq"], params["dc_wkv"], params["dc_bkv"],
            params["dc_wo"], params["dc_bo"],
            params["d_ln1_g"], params["d_ln1_b"], params["d_ln2_g"], params["d_ln2_b"],
            params["d_ln3_g"], params["d_ln3_b"],
            params["d_w1"], params["d_b1"], params["d_w2"], params["d_b2"])

    in_specs = [pl.BlockSpec((1, n_tok, patch_dim), lambda b: (b, 0, 0)),
                pl.BlockSpec((1, L, 2), lambda b: (b, 0, 0)),
                pl.BlockSpec((1, 1, dim), lambda b: (b, 0, 0))] + \
               [_fullspec(a.shape) for a in args[3:]]

    y_out = pl.pallas_call(
        partial(_trajvivit_kernel, depth=depth, heads=heads,
                scale=1.0 / math.sqrt(d), eps=1e-5, T=T),
        out_shape=jax.ShapeDtypeStruct((B, T, dim), jnp.float32),
        grid=(B,),
        in_specs=in_specs,
        out_specs=pl.BlockSpec((1, T, dim), lambda b: (b, 0, 0)),
        compiler_params=pltpu.CompilerParams(dimension_semantics=("parallel",)),
    )(*args)

    # emb_to_coord on y[:, :-1, :] (dim -> 2): done in XLA so the kernel output
    # store stays lane-dense instead of a 2-lane masked store.
    return jnp.dot(y_out, params["e2c_w"]) + params["e2c_b"]


# --------------------------- positional encodings ----------------------------

def posemb_sincos_3d(f, h, w, dim, temperature=10000.0):
    z, y, x = jnp.meshgrid(jnp.arange(f), jnp.arange(h), jnp.arange(w), indexing="ij")
    fourier_dim = dim // 6
    omega = jnp.arange(fourier_dim) / (fourier_dim - 1)
    omega = 1.0 / temperature ** omega
    z = z.flatten()[:, None] * omega[None, :]
    y = y.flatten()[:, None] * omega[None, :]
    x = x.flatten()[:, None] * omega[None, :]
    pe = jnp.concatenate([jnp.sin(x), jnp.cos(x), jnp.sin(y), jnp.cos(y),
                          jnp.sin(z), jnp.cos(z)], axis=1)
    pad = dim - fourier_dim * 6
    if pad:
        pe = jnp.pad(pe, ((0, 0), (0, pad)))
    return pe.astype(jnp.float32)


def positional_encoding_table(max_len, dim):
    position = jnp.arange(max_len, dtype=jnp.float32)[:, None]
    div_term = jnp.exp(jnp.arange(0, dim, 2, dtype=jnp.float32)
                       * (-math.log(10000.0) / dim))
    sin = jnp.sin(position * div_term)
    cos = jnp.cos(position * div_term)
    return jnp.stack([sin, cos], axis=-1).reshape(max_len, dim)


# -------------------------------- parameters ---------------------------------

def init_params(key, *, patch_dim, dim, heads, depth, mlp_dim, dec_ffn):
    keys = iter(jax.random.split(key, 1024))

    def dense(fan_in, fan_out):
        kw, kb = jax.random.split(next(keys))
        lim = 1.0 / math.sqrt(fan_in)
        w = jax.random.uniform(kw, (fan_in, fan_out), jnp.float32, -lim, lim)
        b = jax.random.uniform(kb, (1, fan_out), jnp.float32, -lim, lim)
        return w, b

    def mha():
        wq, bq = dense(dim, dim); wk, bk = dense(dim, dim)
        wv, bv = dense(dim, dim); wo, bo = dense(dim, dim)
        return wq, bq, wk, bk, wv, bv, wo, bo

    ones = lambda n: jnp.ones((1, n), jnp.float32)
    zeros = lambda n: jnp.zeros((1, n), jnp.float32)

    p = {"patch_ln1_g": ones(patch_dim), "patch_ln1_b": zeros(patch_dim),
         "patch_ln2_g": ones(dim), "patch_ln2_b": zeros(dim)}
    p["patch_w"], p["patch_b"] = dense(patch_dim, dim)

    # --- encoder layers (stacked along a leading depth axis) ---
    enc = {k: [] for k in ("wqkv", "bqkv", "wo", "bo", "ln1_g", "ln1_b",
                           "w1", "b1", "w2", "b2", "ln2_g", "ln2_b")}
    for _ in range(depth):
        wq, bq, wk, bk, wv, bv, wo, bo = mha()
        enc["wqkv"].append(jnp.concatenate([wq, wk, wv], axis=1))     # (dim, 3*dim)
        enc["bqkv"].append(jnp.concatenate([bq, bk, bv], axis=1))     # (1, 3*dim)
        enc["wo"].append(wo); enc["bo"].append(bo)
        w1, b1 = dense(dim, mlp_dim); w2, b2 = dense(mlp_dim, dim)
        enc["w1"].append(w1); enc["b1"].append(b1)
        enc["w2"].append(w2); enc["b2"].append(b2)
        enc["ln1_g"].append(ones(dim)); enc["ln1_b"].append(zeros(dim))
        enc["ln2_g"].append(ones(dim)); enc["ln2_b"].append(zeros(dim))
    for k, v in enc.items():
        p[f"e_{k}"] = jnp.stack(v)

    # --- decoder layers ---
    dec = {k: [] for k in ("ds_wqkv", "ds_bqkv", "ds_wo", "ds_bo",
                           "dc_wq", "dc_bq", "dc_wkv", "dc_bkv", "dc_wo", "dc_bo",
                           "ln1_g", "ln1_b", "ln2_g", "ln2_b", "ln3_g", "ln3_b",
                           "w1", "b1", "w2", "b2")}
    for _ in range(depth):
        wq, bq, wk, bk, wv, bv, wo, bo = mha()                        # self-attn
        dec["ds_wqkv"].append(jnp.concatenate([wq, wk, wv], axis=1))
        dec["ds_bqkv"].append(jnp.concatenate([bq, bk, bv], axis=1))
        dec["ds_wo"].append(wo); dec["ds_bo"].append(bo)
        wq, bq, wk, bk, wv, bv, wo, bo = mha()                        # cross-attn
        dec["dc_wq"].append(wq); dec["dc_bq"].append(bq)
        dec["dc_wkv"].append(jnp.concatenate([wk, wv], axis=1))       # (dim, 2*dim)
        dec["dc_bkv"].append(jnp.concatenate([bk, bv], axis=1))
        dec["dc_wo"].append(wo); dec["dc_bo"].append(bo)
        w1, b1 = dense(dim, dec_ffn); w2, b2 = dense(dec_ffn, dim)
        dec["w1"].append(w1); dec["b1"].append(b1)
        dec["w2"].append(w2); dec["b2"].append(b2)
        for i in (1, 2, 3):
            dec[f"ln{i}_g"].append(ones(dim)); dec[f"ln{i}_b"].append(zeros(dim))
    for k, v in dec.items():
        name = k if k.startswith(("ds_", "dc_")) else f"d_{k}"
        p[name] = jnp.stack(v)

    p["c2e_w"], p["c2e_b"] = dense(2, dim)
    p["e2c_w"], p["e2c_b"] = dense(dim, 2)
    return p


# ----------------------------------- main -------------------------------------

if __name__ == "__main__":
    cfg = dict(dim=48, depth=2, heads=4, mlp_dim=64, dec_ffn=64,
               patch=(8, 8), frame_patch=1, pe_max_len=16)
    B, F, H, W, T = 2, 4, 16, 16, 4
    f, h, w = F // cfg["frame_patch"], H // cfg["patch"][0], W // cfg["patch"][1]

    key = jax.random.PRNGKey(0)
    k_video, k_tgt, k_param = jax.random.split(key, 3)
    video = jax.random.normal(k_video, (B, F, H, W), jnp.float32)
    tgt = jax.random.normal(k_tgt, (B, T, 2), jnp.float32)

    params = init_params(k_param,
                         patch_dim=cfg["patch"][0] * cfg["patch"][1] * cfg["frame_patch"],
                         dim=cfg["dim"], heads=cfg["heads"], depth=cfg["depth"],
                         mlp_dim=cfg["mlp_dim"], dec_ffn=cfg["dec_ffn"])

    # Positional tables depend only on static shapes: build once, outside jit.
    consts = dict(pe3d=posemb_sincos_3d(f, h, w, cfg["dim"]),
                  pe_table=positional_encoding_table(cfg["pe_max_len"], cfg["dim"]))

    fwd = jax.jit(lambda p, c, v, t: trajvivit_forward(p, c, v, t, cfg))
    out = jax.block_until_ready(fwd(params, consts, video, tgt))
    assert out.shape == (B, T, 2), out.shape
    assert bool(jnp.all(jnp.isfinite(out)))
    print("KERNEL_OK")
</pallas_src>

<mosaic_0001>
module attributes {stable_mosaic.version = 11 : i64} {
  func.func @_trajvivit_kernel(%arg0: i32, %arg1: memref<1x16x64xf32, #tpu.memory_space<vmem>>, %arg2: memref<1x5x2xf32, #tpu.memory_space<vmem>>, %arg3: memref<1x1x48xf32, #tpu.memory_space<vmem>>, %arg4: memref<1x64xf32, #tpu.memory_space<vmem>>, %arg5: memref<1x64xf32, #tpu.memory_space<vmem>>, %arg6: memref<64x48xf32, #tpu.memory_space<vmem>>, %arg7: memref<1x48xf32, #tpu.memory_space<vmem>>, %arg8: memref<1x48xf32, #tpu.memory_space<vmem>>, %arg9: memref<1x48xf32, #tpu.memory_space<vmem>>, %arg10: memref<16x48xf32, #tpu.memory_space<vmem>>, %arg11: memref<2x48x144xf32, #tpu.memory_space<vmem>>, %arg12: memref<2x1x144xf32, #tpu.memory_space<vmem>>, %arg13: memref<2x48x48xf32, #tpu.memory_space<vmem>>, %arg14: memref<2x1x48xf32, #tpu.memory_space<vmem>>, %arg15: memref<2x1x48xf32, #tpu.memory_space<vmem>>, %arg16: memref<2x1x48xf32, #tpu.memory_space<vmem>>, %arg17: memref<2x48x64xf32, #tpu.memory_space<vmem>>, %arg18: memref<2x1x64xf32, #tpu.memory_space<vmem>>, %arg19: memref<2x64x48xf32, #tpu.memory_space<vmem>>, %arg20: memref<2x1x48xf32, #tpu.memory_space<vmem>>, %arg21: memref<2x1x48xf32, #tpu.memory_space<vmem>>, %arg22: memref<2x1x48xf32, #tpu.memory_space<vmem>>, %arg23: memref<2x48xf32, #tpu.memory_space<vmem>>, %arg24: memref<1x48xf32, #tpu.memory_space<vmem>>, %arg25: memref<2x48x144xf32, #tpu.memory_space<vmem>>, %arg26: memref<2x1x144xf32, #tpu.memory_space<vmem>>, %arg27: memref<2x48x48xf32, #tpu.memory_space<vmem>>, %arg28: memref<2x1x48xf32, #tpu.memory_space<vmem>>, %arg29: memref<2x48x48xf32, #tpu.memory_space<vmem>>, %arg30: memref<2x1x48xf32, #tpu.memory_space<vmem>>, %arg31: memref<2x48x96xf32, #tpu.memory_space<vmem>>, %arg32: memref<2x1x96xf32, #tpu.memory_space<vmem>>, %arg33: memref<2x48x48xf32, #tpu.memory_space<vmem>>, %arg34: memref<2x1x48xf32, #tpu.memory_space<vmem>>, %arg35: memref<2x1x48xf32, #tpu.memory_space<vmem>>, %arg36: memref<2x1x48xf32, #tpu.memory_space<vmem>>, %arg37: memref<2x1x48xf32, #tpu.memory_space<vmem>>, %arg38: memref<2x1x48xf32, #tpu.memory_space<vmem>>, %arg39: memref<2x1x48xf32, #tpu.memory_space<vmem>>, %arg40: memref<2x1x48xf32, #tpu.memory_space<vmem>>, %arg41: memref<2x48x64xf32, #tpu.memory_space<vmem>>, %arg42: memref<2x1x64xf32, #tpu.memory_space<vmem>>, %arg43: memref<2x64x48xf32, #tpu.memory_space<vmem>>, %arg44: memref<2x1x48xf32, #tpu.memory_space<vmem>>, %arg45: memref<1x4x48xf32, #tpu.memory_space<vmem>>) attributes {dimension_semantics = [#tpu.dimension_semantics<parallel>], iteration_bounds = array<i64: 2>, scalar_prefetch = 0 : i64, scratch_operands = 0 : i64, tpu.core_type = #tpu.core_type<tc>, window_params = [{transform_indices = @transform_0, window_bounds = array<i64: 1, 16, 64>}, {transform_indices = @transform_1, window_bounds = array<i64: 1, 5, 2>}, {transform_indices = @transform_2, window_bounds = array<i64: 1, 1, 48>}, {pipeline_mode = #tpu.pipeline_mode<synchronous>, transform_indices = @transform_3, window_bounds = array<i64: 1, 64>}, {pipeline_mode = #tpu.pipeline_mode<synchronous>, transform_indices = @transform_4, window_bounds = array<i64: 1, 64>}, {pipeline_mode = #tpu.pipeline_mode<synchronous>, transform_indices = @transform_5, window_bounds = array<i64: 64, 48>}, {pipeline_mode = #tpu.pipeline_mode<synchronous>, transform_indices = @transform_6, window_bounds = array<i64: 1, 48>}, {pipeline_mode = #tpu.pipeline_mode<synchronous>, transform_indices = @transform_7, window_bounds = array<i64: 1, 48>}, {pipeline_mode = #tpu.pipeline_mode<synchronous>, transform_indices = @transform_8, window_bounds = array<i64: 1, 48>}, {pipeline_mode = #tpu.pipeline_mode<synchronous>, transform_indices = @transform_9, window_bounds = array<i64: 16, 48>}, {pipeline_mode = #tpu.pipeline_mode<synchronous>, transform_indices = @transform_10, window_bounds = array<i64: 2, 48, 144>}, {pipeline_mode = #tpu.pipeline_mode<synchronous>, transform_indices = @transform_11, window_bounds = array<i64: 2, 1, 144>}, {pipeline_mode = #tpu.pipeline_mode<synchronous>, transform_indices = @transform_12, window_bounds = array<i64: 2, 48, 48>}, {pipeline_mode = #tpu.pipeline_mode<synchronous>, transform_indices = @transform_13, window_bounds = array<i64: 2, 1, 48>}, {pipeline_mode = #tpu.pipeline_mode<synchronous>, transform_indices = @transform_14, window_bounds = array<i64: 2, 1, 48>}, {pipeline_mode = #tpu.pipeline_mode<synchronous>, transform_indices = @transform_15, window_bounds = array<i64: 2, 1, 48>}, {pipeline_mode = #tpu.pipeline_mode<synchronous>, transform_indices = @transform_16, window_bounds = array<i64: 2, 48, 64>}, {pipeline_mode = #tpu.pipeline_mode<synchronous>, transform_indices = @transform_17, window_bounds = array<i64: 2, 1, 64>}, {pipeline_mode = #tpu.pipeline_mode<synchronous>, transform_indices = @transform_18, window_bounds = array<i64: 2, 64, 48>}, {pipeline_mode = #tpu.pipeline_mode<synchronous>, transform_indices = @transform_19, window_bounds = array<i64: 2, 1, 48>}, {pipeline_mode = #tpu.pipeline_mode<synchronous>, transform_indices = @transform_20, window_bounds = array<i64: 2, 1, 48>}, {pipeline_mode = #tpu.pipeline_mode<synchronous>, transform_indices = @transform_21, window_bounds = array<i64: 2, 1, 48>}, {pipeline_mode = #tpu.pipeline_mode<synchronous>, transform_indices = @transform_22, window_bounds = array<i64: 2, 48>}, {pipeline_mode = #tpu.pipeline_mode<synchronous>, transform_indices = @transform_23, window_bounds = array<i64: 1, 48>}, {pipeline_mode = #tpu.pipeline_mode<synchronous>, transform_indices = @transform_24, window_bounds = array<i64: 2, 48, 144>}, {pipeline_mode = #tpu.pipeline_mode<synchronous>, transform_indices = @transform_25, window_bounds = array<i64: 2, 1, 144>}, {pipeline_mode = #tpu.pipeline_mode<synchronous>, transform_indices = @transform_26, window_bounds = array<i64: 2, 48, 48>}, {pipeline_mode = #tpu.pipeline_mode<synchronous>, transform_indices = @transform_27, window_bounds = array<i64: 2, 1, 48>}, {pipeline_mode = #tpu.pipeline_mode<synchronous>, transform_indices = @transform_28, window_bounds = array<i64: 2, 48, 48>}, {pipeline_mode = #tpu.pipeline_mode<synchronous>, transform_indices = @transform_29, window_bounds = array<i64: 2, 1, 48>}, {pipeline_mode = #tpu.pipeline_mode<synchronous>, transform_indices = @transform_30, window_bounds = array<i64: 2, 48, 96>}, {pipeline_mode = #tpu.pipeline_mode<synchronous>, transform_indices = @transform_31, window_bounds = array<i64: 2, 1, 96>}, {pipeline_mode = #tpu.pipeline_mode<synchronous>, transform_indices = @transform_32, window_bounds = array<i64: 2, 48, 48>}, {pipeline_mode = #tpu.pipeline_mode<synchronous>, transform_indices = @transform_33, window_bounds = array<i64: 2, 1, 48>}, {pipeline_mode = #tpu.pipeline_mode<synchronous>, transform_indices = @transform_34, window_bounds = array<i64: 2, 1, 48>}, {pipeline_mode = #tpu.pipeline_mode<synchronous>, transform_indices = @transform_35, window_bounds = array<i64: 2, 1, 48>}, {pipeline_mode = #tpu.pipeline_mode<synchronous>, transform_indices = @transform_36, window_bounds = array<i64: 2, 1, 48>}, {pipeline_mode = #tpu.pipeline_mode<synchronous>, transform_indices = @transform_37, window_bounds = array<i64: 2, 1, 48>}, {pipeline_mode = #tpu.pipeline_mode<synchronous>, transform_indices = @transform_38, window_bounds = array<i64: 2, 1, 48>}, {pipeline_mode = #tpu.pipeline_mode<synchronous>, transform_indices = @transform_39, window_bounds = array<i64: 2, 1, 48>}, {pipeline_mode = #tpu.pipeline_mode<synchronous>, transform_indices = @transform_40, window_bounds = array<i64: 2, 48, 64>}, {pipeline_mode = #tpu.pipeline_mode<synchronous>, transform_indices = @transform_41, window_bounds = array<i64: 2, 1, 64>}, {pipeline_mode = #tpu.pipeline_mode<synchronous>, transform_indices = @transform_42, window_bounds = array<i64: 2, 64, 48>}, {pipeline_mode = #tpu.pipeline_mode<synchronous>, transform_indices = @transform_43, window_bounds = array<i64: 2, 1, 48>}, {transform_indices = @transform_44, window_bounds = array<i64: 1, 4, 48>}]} {
    %c0 = arith.constant 0 : index
    %c0_0 = arith.constant 0 : index
    %c0_1 = arith.constant 0 : index
    %0 = vector.load %arg1[%c0, %c0_0, %c0_1] : memref<1x16x64xf32, #tpu.memory_space<vmem>>, vector<1x16x64xf32>
    %1 = vector.shape_cast %0 : vector<1x16x64xf32> to vector<16x64xf32>
    %c0_2 = arith.constant 0 : index
    %c0_3 = arith.constant 0 : index
    %2 = vector.load %arg4[%c0_2, %c0_3] : memref<1x64xf32, #tpu.memory_space<vmem>>, vector<1x64xf32>
    %c0_4 = arith.constant 0 : index
    %c0_5 = arith.constant 0 : index
    %3 = vector.load %arg5[%c0_4, %c0_5] : memref<1x64xf32, #tpu.memory_space<vmem>>, vector<1x64xf32>
    %cst = arith.constant dense<0.000000e+00> : vector<16xf32>
    %4 = vector.multi_reduction <add>, %1, %cst [1] : vector<16x64xf32> to vector<16xf32>
    %5 = vector.shape_cast %4 : vector<16xf32> to vector<16x1xf32>
    %cst_6 = arith.constant 6.400000e+01 : f32
    %6 = vector.broadcast %cst_6 : f32 to vector<16x1xf32>
    %7 = arith.divf %5, %6 : vector<16x1xf32>
    %8 = vector.broadcast %7 : vector<16x1xf32> to vector<16x64xf32>
    %9 = arith.subf %1, %8 : vector<16x64xf32>
    %10 = arith.mulf %9, %9 : vector<16x64xf32>
    %cst_7 = arith.constant dense<0.000000e+00> : vector<16xf32>
    %11 = vector.multi_reduction <add>, %10, %cst_7 [1] : vector<16x64xf32> to vector<16xf32>
    %12 = vector.shape_cast %11 : vector<16xf32> to vector<16x1xf32>
    %cst_8 = arith.constant 6.400000e+01 : f32
    %13 = vector.broadcast %cst_8 : f32 to vector<16x1xf32>
    %14 = arith.divf %12, %13 : vector<16x1xf32>
    %15 = vector.broadcast %7 : vector<16x1xf32> to vector<16x64xf32>
    %16 = arith.subf %1, %15 : vector<16x64xf32>
    %cst_9 = arith.constant 9.99999974E-6 : f32
    %17 = vector.broadcast %cst_9 : f32 to vector<16x1xf32>
    %18 = arith.addf %14, %17 : vector<16x1xf32>
    %19 = math.rsqrt %18 : vector<16x1xf32>
    %20 = vector.broadcast %19 : vector<16x1xf32> to vector<16x64xf32>
    %21 = arith.mulf %16, %20 : vector<16x64xf32>
    %22 = vector.broadcast %2 : vector<1x64xf32> to vector<16x64xf32>
    %23 = arith.mulf %21, %22 : vector<16x64xf32>
    %24 = vector.broadcast %3 : vector<1x64xf32> to vector<16x64xf32>
    %25 = arith.addf %23, %24 : vector<16x64xf32>
    %c0_10 = arith.constant 0 : index
    %c0_11 = arith.constant 0 : index
    %26 = vector.load %arg6[%c0_10, %c0_11] : memref<64x48xf32, #tpu.memory_space<vmem>>, vector<64x48xf32>
    %cst_12 = arith.constant dense<0.000000e+00> : vector<16x48xf32>
    %27 = tpu.matmul %25, %26, %cst_12 {dimension_numbers = #tpu.dot_dimension_numbers<[1], [0], [0], [1], [0, 0, 1, 1], [], []>} : vector<16x64xf32>, vector<64x48xf32>, vector<16x48xf32> -> vector<16x48xf32>
    %c0_13 = arith.constant 0 : index
    %c0_14 = arith.constant 0 : index
    %28 = vector.load %arg7[%c0_13, %c0_14] : memref<1x48xf32, #tpu.memory_space<vmem>>, vector<1x48xf32>
    %29 = vector.broadcast %28 : vector<1x48xf32> to vector<16x48xf32>
    %30 = arith.addf %27, %29 : vector<16x48xf32>
    %c0_15 = arith.constant 0 : index
    %c0_16 = arith.constant 0 : index
    %31 = vector.load %arg8[%c0_15, %c0_16] : memref<1x48xf32, #tpu.memory_space<vmem>>, vector<1x48xf32>
    %c0_17 = arith.constant 0 : index
    %c0_18 = arith.constant 0 : index
    %32 = vector.load %arg9[%c0_17, %c0_18] : memref<1x48xf32, #tpu.memory_space<vmem>>, vector<1x48xf32>
    %cst_19 = arith.constant dense<0.000000e+00> : vector<16xf32>
    %33 = vector.multi_reduction <add>, %30, %cst_19 [1] : vector<16x48xf32> to vector<16xf32>
    %34 = vector.shape_cast %33 : vector<16xf32> to vector<16x1xf32>
    %cst_20 = arith.constant 4.800000e+01 : f32
    %35 = vector.broadcast %cst_20 : f32 to vector<16x1xf32>
    %36 = arith.divf %34, %35 : vector<16x1xf32>
    %37 = vector.broadcast %36 : vector<16x1xf32> to vector<16x48xf32>
    %38 = arith.subf %30, %37 : vector<16x48xf32>
    %39 = arith.mulf %38, %38 : vector<16x48xf32>
    %cst_21 = arith.constant dense<0.000000e+00> : vector<16xf32>
    %40 = vector.multi_reduction <add>, %39, %cst_21 [1] : vector<16x48xf32> to vector<16xf32>
    %41 = vector.shape_cast %40 : vector<16xf32> to vector<16x1xf32>
    %cst_22 = arith.constant 4.800000e+01 : f32
    %42 = vector.broadcast %cst_22 : f32 to vector<16x1xf32>
    %43 = arith.divf %41, %42 : vector<16x1xf32>
    %44 = vector.broadcast %36 : vector<16x1xf32> to vector<16x48xf32>
    %45 = arith.subf %30, %44 : vector<16x48xf32>
    %cst_23 = arith.constant 9.99999974E-6 : f32
    %46 = vector.broadcast %cst_23 : f32 to vector<16x1xf32>
    %47 = arith.addf %43, %46 : vector<16x1xf32>
    %48 = math.rsqrt %47 : vector<16x1xf32>
    %49 = vector.broadcast %48 : vector<16x1xf32> to vector<16x48xf32>
    %50 = arith.mulf %45, %49 : vector<16x48xf32>
    %51 = vector.broadcast %31 : vector<1x48xf32> to vector<16x48xf32>
    %52 = arith.mulf %50, %51 : vector<16x48xf32>
    %53 = vector.broadcast %32 : vector<1x48xf32> to vector<16x48xf32>
    %54 = arith.addf %52, %53 : vector<16x48xf32>
    %c0_24 = arith.constant 0 : index
    %c0_25 = arith.constant 0 : index
    %55 = vector.load %arg10[%c0_24, %c0_25] : memref<16x48xf32, #tpu.memory_space<vmem>>, vector<16x48xf32>
    %56 = arith.addf %54, %55 : vector<16x48xf32>
    %c0_26 = arith.constant 0 : index
    %c0_27 = arith.constant 0 : index
    %c0_28 = arith.constant 0 : index
    %57 = vector.load %arg11[%c0_26, %c0_27, %c0_28] : memref<2x48x144xf32, #tpu.memory_space<vmem>>, vector<1x48x144xf32>
    %58 = vector.shape_cast %57 : vector<1x48x144xf32> to vector<48x144xf32>
    %cst_29 = arith.constant dense<0.000000e+00> : vector<16x144xf32>
    %59 = tpu.matmul %56, %58, %cst_29 {dimension_numbers = #tpu.dot_dimension_numbers<[1], [0], [0], [1], [0, 0, 1, 1], [], []>} : vector<16x48xf32>, vector<48x144xf32>, vector<16x144xf32> -> vector<16x144xf32>
    %c0_30 = arith.constant 0 : index
    %c0_31 = arith.constant 0 : index
    %c0_32 = arith.constant 0 : index
    %60 = vector.load %arg12[%c0_30, %c0_31, %c0_32] : memref<2x1x144xf32, #tpu.memory_space<vmem>>, vector<1x1x144xf32>
    %61 = vector.shape_cast %60 : vector<1x1x144xf32> to vector<1x144xf32>
    %62 = vector.broadcast %61 : vector<1x144xf32> to vector<16x144xf32>
    %63 = arith.addf %59, %62 : vector<16x144xf32>
    %64 = vector.extract_strided_slice %63 {offsets = [0, 0], sizes = [16, 48], strides = [1, 1]} : vector<16x144xf32> to vector<16x48xf32>
    %65 = vector.extract_strided_slice %63 {offsets = [0, 48], sizes = [16, 48], strides = [1, 1]} : vector<16x144xf32> to vector<16x48xf32>
    %66 = vector.extract_strided_slice %63 {offsets = [0, 96], sizes = [16, 48], strides = [1, 1]} : vector<16x144xf32> to vector<16x48xf32>
    %c0_33 = arith.constant 0 : index
    %c0_34 = arith.constant 0 : index
    %c0_35 = arith.constant 0 : index
    %67 = vector.load %arg13[%c0_33, %c0_34, %c0_35] : memref<2x48x48xf32, #tpu.memory_space<vmem>>, vector<1x48x48xf32>
    %68 = vector.shape_cast %67 : vector<1x48x48xf32> to vector<48x48xf32>
    %c0_36 = arith.constant 0 : index
    %c0_37 = arith.constant 0 : index
    %c0_38 = arith.constant 0 : index
    %69 = vector.load %arg14[%c0_36, %c0_37, %c0_38] : memref<2x1x48xf32, #tpu.memory_space<vmem>>, vector<1x1x48xf32>
    %70 = vector.shape_cast %69 : vector<1x1x48xf32> to vector<1x48xf32>
    %71 = vector.extract_strided_slice %64 {offsets = [0, 0], sizes = [16, 12], strides = [1, 1]} : vector<16x48xf32> to vector<16x12xf32>
    %72 = vector.extract_strided_slice %65 {offsets = [0, 0], sizes = [16, 12], strides = [1, 1]} : vector<16x48xf32> to vector<16x12xf32>
    %cst_39 = arith.constant dense<0.000000e+00> : vector<16x16xf32>
    %73 = tpu.matmul %71, %72, %cst_39 {dimension_numbers = #tpu.dot_dimension_numbers<[1], [1], [0], [0], [0, 0, 1, 0], [], []>} : vector<16x12xf32>, vector<16x12xf32>, vector<16x16xf32> -> vector<16x16xf32>
    %cst_40 = arith.constant 0.288675129 : f32
    %74 = vector.broadcast %cst_40 : f32 to vector<16x16xf32>
    %75 = arith.mulf %73, %74 : vector<16x16xf32>
    %cst_41 = arith.constant dense<0xFF800000> : vector<16xf32>
    %76 = vector.multi_reduction <maximumf>, %75, %cst_41 [1] : vector<16x16xf32> to vector<16xf32>
    %77 = vector.shape_cast %76 : vector<16xf32> to vector<16x1xf32>
    %78 = vector.broadcast %77 : vector<16x1xf32> to vector<16x16xf32>
    %79 = arith.subf %75, %78 : vector<16x16xf32>
    %80 = math.exp %79 : vector<16x16xf32>
    %cst_42 = arith.constant dense<0.000000e+00> : vector<16xf32>
    %81 = vector.multi_reduction <add>, %80, %cst_42 [1] : vector<16x16xf32> to vector<16xf32>
    %82 = vector.shape_cast %81 : vector<16xf32> to vector<16x1xf32>
    %83 = tpu.reciprocal %82 : vector<16x1xf32> -> vector<16x1xf32>
    %84 = vector.broadcast %83 : vector<16x1xf32> to vector<16x16xf32>
    %85 = arith.mulf %80, %84 : vector<16x16xf32>
    %86 = vector.extract_strided_slice %66 {offsets = [0, 0], sizes = [16, 12], strides = [1, 1]} : vector<16x48xf32> to vector<16x12xf32>
    %cst_43 = arith.constant dense<0.000000e+00> : vector<16x12xf32>
    %87 = tpu.matmul %85, %86, %cst_43 {dimension_numbers = #tpu.dot_dimension_numbers<[1], [0], [0], [1], [0, 0, 1, 1], [], []>} : vector<16x16xf32>, vector<16x12xf32>, vector<16x12xf32> -> vector<16x12xf32>
    %88 = vector.extract_strided_slice %64 {offsets = [0, 12], sizes = [16, 12], strides = [1, 1]} : vector<16x48xf32> to vector<16x12xf32>
    %89 = vector.extract_strided_slice %65 {offsets = [0, 12], sizes = [16, 12], strides = [1, 1]} : vector<16x48xf32> to vector<16x12xf32>
    %cst_44 = arith.constant dense<0.000000e+00> : vector<16x16xf32>
    %90 = tpu.matmul %88, %89, %cst_44 {dimension_numbers = #tpu.dot_dimension_numbers<[1], [1], [0], [0], [0, 0, 1, 0], [], []>} : vector<16x12xf32>, vector<16x12xf32>, vector<16x16xf32> -> vector<16x16xf32>
    %cst_45 = arith.constant 0.288675129 : f32
    %91 = vector.broadcast %cst_45 : f32 to vector<16x16xf32>
    %92 = arith.mulf %90, %91 : vector<16x16xf32>
    %cst_46 = arith.constant dense<0xFF800000> : vector<16xf32>
    %93 = vector.multi_reduction <maximumf>, %92, %cst_46 [1] : vector<16x16xf32> to vector<16xf32>
    %94 = vector.shape_cast %93 : vector<16xf32> to vector<16x1xf32>
    %95 = vector.broadcast %94 : vector<16x1xf32> to vector<16x16xf32>
    %96 = arith.subf %92, %95 : vector<16x16xf32>
    %97 = math.exp %96 : vector<16x16xf32>
    %cst_47 = arith.constant dense<0.000000e+00> : vector<16xf32>
    %98 = vector.multi_reduction <add>, %97, %cst_47 [1] : vector<16x16xf32> to vector<16xf32>
    %99 = vector.shape_cast %98 : vector<16xf32> to vector<16x1xf32>
    %100 = tpu.reciprocal %99 : vector<16x1xf32> -> vector<16x1xf32>
    %101 = vector.broadcast %100 : vector<16x1xf32> to vector<16x16xf32>
    %102 = arith.mulf %97, %101 : vector<16x16xf32>
    %103 = vector.extract_strided_slice %66 {offsets = [0, 12], sizes = [16, 12], strides = [1, 1]} : vector<16x48xf32> to vector<16x12xf32>
    %cst_48 = arith.constant dense<0.000000e+00> : vector<16x12xf32>
    %104 = tpu.matmul %102, %103, %cst_48 {dimension_numbers = #tpu.dot_dimension_numbers<[1], [0], [0], [1], [0, 0, 1, 1], [], []>} : vector<16x16xf32>, vector<16x12xf32>, vector<16x12xf32> -> vector<16x12xf32>
    %105 = vector.extract_strided_slice %64 {offsets = [0, 24], sizes = [16, 12], strides = [1, 1]} : vector<16x48xf32> to vector<16x12xf32>
    %106 = vector.extract_strided_slice %65 {offsets = [0, 24], sizes = [16, 12], strides = [1, 1]} : vector<16x48xf32> to vector<16x12xf32>
    %cst_49 = arith.constant dense<0.000000e+00> : vector<16x16xf32>
    %107 = tpu.matmul %105, %106, %cst_49 {dimension_numbers = #tpu.dot_dimension_numbers<[1], [1], [0], [0], [0, 0, 1, 0], [], []>} : vector<16x12xf32>, vector<16x12xf32>, vector<16x16xf32> -> vector<16x16xf32>
    %cst_50 = arith.constant 0.288675129 : f32
    %108 = vector.broadcast %cst_50 : f32 to vector<16x16xf32>
    %109 = arith.mulf %107, %108 : vector<16x16xf32>
    %cst_51 = arith.constant dense<0xFF800000> : vector<16xf32>
    %110 = vector.multi_reduction <maximumf>, %109, %cst_51 [1] : vector<16x16xf32> to vector<16xf32>
    %111 = vector.shape_cast %110 : vector<16xf32> to vector<16x1xf32>
    %112 = vector.broadcast %111 : vector<16x1xf32> to vector<16x16xf32>
    %113 = arith.subf %109, %112 : vector<16x16xf32>
    %114 = math.exp %113 : vector<16x16xf32>
    %cst_52 = arith.constant dense<0.000000e+00> : vector<16xf32>
    %115 = vector.multi_reduction <add>, %114, %cst_52 [1] : vector<16x16xf32> to vector<16xf32>
    %116 = vector.shape_cast %115 : vector<16xf32> to vector<16x1xf32>
    %117 = tpu.reciprocal %116 : vector<16x1xf32> -> vector<16x1xf32>
    %118 = vector.broadcast %117 : vector<16x1xf32> to vector<16x16xf32>
    %119 = arith.mulf %114, %118 : vector<16x16xf32>
    %120 = vector.extract_strided_slice %66 {offsets = [0, 24], sizes = [16, 12], strides = [1, 1]} : vector<16x48xf32> to vector<16x12xf32>
    %cst_53 = arith.constant dense<0.000000e+00> : vector<16x12xf32>
    %121 = tpu.matmul %119, %120, %cst_53 {dimension_numbers = #tpu.dot_dimension_numbers<[1], [0], [0], [1], [0, 0, 1, 1], [], []>} : vector<16x16xf32>, vector<16x12xf32>, vector<16x12xf32> -> vector<16x12xf32>
    %122 = vector.extract_strided_slice %64 {offsets = [0, 36], sizes = [16, 12], strides = [1, 1]} : vector<16x48xf32> to vector<16x12xf32>
    %123 = vector.extract_strided_slice %65 {offsets = [0, 36], sizes = [16, 12], strides = [1, 1]} : vector<16x48xf32> to vector<16x12xf32>
    %cst_54 = arith.constant dense<0.000000e+00> : vector<16x16xf32>
    %124 = tpu.matmul %122, %123, %cst_54 {dimension_numbers = #tpu.dot_dimension_numbers<[1], [1], [0], [0], [0, 0, 1, 0], [], []>} : vector<16x12xf32>, vector<16x12xf32>, vector<16x16xf32> -> vector<16x16xf32>
    %cst_55 = arith.constant 0.288675129 : f32
    %125 = vector.broadcast %cst_55 : f32 to vector<16x16xf32>
    %126 = arith.mulf %124, %125 : vector<16x16xf32>
    %cst_56 = arith.constant dense<0xFF800000> : vector<16xf32>
    %127 = vector.multi_reduction <maximumf>, %126, %cst_56 [1] : vector<16x16xf32> to vector<16xf32>
    %128 = vector.shape_cast %127 : vector<16xf32> to vector<16x1xf32>
    %129 = vector.broadcast %128 : vector<16x1xf32> to vector<16x16xf32>
    %130 = arith.subf %126, %129 : vector<16x16xf32>
    %131 = math.exp %130 : vector<16x16xf32>
    %cst_57 = arith.constant dense<0.000000e+00> : vector<16xf32>
    %132 = vector.multi_reduction <add>, %131, %cst_57 [1] : vector<16x16xf32> to vector<16xf32>
    %133 = vector.shape_cast %132 : vector<16xf32> to vector<16x1xf32>
    %134 = tpu.reciprocal %133 : vector<16x1xf32> -> vector<16x1xf32>
    %135 = vector.broadcast %134 : vector<16x1xf32> to vector<16x16xf32>
    %136 = arith.mulf %131, %135 : vector<16x16xf32>
    %137 = vector.extract_strided_slice %66 {offsets = [0, 36], sizes = [16, 12], strides = [1, 1]} : vector<16x48xf32> to vector<16x12xf32>
    %cst_58 = arith.constant dense<0.000000e+00> : vector<16x12xf32>
    %138 = tpu.matmul %136, %137, %cst_58 {dimension_numbers = #tpu.dot_dimension_numbers<[1], [0], [0], [1], [0, 0, 1, 1], [], []>} : vector<16x16xf32>, vector<16x12xf32>, vector<16x12xf32> -> vector<16x12xf32>
    %139 = tpu.concatenate %87, %104, %121, %138 in 1 : vector<16x12xf32>, vector<16x12xf32>, vector<16x12xf32>, vector<16x12xf32> -> vector<16x48xf32>
    %cst_59 = arith.constant dense<0.000000e+00> : vector<16x48xf32>
    %140 = tpu.matmul %139, %68, %cst_59 {dimension_numbers = #tpu.dot_dimension_numbers<[1], [0], [0], [1], [0, 0, 1, 1], [], []>} : vector<16x48xf32>, vector<48x48xf32>, vector<16x48xf32> -> vector<16x48xf32>
    %141 = vector.broadcast %70 : vector<1x48xf32> to vector<16x48xf32>
    %142 = arith.addf %140, %141 : vector<16x48xf32>
    %143 = arith.addf %56, %142 : vector<16x48xf32>
    %c0_60 = arith.constant 0 : index
    %c0_61 = arith.constant 0 : index
    %c0_62 = arith.constant 0 : index
    %144 = vector.load %arg15[%c0_60, %c0_61, %c0_62] : memref<2x1x48xf32, #tpu.memory_space<vmem>>, vector<1x1x48xf32>
    %145 = vector.shape_cast %144 : vector<1x1x48xf32> to vector<1x48xf32>
    %c0_63 = arith.constant 0 : index
    %c0_64 = arith.constant 0 : index
    %c0_65 = arith.constant 0 : index
    %146 = vector.load %arg16[%c0_63, %c0_64, %c0_65] : memref<2x1x48xf32, #tpu.memory_space<vmem>>, vector<1x1x48xf32>
    %147 = vector.shape_cast %146 : vector<1x1x48xf32> to vector<1x48xf32>
    %cst_66 = arith.constant dense<0.000000e+00> : vector<16xf32>
    %148 = vector.multi_reduction <add>, %143, %cst_66 [1] : vector<16x48xf32> to vector<16xf32>
    %149 = vector.shape_cast %148 : vector<16xf32> to vector<16x1xf32>
    %cst_67 = arith.constant 4.800000e+01 : f32
    %150 = vector.broadcast %cst_67 : f32 to vector<16x1xf32>
    %151 = arith.divf %149, %150 : vector<16x1xf32>
    %152 = vector.broadcast %151 : vector<16x1xf32> to vector<16x48xf32>
    %153 = arith.subf %143, %152 : vector<16x48xf32>
    %154 = arith.mulf %153, %153 : vector<16x48xf32>
    %cst_68 = arith.constant dense<0.000000e+00> : vector<16xf32>
    %155 = vector.multi_reduction <add>, %154, %cst_68 [1] : vector<16x48xf32> to vector<16xf32>
    %156 = vector.shape_cast %155 : vector<16xf32> to vector<16x1xf32>
    %cst_69 = arith.constant 4.800000e+01 : f32
    %157 = vector.broadcast %cst_69 : f32 to vector<16x1xf32>
    %158 = arith.divf %156, %157 : vector<16x1xf32>
    %159 = vector.broadcast %151 : vector<16x1xf32> to vector<16x48xf32>
    %160 = arith.subf %143, %159 : vector<16x48xf32>
    %cst_70 = arith.constant 9.99999974E-6 : f32
    %161 = vector.broadcast %cst_70 : f32 to vector<16x1xf32>
    %162 = arith.addf %158, %161 : vector<16x1xf32>
    %163 = math.rsqrt %162 : vector<16x1xf32>
    %164 = vector.broadcast %163 : vector<16x1xf32> to vector<16x48xf32>
    %165 = arith.mulf %160, %164 : vector<16x48xf32>
    %166 = vector.broadcast %145 : vector<1x48xf32> to vector<16x48xf32>
    %167 = arith.mulf %165, %166 : vector<16x48xf32>
    %168 = vector.broadcast %147 : vector<1x48xf32> to vector<16x48xf32>
    %169 = arith.addf %167, %168 : vector<16x48xf32>
    %c0_71 = arith.constant 0 : index
    %c0_72 = arith.constant 0 : index
    %c0_73 = arith.constant 0 : index
    %170 = vector.load %arg17[%c0_71, %c0_72, %c0_73] : memref<2x48x64xf32, #tpu.memory_space<vmem>>, vector<1x48x64xf32>
    %171 = vector.shape_cast %170 : vector<1x48x64xf32> to vector<48x64xf32>
    %cst_74 = arith.constant dense<0.000000e+00> : vector<16x64xf32>
    %172 = tpu.matmul %169, %171, %cst_74 {dimension_numbers = #tpu.dot_dimension_numbers<[1], [0], [0], [1], [0, 0, 1, 1], [], []>} : vector<16x48xf32>, vector<48x64xf32>, vector<16x64xf32> -> vector<16x64xf32>
    %c0_75 = arith.constant 0 : index
    %c0_76 = arith.constant 0 : index
    %c0_77 = arith.constant 0 : index
    %173 = vector.load %arg18[%c0_75, %c0_76, %c0_77] : memref<2x1x64xf32, #tpu.memory_space<vmem>>, vector<1x1x64xf32>
    %174 = vector.shape_cast %173 : vector<1x1x64xf32> to vector<1x64xf32>
    %175 = vector.broadcast %174 : vector<1x64xf32> to vector<16x64xf32>
    %176 = arith.addf %172, %175 : vector<16x64xf32>
    %cst_78 = arith.constant 0.000000e+00 : f32
    %177 = vector.broadcast %cst_78 : f32 to vector<16x64xf32>
    %178 = arith.maximumf %176, %177 : vector<16x64xf32>
    %c0_79 = arith.constant 0 : index
    %c0_80 = arith.constant 0 : index
    %c0_81 = arith.constant 0 : index
    %179 = vector.load %arg19[%c0_79, %c0_80, %c0_81] : memref<2x64x48xf32, #tpu.memory_space<vmem>>, vector<1x64x48xf32>
    %180 = vector.shape_cast %179 : vector<1x64x48xf32> to vector<64x48xf32>
    %cst_82 = arith.constant dense<0.000000e+00> : vector<16x48xf32>
    %181 = tpu.matmul %178, %180, %cst_82 {dimension_numbers = #tpu.dot_dimension_numbers<[1], [0], [0], [1], [0, 0, 1, 1], [], []>} : vector<16x64xf32>, vector<64x48xf32>, vector<16x48xf32> -> vector<16x48xf32>
    %c0_83 = arith.constant 0 : index
    %c0_84 = arith.constant 0 : index
    %c0_85 = arith.constant 0 : index
    %182 = vector.load %arg20[%c0_83, %c0_84, %c0_85] : memref<2x1x48xf32, #tpu.memory_space<vmem>>, vector<1x1x48xf32>
    %183 = vector.shape_cast %182 : vector<1x1x48xf32> to vector<1x48xf32>
    %184 = vector.broadcast %183 : vector<1x48xf32> to vector<16x48xf32>
    %185 = arith.addf %181, %184 : vector<16x48xf32>
    %186 = arith.addf %169, %185 : vector<16x48xf32>
    %c0_86 = arith.constant 0 : index
    %c0_87 = arith.constant 0 : index
    %c0_88 = arith.constant 0 : index
    %187 = vector.load %arg21[%c0_86, %c0_87, %c0_88] : memref<2x1x48xf32, #tpu.memory_space<vmem>>, vector<1x1x48xf32>
    %188 = vector.shape_cast %187 : vector<1x1x48xf32> to vector<1x48xf32>
    %c0_89 = arith.constant 0 : index
    %c0_90 = arith.constant 0 : index
    %c0_91 = arith.constant 0 : index
    %189 = vector.load %arg22[%c0_89, %c0_90, %c0_91] : memref<2x1x48xf32, #tpu.memory_space<vmem>>, vector<1x1x48xf32>
    %190 = vector.shape_cast %189 : vector<1x1x48xf32> to vector<1x48xf32>
    %cst_92 = arith.constant dense<0.000000e+00> : vector<16xf32>
    %191 = vector.multi_reduction <add>, %186, %cst_92 [1] : vector<16x48xf32> to vector<16xf32>
    %192 = vector.shape_cast %191 : vector<16xf32> to vector<16x1xf32>
    %cst_93 = arith.constant 4.800000e+01 : f32
    %193 = vector.broadcast %cst_93 : f32 to vector<16x1xf32>
    %194 = arith.divf %192, %193 : vector<16x1xf32>
    %195 = vector.broadcast %194 : vector<16x1xf32> to vector<16x48xf32>
    %196 = arith.subf %186, %195 : vector<16x48xf32>
    %197 = arith.mulf %196, %196 : vector<16x48xf32>
    %cst_94 = arith.constant dense<0.000000e+00> : vector<16xf32>
    %198 = vector.multi_reduction <add>, %197, %cst_94 [1] : vector<16x48xf32> to vector<16xf32>
    %199 = vector.shape_cast %198 : vector<16xf32> to vector<16x1xf32>
    %cst_95 = arith.constant 4.800000e+01 : f32
    %200 = vector.broadcast %cst_95 : f32 to vector<16x1xf32>
    %201 = arith.divf %199, %200 : vector<16x1xf32>
    %202 = vector.broadcast %194 : vector<16x1xf32> to vector<16x48xf32>
    %203 = arith.subf %186, %202 : vector<16x48xf32>
    %cst_96 = arith.constant 9.99999974E-6 : f32
    %204 = vector.broadcast %cst_96 : f32 to vector<16x1xf32>
    %205 = arith.addf %201, %204 : vector<16x1xf32>
    %206 = math.rsqrt %205 : vector<16x1xf32>
    %207 = vector.broadcast %206 : vector<16x1xf32> to vector<16x48xf32>
    %208 = arith.mulf %203, %207 : vector<16x48xf32>
    %209 = vector.broadcast %188 : vector<1x48xf32> to vector<16x48xf32>
    %210 = arith.mulf %208, %209 : vector<16x48xf32>
    %211 = vector.broadcast %190 : vector<1x48xf32> to vector<16x48xf32>
    %212 = arith.addf %210, %211 : vector<16x48xf32>
    %c1 = arith.constant 1 : index
    %c0_97 = arith.constant 0 : index
    %c0_98 = arith.constant 0 : index
    %213 = vector.load %arg11[%c1, %c0_97, %c0_98] : memref<2x48x144xf32, #tpu.memory_space<vmem>>, vector<1x48x144xf32>
    %214 = vector.shape_cast %213 : vector<1x48x144xf32> to vector<48x144xf32>
    %cst_99 = arith.constant dense<0.000000e+00> : vector<16x144xf32>
    %215 = tpu.matmul %212, %214, %cst_99 {dimension_numbers = #tpu.dot_dimension_numbers<[1], [0], [0], [1], [0, 0, 1, 1], [], []>} : vector<16x48xf32>, vector<48x144xf32>, vector<16x144xf32> -> vector<16x144xf32>
    %c1_100 = arith.constant 1 : index
    %c0_101 = arith.constant 0 : index
    %c0_102 = arith.constant 0 : index
    %216 = vector.load %arg12[%c1_100, %c0_101, %c0_102] : memref<2x1x144xf32, #tpu.memory_space<vmem>>, vector<1x1x144xf32>
    %217 = vector.shape_cast %216 : vector<1x1x144xf32> to vector<1x144xf32>
    %218 = vector.broadcast %217 : vector<1x144xf32> to vector<16x144xf32>
    %219 = arith.addf %215, %218 : vector<16x144xf32>
    %220 = vector.extract_strided_slice %219 {offsets = [0, 0], sizes = [16, 48], strides = [1, 1]} : vector<16x144xf32> to vector<16x48xf32>
    %221 = vector.extract_strided_slice %219 {offsets = [0, 48], sizes = [16, 48], strides = [1, 1]} : vector<16x144xf32> to vector<16x48xf32>
    %222 = vector.extract_strided_slice %219 {offsets = [0, 96], sizes = [16, 48], strides = [1, 1]} : vector<16x144xf32> to vector<16x48xf32>
    %c1_103 = arith.constant 1 : index
    %c0_104 = arith.constant 0 : index
    %c0_105 = arith.constant 0 : index
    %223 = vector.load %arg13[%c1_103, %c0_104, %c0_105] : memref<2x48x48xf32, #tpu.memory_space<vmem>>, vector<1x48x48xf32>
    %224 = vector.shape_cast %223 : vector<1x48x48xf32> to vector<48x48xf32>
    %c1_106 = arith.constant 1 : index
    %c0_107 = arith.constant 0 : index
    %c0_108 = arith.constant 0 : index
    %225 = vector.load %arg14[%c1_106, %c0_107, %c0_108] : memref<2x1x48xf32, #tpu.memory_space<vmem>>, vector<1x1x48xf32>
    %226 = vector.shape_cast %225 : vector<1x1x48xf32> to vector<1x48xf32>
    %227 = vector.extract_strided_slice %220 {offsets = [0, 0], sizes = [16, 12], strides = [1, 1]} : vector<16x48xf32> to vector<16x12xf32>
    %228 = vector.extract_strided_slice %221 {offsets = [0, 0], sizes = [16, 12], strides = [1, 1]} : vector<16x48xf32> to vector<16x12xf32>
    %cst_109 = arith.constant dense<0.000000e+00> : vector<16x16xf32>
    %229 = tpu.matmul %227, %228, %cst_109 {dimension_numbers = #tpu.dot_dimension_numbers<[1], [1], [0], [0], [0, 0, 1, 0], [], []>} : vector<16x12xf32>, vector<16x12xf32>, vector<16x16xf32> -> vector<16x16xf32>
    %cst_110 = arith.constant 0.288675129 : f32
    %230 = vector.broadcast %cst_110 : f32 to vector<16x16xf32>
    %231 = arith.mulf %229, %230 : vector<16x16xf32>
    %cst_111 = arith.constant dense<0xFF800000> : vector<16xf32>
    %232 = vector.multi_reduction <maximumf>, %231, %cst_111 [1] : vector<16x16xf32> to vector<16xf32>
    %233 = vector.shape_cast %232 : vector<16xf32> to vector<16x1xf32>
    %234 = vector.broadcast %233 : vector<16x1xf32> to vector<16x16xf32>
    %235 = arith.subf %231, %234 : vector<16x16xf32>
    %236 = math.exp %235 : vector<16x16xf32>
    %cst_112 = arith.constant dense<0.000000e+00> : vector<16xf32>
    %237 = vector.multi_reduction <add>, %236, %cst_112 [1] : vector<16x16xf32> to vector<16xf32>
    %238 = vector.shape_cast %237 : vector<16xf32> to vector<16x1xf32>
    %239 = tpu.reciprocal %238 : vector<16x1xf32> -> vector<16x1xf32>
    %240 = vector.broadcast %239 : vector<16x1xf32> to vector<16x16xf32>
    %241 = arith.mulf %236, %240 : vector<16x16xf32>
    %242 = vector.extract_strided_slice %222 {offsets = [0, 0], sizes = [16, 12], strides = [1, 1]} : vector<16x48xf32> to vector<16x12xf32>
    %cst_113 = arith.constant dense<0.000000e+00> : vector<16x12xf32>
    %243 = tpu.matmul %241, %242, %cst_113 {dimension_numbers = #tpu.dot_dimension_numbers<[1], [0], [0], [1], [0, 0, 1, 1], [], []>} : vector<16x16xf32>, vector<16x12xf32>, vector<16x12xf32> -> vector<16x12xf32>
    %244 = vector.extract_strided_slice %220 {offsets = [0, 12], sizes = [16, 12], strides = [1, 1]} : vector<16x48xf32> to vector<16x12xf32>
    %245 = vector.extract_strided_slice %221 {offsets = [0, 12], sizes = [16, 12], strides = [1, 1]} : vector<16x48xf32> to vector<16x12xf32>
    %cst_114 = arith.constant dense<0.000000e+00> : vector<16x16xf32>
    %246 = tpu.matmul %244, %245, %cst_114 {dimension_numbers = #tpu.dot_dimension_numbers<[1], [1], [0], [0], [0, 0, 1, 0], [], []>} : vector<16x12xf32>, vector<16x12xf32>, vector<16x16xf32> -> vector<16x16xf32>
    %cst_115 = arith.constant 0.288675129 : f32
    %247 = vector.broadcast %cst_115 : f32 to vector<16x16xf32>
    %248 = arith.mulf %246, %247 : vector<16x16xf32>
    %cst_116 = arith.constant dense<0xFF800000> : vector<16xf32>
    %249 = vector.multi_reduction <maximumf>, %248, %cst_116 [1] : vector<16x16xf32> to vector<16xf32>
    %250 = vector.shape_cast %249 : vector<16xf32> to vector<16x1xf32>
    %251 = vector.broadcast %250 : vector<16x1xf32> to vector<16x16xf32>
    %252 = arith.subf %248, %251 : vector<16x16xf32>
    %253 = math.exp %252 : vector<16x16xf32>
    %cst_117 = arith.constant dense<0.000000e+00> : vector<16xf32>
    %254 = vector.multi_reduction <add>, %253, %cst_117 [1] : vector<16x16xf32> to vector<16xf32>
    %255 = vector.shape_cast %254 : vector<16xf32> to vector<16x1xf32>
    %256 = tpu.reciprocal %255 : vector<16x1xf32> -> vector<16x1xf32>
    %257 = vector.broadcast %256 : vector<16x1xf32> to vector<16x16xf32>
    %258 = arith.mulf %253, %257 : vector<16x16xf32>
    %259 = vector.extract_strided_slice %222 {offsets = [0, 12], sizes = [16, 12], strides = [1, 1]} : vector<16x48xf32> to vector<16x12xf32>
    %cst_118 = arith.constant dense<0.000000e+00> : vector<16x12xf32>
    %260 = tpu.matmul %258, %259, %cst_118 {dimension_numbers = #tpu.dot_dimension_numbers<[1], [0], [0], [1], [0, 0, 1, 1], [], []>} : vector<16x16xf32>, vector<16x12xf32>, vector<16x12xf32> -> vector<16x12xf32>
    %261 = vector.extract_strided_slice %220 {offsets = [0, 24], sizes = [16, 12], strides = [1, 1]} : vector<16x48xf32> to vector<16x12xf32>
    %262 = vector.extract_strided_slice %221 {offsets = [0, 24], sizes = [16, 12], strides = [1, 1]} : vector<16x48xf32> to vector<16x12xf32>
    %cst_119 = arith.constant dense<0.000000e+00> : vector<16x16xf32>
    %263 = tpu.matmul %261, %262, %cst_119 {dimension_numbers = #tpu.dot_dimension_numbers<[1], [1], [0], [0], [0, 0, 1, 0], [], []>} : vector<16x12xf32>, vector<16x12xf32>, vector<16x16xf32> -> vector<16x16xf32>
    %cst_120 = arith.constant 0.288675129 : f32
    %264 = vector.broadcast %cst_120 : f32 to vector<16x16xf32>
    %265 = arith.mulf %263, %264 : vector<16x16xf32>
    %cst_121 = arith.constant dense<0xFF800000> : vector<16xf32>
    %266 = vector.multi_reduction <maximumf>, %265, %cst_121 [1] : vector<16x16xf32> to vector<16xf32>
    %267 = vector.shape_cast %266 : vector<16xf32> to vector<16x1xf32>
    %268 = vector.broadcast %267 : vector<16x1xf32> to vector<16x16xf32>
    %269 = arith.subf %265, %268 : vector<16x16xf32>
    %270 = math.exp %269 : vector<16x16xf32>
    %cst_122 = arith.constant dense<0.000000e+00> : vector<16xf32>
    %271 = vector.multi_reduction <add>, %270, %cst_122 [1] : vector<16x16xf32> to vector<16xf32>
    %272 = vector.shape_cast %271 : vector<16xf32> to vector<16x1xf32>
    %273 = tpu.reciprocal %272 : vector<16x1xf32> -> vector<16x1xf32>
    %274 = vector.broadcast %273 : vector<16x1xf32> to vector<16x16xf32>
    %275 = arith.mulf %270, %274 : vector<16x16xf32>
    %276 = vector.extract_strided_slice %222 {offsets = [0, 24], sizes = [16, 12], strides = [1, 1]} : vector<16x48xf32> to vector<16x12xf32>
    %cst_123 = arith.constant dense<0.000000e+00> : vector<16x12xf32>
    %277 = tpu.matmul %275, %276, %cst_123 {dimension_numbers = #tpu.dot_dimension_numbers<[1], [0], [0], [1], [0, 0, 1, 1], [], []>} : vector<16x16xf32>, vector<16x12xf32>, vector<16x12xf32> -> vector<16x12xf32>
    %278 = vector.extract_strided_slice %220 {offsets = [0, 36], sizes = [16, 12], strides = [1, 1]} : vector<16x48xf32> to vector<16x12xf32>
    %279 = vector.extract_strided_slice %221 {offsets = [0, 36], sizes = [16, 12], strides = [1, 1]} : vector<16x48xf32> to vector<16x12xf32>
    %cst_124 = arith.constant dense<0.000000e+00> : vector<16x16xf32>
    %280 = tpu.matmul %278, %279, %cst_124 {dimension_numbers = #tpu.dot_dimension_numbers<[1], [1], [0], [0], [0, 0, 1, 0], [], []>} : vector<16x12xf32>, vector<16x12xf32>, vector<16x16xf32> -> vector<16x16xf32>
    %cst_125 = arith.constant 0.288675129 : f32
    %281 = vector.broadcast %cst_125 : f32 to vector<16x16xf32>
    %282 = arith.mulf %280, %281 : vector<16x16xf32>
    %cst_126 = arith.constant dense<0xFF800000> : vector<16xf32>
    %283 = vector.multi_reduction <maximumf>, %282, %cst_126 [1] : vector<16x16xf32> to vector<16xf32>
    %284 = vector.shape_cast %283 : vector<16xf32> to vector<16x1xf32>
    %285 = vector.broadcast %284 : vector<16x1xf32> to vector<16x16xf32>
    %286 = arith.subf %282, %285 : vector<16x16xf32>
    %287 = math.exp %286 : vector<16x16xf32>
    %cst_127 = arith.constant dense<0.000000e+00> : vector<16xf32>
    %288 = vector.multi_reduction <add>, %287, %cst_127 [1] : vector<16x16xf32> to vector<16xf32>
    %289 = vector.shape_cast %288 : vector<16xf32> to vector<16x1xf32>
    %290 = tpu.reciprocal %289 : vector<16x1xf32> -> vector<16x1xf32>
    %291 = vector.broadcast %290 : vector<16x1xf32> to vector<16x16xf32>
    %292 = arith.mulf %287, %291 : vector<16x16xf32>
    %293 = vector.extract_strided_slice %222 {offsets = [0, 36], sizes = [16, 12], strides = [1, 1]} : vector<16x48xf32> to vector<16x12xf32>
    %cst_128 = arith.constant dense<0.000000e+00> : vector<16x12xf32>
    %294 = tpu.matmul %292, %293, %cst_128 {dimension_numbers = #tpu.dot_dimension_numbers<[1], [0], [0], [1], [0, 0, 1, 1], [], []>} : vector<16x16xf32>, vector<16x12xf32>, vector<16x12xf32> -> vector<16x12xf32>
    %295 = tpu.concatenate %243, %260, %277, %294 in 1 : vector<16x12xf32>, vector<16x12xf32>, vector<16x12xf32>, vector<16x12xf32> -> vector<16x48xf32>
    %cst_129 = arith.constant dense<0.000000e+00> : vector<16x48xf32>
    %296 = tpu.matmul %295, %224, %cst_129 {dimension_numbers = #tpu.dot_dimension_numbers<[1], [0], [0], [1], [0, 0, 1, 1], [], []>} : vector<16x48xf32>, vector<48x48xf32>, vector<16x48xf32> -> vector<16x48xf32>
    %297 = vector.broadcast %226 : vector<1x48xf32> to vector<16x48xf32>
    %298 = arith.addf %296, %297 : vector<16x48xf32>
    %299 = arith.addf %212, %298 : vector<16x48xf32>
    %c1_130 = arith.constant 1 : index
    %c0_131 = arith.constant 0 : index
    %c0_132 = arith.constant 0 : index
    %300 = vector.load %arg15[%c1_130, %c0_131, %c0_132] : memref<2x1x48xf32, #tpu.memory_space<vmem>>, vector<1x1x48xf32>
    %301 = vector.shape_cast %300 : vector<1x1x48xf32> to vector<1x48xf32>
    %c1_133 = arith.constant 1 : index
    %c0_134 = arith.constant 0 : index
    %c0_135 = arith.constant 0 : index
    %302 = vector.load %arg16[%c1_133, %c0_134, %c0_135] : memref<2x1x48xf32, #tpu.memory_space<vmem>>, vector<1x1x48xf32>
    %303 = vector.shape_cast %302 : vector<1x1x48xf32> to vector<1x48xf32>
    %cst_136 = arith.constant dense<0.000000e+00> : vector<16xf32>
    %304 = vector.multi_reduction <add>, %299, %cst_136 [1] : vector<16x48xf32> to vector<16xf32>
    %305 = vector.shape_cast %304 : vector<16xf32> to vector<16x1xf32>
    %cst_137 = arith.constant 4.800000e+01 : f32
    %306 = vector.broadcast %cst_137 : f32 to vector<16x1xf32>
    %307 = arith.divf %305, %306 : vector<16x1xf32>
    %308 = vector.broadcast %307 : vector<16x1xf32> to vector<16x48xf32>
    %309 = arith.subf %299, %308 : vector<16x48xf32>
    %310 = arith.mulf %309, %309 : vector<16x48xf32>
    %cst_138 = arith.constant dense<0.000000e+00> : vector<16xf32>
    %311 = vector.multi_reduction <add>, %310, %cst_138 [1] : vector<16x48xf32> to vector<16xf32>
    %312 = vector.shape_cast %311 : vector<16xf32> to vector<16x1xf32>
    %cst_139 = arith.constant 4.800000e+01 : f32
    %313 = vector.broadcast %cst_139 : f32 to vector<16x1xf32>
    %314 = arith.divf %312, %313 : vector<16x1xf32>
    %315 = vector.broadcast %307 : vector<16x1xf32> to vector<16x48xf32>
    %316 = arith.subf %299, %315 : vector<16x48xf32>
    %cst_140 = arith.constant 9.99999974E-6 : f32
    %317 = vector.broadcast %cst_140 : f32 to vector<16x1xf32>
    %318 = arith.addf %314, %317 : vector<16x1xf32>
    %319 = math.rsqrt %318 : vector<16x1xf32>
    %320 = vector.broadcast %319 : vector<16x1xf32> to vector<16x48xf32>
    %321 = arith.mulf %316, %320 : vector<16x48xf32>
    %322 = vector.broadcast %301 : vector<1x48xf32> to vector<16x48xf32>
    %323 = arith.mulf %321, %322 : vector<16x48xf32>
    %324 = vector.broadcast %303 : vector<1x48xf32> to vector<16x48xf32>
    %325 = arith.addf %323, %324 : vector<16x48xf32>
    %c1_141 = arith.constant 1 : index
    %c0_142 = arith.constant 0 : index
    %c0_143 = arith.constant 0 : index
    %326 = vector.load %arg17[%c1_141, %c0_142, %c0_143] : memref<2x48x64xf32, #tpu.memory_space<vmem>>, vector<1x48x64xf32>
    %327 = vector.shape_cast %326 : vector<1x48x64xf32> to vector<48x64xf32>
    %cst_144 = arith.constant dense<0.000000e+00> : vector<16x64xf32>
    %328 = tpu.matmul %325, %327, %cst_144 {dimension_numbers = #tpu.dot_dimension_numbers<[1], [0], [0], [1], [0, 0, 1, 1], [], []>} : vector<16x48xf32>, vector<48x64xf32>, vector<16x64xf32> -> vector<16x64xf32>
    %c1_145 = arith.constant 1 : index
    %c0_146 = arith.constant 0 : index
    %c0_147 = arith.constant 0 : index
    %329 = vector.load %arg18[%c1_145, %c0_146, %c0_147] : memref<2x1x64xf32, #tpu.memory_space<vmem>>, vector<1x1x64xf32>
    %330 = vector.shape_cast %329 : vector<1x1x64xf32> to vector<1x64xf32>
    %331 = vector.broadcast %330 : vector<1x64xf32> to vector<16x64xf32>
    %332 = arith.addf %328, %331 : vector<16x64xf32>
    %cst_148 = arith.constant 0.000000e+00 : f32
    %333 = vector.broadcast %cst_148 : f32 to vector<16x64xf32>
    %334 = arith.maximumf %332, %333 : vector<16x64xf32>
    %c1_149 = arith.constant 1 : index
    %c0_150 = arith.constant 0 : index
    %c0_151 = arith.constant 0 : index
    %335 = vector.load %arg19[%c1_149, %c0_150, %c0_151] : memref<2x64x48xf32, #tpu.memory_space<vmem>>, vector<1x64x48xf32>
    %336 = vector.shape_cast %335 : vector<1x64x48xf32> to vector<64x48xf32>
    %cst_152 = arith.constant dense<0.000000e+00> : vector<16x48xf32>
    %337 = tpu.matmul %334, %336, %cst_152 {dimension_numbers = #tpu.dot_dimension_numbers<[1], [0], [0], [1], [0, 0, 1, 1], [], []>} : vector<16x64xf32>, vector<64x48xf32>, vector<16x48xf32> -> vector<16x48xf32>
    %c1_153 = arith.constant 1 : index
    %c0_154 = arith.constant 0 : index
    %c0_155 = arith.constant 0 : index
    %338 = vector.load %arg20[%c1_153, %c0_154, %c0_155] : memref<2x1x48xf32, #tpu.memory_space<vmem>>, vector<1x1x48xf32>
    %339 = vector.shape_cast %338 : vector<1x1x48xf32> to vector<1x48xf32>
    %340 = vector.broadcast %339 : vector<1x48xf32> to vector<16x48xf32>
    %341 = arith.addf %337, %340 : vector<16x48xf32>
    %342 = arith.addf %325, %341 : vector<16x48xf32>
    %c1_156 = arith.constant 1 : index
    %c0_157 = arith.constant 0 : index
    %c0_158 = arith.constant 0 : index
    %343 = vector.load %arg21[%c1_156, %c0_157, %c0_158] : memref<2x1x48xf32, #tpu.memory_space<vmem>>, vector<1x1x48xf32>
    %344 = vector.shape_cast %343 : vector<1x1x48xf32> to vector<1x48xf32>
    %c1_159 = arith.constant 1 : index
    %c0_160 = arith.constant 0 : index
    %c0_161 = arith.constant 0 : index
    %345 = vector.load %arg22[%c1_159, %c0_160, %c0_161] : memref<2x1x48xf32, #tpu.memory_space<vmem>>, vector<1x1x48xf32>
    %346 = vector.shape_cast %345 : vector<1x1x48xf32> to vector<1x48xf32>
    %cst_162 = arith.constant dense<0.000000e+00> : vector<16xf32>
    %347 = vector.multi_reduction <add>, %342, %cst_162 [1] : vector<16x48xf32> to vector<16xf32>
    %348 = vector.shape_cast %347 : vector<16xf32> to vector<16x1xf32>
    %cst_163 = arith.constant 4.800000e+01 : f32
    %349 = vector.broadcast %cst_163 : f32 to vector<16x1xf32>
    %350 = arith.divf %348, %349 : vector<16x1xf32>
    %351 = vector.broadcast %350 : vector<16x1xf32> to vector<16x48xf32>
    %352 = arith.subf %342, %351 : vector<16x48xf32>
    %353 = arith.mulf %352, %352 : vector<16x48xf32>
    %cst_164 = arith.constant dense<0.000000e+00> : vector<16xf32>
    %354 = vector.multi_reduction <add>, %353, %cst_164 [1] : vector<16x48xf32> to vector<16xf32>
    %355 = vector.shape_cast %354 : vector<16xf32> to vector<16x1xf32>
    %cst_165 = arith.constant 4.800000e+01 : f32
    %356 = vector.broadcast %cst_165 : f32 to vector<16x1xf32>
    %357 = arith.divf %355, %356 : vector<16x1xf32>
    %358 = vector.broadcast %350 : vector<16x1xf32> to vector<16x48xf32>
    %359 = arith.subf %342, %358 : vector<16x48xf32>
    %cst_166 = arith.constant 9.99999974E-6 : f32
    %360 = vector.broadcast %cst_166 : f32 to vector<16x1xf32>
    %361 = arith.addf %357, %360 : vector<16x1xf32>
    %362 = math.rsqrt %361 : vector<16x1xf32>
    %363 = vector.broadcast %362 : vector<16x1xf32> to vector<16x48xf32>
    %364 = arith.mulf %359, %363 : vector<16x48xf32>
    %365 = vector.broadcast %344 : vector<1x48xf32> to vector<16x48xf32>
    %366 = arith.mulf %364, %365 : vector<16x48xf32>
    %367 = vector.broadcast %346 : vector<1x48xf32> to vector<16x48xf32>
    %368 = arith.addf %366, %367 : vector<16x48xf32>
    %c0_167 = arith.constant 0 : index
    %c0_168 = arith.constant 0 : index
    %c0_169 = arith.constant 0 : index
    %369 = vector.load %arg2[%c0_167, %c0_168, %c0_169] : memref<1x5x2xf32, #tpu.memory_space<vmem>>, vector<1x5x2xf32>
    %370 = vector.shape_cast %369 : vector<1x5x2xf32> to vector<5x2xf32>
    %c0_170 = arith.constant 0 : index
    %c0_171 = arith.constant 0 : index
    %371 = vector.load %arg23[%c0_170, %c0_171] : memref<2x48xf32, #tpu.memory_space<vmem>>, vector<2x48xf32>
    %cst_172 = arith.constant dense<0.000000e+00> : vector<5x48xf32>
    %372 = tpu.matmul %370, %371, %cst_172 {dimension_numbers = #tpu.dot_dimension_numbers<[1], [0], [0], [1], [0, 0, 1, 1], [], []>} : vector<5x2xf32>, vector<2x48xf32>, vector<5x48xf32> -> vector<5x48xf32>
    %c0_173 = arith.constant 0 : index
    %c0_174 = arith.constant 0 : index
    %373 = vector.load %arg24[%c0_173, %c0_174] : memref<1x48xf32, #tpu.memory_space<vmem>>, vector<1x48xf32>
    %374 = vector.broadcast %373 : vector<1x48xf32> to vector<5x48xf32>
    %375 = arith.addf %372, %374 : vector<5x48xf32>
    %376 = tpu.iota {dimensions = array<i32: 0>} : vector<5x48xi32>
    %c0_i32 = arith.constant 0 : i32
    %377 = vector.broadcast %c0_i32 : i32 to vector<5x48xi32>
    %378 = arith.cmpi eq, %376, %377 : vector<5x48xi32>
    %cst_175 = arith.constant 1.000000e+00 : f32
    %379 = vector.broadcast %cst_175 : f32 to vector<5x48xf32>
    %380 = arith.select %378, %379, %375 : vector<5x48xi1>, vector<5x48xf32>
    %c0_176 = arith.constant 0 : index
    %c0_177 = arith.constant 0 : index
    %c0_178 = arith.constant 0 : index
    %381 = vector.load %arg3[%c0_176, %c0_177, %c0_178] : memref<1x1x48xf32, #tpu.memory_space<vmem>>, vector<1x1x48xf32>
    %382 = vector.shape_cast %381 : vector<1x1x48xf32> to vector<1x48xf32>
    %383 = vector.broadcast %382 : vector<1x48xf32> to vector<5x48xf32>
    %384 = arith.addf %380, %383 : vector<5x48xf32>
    %c0_179 = arith.constant 0 : index
    %c0_180 = arith.constant 0 : index
    %c0_181 = arith.constant 0 : index
    %385 = vector.load %arg25[%c0_179, %c0_180, %c0_181] : memref<2x48x144xf32, #tpu.memory_space<vmem>>, vector<1x48x144xf32>
    %386 = vector.shape_cast %385 : vector<1x48x144xf32> to vector<48x144xf32>
    %cst_182 = arith.constant dense<0.000000e+00> : vector<5x144xf32>
    %387 = tpu.matmul %384, %386, %cst_182 {dimension_numbers = #tpu.dot_dimension_numbers<[1], [0], [0], [1], [0, 0, 1, 1], [], []>} : vector<5x48xf32>, vector<48x144xf32>, vector<5x144xf32> -> vector<5x144xf32>
    %c0_183 = arith.constant 0 : index
    %c0_184 = arith.constant 0 : index
    %c0_185 = arith.constant 0 : index
    %388 = vector.load %arg26[%c0_183, %c0_184, %c0_185] : memref<2x1x144xf32, #tpu.memory_space<vmem>>, vector<1x1x144xf32>
    %389 = vector.shape_cast %388 : vector<1x1x144xf32> to vector<1x144xf32>
    %390 = vector.broadcast %389 : vector<1x144xf32> to vector<5x144xf32>
    %391 = arith.addf %387, %390 : vector<5x144xf32>
    %392 = vector.extract_strided_slice %391 {offsets = [0, 0], sizes = [5, 48], strides = [1, 1]} : vector<5x144xf32> to vector<5x48xf32>
    %393 = vector.extract_strided_slice %391 {offsets = [0, 48], sizes = [5, 48], strides = [1, 1]} : vector<5x144xf32> to vector<5x48xf32>
    %394 = vector.extract_strided_slice %391 {offsets = [0, 96], sizes = [5, 48], strides = [1, 1]} : vector<5x144xf32> to vector<5x48xf32>
    %c0_186 = arith.constant 0 : index
    %c0_187 = arith.constant 0 : index
    %c0_188 = arith.constant 0 : index
    %395 = vector.load %arg27[%c0_186, %c0_187, %c0_188] : memref<2x48x48xf32, #tpu.memory_space<vmem>>, vector<1x48x48xf32>
    %396 = vector.shape_cast %395 : vector<1x48x48xf32> to vector<48x48xf32>
    %c0_189 = arith.constant 0 : index
    %c0_190 = arith.constant 0 : index
    %c0_191 = arith.constant 0 : index
    %397 = vector.load %arg28[%c0_189, %c0_190, %c0_191] : memref<2x1x48xf32, #tpu.memory_space<vmem>>, vector<1x1x48xf32>
    %398 = vector.shape_cast %397 : vector<1x1x48xf32> to vector<1x48xf32>
    %399 = vector.extract_strided_slice %392 {offsets = [0, 0], sizes = [5, 12], strides = [1, 1]} : vector<5x48xf32> to vector<5x12xf32>
    %400 = vector.extract_strided_slice %393 {offsets = [0, 0], sizes = [5, 12], strides = [1, 1]} : vector<5x48xf32> to vector<5x12xf32>
    %cst_192 = arith.constant dense<0.000000e+00> : vector<5x5xf32>
    %401 = tpu.matmul %399, %400, %cst_192 {dimension_numbers = #tpu.dot_dimension_numbers<[1], [1], [0], [0], [0, 0, 1, 0], [], []>} : vector<5x12xf32>, vector<5x12xf32>, vector<5x5xf32> -> vector<5x5xf32>
    %cst_193 = arith.constant 0.288675129 : f32
    %402 = vector.broadcast %cst_193 : f32 to vector<5x5xf32>
    %403 = arith.mulf %401, %402 : vector<5x5xf32>
    %404 = tpu.iota {dimensions = array<i32: 0>} : vector<5x5xi32>
    %405 = tpu.iota {dimensions = array<i32: 1>} : vector<5x5xi32>
    %406 = arith.cmpi sle, %405, %404 : vector<5x5xi32>
    %cst_194 = arith.constant 0xFF800000 : f32
    %407 = vector.broadcast %cst_194 : f32 to vector<5x5xf32>
    %408 = arith.select %406, %403, %407 : vector<5x5xi1>, vector<5x5xf32>
    %cst_195 = arith.constant dense<0xFF800000> : vector<5xf32>
    %409 = vector.multi_reduction <maximumf>, %408, %cst_195 [1] : vector<5x5xf32> to vector<5xf32>
    %410 = vector.shape_cast %409 : vector<5xf32> to vector<5x1xf32>
    %411 = vector.broadcast %410 : vector<5x1xf32> to vector<5x5xf32>
    %412 = arith.subf %408, %411 : vector<5x5xf32>
    %413 = math.exp %412 : vector<5x5xf32>
    %cst_196 = arith.constant dense<0.000000e+00> : vector<5xf32>
    %414 = vector.multi_reduction <add>, %413, %cst_196 [1] : vector<5x5xf32> to vector<5xf32>
    %415 = vector.shape_cast %414 : vector<5xf32> to vector<5x1xf32>
    %416 = tpu.reciprocal %415 : vector<5x1xf32> -> vector<5x1xf32>
    %417 = vector.broadcast %416 : vector<5x1xf32> to vector<5x5xf32>
    %418 = arith.mulf %413, %417 : vector<5x5xf32>
    %419 = vector.extract_strided_slice %394 {offsets = [0, 0], sizes = [5, 12], strides = [1, 1]} : vector<5x48xf32> to vector<5x12xf32>
    %cst_197 = arith.constant dense<0.000000e+00> : vector<5x12xf32>
    %420 = tpu.matmul %418, %419, %cst_197 {dimension_numbers = #tpu.dot_dimension_numbers<[1], [0], [0], [1], [0, 0, 1, 1], [], []>} : vector<5x5xf32>, vector<5x12xf32>, vector<5x12xf32> -> vector<5x12xf32>
    %421 = vector.extract_strided_slice %392 {offsets = [0, 12], sizes = [5, 12], strides = [1, 1]} : vector<5x48xf32> to vector<5x12xf32>
    %422 = vector.extract_strided_slice %393 {offsets = [0, 12], sizes = [5, 12], strides = [1, 1]} : vector<5x48xf32> to vector<5x12xf32>
    %cst_198 = arith.constant dense<0.000000e+00> : vector<5x5xf32>
    %423 = tpu.matmul %421, %422, %cst_198 {dimension_numbers = #tpu.dot_dimension_numbers<[1], [1], [0], [0], [0, 0, 1, 0], [], []>} : vector<5x12xf32>, vector<5x12xf32>, vector<5x5xf32> -> vector<5x5xf32>
    %cst_199 = arith.constant 0.288675129 : f32
    %424 = vector.broadcast %cst_199 : f32 to vector<5x5xf32>
    %425 = arith.mulf %423, %424 : vector<5x5xf32>
    %426 = tpu.iota {dimensions = array<i32: 0>} : vector<5x5xi32>
    %427 = tpu.iota {dimensions = array<i32: 1>} : vector<5x5xi32>
    %428 = arith.cmpi sle, %427, %426 : vector<5x5xi32>
    %cst_200 = arith.constant 0xFF800000 : f32
    %429 = vector.broadcast %cst_200 : f32 to vector<5x5xf32>
    %430 = arith.select %428, %425, %429 : vector<5x5xi1>, vector<5x5xf32>
    %cst_201 = arith.constant dense<0xFF800000> : vector<5xf32>
    %431 = vector.multi_reduction <maximumf>, %430, %cst_201 [1] : vector<5x5xf32> to vector<5xf32>
    %432 = vector.shape_cast %431 : vector<5xf32> to vector<5x1xf32>
    %433 = vector.broadcast %432 : vector<5x1xf32> to vector<5x5xf32>
    %434 = arith.subf %430, %433 : vector<5x5xf32>
    %435 = math.exp %434 : vector<5x5xf32>
    %cst_202 = arith.constant dense<0.000000e+00> : vector<5xf32>
    %436 = vector.multi_reduction <add>, %435, %cst_202 [1] : vector<5x5xf32> to vector<5xf32>
    %437 = vector.shape_cast %436 : vector<5xf32> to vector<5x1xf32>
    %438 = tpu.reciprocal %437 : vector<5x1xf32> -> vector<5x1xf32>
    %439 = vector.broadcast %438 : vector<5x1xf32> to vector<5x5xf32>
    %440 = arith.mulf %435, %439 : vector<5x5xf32>
    %441 = vector.extract_strided_slice %394 {offsets = [0, 12], sizes = [5, 12], strides = [1, 1]} : vector<5x48xf32> to vector<5x12xf32>
    %cst_203 = arith.constant dense<0.000000e+00> : vector<5x12xf32>
    %442 = tpu.matmul %440, %441, %cst_203 {dimension_numbers = #tpu.dot_dimension_numbers<[1], [0], [0], [1], [0, 0, 1, 1], [], []>} : vector<5x5xf32>, vector<5x12xf32>, vector<5x12xf32> -> vector<5x12xf32>
    %443 = vector.extract_strided_slice %392 {offsets = [0, 24], sizes = [5, 12], strides = [1, 1]} : vector<5x48xf32> to vector<5x12xf32>
    %444 = vector.extract_strided_slice %393 {offsets = [0, 24], sizes = [5, 12], strides = [1, 1]} : vector<5x48xf32> to vector<5x12xf32>
    %cst_204 = arith.constant dense<0.000000e+00> : vector<5x5xf32>
    %445 = tpu.matmul %443, %444, %cst_204 {dimension_numbers = #tpu.dot_dimension_numbers<[1], [1], [0], [0], [0, 0, 1, 0], [], []>} : vector<5x12xf32>, vector<5x12xf32>, vector<5x5xf32> -> vector<5x5xf32>
    %cst_205 = arith.constant 0.288675129 : f32
    %446 = vector.broadcast %cst_205 : f32 to vector<5x5xf32>
    %447 = arith.mulf %445, %446 : vector<5x5xf32>
    %448 = tpu.iota {dimensions = array<i32: 0>} : vector<5x5xi32>
    %449 = tpu.iota {dimensions = array<i32: 1>} : vector<5x5xi32>
    %450 = arith.cmpi sle, %449, %448 : vector<5x5xi32>
    %cst_206 = arith.constant 0xFF800000 : f32
    %451 = vector.broadcast %cst_206 : f32 to vector<5x5xf32>
    %452 = arith.select %450, %447, %451 : vector<5x5xi1>, vector<5x5xf32>
    %cst_207 = arith.constant dense<0xFF800000> : vector<5xf32>
    %453 = vector.multi_reduction <maximumf>, %452, %cst_207 [1] : vector<5x5xf32> to vector<5xf32>
    %454 = vector.shape_cast %453 : vector<5xf32> to vector<5x1xf32>
    %455 = vector.broadcast %454 : vector<5x1xf32> to vector<5x5xf32>
    %456 = arith.subf %452, %455 : vector<5x5xf32>
    %457 = math.exp %456 : vector<5x5xf32>
    %cst_208 = arith.constant dense<0.000000e+00> : vector<5xf32>
    %458 = vector.multi_reduction <add>, %457, %cst_208 [1] : vector<5x5xf32> to vector<5xf32>
    %459 = vector.shape_cast %458 : vector<5xf32> to vector<5x1xf32>
    %460 = tpu.reciprocal %459 : vector<5x1xf32> -> vector<5x1xf32>
    %461 = vector.broadcast %460 : vector<5x1xf32> to vector<5x5xf32>
    %462 = arith.mulf %457, %461 : vector<5x5xf32>
    %463 = vector.extract_strided_slice %394 {offsets = [0, 24], sizes = [5, 12], strides = [1, 1]} : vector<5x48xf32> to vector<5x12xf32>
    %cst_209 = arith.constant dense<0.000000e+00> : vector<5x12xf32>
    %464 = tpu.matmul %462, %463, %cst_209 {dimension_numbers = #tpu.dot_dimension_numbers<[1], [0], [0], [1], [0, 0, 1, 1], [], []>} : vector<5x5xf32>, vector<5x12xf32>, vector<5x12xf32> -> vector<5x12xf32>
    %465 = vector.extract_strided_slice %392 {offsets = [0, 36], sizes = [5, 12], strides = [1, 1]} : vector<5x48xf32> to vector<5x12xf32>
    %466 = vector.extract_strided_slice %393 {offsets = [0, 36], sizes = [5, 12], strides = [1, 1]} : vector<5x48xf32> to vector<5x12xf32>
    %cst_210 = arith.constant dense<0.000000e+00> : vector<5x5xf32>
    %467 = tpu.matmul %465, %466, %cst_210 {dimension_numbers = #tpu.dot_dimension_numbers<[1], [1], [0], [0], [0, 0, 1, 0], [], []>} : vector<5x12xf32>, vector<5x12xf32>, vector<5x5xf32> -> vector<5x5xf32>
    %cst_211 = arith.constant 0.288675129 : f32
    %468 = vector.broadcast %cst_211 : f32 to vector<5x5xf32>
    %469 = arith.mulf %467, %468 : vector<5x5xf32>
    %470 = tpu.iota {dimensions = array<i32: 0>} : vector<5x5xi32>
    %471 = tpu.iota {dimensions = array<i32: 1>} : vector<5x5xi32>
    %472 = arith.cmpi sle, %471, %470 : vector<5x5xi32>
    %cst_212 = arith.constant 0xFF800000 : f32
    %473 = vector.broadcast %cst_212 : f32 to vector<5x5xf32>
    %474 = arith.select %472, %469, %473 : vector<5x5xi1>, vector<5x5xf32>
    %cst_213 = arith.constant dense<0xFF800000> : vector<5xf32>
    %475 = vector.multi_reduction <maximumf>, %474, %cst_213 [1] : vector<5x5xf32> to vector<5xf32>
    %476 = vector.shape_cast %475 : vector<5xf32> to vector<5x1xf32>
    %477 = vector.broadcast %476 : vector<5x1xf32> to vector<5x5xf32>
    %478 = arith.subf %474, %477 : vector<5x5xf32>
    %479 = math.exp %478 : vector<5x5xf32>
    %cst_214 = arith.constant dense<0.000000e+00> : vector<5xf32>
    %480 = vector.multi_reduction <add>, %479, %cst_214 [1] : vector<5x5xf32> to vector<5xf32>
    %481 = vector.shape_cast %480 : vector<5xf32> to vector<5x1xf32>
    %482 = tpu.reciprocal %481 : vector<5x1xf32> -> vector<5x1xf32>
    %483 = vector.broadcast %482 : vector<5x1xf32> to vector<5x5xf32>
    %484 = arith.mulf %479, %483 : vector<5x5xf32>
    %485 = vector.extract_strided_slice %394 {offsets = [0, 36], sizes = [5, 12], strides = [1, 1]} : vector<5x48xf32> to vector<5x12xf32>
    %cst_215 = arith.constant dense<0.000000e+00> : vector<5x12xf32>
    %486 = tpu.matmul %484, %485, %cst_215 {dimension_numbers = #tpu.dot_dimension_numbers<[1], [0], [0], [1], [0, 0, 1, 1], [], []>} : vector<5x5xf32>, vector<5x12xf32>, vector<5x12xf32> -> vector<5x12xf32>
    %487 = tpu.concatenate %420, %442, %464, %486 in 1 : vector<5x12xf32>, vector<5x12xf32>, vector<5x12xf32>, vector<5x12xf32> -> vector<5x48xf32>
    %cst_216 = arith.constant dense<0.000000e+00> : vector<5x48xf32>
    %488 = tpu.matmul %487, %396, %cst_216 {dimension_numbers = #tpu.dot_dimension_numbers<[1], [0], [0], [1], [0, 0, 1, 1], [], []>} : vector<5x48xf32>, vector<48x48xf32>, vector<5x48xf32> -> vector<5x48xf32>
    %489 = vector.broadcast %398 : vector<1x48xf32> to vector<5x48xf32>
    %490 = arith.addf %488, %489 : vector<5x48xf32>
    %491 = arith.addf %384, %490 : vector<5x48xf32>
    %c0_217 = arith.constant 0 : index
    %c0_218 = arith.constant 0 : index
    %c0_219 = arith.constant 0 : index
    %492 = vector.load %arg35[%c0_217, %c0_218, %c0_219] : memref<2x1x48xf32, #tpu.memory_space<vmem>>, vector<1x1x48xf32>
    %493 = vector.shape_cast %492 : vector<1x1x48xf32> to vector<1x48xf32>
    %c0_220 = arith.constant 0 : index
    %c0_221 = arith.constant 0 : index
    %c0_222 = arith.constant 0 : index
    %494 = vector.load %arg36[%c0_220, %c0_221, %c0_222] : memref<2x1x48xf32, #tpu.memory_space<vmem>>, vector<1x1x48xf32>
    %495 = vector.shape_cast %494 : vector<1x1x48xf32> to vector<1x48xf32>
    %cst_223 = arith.constant dense<0.000000e+00> : vector<5xf32>
    %496 = vector.multi_reduction <add>, %491, %cst_223 [1] : vector<5x48xf32> to vector<5xf32>
    %497 = vector.shape_cast %496 : vector<5xf32> to vector<5x1xf32>
    %cst_224 = arith.constant 4.800000e+01 : f32
    %498 = vector.broadcast %cst_224 : f32 to vector<5x1xf32>
    %499 = arith.divf %497, %498 : vector<5x1xf32>
    %500 = vector.broadcast %499 : vector<5x1xf32> to vector<5x48xf32>
    %501 = arith.subf %491, %500 : vector<5x48xf32>
    %502 = arith.mulf %501, %501 : vector<5x48xf32>
    %cst_225 = arith.constant dense<0.000000e+00> : vector<5xf32>
    %503 = vector.multi_reduction <add>, %502, %cst_225 [1] : vector<5x48xf32> to vector<5xf32>
    %504 = vector.shape_cast %503 : vector<5xf32> to vector<5x1xf32>
    %cst_226 = arith.constant 4.800000e+01 : f32
    %505 = vector.broadcast %cst_226 : f32 to vector<5x1xf32>
    %506 = arith.divf %504, %505 : vector<5x1xf32>
    %507 = vector.broadcast %499 : vector<5x1xf32> to vector<5x48xf32>
    %508 = arith.subf %491, %507 : vector<5x48xf32>
    %cst_227 = arith.constant 9.99999974E-6 : f32
    %509 = vector.broadcast %cst_227 : f32 to vector<5x1xf32>
    %510 = arith.addf %506, %509 : vector<5x1xf32>
    %511 = math.rsqrt %510 : vector<5x1xf32>
    %512 = vector.broadcast %511 : vector<5x1xf32> to vector<5x48xf32>
    %513 = arith.mulf %508, %512 : vector<5x48xf32>
    %514 = vector.broadcast %493 : vector<1x48xf32> to vector<5x48xf32>
    %515 = arith.mulf %513, %514 : vector<5x48xf32>
    %516 = vector.broadcast %495 : vector<1x48xf32> to vector<5x48xf32>
    %517 = arith.addf %515, %516 : vector<5x48xf32>
    %c0_228 = arith.constant 0 : index
    %c0_229 = arith.constant 0 : index
    %c0_230 = arith.constant 0 : index
    %518 = vector.load %arg29[%c0_228, %c0_229, %c0_230] : memref<2x48x48xf32, #tpu.memory_space<vmem>>, vector<1x48x48xf32>
    %519 = vector.shape_cast %518 : vector<1x48x48xf32> to vector<48x48xf32>
    %cst_231 = arith.constant dense<0.000000e+00> : vector<5x48xf32>
    %520 = tpu.matmul %517, %519, %cst_231 {dimension_numbers = #tpu.dot_dimension_numbers<[1], [0], [0], [1], [0, 0, 1, 1], [], []>} : vector<5x48xf32>, vector<48x48xf32>, vector<5x48xf32> -> vector<5x48xf32>
    %c0_232 = arith.constant 0 : index
    %c0_233 = arith.constant 0 : index
    %c0_234 = arith.constant 0 : index
    %521 = vector.load %arg30[%c0_232, %c0_233, %c0_234] : memref<2x1x48xf32, #tpu.memory_space<vmem>>, vector<1x1x48xf32>
    %522 = vector.shape_cast %521 : vector<1x1x48xf32> to vector<1x48xf32>
    %523 = vector.broadcast %522 : vector<1x48xf32> to vector<5x48xf32>
    %524 = arith.addf %520, %523 : vector<5x48xf32>
    %c0_235 = arith.constant 0 : index
    %c0_236 = arith.constant 0 : index
    %c0_237 = arith.constant 0 : index
    %525 = vector.load %arg31[%c0_235, %c0_236, %c0_237] : memref<2x48x96xf32, #tpu.memory_space<vmem>>, vector<1x48x96xf32>
    %526 = vector.shape_cast %525 : vector<1x48x96xf32> to vector<48x96xf32>
    %cst_238 = arith.constant dense<0.000000e+00> : vector<16x96xf32>
    %527 = tpu.matmul %368, %526, %cst_238 {dimension_numbers = #tpu.dot_dimension_numbers<[1], [0], [0], [1], [0, 0, 1, 1], [], []>} : vector<16x48xf32>, vector<48x96xf32>, vector<16x96xf32> -> vector<16x96xf32>
    %c0_239 = arith.constant 0 : index
    %c0_240 = arith.constant 0 : index
    %c0_241 = arith.constant 0 : index
    %528 = vector.load %arg32[%c0_239, %c0_240, %c0_241] : memref<2x1x96xf32, #tpu.memory_space<vmem>>, vector<1x1x96xf32>
    %529 = vector.shape_cast %528 : vector<1x1x96xf32> to vector<1x96xf32>
    %530 = vector.broadcast %529 : vector<1x96xf32> to vector<16x96xf32>
    %531 = arith.addf %527, %530 : vector<16x96xf32>
    %532 = vector.extract_strided_slice %531 {offsets = [0, 0], sizes = [16, 48], strides = [1, 1]} : vector<16x96xf32> to vector<16x48xf32>
    %533 = vector.extract_strided_slice %531 {offsets = [0, 48], sizes = [16, 48], strides = [1, 1]} : vector<16x96xf32> to vector<16x48xf32>
    %c0_242 = arith.constant 0 : index
    %c0_243 = arith.constant 0 : index
    %c0_244 = arith.constant 0 : index
    %534 = vector.load %arg33[%c0_242, %c0_243, %c0_244] : memref<2x48x48xf32, #tpu.memory_space<vmem>>, vector<1x48x48xf32>
    %535 = vector.shape_cast %534 : vector<1x48x48xf32> to vector<48x48xf32>
    %c0_245 = arith.constant 0 : index
    %c0_246 = arith.constant 0 : index
    %c0_247 = arith.constant 0 : index
    %536 = vector.load %arg34[%c0_245, %c0_246, %c0_247] : memref<2x1x48xf32, #tpu.memory_space<vmem>>, vector<1x1x48xf32>
    %537 = vector.shape_cast %536 : vector<1x1x48xf32> to vector<1x48xf32>
    %538 = vector.extract_strided_slice %524 {offsets = [0, 0], sizes = [5, 12], strides = [1, 1]} : vector<5x48xf32> to vector<5x12xf32>
    %539 = vector.extract_strided_slice %532 {offsets = [0, 0], sizes = [16, 12], strides = [1, 1]} : vector<16x48xf32> to vector<16x12xf32>
    %cst_248 = arith.constant dense<0.000000e+00> : vector<5x16xf32>
    %540 = tpu.matmul %538, %539, %cst_248 {dimension_numbers = #tpu.dot_dimension_numbers<[1], [1], [0], [0], [0, 0, 1, 0], [], []>} : vector<5x12xf32>, vector<16x12xf32>, vector<5x16xf32> -> vector<5x16xf32>
    %cst_249 = arith.constant 0.288675129 : f32
    %541 = vector.broadcast %cst_249 : f32 to vector<5x16xf32>
    %542 = arith.mulf %540, %541 : vector<5x16xf32>
    %cst_250 = arith.constant dense<0xFF800000> : vector<5xf32>
    %543 = vector.multi_reduction <maximumf>, %542, %cst_250 [1] : vector<5x16xf32> to vector<5xf32>
    %544 = vector.shape_cast %543 : vector<5xf32> to vector<5x1xf32>
    %545 = vector.broadcast %544 : vector<5x1xf32> to vector<5x16xf32>
    %546 = arith.subf %542, %545 : vector<5x16xf32>
    %547 = math.exp %546 : vector<5x16xf32>
    %cst_251 = arith.constant dense<0.000000e+00> : vector<5xf32>
    %548 = vector.multi_reduction <add>, %547, %cst_251 [1] : vector<5x16xf32> to vector<5xf32>
    %549 = vector.shape_cast %548 : vector<5xf32> to vector<5x1xf32>
    %550 = tpu.reciprocal %549 : vector<5x1xf32> -> vector<5x1xf32>
    %551 = vector.broadcast %550 : vector<5x1xf32> to vector<5x16xf32>
    %552 = arith.mulf %547, %551 : vector<5x16xf32>
    %553 = vector.extract_strided_slice %533 {offsets = [0, 0], sizes = [16, 12], strides = [1, 1]} : vector<16x48xf32> to vector<16x12xf32>
    %cst_252 = arith.constant dense<0.000000e+00> : vector<5x12xf32>
    %554 = tpu.matmul %552, %553, %cst_252 {dimension_numbers = #tpu.dot_dimension_numbers<[1], [0], [0], [1], [0, 0, 1, 1], [], []>} : vector<5x16xf32>, vector<16x12xf32>, vector<5x12xf32> -> vector<5x12xf32>
    %555 = vector.extract_strided_slice %524 {offsets = [0, 12], sizes = [5, 12], strides = [1, 1]} : vector<5x48xf32> to vector<5x12xf32>
    %556 = vector.extract_strided_slice %532 {offsets = [0, 12], sizes = [16, 12], strides = [1, 1]} : vector<16x48xf32> to vector<16x12xf32>
    %cst_253 = arith.constant dense<0.000000e+00> : vector<5x16xf32>
    %557 = tpu.matmul %555, %556, %cst_253 {dimension_numbers = #tpu.dot_dimension_numbers<[1], [1], [0], [0], [0, 0, 1, 0], [], []>} : vector<5x12xf32>, vector<16x12xf32>, vector<5x16xf32> -> vector<5x16xf32>
    %cst_254 = arith.constant 0.288675129 : f32
    %558 = vector.broadcast %cst_254 : f32 to vector<5x16xf32>
    %559 = arith.mulf %557, %558 : vector<5x16xf32>
    %cst_255 = arith.constant dense<0xFF800000> : vector<5xf32>
    %560 = vector.multi_reduction <maximumf>, %559, %cst_255 [1] : vector<5x16xf32> to vector<5xf32>
    %561 = vector.shape_cast %560 : vector<5xf32> to vector<5x1xf32>
    %562 = vector.broadcast %561 : vector<5x1xf32> to vector<5x16xf32>
    %563 = arith.subf %559, %562 : vector<5x16xf32>
    %564 = math.exp %563 : vector<5x16xf32>
    %cst_256 = arith.constant dense<0.000000e+00> : vector<5xf32>
    %565 = vector.multi_reduction <add>, %564, %cst_256 [1] : vector<5x16xf32> to vector<5xf32>
    %566 = vector.shape_cast %565 : vector<5xf32> to vector<5x1xf32>
    %567 = tpu.reciprocal %566 : vector<5x1xf32> -> vector<5x1xf32>
    %568 = vector.broadcast %567 : vector<5x1xf32> to vector<5x16xf32>
    %569 = arith.mulf %564, %568 : vector<5x16xf32>
    %570 = vector.extract_strided_slice %533 {offsets = [0, 12], sizes = [16, 12], strides = [1, 1]} : vector<16x48xf32> to vector<16x12xf32>
    %cst_257 = arith.constant dense<0.000000e+00> : vector<5x12xf32>
    %571 = tpu.matmul %569, %570, %cst_257 {dimension_numbers = #tpu.dot_dimension_numbers<[1], [0], [0], [1], [0, 0, 1, 1], [], []>} : vector<5x16xf32>, vector<16x12xf32>, vector<5x12xf32> -> vector<5x12xf32>
    %572 = vector.extract_strided_slice %524 {offsets = [0, 24], sizes = [5, 12], strides = [1, 1]} : vector<5x48xf32> to vector<5x12xf32>
    %573 = vector.extract_strided_slice %532 {offsets = [0, 24], sizes = [16, 12], strides = [1, 1]} : vector<16x48xf32> to vector<16x12xf32>
    %cst_258 = arith.constant dense<0.000000e+00> : vector<5x16xf32>
    %574 = tpu.matmul %572, %573, %cst_258 {dimension_numbers = #tpu.dot_dimension_numbers<[1], [1], [0], [0], [0, 0, 1, 0], [], []>} : vector<5x12xf32>, vector<16x12xf32>, vector<5x16xf32> -> vector<5x16xf32>
    %cst_259 = arith.constant 0.288675129 : f32
    %575 = vector.broadcast %cst_259 : f32 to vector<5x16xf32>
    %576 = arith.mulf %574, %575 : vector<5x16xf32>
    %cst_260 = arith.constant dense<0xFF800000> : vector<5xf32>
    %577 = vector.multi_reduction <maximumf>, %576, %cst_260 [1] : vector<5x16xf32> to vector<5xf32>
    %578 = vector.shape_cast %577 : vector<5xf32> to vector<5x1xf32>
    %579 = vector.broadcast %578 : vector<5x1xf32> to vector<5x16xf32>
    %580 = arith.subf %576, %579 : vector<5x16xf32>
    %581 = math.exp %580 : vector<5x16xf32>
    %cst_261 = arith.constant dense<0.000000e+00> : vector<5xf32>
    %582 = vector.multi_reduction <add>, %581, %cst_261 [1] : vector<5x16xf32> to vector<5xf32>
    %583 = vector.shape_cast %582 : vector<5xf32> to vector<5x1xf32>
    %584 = tpu.reciprocal %583 : vector<5x1xf32> -> vector<5x1xf32>
    %585 = vector.broadcast %584 : vector<5x1xf32> to vector<5x16xf32>
    %586 = arith.mulf %581, %585 : vector<5x16xf32>
    %587 = vector.extract_strided_slice %533 {offsets = [0, 24], sizes = [16, 12], strides = [1, 1]} : vector<16x48xf32> to vector<16x12xf32>
    %cst_262 = arith.constant dense<0.000000e+00> : vector<5x12xf32>
    %588 = tpu.matmul %586, %587, %cst_262 {dimension_numbers = #tpu.dot_dimension_numbers<[1], [0], [0], [1], [0, 0, 1, 1], [], []>} : vector<5x16xf32>, vector<16x12xf32>, vector<5x12xf32> -> vector<5x12xf32>
    %589 = vector.extract_strided_slice %524 {offsets = [0, 36], sizes = [5, 12], strides = [1, 1]} : vector<5x48xf32> to vector<5x12xf32>
    %590 = vector.extract_strided_slice %532 {offsets = [0, 36], sizes = [16, 12], strides = [1, 1]} : vector<16x48xf32> to vector<16x12xf32>
    %cst_263 = arith.constant dense<0.000000e+00> : vector<5x16xf32>
    %591 = tpu.matmul %589, %590, %cst_263 {dimension_numbers = #tpu.dot_dimension_numbers<[1], [1], [0], [0], [0, 0, 1, 0], [], []>} : vector<5x12xf32>, vector<16x12xf32>, vector<5x16xf32> -> vector<5x16xf32>
    %cst_264 = arith.constant 0.288675129 : f32
    %592 = vector.broadcast %cst_264 : f32 to vector<5x16xf32>
    %593 = arith.mulf %591, %592 : vector<5x16xf32>
    %cst_265 = arith.constant dense<0xFF800000> : vector<5xf32>
    %594 = vector.multi_reduction <maximumf>, %593, %cst_265 [1] : vector<5x16xf32> to vector<5xf32>
    %595 = vector.shape_cast %594 : vector<5xf32> to vector<5x1xf32>
    %596 = vector.broadcast %595 : vector<5x1xf32> to vector<5x16xf32>
    %597 = arith.subf %593, %596 : vector<5x16xf32>
    %598 = math.exp %597 : vector<5x16xf32>
    %cst_266 = arith.constant dense<0.000000e+00> : vector<5xf32>
    %599 = vector.multi_reduction <add>, %598, %cst_266 [1] : vector<5x16xf32> to vector<5xf32>
    %600 = vector.shape_cast %599 : vector<5xf32> to vector<5x1xf32>
    %601 = tpu.reciprocal %600 : vector<5x1xf32> -> vector<5x1xf32>
    %602 = vector.broadcast %601 : vector<5x1xf32> to vector<5x16xf32>
    %603 = arith.mulf %598, %602 : vector<5x16xf32>
    %604 = vector.extract_strided_slice %533 {offsets = [0, 36], sizes = [16, 12], strides = [1, 1]} : vector<16x48xf32> to vector<16x12xf32>
    %cst_267 = arith.constant dense<0.000000e+00> : vector<5x12xf32>
    %605 = tpu.matmul %603, %604, %cst_267 {dimension_numbers = #tpu.dot_dimension_numbers<[1], [0], [0], [1], [0, 0, 1, 1], [], []>} : vector<5x16xf32>, vector<16x12xf32>, vector<5x12xf32> -> vector<5x12xf32>
    %606 = tpu.concatenate %554, %571, %588, %605 in 1 : vector<5x12xf32>, vector<5x12xf32>, vector<5x12xf32>, vector<5x12xf32> -> vector<5x48xf32>
    %cst_268 = arith.constant dense<0.000000e+00> : vector<5x48xf32>
    %607 = tpu.matmul %606, %535, %cst_268 {dimension_numbers = #tpu.dot_dimension_numbers<[1], [0], [0], [1], [0, 0, 1, 1], [], []>} : vector<5x48xf32>, vector<48x48xf32>, vector<5x48xf32> -> vector<5x48xf32>
    %608 = vector.broadcast %537 : vector<1x48xf32> to vector<5x48xf32>
    %609 = arith.addf %607, %608 : vector<5x48xf32>
    %610 = arith.addf %517, %609 : vector<5x48xf32>
    %c0_269 = arith.constant 0 : index
    %c0_270 = arith.constant 0 : index
    %c0_271 = arith.constant 0 : index
    %611 = vector.load %arg37[%c0_269, %c0_270, %c0_271] : memref<2x1x48xf32, #tpu.memory_space<vmem>>, vector<1x1x48xf32>
    %612 = vector.shape_cast %611 : vector<1x1x48xf32> to vector<1x48xf32>
    %c0_272 = arith.constant 0 : index
    %c0_273 = arith.constant 0 : index
    %c0_274 = arith.constant 0 : index
    %613 = vector.load %arg38[%c0_272, %c0_273, %c0_274] : memref<2x1x48xf32, #tpu.memory_space<vmem>>, vector<1x1x48xf32>
    %614 = vector.shape_cast %613 : vector<1x1x48xf32> to vector<1x48xf32>
    %cst_275 = arith.constant dense<0.000000e+00> : vector<5xf32>
    %615 = vector.multi_reduction <add>, %610, %cst_275 [1] : vector<5x48xf32> to vector<5xf32>
    %616 = vector.shape_cast %615 : vector<5xf32> to vector<5x1xf32>
    %cst_276 = arith.constant 4.800000e+01 : f32
    %617 = vector.broadcast %cst_276 : f32 to vector<5x1xf32>
    %618 = arith.divf %616, %617 : vector<5x1xf32>
    %619 = vector.broadcast %618 : vector<5x1xf32> to vector<5x48xf32>
    %620 = arith.subf %610, %619 : vector<5x48xf32>
    %621 = arith.mulf %620, %620 : vector<5x48xf32>
    %cst_277 = arith.constant dense<0.000000e+00> : vector<5xf32>
    %622 = vector.multi_reduction <add>, %621, %cst_277 [1] : vector<5x48xf32> to vector<5xf32>
    %623 = vector.shape_cast %622 : vector<5xf32> to vector<5x1xf32>
    %cst_278 = arith.constant 4.800000e+01 : f32
    %624 = vector.broadcast %cst_278 : f32 to vector<5x1xf32>
    %625 = arith.divf %623, %624 : vector<5x1xf32>
    %626 = vector.broadcast %618 : vector<5x1xf32> to vector<5x48xf32>
    %627 = arith.subf %610, %626 : vector<5x48xf32>
    %cst_279 = arith.constant 9.99999974E-6 : f32
    %628 = vector.broadcast %cst_279 : f32 to vector<5x1xf32>
    %629 = arith.addf %625, %628 : vector<5x1xf32>
    %630 = math.rsqrt %629 : vector<5x1xf32>
    %631 = vector.broadcast %630 : vector<5x1xf32> to vector<5x48xf32>
    %632 = arith.mulf %627, %631 : vector<5x48xf32>
    %633 = vector.broadcast %612 : vector<1x48xf32> to vector<5x48xf32>
    %634 = arith.mulf %632, %633 : vector<5x48xf32>
    %635 = vector.broadcast %614 : vector<1x48xf32> to vector<5x48xf32>
    %636 = arith.addf %634, %635 : vector<5x48xf32>
    %c0_280 = arith.constant 0 : index
    %c0_281 = arith.constant 0 : index
    %c0_282 = arith.constant 0 : index
    %637 = vector.load %arg41[%c0_280, %c0_281, %c0_282] : memref<2x48x64xf32, #tpu.memory_space<vmem>>, vector<1x48x64xf32>
    %638 = vector.shape_cast %637 : vector<1x48x64xf32> to vector<48x64xf32>
    %cst_283 = arith.constant dense<0.000000e+00> : vector<5x64xf32>
    %639 = tpu.matmul %636, %638, %cst_283 {dimension_numbers = #tpu.dot_dimension_numbers<[1], [0], [0], [1], [0, 0, 1, 1], [], []>} : vector<5x48xf32>, vector<48x64xf32>, vector<5x64xf32> -> vector<5x64xf32>
    %c0_284 = arith.constant 0 : index
    %c0_285 = arith.constant 0 : index
    %c0_286 = arith.constant 0 : index
    %640 = vector.load %arg42[%c0_284, %c0_285, %c0_286] : memref<2x1x64xf32, #tpu.memory_space<vmem>>, vector<1x1x64xf32>
    %641 = vector.shape_cast %640 : vector<1x1x64xf32> to vector<1x64xf32>
    %642 = vector.broadcast %641 : vector<1x64xf32> to vector<5x64xf32>
    %643 = arith.addf %639, %642 : vector<5x64xf32>
    %cst_287 = arith.constant 0.000000e+00 : f32
    %644 = vector.broadcast %cst_287 : f32 to vector<5x64xf32>
    %645 = arith.maximumf %643, %644 : vector<5x64xf32>
    %c0_288 = arith.constant 0 : index
    %c0_289 = arith.constant 0 : index
    %c0_290 = arith.constant 0 : index
    %646 = vector.load %arg43[%c0_288, %c0_289, %c0_290] : memref<2x64x48xf32, #tpu.memory_space<vmem>>, vector<1x64x48xf32>
    %647 = vector.shape_cast %646 : vector<1x64x48xf32> to vector<64x48xf32>
    %cst_291 = arith.constant dense<0.000000e+00> : vector<5x48xf32>
    %648 = tpu.matmul %645, %647, %cst_291 {dimension_numbers = #tpu.dot_dimension_numbers<[1], [0], [0], [1], [0, 0, 1, 1], [], []>} : vector<5x64xf32>, vector<64x48xf32>, vector<5x48xf32> -> vector<5x48xf32>
    %c0_292 = arith.constant 0 : index
    %c0_293 = arith.constant 0 : index
    %c0_294 = arith.constant 0 : index
    %649 = vector.load %arg44[%c0_292, %c0_293, %c0_294] : memref<2x1x48xf32, #tpu.memory_space<vmem>>, vector<1x1x48xf32>
    %650 = vector.shape_cast %649 : vector<1x1x48xf32> to vector<1x48xf32>
    %651 = vector.broadcast %650 : vector<1x48xf32> to vector<5x48xf32>
    %652 = arith.addf %648, %651 : vector<5x48xf32>
    %653 = arith.addf %636, %652 : vector<5x48xf32>
    %c0_295 = arith.constant 0 : index
    %c0_296 = arith.constant 0 : index
    %c0_297 = arith.constant 0 : index
    %654 = vector.load %arg39[%c0_295, %c0_296, %c0_297] : memref<2x1x48xf32, #tpu.memory_space<vmem>>, vector<1x1x48xf32>
    %655 = vector.shape_cast %654 : vector<1x1x48xf32> to vector<1x48xf32>
    %c0_298 = arith.constant 0 : index
    %c0_299 = arith.constant 0 : index
    %c0_300 = arith.constant 0 : index
    %656 = vector.load %arg40[%c0_298, %c0_299, %c0_300] : memref<2x1x48xf32, #tpu.memory_space<vmem>>, vector<1x1x48xf32>
    %657 = vector.shape_cast %656 : vector<1x1x48xf32> to vector<1x48xf32>
    %cst_301 = arith.constant dense<0.000000e+00> : vector<5xf32>
    %658 = vector.multi_reduction <add>, %653, %cst_301 [1] : vector<5x48xf32> to vector<5xf32>
    %659 = vector.shape_cast %658 : vector<5xf32> to vector<5x1xf32>
    %cst_302 = arith.constant 4.800000e+01 : f32
    %660 = vector.broadcast %cst_302 : f32 to vector<5x1xf32>
    %661 = arith.divf %659, %660 : vector<5x1xf32>
    %662 = vector.broadcast %661 : vector<5x1xf32> to vector<5x48xf32>
    %663 = arith.subf %653, %662 : vector<5x48xf32>
    %664 = arith.mulf %663, %663 : vector<5x48xf32>
    %cst_303 = arith.constant dense<0.000000e+00> : vector<5xf32>
    %665 = vector.multi_reduction <add>, %664, %cst_303 [1] : vector<5x48xf32> to vector<5xf32>
    %666 = vector.shape_cast %665 : vector<5xf32> to vector<5x1xf32>
    %cst_304 = arith.constant 4.800000e+01 : f32
    %667 = vector.broadcast %cst_304 : f32 to vector<5x1xf32>
    %668 = arith.divf %666, %667 : vector<5x1xf32>
    %669 = vector.broadcast %661 : vector<5x1xf32> to vector<5x48xf32>
    %670 = arith.subf %653, %669 : vector<5x48xf32>
    %cst_305 = arith.constant 9.99999974E-6 : f32
    %671 = vector.broadcast %cst_305 : f32 to vector<5x1xf32>
    %672 = arith.addf %668, %671 : vector<5x1xf32>
    %673 = math.rsqrt %672 : vector<5x1xf32>
    %674 = vector.broadcast %673 : vector<5x1xf32> to vector<5x48xf32>
    %675 = arith.mulf %670, %674 : vector<5x48xf32>
    %676 = vector.broadcast %655 : vector<1x48xf32> to vector<5x48xf32>
    %677 = arith.mulf %675, %676 : vector<5x48xf32>
    %678 = vector.broadcast %657 : vector<1x48xf32> to vector<5x48xf32>
    %679 = arith.addf %677, %678 : vector<5x48xf32>
    %c1_306 = arith.constant 1 : index
    %c0_307 = arith.constant 0 : index
    %c0_308 = arith.constant 0 : index
    %680 = vector.load %arg25[%c1_306, %c0_307, %c0_308] : memref<2x48x144xf32, #tpu.memory_space<vmem>>, vector<1x48x144xf32>
    %681 = vector.shape_cast %680 : vector<1x48x144xf32> to vector<48x144xf32>
    %cst_309 = arith.constant dense<0.000000e+00> : vector<5x144xf32>
    %682 = tpu.matmul %679, %681, %cst_309 {dimension_numbers = #tpu.dot_dimension_numbers<[1], [0], [0], [1], [0, 0, 1, 1], [], []>} : vector<5x48xf32>, vector<48x144xf32>, vector<5x144xf32> -> vector<5x144xf32>
    %c1_310 = arith.constant 1 : index
    %c0_311 = arith.constant 0 : index
    %c0_312 = arith.constant 0 : index
    %683 = vector.load %arg26[%c1_310, %c0_311, %c0_312] : memref<2x1x144xf32, #tpu.memory_space<vmem>>, vector<1x1x144xf32>
    %684 = vector.shape_cast %683 : vector<1x1x144xf32> to vector<1x144xf32>
    %685 = vector.broadcast %684 : vector<1x144xf32> to vector<5x144xf32>
    %686 = arith.addf %682, %685 : vector<5x144xf32>
    %687 = vector.extract_strided_slice %686 {offsets = [0, 0], sizes = [5, 48], strides = [1, 1]} : vector<5x144xf32> to vector<5x48xf32>
    %688 = vector.extract_strided_slice %686 {offsets = [0, 48], sizes = [5, 48], strides = [1, 1]} : vector<5x144xf32> to vector<5x48xf32>
    %689 = vector.extract_strided_slice %686 {offsets = [0, 96], sizes = [5, 48], strides = [1, 1]} : vector<5x144xf32> to vector<5x48xf32>
    %c1_313 = arith.constant 1 : index
    %c0_314 = arith.constant 0 : index
    %c0_315 = arith.constant 0 : index
    %690 = vector.load %arg27[%c1_313, %c0_314, %c0_315] : memref<2x48x48xf32, #tpu.memory_space<vmem>>, vector<1x48x48xf32>
    %691 = vector.shape_cast %690 : vector<1x48x48xf32> to vector<48x48xf32>
    %c1_316 = arith.constant 1 : index
    %c0_317 = arith.constant 0 : index
    %c0_318 = arith.constant 0 : index
    %692 = vector.load %arg28[%c1_316, %c0_317, %c0_318] : memref<2x1x48xf32, #tpu.memory_space<vmem>>, vector<1x1x48xf32>
    %693 = vector.shape_cast %692 : vector<1x1x48xf32> to vector<1x48xf32>
    %694 = vector.extract_strided_slice %687 {offsets = [0, 0], sizes = [5, 12], strides = [1, 1]} : vector<5x48xf32> to vector<5x12xf32>
    %695 = vector.extract_strided_slice %688 {offsets = [0, 0], sizes = [5, 12], strides = [1, 1]} : vector<5x48xf32> to vector<5x12xf32>
    %cst_319 = arith.constant dense<0.000000e+00> : vector<5x5xf32>
    %696 = tpu.matmul %694, %695, %cst_319 {dimension_numbers = #tpu.dot_dimension_numbers<[1], [1], [0], [0], [0, 0, 1, 0], [], []>} : vector<5x12xf32>, vector<5x12xf32>, vector<5x5xf32> -> vector<5x5xf32>
    %cst_320 = arith.constant 0.288675129 : f32
    %697 = vector.broadcast %cst_320 : f32 to vector<5x5xf32>
    %698 = arith.mulf %696, %697 : vector<5x5xf32>
    %699 = tpu.iota {dimensions = array<i32: 0>} : vector<5x5xi32>
    %700 = tpu.iota {dimensions = array<i32: 1>} : vector<5x5xi32>
    %701 = arith.cmpi sle, %700, %699 : vector<5x5xi32>
    %cst_321 = arith.constant 0xFF800000 : f32
    %702 = vector.broadcast %cst_321 : f32 to vector<5x5xf32>
    %703 = arith.select %701, %698, %702 : vector<5x5xi1>, vector<5x5xf32>
    %cst_322 = arith.constant dense<0xFF800000> : vector<5xf32>
    %704 = vector.multi_reduction <maximumf>, %703, %cst_322 [1] : vector<5x5xf32> to vector<5xf32>
    %705 = vector.shape_cast %704 : vector<5xf32> to vector<5x1xf32>
    %706 = vector.broadcast %705 : vector<5x1xf32> to vector<5x5xf32>
    %707 = arith.subf %703, %706 : vector<5x5xf32>
    %708 = math.exp %707 : vector<5x5xf32>
    %cst_323 = arith.constant dense<0.000000e+00> : vector<5xf32>
    %709 = vector.multi_reduction <add>, %708, %cst_323 [1] : vector<5x5xf32> to vector<5xf32>
    %710 = vector.shape_cast %709 : vector<5xf32> to vector<5x1xf32>
    %711 = tpu.reciprocal %710 : vector<5x1xf32> -> vector<5x1xf32>
    %712 = vector.broadcast %711 : vector<5x1xf32> to vector<5x5xf32>
    %713 = arith.mulf %708, %712 : vector<5x5xf32>
    %714 = vector.extract_strided_slice %689 {offsets = [0, 0], sizes = [5, 12], strides = [1, 1]} : vector<5x48xf32> to vector<5x12xf32>
    %cst_324 = arith.constant dense<0.000000e+00> : vector<5x12xf32>
    %715 = tpu.matmul %713, %714, %cst_324 {dimension_numbers = #tpu.dot_dimension_numbers<[1], [0], [0], [1], [0, 0, 1, 1], [], []>} : vector<5x5xf32>, vector<5x12xf32>, vector<5x12xf32> -> vector<5x12xf32>
    %716 = vector.extract_strided_slice %687 {offsets = [0, 12], sizes = [5, 12], strides = [1, 1]} : vector<5x48xf32> to vector<5x12xf32>
    %717 = vector.extract_strided_slice %688 {offsets = [0, 12], sizes = [5, 12], strides = [1, 1]} : vector<5x48xf32> to vector<5x12xf32>
    %cst_325 = arith.constant dense<0.000000e+00> : vector<5x5xf32>
    %718 = tpu.matmul %716, %717, %cst_325 {dimension_numbers = #tpu.dot_dimension_numbers<[1], [1], [0], [0], [0, 0, 1, 0], [], []>} : vector<5x12xf32>, vector<5x12xf32>, vector<5x5xf32> -> vector<5x5xf32>
    %cst_326 = arith.constant 0.288675129 : f32
    %719 = vector.broadcast %cst_326 : f32 to vector<5x5xf32>
    %720 = arith.mulf %718, %719 : vector<5x5xf32>
    %721 = tpu.iota {dimensions = array<i32: 0>} : vector<5x5xi32>
    %722 = tpu.iota {dimensions = array<i32: 1>} : vector<5x5xi32>
    %723 = arith.cmpi sle, %722, %721 : vector<5x5xi32>
    %cst_327 = arith.constant 0xFF800000 : f32
    %724 = vector.broadcast %cst_327 : f32 to vector<5x5xf32>
    %725 = arith.select %723, %720, %724 : vector<5x5xi1>, vector<5x5xf32>
    %cst_328 = arith.constant dense<0xFF800000> : vector<5xf32>
    %726 = vector.multi_reduction <maximumf>, %725, %cst_328 [1] : vector<5x5xf32> to vector<5xf32>
    %727 = vector.shape_cast %726 : vector<5xf32> to vector<5x1xf32>
    %728 = vector.broadcast %727 : vector<5x1xf32> to vector<5x5xf32>
    %729 = arith.subf %725, %728 : vector<5x5xf32>
    %730 = math.exp %729 : vector<5x5xf32>
    %cst_329 = arith.constant dense<0.000000e+00> : vector<5xf32>
    %731 = vector.multi_reduction <add>, %730, %cst_329 [1] : vector<5x5xf32> to vector<5xf32>
    %732 = vector.shape_cast %731 : vector<5xf32> to vector<5x1xf32>
    %733 = tpu.reciprocal %732 : vector<5x1xf32> -> vector<5x1xf32>
    %734 = vector.broadcast %733 : vector<5x1xf32> to vector<5x5xf32>
    %735 = arith.mulf %730, %734 : vector<5x5xf32>
    %736 = vector.extract_strided_slice %689 {offsets = [0, 12], sizes = [5, 12], strides = [1, 1]} : vector<5x48xf32> to vector<5x12xf32>
    %cst_330 = arith.constant dense<0.000000e+00> : vector<5x12xf32>
    %737 = tpu.matmul %735, %736, %cst_330 {dimension_numbers = #tpu.dot_dimension_numbers<[1], [0], [0], [1], [0, 0, 1, 1], [], []>} : vector<5x5xf32>, vector<5x12xf32>, vector<5x12xf32> -> vector<5x12xf32>
    %738 = vector.extract_strided_slice %687 {offsets = [0, 24], sizes = [5, 12], strides = [1, 1]} : vector<5x48xf32> to vector<5x12xf32>
    %739 = vector.extract_strided_slice %688 {offsets = [0, 24], sizes = [5, 12], strides = [1, 1]} : vector<5x48xf32> to vector<5x12xf32>
    %cst_331 = arith.constant dense<0.000000e+00> : vector<5x5xf32>
    %740 = tpu.matmul %738, %739, %cst_331 {dimension_numbers = #tpu.dot_dimension_numbers<[1], [1], [0], [0], [0, 0, 1, 0], [], []>} : vector<5x12xf32>, vector<5x12xf32>, vector<5x5xf32> -> vector<5x5xf32>
    %cst_332 = arith.constant 0.288675129 : f32
    %741 = vector.broadcast %cst_332 : f32 to vector<5x5xf32>
    %742 = arith.mulf %740, %741 : vector<5x5xf32>
    %743 = tpu.iota {dimensions = array<i32: 0>} : vector<5x5xi32>
    %744 = tpu.iota {dimensions = array<i32: 1>} : vector<5x5xi32>
    %745 = arith.cmpi sle, %744, %743 : vector<5x5xi32>
    %cst_333 = arith.constant 0xFF800000 : f32
    %746 = vector.broadcast %cst_333 : f32 to vector<5x5xf32>
    %747 = arith.select %745, %742, %746 : vector<5x5xi1>, vector<5x5xf32>
    %cst_334 = arith.constant dense<0xFF800000> : vector<5xf32>
    %748 = vector.multi_reduction <maximumf>, %747, %cst_334 [1] : vector<5x5xf32> to vector<5xf32>
    %749 = vector.shape_cast %748 : vector<5xf32> to vector<5x1xf32>
    %750 = vector.broadcast %749 : vector<5x1xf32> to vector<5x5xf32>
    %751 = arith.subf %747, %750 : vector<5x5xf32>
    %752 = math.exp %751 : vector<5x5xf32>
    %cst_335 = arith.constant dense<0.000000e+00> : vector<5xf32>
    %753 = vector.multi_reduction <add>, %752, %cst_335 [1] : vector<5x5xf32> to vector<5xf32>
    %754 = vector.shape_cast %753 : vector<5xf32> to vector<5x1xf32>
    %755 = tpu.reciprocal %754 : vector<5x1xf32> -> vector<5x1xf32>
    %756 = vector.broadcast %755 : vector<5x1xf32> to vector<5x5xf32>
    %757 = arith.mulf %752, %756 : vector<5x5xf32>
    %758 = vector.extract_strided_slice %689 {offsets = [0, 24], sizes = [5, 12], strides = [1, 1]} : vector<5x48xf32> to vector<5x12xf32>
    %cst_336 = arith.constant dense<0.000000e+00> : vector<5x12xf32>
    %759 = tpu.matmul %757, %758, %cst_336 {dimension_numbers = #tpu.dot_dimension_numbers<[1], [0], [0], [1], [0, 0, 1, 1], [], []>} : vector<5x5xf32>, vector<5x12xf32>, vector<5x12xf32> -> vector<5x12xf32>
    %760 = vector.extract_strided_slice %687 {offsets = [0, 36], sizes = [5, 12], strides = [1, 1]} : vector<5x48xf32> to vector<5x12xf32>
    %761 = vector.extract_strided_slice %688 {offsets = [0, 36], sizes = [5, 12], strides = [1, 1]} : vector<5x48xf32> to vector<5x12xf32>
    %cst_337 = arith.constant dense<0.000000e+00> : vector<5x5xf32>
    %762 = tpu.matmul %760, %761, %cst_337 {dimension_numbers = #tpu.dot_dimension_numbers<[1], [1], [0], [0], [0, 0, 1, 0], [], []>} : vector<5x12xf32>, vector<5x12xf32>, vector<5x5xf32> -> vector<5x5xf32>
    %cst_338 = arith.constant 0.288675129 : f32
    %763 = vector.broadcast %cst_338 : f32 to vector<5x5xf32>
    %764 = arith.mulf %762, %763 : vector<5x5xf32>
    %765 = tpu.iota {dimensions = array<i32: 0>} : vector<5x5xi32>
    %766 = tpu.iota {dimensions = array<i32: 1>} : vector<5x5xi32>
    %767 = arith.cmpi sle, %766, %765 : vector<5x5xi32>
    %cst_339 = arith.constant 0xFF800000 : f32
    %768 = vector.broadcast %cst_339 : f32 to vector<5x5xf32>
    %769 = arith.select %767, %764, %768 : vector<5x5xi1>, vector<5x5xf32>
    %cst_340 = arith.constant dense<0xFF800000> : vector<5xf32>
    %770 = vector.multi_reduction <maximumf>, %769, %cst_340 [1] : vector<5x5xf32> to vector<5xf32>
    %771 = vector.shape_cast %770 : vector<5xf32> to vector<5x1xf32>
    %772 = vector.broadcast %771 : vector<5x1xf32> to vector<5x5xf32>
    %773 = arith.subf %769, %772 : vector<5x5xf32>
    %774 = math.exp %773 : vector<5x5xf32>
    %cst_341 = arith.constant dense<0.000000e+00> : vector<5xf32>
    %775 = vector.multi_reduction <add>, %774, %cst_341 [1] : vector<5x5xf32> to vector<5xf32>
    %776 = vector.shape_cast %775 : vector<5xf32> to vector<5x1xf32>
    %777 = tpu.reciprocal %776 : vector<5x1xf32> -> vector<5x1xf32>
    %778 = vector.broadcast %777 : vector<5x1xf32> to vector<5x5xf32>
    %779 = arith.mulf %774, %778 : vector<5x5xf32>
    %780 = vector.extract_strided_slice %689 {offsets = [0, 36], sizes = [5, 12], strides = [1, 1]} : vector<5x48xf32> to vector<5x12xf32>
    %cst_342 = arith.constant dense<0.000000e+00> : vector<5x12xf32>
    %781 = tpu.matmul %779, %780, %cst_342 {dimension_numbers = #tpu.dot_dimension_numbers<[1], [0], [0], [1], [0, 0, 1, 1], [], []>} : vector<5x5xf32>, vector<5x12xf32>, vector<5x12xf32> -> vector<5x12xf32>
    %782 = tpu.concatenate %715, %737, %759, %781 in 1 : vector<5x12xf32>, vector<5x12xf32>, vector<5x12xf32>, vector<5x12xf32> -> vector<5x48xf32>
    %cst_343 = arith.constant dense<0.000000e+00> : vector<5x48xf32>
    %783 = tpu.matmul %782, %691, %cst_343 {dimension_numbers = #tpu.dot_dimension_numbers<[1], [0], [0], [1], [0, 0, 1, 1], [], []>} : vector<5x48xf32>, vector<48x48xf32>, vector<5x48xf32> -> vector<5x48xf32>
    %784 = vector.broadcast %693 : vector<1x48xf32> to vector<5x48xf32>
    %785 = arith.addf %783, %784 : vector<5x48xf32>
    %786 = arith.addf %679, %785 : vector<5x48xf32>
    %c1_344 = arith.constant 1 : index
    %c0_345 = arith.constant 0 : index
    %c0_346 = arith.constant 0 : index
    %787 = vector.load %arg35[%c1_344, %c0_345, %c0_346] : memref<2x1x48xf32, #tpu.memory_space<vmem>>, vector<1x1x48xf32>
    %788 = vector.shape_cast %787 : vector<1x1x48xf32> to vector<1x48xf32>
    %c1_347 = arith.constant 1 : index
    %c0_348 = arith.constant 0 : index
    %c0_349 = arith.constant 0 : index
    %789 = vector.load %arg36[%c1_347, %c0_348, %c0_349] : memref<2x1x48xf32, #tpu.memory_space<vmem>>, vector<1x1x48xf32>
    %790 = vector.shape_cast %789 : vector<1x1x48xf32> to vector<1x48xf32>
    %cst_350 = arith.constant dense<0.000000e+00> : vector<5xf32>
    %791 = vector.multi_reduction <add>, %786, %cst_350 [1] : vector<5x48xf32> to vector<5xf32>
    %792 = vector.shape_cast %791 : vector<5xf32> to vector<5x1xf32>
    %cst_351 = arith.constant 4.800000e+01 : f32
    %793 = vector.broadcast %cst_351 : f32 to vector<5x1xf32>
    %794 = arith.divf %792, %793 : vector<5x1xf32>
    %795 = vector.broadcast %794 : vector<5x1xf32> to vector<5x48xf32>
    %796 = arith.subf %786, %795 : vector<5x48xf32>
    %797 = arith.mulf %796, %796 : vector<5x48xf32>
    %cst_352 = arith.constant dense<0.000000e+00> : vector<5xf32>
    %798 = vector.multi_reduction <add>, %797, %cst_352 [1] : vector<5x48xf32> to vector<5xf32>
    %799 = vector.shape_cast %798 : vector<5xf32> to vector<5x1xf32>
    %cst_353 = arith.constant 4.800000e+01 : f32
    %800 = vector.broadcast %cst_353 : f32 to vector<5x1xf32>
    %801 = arith.divf %799, %800 : vector<5x1xf32>
    %802 = vector.broadcast %794 : vector<5x1xf32> to vector<5x48xf32>
    %803 = arith.subf %786, %802 : vector<5x48xf32>
    %cst_354 = arith.constant 9.99999974E-6 : f32
    %804 = vector.broadcast %cst_354 : f32 to vector<5x1xf32>
    %805 = arith.addf %801, %804 : vector<5x1xf32>
    %806 = math.rsqrt %805 : vector<5x1xf32>
    %807 = vector.broadcast %806 : vector<5x1xf32> to vector<5x48xf32>
    %808 = arith.mulf %803, %807 : vector<5x48xf32>
    %809 = vector.broadcast %788 : vector<1x48xf32> to vector<5x48xf32>
    %810 = arith.mulf %808, %809 : vector<5x48xf32>
    %811 = vector.broadcast %790 : vector<1x48xf32> to vector<5x48xf32>
    %812 = arith.addf %810, %811 : vector<5x48xf32>
    %c1_355 = arith.constant 1 : index
    %c0_356 = arith.constant 0 : index
    %c0_357 = arith.constant 0 : index
    %813 = vector.load %arg29[%c1_355, %c0_356, %c0_357] : memref<2x48x48xf32, #tpu.memory_space<vmem>>, vector<1x48x48xf32>
    %814 = vector.shape_cast %813 : vector<1x48x48xf32> to vector<48x48xf32>
    %cst_358 = arith.constant dense<0.000000e+00> : vector<5x48xf32>
    %815 = tpu.matmul %812, %814, %cst_358 {dimension_numbers = #tpu.dot_dimension_numbers<[1], [0], [0], [1], [0, 0, 1, 1], [], []>} : vector<5x48xf32>, vector<48x48xf32>, vector<5x48xf32> -> vector<5x48xf32>
    %c1_359 = arith.constant 1 : index
    %c0_360 = arith.constant 0 : index
    %c0_361 = arith.constant 0 : index
    %816 = vector.load %arg30[%c1_359, %c0_360, %c0_361] : memref<2x1x48xf32, #tpu.memory_space<vmem>>, vector<1x1x48xf32>
    %817 = vector.shape_cast %816 : vector<1x1x48xf32> to vector<1x48xf32>
    %818 = vector.broadcast %817 : vector<1x48xf32> to vector<5x48xf32>
    %819 = arith.addf %815, %818 : vector<5x48xf32>
    %c1_362 = arith.constant 1 : index
    %c0_363 = arith.constant 0 : index
    %c0_364 = arith.constant 0 : index
    %820 = vector.load %arg31[%c1_362, %c0_363, %c0_364] : memref<2x48x96xf32, #tpu.memory_space<vmem>>, vector<1x48x96xf32>
    %821 = vector.shape_cast %820 : vector<1x48x96xf32> to vector<48x96xf32>
    %cst_365 = arith.constant dense<0.000000e+00> : vector<16x96xf32>
    %822 = tpu.matmul %368, %821, %cst_365 {dimension_numbers = #tpu.dot_dimension_numbers<[1], [0], [0], [1], [0, 0, 1, 1], [], []>} : vector<16x48xf32>, vector<48x96xf32>, vector<16x96xf32> -> vector<16x96xf32>
    %c1_366 = arith.constant 1 : index
    %c0_367 = arith.constant 0 : index
    %c0_368 = arith.constant 0 : index
    %823 = vector.load %arg32[%c1_366, %c0_367, %c0_368] : memref<2x1x96xf32, #tpu.memory_space<vmem>>, vector<1x1x96xf32>
    %824 = vector.shape_cast %823 : vector<1x1x96xf32> to vector<1x96xf32>
    %825 = vector.broadcast %824 : vector<1x96xf32> to vector<16x96xf32>
    %826 = arith.addf %822, %825 : vector<16x96xf32>
    %827 = vector.extract_strided_slice %826 {offsets = [0, 0], sizes = [16, 48], strides = [1, 1]} : vector<16x96xf32> to vector<16x48xf32>
    %828 = vector.extract_strided_slice %826 {offsets = [0, 48], sizes = [16, 48], strides = [1, 1]} : vector<16x96xf32> to vector<16x48xf32>
    %c1_369 = arith.constant 1 : index
    %c0_370 = arith.constant 0 : index
    %c0_371 = arith.constant 0 : index
    %829 = vector.load %arg33[%c1_369, %c0_370, %c0_371] : memref<2x48x48xf32, #tpu.memory_space<vmem>>, vector<1x48x48xf32>
    %830 = vector.shape_cast %829 : vector<1x48x48xf32> to vector<48x48xf32>
    %c1_372 = arith.constant 1 : index
    %c0_373 = arith.constant 0 : index
    %c0_374 = arith.constant 0 : index
    %831 = vector.load %arg34[%c1_372, %c0_373, %c0_374] : memref<2x1x48xf32, #tpu.memory_space<vmem>>, vector<1x1x48xf32>
    %832 = vector.shape_cast %831 : vector<1x1x48xf32> to vector<1x48xf32>
    %833 = vector.extract_strided_slice %819 {offsets = [0, 0], sizes = [5, 12], strides = [1, 1]} : vector<5x48xf32> to vector<5x12xf32>
    %834 = vector.extract_strided_slice %827 {offsets = [0, 0], sizes = [16, 12], strides = [1, 1]} : vector<16x48xf32> to vector<16x12xf32>
    %cst_375 = arith.constant dense<0.000000e+00> : vector<5x16xf32>
    %835 = tpu.matmul %833, %834, %cst_375 {dimension_numbers = #tpu.dot_dimension_numbers<[1], [1], [0], [0], [0, 0, 1, 0], [], []>} : vector<5x12xf32>, vector<16x12xf32>, vector<5x16xf32> -> vector<5x16xf32>
    %cst_376 = arith.constant 0.288675129 : f32
    %836 = vector.broadcast %cst_376 : f32 to vector<5x16xf32>
    %837 = arith.mulf %835, %836 : vector<5x16xf32>
    %cst_377 = arith.constant dense<0xFF800000> : vector<5xf32>
    %838 = vector.multi_reduction <maximumf>, %837, %cst_377 [1] : vector<5x16xf32> to vector<5xf32>
    %839 = vector.shape_cast %838 : vector<5xf32> to vector<5x1xf32>
    %840 = vector.broadcast %839 : vector<5x1xf32> to vector<5x16xf32>
    %841 = arith.subf %837, %840 : vector<5x16xf32>
    %842 = math.exp %841 : vector<5x16xf32>
    %cst_378 = arith.constant dense<0.000000e+00> : vector<5xf32>
    %843 = vector.multi_reduction <add>, %842, %cst_378 [1] : vector<5x16xf32> to vector<5xf32>
    %844 = vector.shape_cast %843 : vector<5xf32> to vector<5x1xf32>
    %845 = tpu.reciprocal %844 : vector<5x1xf32> -> vector<5x1xf32>
    %846 = vector.broadcast %845 : vector<5x1xf32> to vector<5x16xf32>
    %847 = arith.mulf %842, %846 : vector<5x16xf32>
    %848 = vector.extract_strided_slice %828 {offsets = [0, 0], sizes = [16, 12], strides = [1, 1]} : vector<16x48xf32> to vector<16x12xf32>
    %cst_379 = arith.constant dense<0.000000e+00> : vector<5x12xf32>
    %849 = tpu.matmul %847, %848, %cst_379 {dimension_numbers = #tpu.dot_dimension_numbers<[1], [0], [0], [1], [0, 0, 1, 1], [], []>} : vector<5x16xf32>, vector<16x12xf32>, vector<5x12xf32> -> vector<5x12xf32>
    %850 = vector.extract_strided_slice %819 {offsets = [0, 12], sizes = [5, 12], strides = [1, 1]} : vector<5x48xf32> to vector<5x12xf32>
    %851 = vector.extract_strided_slice %827 {offsets = [0, 12], sizes = [16, 12], strides = [1, 1]} : vector<16x48xf32> to vector<16x12xf32>
    %cst_380 = arith.constant dense<0.000000e+00> : vector<5x16xf32>
    %852 = tpu.matmul %850, %851, %cst_380 {dimension_numbers = #tpu.dot_dimension_numbers<[1], [1], [0], [0], [0, 0, 1, 0], [], []>} : vector<5x12xf32>, vector<16x12xf32>, vector<5x16xf32> -> vector<5x16xf32>
    %cst_381 = arith.constant 0.288675129 : f32
    %853 = vector.broadcast %cst_381 : f32 to vector<5x16xf32>
    %854 = arith.mulf %852, %853 : vector<5x16xf32>
    %cst_382 = arith.constant dense<0xFF800000> : vector<5xf32>
    %855 = vector.multi_reduction <maximumf>, %854, %cst_382 [1] : vector<5x16xf32> to vector<5xf32>
    %856 = vector.shape_cast %855 : vector<5xf32> to vector<5x1xf32>
    %857 = vector.broadcast %856 : vector<5x1xf32> to vector<5x16xf32>
    %858 = arith.subf %854, %857 : vector<5x16xf32>
    %859 = math.exp %858 : vector<5x16xf32>
    %cst_383 = arith.constant dense<0.000000e+00> : vector<5xf32>
    %860 = vector.multi_reduction <add>, %859, %cst_383 [1] : vector<5x16xf32> to vector<5xf32>
    %861 = vector.shape_cast %860 : vector<5xf32> to vector<5x1xf32>
    %862 = tpu.reciprocal %861 : vector<5x1xf32> -> vector<5x1xf32>
    %863 = vector.broadcast %862 : vector<5x1xf32> to vector<5x16xf32>
    %864 = arith.mulf %859, %863 : vector<5x16xf32>
    %865 = vector.extract_strided_slice %828 {offsets = [0, 12], sizes = [16, 12], strides = [1, 1]} : vector<16x48xf32> to vector<16x12xf32>
    %cst_384 = arith.constant dense<0.000000e+00> : vector<5x12xf32>
    %866 = tpu.matmul %864, %865, %cst_384 {dimension_numbers = #tpu.dot_dimension_numbers<[1], [0], [0], [1], [0, 0, 1, 1], [], []>} : vector<5x16xf32>, vector<16x12xf32>, vector<5x12xf32> -> vector<5x12xf32>
    %867 = vector.extract_strided_slice %819 {offsets = [0, 24], sizes = [5, 12], strides = [1, 1]} : vector<5x48xf32> to vector<5x12xf32>
    %868 = vector.extract_strided_slice %827 {offsets = [0, 24], sizes = [16, 12], strides = [1, 1]} : vector<16x48xf32> to vector<16x12xf32>
    %cst_385 = arith.constant dense<0.000000e+00> : vector<5x16xf32>
    %869 = tpu.matmul %867, %868, %cst_385 {dimension_numbers = #tpu.dot_dimension_numbers<[1], [1], [0], [0], [0, 0, 1, 0], [], []>} : vector<5x12xf32>, vector<16x12xf32>, vector<5x16xf32> -> vector<5x16xf32>
    %cst_386 = arith.constant 0.288675129 : f32
    %870 = vector.broadcast %cst_386 : f32 to vector<5x16xf32>
    %871 = arith.mulf %869, %870 : vector<5x16xf32>
    %cst_387 = arith.constant dense<0xFF800000> : vector<5xf32>
    %872 = vector.multi_reduction <maximumf>, %871, %cst_387 [1] : vector<5x16xf32> to vector<5xf32>
    %873 = vector.shape_cast %872 : vector<5xf32> to vector<5x1xf32>
    %874 = vector.broadcast %873 : vector<5x1xf32> to vector<5x16xf32>
    %875 = arith.subf %871, %874 : vector<5x16xf32>
    %876 = math.exp %875 : vector<5x16xf32>
    %cst_388 = arith.constant dense<0.000000e+00> : vector<5xf32>
    %877 = vector.multi_reduction <add>, %876, %cst_388 [1] : vector<5x16xf32> to vector<5xf32>
    %878 = vector.shape_cast %877 : vector<5xf32> to vector<5x1xf32>
    %879 = tpu.reciprocal %878 : vector<5x1xf32> -> vector<5x1xf32>
    %880 = vector.broadcast %879 : vector<5x1xf32> to vector<5x16xf32>
    %881 = arith.mulf %876, %880 : vector<5x16xf32>
    %882 = vector.extract_strided_slice %828 {offsets = [0, 24], sizes = [16, 12], strides = [1, 1]} : vector<16x48xf32> to vector<16x12xf32>
    %cst_389 = arith.constant dense<0.000000e+00> : vector<5x12xf32>
    %883 = tpu.matmul %881, %882, %cst_389 {dimension_numbers = #tpu.dot_dimension_numbers<[1], [0], [0], [1], [0, 0, 1, 1], [], []>} : vector<5x16xf32>, vector<16x12xf32>, vector<5x12xf32> -> vector<5x12xf32>
    %884 = vector.extract_strided_slice %819 {offsets = [0, 36], sizes = [5, 12], strides = [1, 1]} : vector<5x48xf32> to vector<5x12xf32>
    %885 = vector.extract_strided_slice %827 {offsets = [0, 36], sizes = [16, 12], strides = [1, 1]} : vector<16x48xf32> to vector<16x12xf32>
    %cst_390 = arith.constant dense<0.000000e+00> : vector<5x16xf32>
    %886 = tpu.matmul %884, %885, %cst_390 {dimension_numbers = #tpu.dot_dimension_numbers<[1], [1], [0], [0], [0, 0, 1, 0], [], []>} : vector<5x12xf32>, vector<16x12xf32>, vector<5x16xf32> -> vector<5x16xf32>
    %cst_391 = arith.constant 0.288675129 : f32
    %887 = vector.broadcast %cst_391 : f32 to vector<5x16xf32>
    %888 = arith.mulf %886, %887 : vector<5x16xf32>
    %cst_392 = arith.constant dense<0xFF800000> : vector<5xf32>
    %889 = vector.multi_reduction <maximumf>, %888, %cst_392 [1] : vector<5x16xf32> to vector<5xf32>
    %890 = vector.shape_cast %889 : vector<5xf32> to vector<5x1xf32>
    %891 = vector.broadcast %890 : vector<5x1xf32> to vector<5x16xf32>
    %892 = arith.subf %888, %891 : vector<5x16xf32>
    %893 = math.exp %892 : vector<5x16xf32>
    %cst_393 = arith.constant dense<0.000000e+00> : vector<5xf32>
    %894 = vector.multi_reduction <add>, %893, %cst_393 [1] : vector<5x16xf32> to vector<5xf32>
    %895 = vector.shape_cast %894 : vector<5xf32> to vector<5x1xf32>
    %896 = tpu.reciprocal %895 : vector<5x1xf32> -> vector<5x1xf32>
    %897 = vector.broadcast %896 : vector<5x1xf32> to vector<5x16xf32>
    %898 = arith.mulf %893, %897 : vector<5x16xf32>
    %899 = vector.extract_strided_slice %828 {offsets = [0, 36], sizes = [16, 12], strides = [1, 1]} : vector<16x48xf32> to vector<16x12xf32>
    %cst_394 = arith.constant dense<0.000000e+00> : vector<5x12xf32>
    %900 = tpu.matmul %898, %899, %cst_394 {dimension_numbers = #tpu.dot_dimension_numbers<[1], [0], [0], [1], [0, 0, 1, 1], [], []>} : vector<5x16xf32>, vector<16x12xf32>, vector<5x12xf32> -> vector<5x12xf32>
    %901 = tpu.concatenate %849, %866, %883, %900 in 1 : vector<5x12xf32>, vector<5x12xf32>, vector<5x12xf32>, vector<5x12xf32> -> vector<5x48xf32>
    %cst_395 = arith.constant dense<0.000000e+00> : vector<5x48xf32>
    %902 = tpu.matmul %901, %830, %cst_395 {dimension_numbers = #tpu.dot_dimension_numbers<[1], [0], [0], [1], [0, 0, 1, 1], [], []>} : vector<5x48xf32>, vector<48x48xf32>, vector<5x48xf32> -> vector<5x48xf32>
    %903 = vector.broadcast %832 : vector<1x48xf32> to vector<5x48xf32>
    %904 = arith.addf %902, %903 : vector<5x48xf32>
    %905 = arith.addf %812, %904 : vector<5x48xf32>
    %c1_396 = arith.constant 1 : index
    %c0_397 = arith.constant 0 : index
    %c0_398 = arith.constant 0 : index
    %906 = vector.load %arg37[%c1_396, %c0_397, %c0_398] : memref<2x1x48xf32, #tpu.memory_space<vmem>>, vector<1x1x48xf32>
    %907 = vector.shape_cast %906 : vector<1x1x48xf32> to vector<1x48xf32>
    %c1_399 = arith.constant 1 : index
    %c0_400 = arith.constant 0 : index
    %c0_401 = arith.constant 0 : index
    %908 = vector.load %arg38[%c1_399, %c0_400, %c0_401] : memref<2x1x48xf32, #tpu.memory_space<vmem>>, vector<1x1x48xf32>
    %909 = vector.shape_cast %908 : vector<1x1x48xf32> to vector<1x48xf32>
    %cst_402 = arith.constant dense<0.000000e+00> : vector<5xf32>
    %910 = vector.multi_reduction <add>, %905, %cst_402 [1] : vector<5x48xf32> to vector<5xf32>
    %911 = vector.shape_cast %910 : vector<5xf32> to vector<5x1xf32>
    %cst_403 = arith.constant 4.800000e+01 : f32
    %912 = vector.broadcast %cst_403 : f32 to vector<5x1xf32>
    %913 = arith.divf %911, %912 : vector<5x1xf32>
    %914 = vector.broadcast %913 : vector<5x1xf32> to vector<5x48xf32>
    %915 = arith.subf %905, %914 : vector<5x48xf32>
    %916 = arith.mulf %915, %915 : vector<5x48xf32>
    %cst_404 = arith.constant dense<0.000000e+00> : vector<5xf32>
    %917 = vector.multi_reduction <add>, %916, %cst_404 [1] : vector<5x48xf32> to vector<5xf32>
    %918 = vector.shape_cast %917 : vector<5xf32> to vector<5x1xf32>
    %cst_405 = arith.constant 4.800000e+01 : f32
    %919 = vector.broadcast %cst_405 : f32 to vector<5x1xf32>
    %920 = arith.divf %918, %919 : vector<5x1xf32>
    %921 = vector.broadcast %913 : vector<5x1xf32> to vector<5x48xf32>
    %922 = arith.subf %905, %921 : vector<5x48xf32>
    %cst_406 = arith.constant 9.99999974E-6 : f32
    %923 = vector.broadcast %cst_406 : f32 to vector<5x1xf32>
    %924 = arith.addf %920, %923 : vector<5x1xf32>
    %925 = math.rsqrt %924 : vector<5x1xf32>
    %926 = vector.broadcast %925 : vector<5x1xf32> to vector<5x48xf32>
    %927 = arith.mulf %922, %926 : vector<5x48xf32>
    %928 = vector.broadcast %907 : vector<1x48xf32> to vector<5x48xf32>
    %929 = arith.mulf %927, %928 : vector<5x48xf32>
    %930 = vector.broadcast %909 : vector<1x48xf32> to vector<5x48xf32>
    %931 = arith.addf %929, %930 : vector<5x48xf32>
    %c1_407 = arith.constant 1 : index
    %c0_408 = arith.constant 0 : index
    %c0_409 = arith.constant 0 : index
    %932 = vector.load %arg41[%c1_407, %c0_408, %c0_409] : memref<2x48x64xf32, #tpu.memory_space<vmem>>, vector<1x48x64xf32>
    %933 = vector.shape_cast %932 : vector<1x48x64xf32> to vector<48x64xf32>
    %cst_410 = arith.constant dense<0.000000e+00> : vector<5x64xf32>
    %934 = tpu.matmul %931, %933, %cst_410 {dimension_numbers = #tpu.dot_dimension_numbers<[1], [0], [0], [1], [0, 0, 1, 1], [], []>} : vector<5x48xf32>, vector<48x64xf32>, vector<5x64xf32> -> vector<5x64xf32>
    %c1_411 = arith.constant 1 : index
    %c0_412 = arith.constant 0 : index
    %c0_413 = arith.constant 0 : index
    %935 = vector.load %arg42[%c1_411, %c0_412, %c0_413] : memref<2x1x64xf32, #tpu.memory_space<vmem>>, vector<1x1x64xf32>
    %936 = vector.shape_cast %935 : vector<1x1x64xf32> to vector<1x64xf32>
    %937 = vector.broadcast %936 : vector<1x64xf32> to vector<5x64xf32>
    %938 = arith.addf %934, %937 : vector<5x64xf32>
    %cst_414 = arith.constant 0.000000e+00 : f32
    %939 = vector.broadcast %cst_414 : f32 to vector<5x64xf32>
    %940 = arith.maximumf %938, %939 : vector<5x64xf32>
    %c1_415 = arith.constant 1 : index
    %c0_416 = arith.constant 0 : index
    %c0_417 = arith.constant 0 : index
    %941 = vector.load %arg43[%c1_415, %c0_416, %c0_417] : memref<2x64x48xf32, #tpu.memory_space<vmem>>, vector<1x64x48xf32>
    %942 = vector.shape_cast %941 : vector<1x64x48xf32> to vector<64x48xf32>
    %cst_418 = arith.constant dense<0.000000e+00> : vector<5x48xf32>
    %943 = tpu.matmul %940, %942, %cst_418 {dimension_numbers = #tpu.dot_dimension_numbers<[1], [0], [0], [1], [0, 0, 1, 1], [], []>} : vector<5x64xf32>, vector<64x48xf32>, vector<5x48xf32> -> vector<5x48xf32>
    %c1_419 = arith.constant 1 : index
    %c0_420 = arith.constant 0 : index
    %c0_421 = arith.constant 0 : index
    %944 = vector.load %arg44[%c1_419, %c0_420, %c0_421] : memref<2x1x48xf32, #tpu.memory_space<vmem>>, vector<1x1x48xf32>
    %945 = vector.shape_cast %944 : vector<1x1x48xf32> to vector<1x48xf32>
    %946 = vector.broadcast %945 : vector<1x48xf32> to vector<5x48xf32>
    %947 = arith.addf %943, %946 : vector<5x48xf32>
    %948 = arith.addf %931, %947 : vector<5x48xf32>
    %c1_422 = arith.constant 1 : index
    %c0_423 = arith.constant 0 : index
    %c0_424 = arith.constant 0 : index
    %949 = vector.load %arg39[%c1_422, %c0_423, %c0_424] : memref<2x1x48xf32, #tpu.memory_space<vmem>>, vector<1x1x48xf32>
    %950 = vector.shape_cast %949 : vector<1x1x48xf32> to vector<1x48xf32>
    %c1_425 = arith.constant 1 : index
    %c0_426 = arith.constant 0 : index
    %c0_427 = arith.constant 0 : index
    %951 = vector.load %arg40[%c1_425, %c0_426, %c0_427] : memref<2x1x48xf32, #tpu.memory_space<vmem>>, vector<1x1x48xf32>
    %952 = vector.shape_cast %951 : vector<1x1x48xf32> to vector<1x48xf32>
    %cst_428 = arith.constant dense<0.000000e+00> : vector<5xf32>
    %953 = vector.multi_reduction <add>, %948, %cst_428 [1] : vector<5x48xf32> to vector<5xf32>
    %954 = vector.shape_cast %953 : vector<5xf32> to vector<5x1xf32>
    %cst_429 = arith.constant 4.800000e+01 : f32
    %955 = vector.broadcast %cst_429 : f32 to vector<5x1xf32>
    %956 = arith.divf %954, %955 : vector<5x1xf32>
    %957 = vector.broadcast %956 : vector<5x1xf32> to vector<5x48xf32>
    %958 = arith.subf %948, %957 : vector<5x48xf32>
    %959 = arith.mulf %958, %958 : vector<5x48xf32>
    %cst_430 = arith.constant dense<0.000000e+00> : vector<5xf32>
    %960 = vector.multi_reduction <add>, %959, %cst_430 [1] : vector<5x48xf32> to vector<5xf32>
    %961 = vector.shape_cast %960 : vector<5xf32> to vector<5x1xf32>
    %cst_431 = arith.constant 4.800000e+01 : f32
    %962 = vector.broadcast %cst_431 : f32 to vector<5x1xf32>
    %963 = arith.divf %961, %962 : vector<5x1xf32>
    %964 = vector.broadcast %956 : vector<5x1xf32> to vector<5x48xf32>
    %965 = arith.subf %948, %964 : vector<5x48xf32>
    %cst_432 = arith.constant 9.99999974E-6 : f32
    %966 = vector.broadcast %cst_432 : f32 to vector<5x1xf32>
    %967 = arith.addf %963, %966 : vector<5x1xf32>
    %968 = math.rsqrt %967 : vector<5x1xf32>
    %969 = vector.broadcast %968 : vector<5x1xf32> to vector<5x48xf32>
    %970 = arith.mulf %965, %969 : vector<5x48xf32>
    %971 = vector.broadcast %950 : vector<1x48xf32> to vector<5x48xf32>
    %972 = arith.mulf %970, %971 : vector<5x48xf32>
    %973 = vector.broadcast %952 : vector<1x48xf32> to vector<5x48xf32>
    %974 = arith.addf %972, %973 : vector<5x48xf32>
    %975 = vector.extract_strided_slice %974 {offsets = [0, 0], sizes = [4, 48], strides = [1, 1]} : vector<5x48xf32> to vector<4x48xf32>
    %c0_433 = arith.constant 0 : index
    %c0_434 = arith.constant 0 : index
    %c0_435 = arith.constant 0 : index
    %976 = vector.load %arg45[%c0_433, %c0_434, %c0_435] : memref<1x4x48xf32, #tpu.memory_space<vmem>>, vector<1x4x48xf32>
    %977 = vector.shape_cast %976 : vector<1x4x48xf32> to vector<4x48xf32>
    %978 = vector.shape_cast %975 : vector<4x48xf32> to vector<1x4x48xf32>
    tpu.vector_store %arg45[%c0_433, %c0_434, %c0_435], %978 {strides = array<i32>} : memref<1x4x48xf32, #tpu.memory_space<vmem>>, vector<1x4x48xf32>,
    return
  }
  func.func @transform_0(%arg0: i32) -> (i32, i32, i32) {
    %c0_i32 = arith.constant 0 : i32
    %c0_i32_0 = arith.constant 0 : i32
    %c0_i32_1 = arith.constant 0 : i32
    return %arg0, %c0_i32, %c0_i32_0 : i32, i32, i32
  }
  func.func @transform_1(%arg0: i32) -> (i32, i32, i32) {
    %c0_i32 = arith.constant 0 : i32
    %c0_i32_0 = arith.constant 0 : i32
    %c0_i32_1 = arith.constant 0 : i32
    return %arg0, %c0_i32, %c0_i32_0 : i32, i32, i32
  }
  func.func @transform_2(%arg0: i32) -> (i32, i32, i32) {
    %c0_i32 = arith.constant 0 : i32
    %c0_i32_0 = arith.constant 0 : i32
    %c0_i32_1 = arith.constant 0 : i32
    return %arg0, %c0_i32, %c0_i32_0 : i32, i32, i32
  }
  func.func @transform_3(%arg0: i32) -> (i32, i32) {
    %c0_i32 = arith.constant 0 : i32
    %c0_i32_0 = arith.constant 0 : i32
    %c0_i32_1 = arith.constant 0 : i32
    return %c0_i32, %c0_i32_0 : i32, i32
  }
  func.func @transform_4(%arg0: i32) -> (i32, i32) {
    %c0_i32 = arith.constant 0 : i32
    %c0_i32_0 = arith.constant 0 : i32
    %c0_i32_1 = arith.constant 0 : i32
    return %c0_i32, %c0_i32_0 : i32, i32
  }
  func.func @transform_5(%arg0: i32) -> (i32, i32) {
    %c0_i32 = arith.constant 0 : i32
    %c0_i32_0 = arith.constant 0 : i32
    %c0_i32_1 = arith.constant 0 : i32
    return %c0_i32, %c0_i32_0 : i32, i32
  }
  func.func @transform_6(%arg0: i32) -> (i32, i32) {
    %c0_i32 = arith.constant 0 : i32
    %c0_i32_0 = arith.constant 0 : i32
    %c0_i32_1 = arith.constant 0 : i32
    return %c0_i32, %c0_i32_0 : i32, i32
  }
  func.func @transform_7(%arg0: i32) -> (i32, i32) {
    %c0_i32 = arith.constant 0 : i32
    %c0_i32_0 = arith.constant 0 : i32
    %c0_i32_1 = arith.constant 0 : i32
    return %c0_i32, %c0_i32_0 : i32, i32
  }
  func.func @transform_8(%arg0: i32) -> (i32, i32) {
    %c0_i32 = arith.constant 0 : i32
    %c0_i32_0 = arith.constant 0 : i32
    %c0_i32_1 = arith.constant 0 : i32
    return %c0_i32, %c0_i32_0 : i32, i32
  }
  func.func @transform_9(%arg0: i32) -> (i32, i32) {
    %c0_i32 = arith.constant 0 : i32
    %c0_i32_0 = arith.constant 0 : i32
    %c0_i32_1 = arith.constant 0 : i32
    return %c0_i32, %c0_i32_0 : i32, i32
  }
  func.func @transform_10(%arg0: i32) -> (i32, i32, i32) {
    %c0_i32 = arith.constant 0 : i32
    %c0_i32_0 = arith.constant 0 : i32
    %c0_i32_1 = arith.constant 0 : i32
    %c0_i32_2 = arith.constant 0 : i32
    return %c0_i32, %c0_i32_0, %c0_i32_1 : i32, i32, i32
  }
  func.func @transform_11(%arg0: i32) -> (i32, i32, i32) {
    %c0_i32 = arith.constant 0 : i32
    %c0_i32_0 = arith.constant 0 : i32
    %c0_i32_1 = arith.constant 0 : i32
    %c0_i32_2 = arith.constant 0 : i32
    return %c0_i32, %c0_i32_0, %c0_i32_1 : i32, i32, i32
  }
  func.func @transform_12(%arg0: i32) -> (i32, i32, i32) {
    %c0_i32 = arith.constant 0 : i32
    %c0_i32_0 = arith.constant 0 : i32
    %c0_i32_1 = arith.constant 0 : i32
    %c0_i32_2 = arith.constant 0 : i32
    return %c0_i32, %c0_i32_0, %c0_i32_1 : i32, i32, i32
  }
  func.func @transform_13(%arg0: i32) -> (i32, i32, i32) {
    %c0_i32 = arith.constant 0 : i32
    %c0_i32_0 = arith.constant 0 : i32
    %c0_i32_1 = arith.constant 0 : i32
    %c0_i32_2 = arith.constant 0 : i32
    return %c0_i32, %c0_i32_0, %c0_i32_1 : i32, i32, i32
  }
  func.func @transform_14(%arg0: i32) -> (i32, i32, i32) {
    %c0_i32 = arith.constant 0 : i32
    %c0_i32_0 = arith.constant 0 : i32
    %c0_i32_1 = arith.constant 0 : i32
    %c0_i32_2 = arith.constant 0 : i32
    return %c0_i32, %c0_i32_0, %c0_i32_1 : i32, i32, i32
  }
  func.func @transform_15(%arg0: i32) -> (i32, i32, i32) {
    %c0_i32 = arith.constant 0 : i32
    %c0_i32_0 = arith.constant 0 : i32
    %c0_i32_1 = arith.constant 0 : i32
    %c0_i32_2 = arith.constant 0 : i32
    return %c0_i32, %c0_i32_0, %c0_i32_1 : i32, i32, i32
  }
  func.func @transform_16(%arg0: i32) -> (i32, i32, i32) {
    %c0_i32 = arith.constant 0 : i32
    %c0_i32_0 = arith.constant 0 : i32
    %c0_i32_1 = arith.constant 0 : i32
    %c0_i32_2 = arith.constant 0 : i32
    return %c0_i32, %c0_i32_0, %c0_i32_1 : i32, i32, i32
  }
  func.func @transform_17(%arg0: i32) -> (i32, i32, i32) {
    %c0_i32 = arith.constant 0 : i32
    %c0_i32_0 = arith.constant 0 : i32
    %c0_i32_1 = arith.constant 0 : i32
    %c0_i32_2 = arith.constant 0 : i32
    return %c0_i32, %c0_i32_0, %c0_i32_1 : i32, i32, i32
  }
  func.func @transform_18(%arg0: i32) -> (i32, i32, i32) {
    %c0_i32 = arith.constant 0 : i32
    %c0_i32_0 = arith.constant 0 : i32
    %c0_i32_1 = arith.constant 0 : i32
    %c0_i32_2 = arith.constant 0 : i32
    return %c0_i32, %c0_i32_0, %c0_i32_1 : i32, i32, i32
  }
  func.func @transform_19(%arg0: i32) -> (i32, i32, i32) {
    %c0_i32 = arith.constant 0 : i32
    %c0_i32_0 = arith.constant 0 : i32
    %c0_i32_1 = arith.constant 0 : i32
    %c0_i32_2 = arith.constant 0 : i32
    return %c0_i32, %c0_i32_0, %c0_i32_1 : i32, i32, i32
  }
  func.func @transform_20(%arg0: i32) -> (i32, i32, i32) {
    %c0_i32 = arith.constant 0 : i32
    %c0_i32_0 = arith.constant 0 : i32
    %c0_i32_1 = arith.constant 0 : i32
    %c0_i32_2 = arith.constant 0 : i32
    return %c0_i32, %c0_i32_0, %c0_i32_1 : i32, i32, i32
  }
  func.func @transform_21(%arg0: i32) -> (i32, i32, i32) {
    %c0_i32 = arith.constant 0 : i32
    %c0_i32_0 = arith.constant 0 : i32
    %c0_i32_1 = arith.constant 0 : i32
    %c0_i32_2 = arith.constant 0 : i32
    return %c0_i32, %c0_i32_0, %c0_i32_1 : i32, i32, i32
  }
  func.func @transform_22(%arg0: i32) -> (i32, i32) {
    %c0_i32 = arith.constant 0 : i32
    %c0_i32_0 = arith.constant 0 : i32
    %c0_i32_1 = arith.constant 0 : i32
    return %c0_i32, %c0_i32_0 : i32, i32
  }
  func.func @transform_23(%arg0: i32) -> (i32, i32) {
    %c0_i32 = arith.constant 0 : i32
    %c0_i32_0 = arith.constant 0 : i32
    %c0_i32_1 = arith.constant 0 : i32
    return %c0_i32, %c0_i32_0 : i32, i32
  }
  func.func @transform_24(%arg0: i32) -> (i32, i32, i32) {
    %c0_i32 = arith.constant 0 : i32
    %c0_i32_0 = arith.constant 0 : i32
    %c0_i32_1 = arith.constant 0 : i32
    %c0_i32_2 = arith.constant 0 : i32
    return %c0_i32, %c0_i32_0, %c0_i32_1 : i32, i32, i32
  }
  func.func @transform_25(%arg0: i32) -> (i32, i32, i32) {
    %c0_i32 = arith.constant 0 : i32
    %c0_i32_0 = arith.constant 0 : i32
    %c0_i32_1 = arith.constant 0 : i32
    %c0_i32_2 = arith.constant 0 : i32
    return %c0_i32, %c0_i32_0, %c0_i32_1 : i32, i32, i32
  }
  func.func @transform_26(%arg0: i32) -> (i32, i32, i32) {
    %c0_i32 = arith.constant 0 : i32
    %c0_i32_0 = arith.constant 0 : i32
    %c0_i32_1 = arith.constant 0 : i32
    %c0_i32_2 = arith.constant 0 : i32
    return %c0_i32, %c0_i32_0, %c0_i32_1 : i32, i32, i32
  }
  func.func @transform_27(%arg0: i32) -> (i32, i32, i32) {
    %c0_i32 = arith.constant 0 : i32
    %c0_i32_0 = arith.constant 0 : i32
    %c0_i32_1 = arith.constant 0 : i32
    %c0_i32_2 = arith.constant 0 : i32
    return %c0_i32, %c0_i32_0, %c0_i32_1 : i32, i32, i32
  }
  func.func @transform_28(%arg0: i32) -> (i32, i32, i32) {
    %c0_i32 = arith.constant 0 : i32
    %c0_i32_0 = arith.constant 0 : i32
    %c0_i32_1 = arith.constant 0 : i32
    %c0_i32_2 = arith.constant 0 : i32
    return %c0_i32, %c0_i32_0, %c0_i32_1 : i32, i32, i32
  }
  func.func @transform_29(%arg0: i32) -> (i32, i32, i32) {
    %c0_i32 = arith.constant 0 : i32
    %c0_i32_0 = arith.constant 0 : i32
    %c0_i32_1 = arith.constant 0 : i32
    %c0_i32_2 = arith.constant 0 : i32
    return %c0_i32, %c0_i32_0, %c0_i32_1 : i32, i32, i32
  }
  func.func @transform_30(%arg0: i32) -> (i32, i32, i32) {
    %c0_i32 = arith.constant 0 : i32
    %c0_i32_0 = arith.constant 0 : i32
    %c0_i32_1 = arith.constant 0 : i32
    %c0_i32_2 = arith.constant 0 : i32
    return %c0_i32, %c0_i32_0, %c0_i32_1 : i32, i32, i32
  }
  func.func @transform_31(%arg0: i32) -> (i32, i32, i32) {
    %c0_i32 = arith.constant 0 : i32
    %c0_i32_0 = arith.constant 0 : i32
    %c0_i32_1 = arith.constant 0 : i32
    %c0_i32_2 = arith.constant 0 : i32
    return %c0_i32, %c0_i32_0, %c0_i32_1 : i32, i32, i32
  }
  func.func @transform_32(%arg0: i32) -> (i32, i32, i32) {
    %c0_i32 = arith.constant 0 : i32
    %c0_i32_0 = arith.constant 0 : i32
    %c0_i32_1 = arith.constant 0 : i32
    %c0_i32_2 = arith.constant 0 : i32
    return %c0_i32, %c0_i32_0, %c0_i32_1 : i32, i32, i32
  }
  func.func @transform_33(%arg0: i32) -> (i32, i32, i32) {
    %c0_i32 = arith.constant 0 : i32
    %c0_i32_0 = arith.constant 0 : i32
    %c0_i32_1 = arith.constant 0 : i32
    %c0_i32_2 = arith.constant 0 : i32
    return %c0_i32, %c0_i32_0, %c0_i32_1 : i32, i32, i32
  }
  func.func @transform_34(%arg0: i32) -> (i32, i32, i32) {
    %c0_i32 = arith.constant 0 : i32
    %c0_i32_0 = arith.constant 0 : i32
    %c0_i32_1 = arith.constant 0 : i32
    %c0_i32_2 = arith.constant 0 : i32
    return %c0_i32, %c0_i32_0, %c0_i32_1 : i32, i32, i32
  }
  func.func @transform_35(%arg0: i32) -> (i32, i32, i32) {
    %c0_i32 = arith.constant 0 : i32
    %c0_i32_0 = arith.constant 0 : i32
    %c0_i32_1 = arith.constant 0 : i32
    %c0_i32_2 = arith.constant 0 : i32
    return %c0_i32, %c0_i32_0, %c0_i32_1 : i32, i32, i32
  }
  func.func @transform_36(%arg0: i32) -> (i32, i32, i32) {
    %c0_i32 = arith.constant 0 : i32
    %c0_i32_0 = arith.constant 0 : i32
    %c0_i32_1 = arith.constant 0 : i32
    %c0_i32_2 = arith.constant 0 : i32
    return %c0_i32, %c0_i32_0, %c0_i32_1 : i32, i32, i32
  }
  func.func @transform_37(%arg0: i32) -> (i32, i32, i32) {
    %c0_i32 = arith.constant 0 : i32
    %c0_i32_0 = arith.constant 0 : i32
    %c0_i32_1 = arith.constant 0 : i32
    %c0_i32_2 = arith.constant 0 : i32
    return %c0_i32, %c0_i32_0, %c0_i32_1 : i32, i32, i32
  }
  func.func @transform_38(%arg0: i32) -> (i32, i32, i32) {
    %c0_i32 = arith.constant 0 : i32
    %c0_i32_0 = arith.constant 0 : i32
    %c0_i32_1 = arith.constant 0 : i32
    %c0_i32_2 = arith.constant 0 : i32
    return %c0_i32, %c0_i32_0, %c0_i32_1 : i32, i32, i32
  }
  func.func @transform_39(%arg0: i32) -> (i32, i32, i32) {
    %c0_i32 = arith.constant 0 : i32
    %c0_i32_0 = arith.constant 0 : i32
    %c0_i32_1 = arith.constant 0 : i32
    %c0_i32_2 = arith.constant 0 : i32
    return %c0_i32, %c0_i32_0, %c0_i32_1 : i32, i32, i32
  }
  func.func @transform_40(%arg0: i32) -> (i32, i32, i32) {
    %c0_i32 = arith.constant 0 : i32
    %c0_i32_0 = arith.constant 0 : i32
    %c0_i32_1 = arith.constant 0 : i32
    %c0_i32_2 = arith.constant 0 : i32
    return %c0_i32, %c0_i32_0, %c0_i32_1 : i32, i32, i32
  }
  func.func @transform_41(%arg0: i32) -> (i32, i32, i32) {
    %c0_i32 = arith.constant 0 : i32
    %c0_i32_0 = arith.constant 0 : i32
    %c0_i32_1 = arith.constant 0 : i32
    %c0_i32_2 = arith.constant 0 : i32
    return %c0_i32, %c0_i32_0, %c0_i32_1 : i32, i32, i32
  }
  func.func @transform_42(%arg0: i32) -> (i32, i32, i32) {
    %c0_i32 = arith.constant 0 : i32
    %c0_i32_0 = arith.constant 0 : i32
    %c0_i32_1 = arith.constant 0 : i32
    %c0_i32_2 = arith.constant 0 : i32
    return %c0_i32, %c0_i32_0, %c0_i32_1 : i32, i32, i32
  }
  func.func @transform_43(%arg0: i32) -> (i32, i32, i32) {
    %c0_i32 = arith.constant 0 : i32
    %c0_i32_0 = arith.constant 0 : i32
    %c0_i32_1 = arith.constant 0 : i32
    %c0_i32_2 = arith.constant 0 : i32
    return %c0_i32, %c0_i32_0, %c0_i32_1 : i32, i32, i32
  }
  func.func @transform_44(%arg0: i32) -> (i32, i32, i32) {
    %c0_i32 = arith.constant 0 : i32
    %c0_i32_0 = arith.constant 0 : i32
    %c0_i32_1 = arith.constant 0 : i32
    return %arg0, %c0_i32, %c0_i32_0 : i32, i32, i32
  }
}

</mosaic_0001>

<llo_original>
// kernel: _lambda_.1
$region0: #{_lambda_.1}
  #allocation0 [shape = 'u32[]', space=smem, size = 0x4, offset = 0x4, fixed_abs, tag = 'smem constant byte address 0x4 - core index']
  #allocation1 [shape = 'u32[72,128]{1,0:T(1,128)}', space=vmem, size = 0x9000, scoped, tag = 'internal scratch']
  %s0 = inlined_call_operand.smem [shape: u32[45], index: -1, kind: input, shape index: {}]
  %s1 = sld [smem:[%s0]]
  %s2 = scalar_lea.smem %s0, 1
  %s3 = sld [smem:[%s2]]
  %s4 = scalar_lea.smem %s0, 2
  %s5 = sld [smem:[%s4]]
  %s6 = scalar_lea.smem %s0, 3
  %s7 = sld [smem:[%s6]]
  %s8 = scalar_lea.smem %s0, 4
  %s9 = sld [smem:[%s8]]
  %s10 = scalar_lea.smem %s0, 5
  %s11 = sld [smem:[%s10]]
  %s12 = scalar_lea.smem %s0, 6
  %s13 = sld [smem:[%s12]]
  %s14 = scalar_lea.smem %s0, 7
  %s15 = sld [smem:[%s14]]
  %s16 = scalar_lea.smem %s0, 8
  %s17 = sld [smem:[%s16]]
  %s18 = scalar_lea.smem %s0, 9
  %s19 = sld [smem:[%s18]]
  %s20 = scalar_lea.smem %s0, 10
  %s21 = sld [smem:[%s20]]
  %s22 = scalar_lea.smem %s0, 11
  %s23 = sld [smem:[%s22]]
  %s24 = scalar_lea.smem %s0, 12
  %s25 = sld [smem:[%s24]]
  %s26 = scalar_lea.smem %s0, 13
  %s27 = sld [smem:[%s26]]
  %s28 = scalar_lea.smem %s0, 14
  %s29 = sld [smem:[%s28]]
  %s30 = scalar_lea.smem %s0, 15
  %s31 = sld [smem:[%s30]]
  %s32 = scalar_lea.smem %s0, 16
  %s33 = sld [smem:[%s32]]
  %s34 = scalar_lea.smem %s0, 17
  %s35 = sld [smem:[%s34]]
  %s36 = scalar_lea.smem %s0, 18
  %s37 = sld [smem:[%s36]]
  %s38 = scalar_lea.smem %s0, 19
  %s39 = sld [smem:[%s38]]
  %s40 = scalar_lea.smem %s0, 20
  %s41 = sld [smem:[%s40]]
  %s42 = scalar_lea.smem %s0, 21
  %s43 = sld [smem:[%s42]]
  %s44 = scalar_lea.smem %s0, 22
  %s45 = sld [smem:[%s44]]
  %s46 = scalar_lea.smem %s0, 23
  %s47 = sld [smem:[%s46]]
  %s48 = scalar_lea.smem %s0, 24
  %s49 = sld [smem:[%s48]]
  %s50 = scalar_lea.smem %s0, 25
  %s51 = sld [smem:[%s50]]
  %s52 = scalar_lea.smem %s0, 26
  %s53 = sld [smem:[%s52]]
  %s54 = scalar_lea.smem %s0, 27
  %s55 = sld [smem:[%s54]]
  %s56 = scalar_lea.smem %s0, 28
  %s57 = sld [smem:[%s56]]
  %s58 = scalar_lea.smem %s0, 29
  %s59 = sld [smem:[%s58]]
  %s60 = scalar_lea.smem %s0, 30
  %s61 = sld [smem:[%s60]]
  %s62 = scalar_lea.smem %s0, 31
  %s63 = sld [smem:[%s62]]
  %s64 = scalar_lea.smem %s0, 32
  %s65 = sld [smem:[%s64]]
  %s66 = scalar_lea.smem %s0, 33
  %s67 = sld [smem:[%s66]]
  %s68 = scalar_lea.smem %s0, 34
  %s69 = sld [smem:[%s68]]
  %s70 = scalar_lea.smem %s0, 35
  %s71 = sld [smem:[%s70]]
  %s72 = scalar_lea.smem %s0, 36
  %s73 = sld [smem:[%s72]]
  %s74 = scalar_lea.smem %s0, 37
  %s75 = sld [smem:[%s74]]
  %s76 = scalar_lea.smem %s0, 38
  %s77 = sld [smem:[%s76]]
  %s78 = scalar_lea.smem %s0, 39
  %s79 = sld [smem:[%s78]]
  %s80 = scalar_lea.smem %s0, 40
  %s81 = sld [smem:[%s80]]
  %s82 = scalar_lea.smem %s0, 41
  %s83 = sld [smem:[%s82]]
  %s84 = scalar_lea.smem %s0, 42
  %s85 = sld [smem:[%s84]]
  %s86 = scalar_lea.smem %s0, 43
  %s87 = sld [smem:[%s86]]
  %s88 = scalar_lea.smem %s0, 44
  %s89 = sld [smem:[%s88]]
  %s90 = sld [smem:[#allocation0]]
  $region221: #{_lambda_.1} parent=0
    _
  %s92 = ssub.s32 1, %s90
  %s93 = scalar_select 0, %s92, %s90
  $region1: #{_lambda_.1} parent=0
    #allocation2 [shape = 'u8[512]{0}', space=vmem, size = 0x400, scoped, tag = 'input window, operand 7, single buffered']
    #allocation3 [shape = 's32[2]{0}', space=sflag, size = 0x8, scoped, tag = 'scoped memory for _lambda_.1']
    #allocation4 [shape = 'u8[512]{0}', space=vmem, size = 0x400, scoped, tag = 'input window, operand 8, single buffered']
    #allocation5 [shape = 's32[1]{0}', space=sflag, size = 0x4, scoped, tag = 'scoped memory for _lambda_.1']
    #allocation6 [shape = 'u8[512]{0}', space=vmem, size = 0x400, scoped, tag = 'input window, operand 23, single buffered']
    %94 = vsyncpa [#allocation3], 0
    %95 = vsyncpa [#allocation5], 0
    loop: start=0, step=1, limit=4
    $region2: #{_lambda_.1} parent=1 // loop_pre_header
      _
    $region3: #{_lambda_.1} parent=1 // loop_header
      %s97 = sphi 0, %s101
      %p98 = scmp.ge.s32.totalorder %s97, 4
      %s107 = sphi 0, %s109
      %s110 = sphi 0, %s107
      %s111 = sphi 0, %s110
      %s127 = sphi 0, %s111
      %s133 = sphi 0, %s135
      %s136 = sphi 0, %s133
      %s137 = sphi 0, %s136
      %s153 = sphi 0, %s137
      %s159 = sphi 0, %s161
      %s162 = sphi 0, %s159
      %s163 = sphi 0, %s162
      %s179 = sphi 0, %s163
      %s183 = sphi 0, %s183
      %s185 = sphi 0, %s183
      %s186 = sphi 0, %s185
      %s200 = sphi 0, %s186
      %s204 = sphi 0, %s204
      %s206 = sphi 0, %s204
      %s207 = sphi 0, %s206
      %s221 = sphi 0, %s207
      %s225 = sphi 0, %s225
      %s227 = sphi 0, %s225
      %s228 = sphi 0, %s227
      %s242 = sphi 0, %s228
      %s246 = sphi 0, %s246
      %s248 = sphi 0, %s246
      %s249 = sphi 0, %s248
      %s263 = sphi 0, %s249
      %s267 = sphi 0, %s267
      %s269 = sphi 0, %s267
      %s270 = sphi 0, %s269
      %s284 = sphi 0, %s270
      %s288 = sphi 0, %s288
      %s290 = sphi 0, %s288
      %s291 = sphi 0, %s290
      %s305 = sphi 0, %s291
      %s309 = sphi 0, %s309
      %s311 = sphi 0, %s309
      %s312 = sphi 0, %s311
      %s326 = sphi 0, %s312
      %s330 = sphi 0, %s330
      %s332 = sphi 0, %s330
      %s333 = sphi 0, %s332
      %s347 = sphi 0, %s333
      %s351 = sphi 0, %s351
      %s353 = sphi 0, %s351
      %s354 = sphi 0, %s353
      %s368 = sphi 0, %s354
      %s372 = sphi 0, %s372
      %s374 = sphi 0, %s372
      %s375 = sphi 0, %s374
      %s389 = sphi 0, %s375
      %s393 = sphi 0, %s393
      %s395 = sphi 0, %s393
      %s396 = sphi 0, %s395
      %s410 = sphi 0, %s396
      %s414 = sphi 0, %s414
      %s416 = sphi 0, %s414
      %s417 = sphi 0, %s416
      %s431 = sphi 0, %s417
      %s435 = sphi 0, %s435
      %s437 = sphi 0, %s435
      %s438 = sphi 0, %s437
      %s452 = sphi 0, %s438
      %s456 = sphi 0, %s456
      %s458 = sphi 0, %s456
      %s459 = sphi 0, %s458
      %s473 = sphi 0, %s459
      %s477 = sphi 0, %s477
      %s479 = sphi 0, %s477
      %s480 = sphi 0, %s479
      %s494 = sphi 0, %s480
      %s498 = sphi 0, %s498
      %s500 = sphi 0, %s498
      %s501 = sphi 0, %s500
      %s515 = sphi 0, %s501
      %s519 = sphi 0, %s519
      %s521 = sphi 0, %s519
      %s522 = sphi 0, %s521
      %s536 = sphi 0, %s522
      %s540 = sphi 0, %s540
      %s542 = sphi 0, %s540
      %s543 = sphi 0, %s542
      %s557 = sphi 0, %s543
      %s561 = sphi 0, %s561
      %s563 = sphi 0, %s561
      %s564 = sphi 0, %s563
      %s578 = sphi 0, %s564
      %s582 = sphi 0, %s582
      %s584 = sphi 0, %s582
      %s585 = sphi 0, %s584
      %s599 = sphi 0, %s585
      %s603 = sphi 0, %s603
      %s605 = sphi 0, %s603
      %s606 = sphi 0, %s605
      %s620 = sphi 0, %s606
      %s624 = sphi 0, %s624
      %s626 = sphi 0, %s624
      %s627 = sphi 0, %s626
      %s641 = sphi 0, %s627
      %s645 = sphi 0, %s645
      %s647 = sphi 0, %s645
      %s648 = sphi 0, %s647
      %s662 = sphi 0, %s648
      %s666 = sphi 0, %s666
      %s668 = sphi 0, %s666
      %s669 = sphi 0, %s668
      %s683 = sphi 0, %s669
      %s687 = sphi 0, %s687
      %s689 = sphi 0, %s687
      %s690 = sphi 0, %s689
      %s704 = sphi 0, %s690
      %s708 = sphi 0, %s708
      %s710 = sphi 0, %s708
      %s711 = sphi 0, %s710
      %s725 = sphi 0, %s711
      %s729 = sphi 0, %s729
      %s731 = sphi 0, %s729
      %s732 = sphi 0, %s731
      %s746 = sphi 0, %s732
      %s750 = sphi 0, %s750
      %s752 = sphi 0, %s750
      %s753 = sphi 0, %s752
      %s767 = sphi 0, %s753
      %s771 = sphi 0, %s771
      %s773 = sphi 0, %s771
      %s774 = sphi 0, %s773
      %s788 = sphi 0, %s774
      %s792 = sphi 0, %s792
      %s794 = sphi 0, %s792
      %s795 = sphi 0, %s794
      %s809 = sphi 0, %s795
      %s813 = sphi 0, %s813
      %s815 = sphi 0, %s813
      %s816 = sphi 0, %s815
      %s830 = sphi 0, %s816
      %s834 = sphi 0, %s834
      %s836 = sphi 0, %s834
      %s837 = sphi 0, %s836
      %s851 = sphi 0, %s837
      %s855 = sphi 0, %s855
      %s857 = sphi 0, %s855
      %s858 = sphi 0, %s857
      %s872 = sphi 0, %s858
      %s876 = sphi 0, %s876
      %s878 = sphi 0, %s876
      %s879 = sphi 0, %s878
      %s893 = sphi 0, %s879
      %s897 = sphi 0, %s897
      %s899 = sphi 0, %s897
      %s900 = sphi 0, %s899
      %s914 = sphi 0, %s900
      %s918 = sphi 0, %s918
      %s920 = sphi 0, %s918
      %s921 = sphi 0, %s920
      %s935 = sphi 0, %s921
      %s939 = sphi 0, %s939
      %s941 = sphi 0, %s939
      %s942 = sphi 0, %s941
      %s956 = sphi 0, %s942
      %s960 = sphi 0, %s960
      %s962 = sphi 0, %s960
      %s963 = sphi 0, %s962
      %s977 = sphi 0, %s963
      %s981 = sphi 0, %s981
      %s983 = sphi 0, %s981
      %s984 = sphi 0, %s983
      %s998 = sphi 0, %s984
      %s1002 = sphi 0, %s1002
      %s1004 = sphi 0, %s1002
      %s1005 = sphi 0, %s1004
      %s1019 = sphi 0, %s1005
      %s1023 = sphi 0, %s1023
      %s1025 = sphi 0, %s1023
      %s1026 = sphi 0, %s1025
      %s1040 = sphi 0, %s1026
      %s1046 = sphi 0, %s1048
      %s1049 = sphi 0, %s1046
      %s1050 = sphi 0, %s1049
      %s1066 = sphi 0, %s1050
    $region4: #{_lambda_.1} parent=1 // loop_header_branch
      %100 = sbr.rel (%p98) target = $region8
    $region5: #{_lambda_.1} parent=1 // loop_body
      %s102 = ssub.s32 %s97, 1
      %s103 = ssub.s32 %s97, 2
      %s104 = sadd.s32 %s97, 1
      %s105 = ssub.s32 %s97, %s104
      %p106 = scmp.eq.s32.totalorder %s105, 0
      %s108 = sadd.s32 %s107, 1
      %s109 = scalar_select %p106, %s107, %s108
      %p112 = pneg %p106
      %p113 = scmp.eq.s32.totalorder %s97, 1
      %p114 = por %p112, %p113
      %p115 = scmp.ne.s32.totalorder %s107, %s110
      %p116 = scmp.eq.s32.totalorder %s97, 0
      %p117 = por %p115, %p116
      %p118 = scmp.ne.s32.totalorder %s107, %s110
      %p119 = scmp.eq.s32.totalorder %s102, 1
      %p120 = por %p118, %p119
      %p121 = scmp.ne.s32.totalorder %s110, %s111
      %p122 = scmp.eq.s32.totalorder %s102, 0
      %p123 = por %p121, %p122
      %p124 = scmp.ne.s32.totalorder %s110, %s111
      %p125 = scmp.eq.s32.totalorder %s103, 1
      %p126 = por %p124, %p125
      %p128 = scmp.ne.s32.totalorder %s111, %s127
      %p129 = scmp.eq.s32.totalorder %s103, 0
      %p130 = por %p128, %p129
      %s131 = ssub.s32 %s97, %s104
      %p132 = scmp.eq.s32.totalorder %s131, 0
      %s134 = sadd.s32 %s133, 1
      %s135 = scalar_select %p132, %s133, %s134
      %p138 = pneg %p132
      %p139 = scmp.eq.s32.totalorder %s97, 1
      %p140 = por %p138, %p139
      %p141 = scmp.ne.s32.totalorder %s133, %s136
      %p142 = scmp.eq.s32.totalorder %s97, 0
      %p143 = por %p141, %p142
      %p144 = scmp.ne.s32.totalorder %s133, %s136
      %p145 = scmp.eq.s32.totalorder %s102, 1
      %p146 = por %p144, %p145
      %p147 = scmp.ne.s32.totalorder %s136, %s137
      %p148 = scmp.eq.s32.totalorder %s102, 0
      %p149 = por %p147, %p148
      %p150 = scmp.ne.s32.totalorder %s136, %s137
      %p151 = scmp.eq.s32.totalorder %s103, 1
      %p152 = por %p150, %p151
      %p154 = scmp.ne.s32.totalorder %s137, %s153
      %p155 = scmp.eq.s32.totalorder %s103, 0
      %p156 = por %p154, %p155
      %s157 = ssub.s32 %s97, %s104
      %p158 = scmp.eq.s32.totalorder %s157, 0
      %s160 = sadd.s32 %s159, 1
      %s161 = scalar_select %p158, %s159, %s160
      %p164 = pneg %p158
      %p165 = scmp.eq.s32.totalorder %s97, 1
      %p166 = por %p164, %p165
      %p167 = scmp.ne.s32.totalorder %s159, %s162
      %p168 = scmp.eq.s32.totalorder %s97, 0
      %p169 = por %p167, %p168
      %p170 = scmp.ne.s32.totalorder %s159, %s162
      %p171 = scmp.eq.s32.totalorder %s102, 1
      %p172 = por %p170, %p171
      %p173 = scmp.ne.s32.totalorder %s162, %s163
      %p174 = scmp.eq.s32.totalorder %s102, 0
      %p175 = por %p173, %p174
      %p176 = scmp.ne.s32.totalorder %s162, %s163
      %p177 = scmp.eq.s32.totalorder %s103, 1
      %p178 = por %p176, %p177
      %p180 = scmp.ne.s32.totalorder %s163, %s179
      %p181 = scmp.eq.s32.totalorder %s103, 0
      %p182 = por %p180, %p181
      %s184 = sadd.s32 %s183, 1
      %p187 = scmp.eq.s32.totalorder %s97, 1
      %p188 = scmp.ne.s32.totalorder %s183, %s185
      %p189 = scmp.eq.s32.totalorder %s97, 0
      %p190 = por %p188, %p189
      %p191 = scmp.ne.s32.totalorder %s183, %s185
      %p192 = scmp.eq.s32.totalorder %s102, 1
      %p193 = por %p191, %p192
      %p194 = scmp.ne.s32.totalorder %s185, %s186
      %p195 = scmp.eq.s32.totalorder %s102, 0
      %p196 = por %p194, %p195
      %p197 = scmp.ne.s32.totalorder %s185, %s186
      %p198 = scmp.eq.s32.totalorder %s103, 1
      %p199 = por %p197, %p198
      %p201 = scmp.ne.s32.totalorder %s186, %s200
      %p202 = scmp.eq.s32.totalorder %s103, 0
      %p203 = por %p201, %p202
      %s205 = sadd.s32 %s204, 1
      %p208 = scmp.eq.s32.totalorder %s97, 1
      %p209 = scmp.ne.s32.totalorder %s204, %s206
      %p210 = scmp.eq.s32.totalorder %s97, 0
      %p211 = por %p209, %p210
      %p212 = scmp.ne.s32.totalorder %s204, %s206
      %p213 = scmp.eq.s32.totalorder %s102, 1
      %p214 = por %p212, %p213
      %p215 = scmp.ne.s32.totalorder %s206, %s207
      %p216 = scmp.eq.s32.totalorder %s102, 0
      %p217 = por %p215, %p216
      %p218 = scmp.ne.s32.totalorder %s206, %s207
      %p219 = scmp.eq.s32.totalorder %s103, 1
      %p220 = por %p218, %p219
      %p222 = scmp.ne.s32.totalorder %s207, %s221
      %p223 = scmp.eq.s32.totalorder %s103, 0
      %p224 = por %p222, %p223
      %s226 = sadd.s32 %s225, 1
      %p229 = scmp.eq.s32.totalorder %s97, 1
      %p230 = scmp.ne.s32.totalorder %s225, %s227
      %p231 = scmp.eq.s32.totalorder %s97, 0
      %p232 = por %p230, %p231
      %p233 = scmp.ne.s32.totalorder %s225, %s227
      %p234 = scmp.eq.s32.totalorder %s102, 1
      %p235 = por %p233, %p234
      %p236 = scmp.ne.s32.totalorder %s227, %s228
      %p237 = scmp.eq.s32.totalorder %s102, 0
      %p238 = por %p236, %p237
      %p239 = scmp.ne.s32.totalorder %s227, %s228
      %p240 = scmp.eq.s32.totalorder %s103, 1
      %p241 = por %p239, %p240
      %p243 = scmp.ne.s32.totalorder %s228, %s242
      %p244 = scmp.eq.s32.totalorder %s103, 0
      %p245 = por %p243, %p244
      %s247 = sadd.s32 %s246, 1
      %p250 = scmp.eq.s32.totalorder %s97, 1
      %p251 = scmp.ne.s32.totalorder %s246, %s248
      %p252 = scmp.eq.s32.totalorder %s97, 0
      %p253 = por %p251, %p252
      %p254 = scmp.ne.s32.totalorder %s246, %s248
      %p255 = scmp.eq.s32.totalorder %s102, 1
      %p256 = por %p254, %p255
      %p257 = scmp.ne.s32.totalorder %s248, %s249
      %p258 = scmp.eq.s32.totalorder %s102, 0
      %p259 = por %p257, %p258
      %p260 = scmp.ne.s32.totalorder %s248, %s249
      %p261 = scmp.eq.s32.totalorder %s103, 1
      %p262 = por %p260, %p261
      %p264 = scmp.ne.s32.totalorder %s249, %s263
      %p265 = scmp.eq.s32.totalorder %s103, 0
      %p266 = por %p264, %p265
      %s268 = sadd.s32 %s267, 1
      %p271 = scmp.eq.s32.totalorder %s97, 1
      %p272 = scmp.ne.s32.totalorder %s267, %s269
      %p273 = scmp.eq.s32.totalorder %s97, 0
      %p274 = por %p272, %p273
      %p275 = scmp.ne.s32.totalorder %s267, %s269
      %p276 = scmp.eq.s32.totalorder %s102, 1
      %p277 = por %p275, %p276
      %p278 = scmp.ne.s32.totalorder %s269, %s270
      %p279 = scmp.eq.s32.totalorder %s102, 0
      %p280 = por %p278, %p279
      %p281 = scmp.ne.s32.totalorder %s269, %s270
      %p282 = scmp.eq.s32.totalorder %s103, 1
      %p283 = por %p281, %p282
      %p285 = scmp.ne.s32.totalorder %s270, %s284
      %p286 = scmp.eq.s32.totalorder %s103, 0
      %p287 = por %p285, %p286
      %s289 = sadd.s32 %s288, 1
      %p292 = scmp.eq.s32.totalorder %s97, 1
      %p293 = scmp.ne.s32.totalorder %s288, %s290
      %p294 = scmp.eq.s32.totalorder %s97, 0
      %p295 = por %p293, %p294
      %p296 = scmp.ne.s32.totalorder %s288, %s290
      %p297 = scmp.eq.s32.totalorder %s102, 1
      %p298 = por %p296, %p297
      %p299 = scmp.ne.s32.totalorder %s290, %s291
      %p300 = scmp.eq.s32.totalorder %s102, 0
      %p301 = por %p299, %p300
      %p302 = scmp.ne.s32.totalorder %s290, %s291
      %p303 = scmp.eq.s32.totalorder %s103, 1
      %p304 = por %p302, %p303
      %p306 = scmp.ne.s32.totalorder %s291, %s305
      %p307 = scmp.eq.s32.totalorder %s103, 0
      %p308 = por %p306, %p307
      %s310 = sadd.s32 %s309, 1
      %p313 = scmp.eq.s32.totalorder %s97, 1
      %p314 = scmp.ne.s32.totalorder %s309, %s311
      %p315 = scmp.eq.s32.totalorder %s97, 0
      %p316 = por %p314, %p315
      %p317 = scmp.ne.s32.totalorder %s309, %s311
      %p318 = scmp.eq.s32.totalorder %s102, 1
      %p319 = por %p317, %p318
      %p320 = scmp.ne.s32.totalorder %s311, %s312
      %p321 = scmp.eq.s32.totalorder %s102, 0
      %p322 = por %p320, %p321
      %p323 = scmp.ne.s32.totalorder %s311, %s312
      %p324 = scmp.eq.s32.totalorder %s103, 1
      %p325 = por %p323, %p324
      %p327 = scmp.ne.s32.totalorder %s312, %s326
      %p328 = scmp.eq.s32.totalorder %s103, 0
      %p329 = por %p327, %p328
      %s331 = sadd.s32 %s330, 1
      %p334 = scmp.eq.s32.totalorder %s97, 1
      %p335 = scmp.ne.s32.totalorder %s330, %s332
      %p336 = scmp.eq.s32.totalorder %s97, 0
      %p337 = por %p335, %p336
      %p338 = scmp.ne.s32.totalorder %s330, %s332
      %p339 = scmp.eq.s32.totalorder %s102, 1
      %p340 = por %p338, %p339
      %p341 = scmp.ne.s32.totalorder %s332, %s333
      %p342 = scmp.eq.s32.totalorder %s102, 0
      %p343 = por %p341, %p342
      %p344 = scmp.ne.s32.totalorder %s332, %s333
      %p345 = scmp.eq.s32.totalorder %s103, 1
      %p346 = por %p344, %p345
      %p348 = scmp.ne.s32.totalorder %s333, %s347
      %p349 = scmp.eq.s32.totalorder %s103, 0
      %p350 = por %p348, %p349
      %s352 = sadd.s32 %s351, 1
      %p355 = scmp.eq.s32.totalorder %s97, 1
      %p356 = scmp.ne.s32.totalorder %s351, %s353
      %p357 = scmp.eq.s32.totalorder %s97, 0
      %p358 = por %p356, %p357
      %p359 = scmp.ne.s32.totalorder %s351, %s353
      %p360 = scmp.eq.s32.totalorder %s102, 1
      %p361 = por %p359, %p360
      %p362 = scmp.ne.s32.totalorder %s353, %s354
      %p363 = scmp.eq.s32.totalorder %s102, 0
      %p364 = por %p362, %p363
      %p365 = scmp.ne.s32.totalorder %s353, %s354
      %p366 = scmp.eq.s32.totalorder %s103, 1
      %p367 = por %p365, %p366
      %p369 = scmp.ne.s32.totalorder %s354, %s368
      %p370 = scmp.eq.s32.totalorder %s103, 0
      %p371 = por %p369, %p370
      %s373 = sadd.s32 %s372, 1
      %p376 = scmp.eq.s32.totalorder %s97, 1
      %p377 = scmp.ne.s32.totalorder %s372, %s374
      %p378 = scmp.eq.s32.totalorder %s97, 0
      %p379 = por %p377, %p378
      %p380 = scmp.ne.s32.totalorder %s372, %s374
      %p381 = scmp.eq.s32.totalorder %s102, 1
      %p382 = por %p380, %p381
      %p383 = scmp.ne.s32.totalorder %s374, %s375
      %p384 = scmp.eq.s32.totalorder %s102, 0
      %p385 = por %p383, %p384
      %p386 = scmp.ne.s32.totalorder %s374, %s375
      %p387 = scmp.eq.s32.totalorder %s103, 1
      %p388 = por %p386, %p387
      %p390 = scmp.ne.s32.totalorder %s375, %s389
      %p391 = scmp.eq.s32.totalorder %s103, 0
      %p392 = por %p390, %p391
      %s394 = sadd.s32 %s393, 1
      %p397 = scmp.eq.s32.totalorder %s97, 1
      %p398 = scmp.ne.s32.totalorder %s393, %s395
      %p399 = scmp.eq.s32.totalorder %s97, 0
      %p400 = por %p398, %p399
      %p401 = scmp.ne.s32.totalorder %s393, %s395
      %p402 = scmp.eq.s32.totalorder %s102, 1
      %p403 = por %p401, %p402
      %p404 = scmp.ne.s32.totalorder %s395, %s396
      %p405 = scmp.eq.s32.totalorder %s102, 0
      %p406 = por %p404, %p405
      %p407 = scmp.ne.s32.totalorder %s395, %s396
      %p408 = scmp.eq.s32.totalorder %s103, 1
      %p409 = por %p407, %p408
      %p411 = scmp.ne.s32.totalorder %s396, %s410
      %p412 = scmp.eq.s32.totalorder %s103, 0
      %p413 = por %p411, %p412
      %s415 = sadd.s32 %s414, 1
      %p418 = scmp.eq.s32.totalorder %s97, 1
      %p419 = scmp.ne.s32.totalorder %s414, %s416
      %p420 = scmp.eq.s32.totalorder %s97, 0
      %p421 = por %p419, %p420
      %p422 = scmp.ne.s32.totalorder %s414, %s416
      %p423 = scmp.eq.s32.totalorder %s102, 1
      %p424 = por %p422, %p423
      %p425 = scmp.ne.s32.totalorder %s416, %s417
      %p426 = scmp.eq.s32.totalorder %s102, 0
      %p427 = por %p425, %p426
      %p428 = scmp.ne.s32.totalorder %s416, %s417
      %p429 = scmp.eq.s32.totalorder %s103, 1
      %p430 = por %p428, %p429
      %p432 = scmp.ne.s32.totalorder %s417, %s431
      %p433 = scmp.eq.s32.totalorder %s103, 0
      %p434 = por %p432, %p433
      %s436 = sadd.s32 %s435, 1
      %p439 = scmp.eq.s32.totalorder %s97, 1
      %p440 = scmp.ne.s32.totalorder %s435, %s437
      %p441 = scmp.eq.s32.totalorder %s97, 0
      %p442 = por %p440, %p441
      %p443 = scmp.ne.s32.totalorder %s435, %s437
      %p444 = scmp.eq.s32.totalorder %s102, 1
      %p445 = por %p443, %p444
      %p446 = scmp.ne.s32.totalorder %s437, %s438
      %p447 = scmp.eq.s32.totalorder %s102, 0
      %p448 = por %p446, %p447
      %p449 = scmp.ne.s32.totalorder %s437, %s438
      %p450 = scmp.eq.s32.totalorder %s103, 1
      %p451 = por %p449, %p450
      %p453 = scmp.ne.s32.totalorder %s438, %s452
      %p454 = scmp.eq.s32.totalorder %s103, 0
      %p455 = por %p453, %p454
      %s457 = sadd.s32 %s456, 1
      %p460 = scmp.eq.s32.totalorder %s97, 1
      %p461 = scmp.ne.s32.totalorder %s456, %s458
      %p462 = scmp.eq.s32.totalorder %s97, 0
      %p463 = por %p461, %p462
      %p464 = scmp.ne.s32.totalorder %s456, %s458
      %p465 = scmp.eq.s32.totalorder %s102, 1
      %p466 = por %p464, %p465
      %p467 = scmp.ne.s32.totalorder %s458, %s459
      %p468 = scmp.eq.s32.totalorder %s102, 0
      %p469 = por %p467, %p468
      %p470 = scmp.ne.s32.totalorder %s458, %s459
      %p471 = scmp.eq.s32.totalorder %s103, 1
      %p472 = por %p470, %p471
      %p474 = scmp.ne.s32.totalorder %s459, %s473
      %p475 = scmp.eq.s32.totalorder %s103, 0
      %p476 = por %p474, %p475
      %s478 = sadd.s32 %s477, 1
      %p481 = scmp.eq.s32.totalorder %s97, 1
      %p482 = scmp.ne.s32.totalorder %s477, %s479
      %p483 = scmp.eq.s32.totalorder %s97, 0
      %p484 = por %p482, %p483
      %p485 = scmp.ne.s32.totalorder %s477, %s479
      %p486 = scmp.eq.s32.totalorder %s102, 1
      %p487 = por %p485, %p486
      %p488 = scmp.ne.s32.totalorder %s479, %s480
      %p489 = scmp.eq.s32.totalorder %s102, 0
      %p490 = por %p488, %p489
      %p491 = scmp.ne.s32.totalorder %s479, %s480
      %p492 = scmp.eq.s32.totalorder %s103, 1
      %p493 = por %p491, %p492
      %p495 = scmp.ne.s32.totalorder %s480, %s494
      %p496 = scmp.eq.s32.totalorder %s103, 0
      %p497 = por %p495, %p496
      %s499 = sadd.s32 %s498, 1
      %p502 = scmp.eq.s32.totalorder %s97, 1
      %p503 = scmp.ne.s32.totalorder %s498, %s500
      %p504 = scmp.eq.s32.totalorder %s97, 0
      %p505 = por %p503, %p504
      %p506 = scmp.ne.s32.totalorder %s498, %s500
      %p507 = scmp.eq.s32.totalorder %s102, 1
      %p508 = por %p506, %p507
      %p509 = scmp.ne.s32.totalorder %s500, %s501
      %p510 = scmp.eq.s32.totalorder %s102, 0
      %p511 = por %p509, %p510
      %p512 = scmp.ne.s32.totalorder %s500, %s501
      %p513 = scmp.eq.s32.totalorder %s103, 1
      %p514 = por %p512, %p513
      %p516 = scmp.ne.s32.totalorder %s501, %s515
      %p517 = scmp.eq.s32.totalorder %s103, 0
      %p518 = por %p516, %p517
      %s520 = sadd.s32 %s519, 1
      %p523 = scmp.eq.s32.totalorder %s97, 1
      %p524 = scmp.ne.s32.totalorder %s519, %s521
      %p525 = scmp.eq.s32.totalorder %s97, 0
      %p526 = por %p524, %p525
      %p527 = scmp.ne.s32.totalorder %s519, %s521
      %p528 = scmp.eq.s32.totalorder %s102, 1
      %p529 = por %p527, %p528
      %p530 = scmp.ne.s32.totalorder %s521, %s522
      %p531 = scmp.eq.s32.totalorder %s102, 0
      %p532 = por %p530, %p531
      %p533 = scmp.ne.s32.totalorder %s521, %s522
      %p534 = scmp.eq.s32.totalorder %s103, 1
      %p535 = por %p533, %p534
      %p537 = scmp.ne.s32.totalorder %s522, %s536
      %p538 = scmp.eq.s32.totalorder %s103, 0
      %p539 = por %p537, %p538
      %s541 = sadd.s32 %s540, 1
      %p544 = scmp.eq.s32.totalorder %s97, 1
      %p545 = scmp.ne.s32.totalorder %s540, %s542
      %p546 = scmp.eq.s32.totalorder %s97, 0
      %p547 = por %p545, %p546
      %p548 = scmp.ne.s32.totalorder %s540, %s542
      %p549 = scmp.eq.s32.totalorder %s102, 1
      %p550 = por %p548, %p549
      %p551 = scmp.ne.s32.totalorder %s542, %s543
      %p552 = scmp.eq.s32.totalorder %s102, 0
      %p553 = por %p551, %p552
      %p554 = scmp.ne.s32.totalorder %s542, %s543
      %p555 = scmp.eq.s32.totalorder %s103, 1
      %p556 = por %p554, %p555
      %p558 = scmp.ne.s32.totalorder %s543, %s557
      %p559 = scmp.eq.s32.totalorder %s103, 0
      %p560 = por %p558, %p559
      %s562 = sadd.s32 %s561, 1
      %p565 = scmp.eq.s32.totalorder %s97, 1
      %p566 = scmp.ne.s32.totalorder %s561, %s563
      %p567 = scmp.eq.s32.totalorder %s97, 0
      %p568 = por %p566, %p567
      %p569 = scmp.ne.s32.totalorder %s561, %s563
      %p570 = scmp.eq.s32.totalorder %s102, 1
      %p571 = por %p569, %p570
      %p572 = scmp.ne.s32.totalorder %s563, %s564
      %p573 = scmp.eq.s32.totalorder %s102, 0
      %p574 = por %p572, %p573
      %p575 = scmp.ne.s32.totalorder %s563, %s564
      %p576 = scmp.eq.s32.totalorder %s103, 1
      %p577 = por %p575, %p576
      %p579 = scmp.ne.s32.totalorder %s564, %s578
      %p580 = scmp.eq.s32.totalorder %s103, 0
      %p581 = por %p579, %p580
      %s583 = sadd.s32 %s582, 1
      %p586 = scmp.eq.s32.totalorder %s97, 1
      %p587 = scmp.ne.s32.totalorder %s582, %s584
      %p588 = scmp.eq.s32.totalorder %s97, 0
      %p589 = por %p587, %p588
      %p590 = scmp.ne.s32.totalorder %s582, %s584
      %p591 = scmp.eq.s32.totalorder %s102, 1
      %p592 = por %p590, %p591
      %p593 = scmp.ne.s32.totalorder %s584, %s585
      %p594 = scmp.eq.s32.totalorder %s102, 0
      %p595 = por %p593, %p594
      %p596 = scmp.ne.s32.totalorder %s584, %s585
      %p597 = scmp.eq.s32.totalorder %s103, 1
      %p598 = por %p596, %p597
      %p600 = scmp.ne.s32.totalorder %s585, %s599
      %p601 = scmp.eq.s32.totalorder %s103, 0
      %p602 = por %p600, %p601
      %s604 = sadd.s32 %s603, 1
      %p607 = scmp.eq.s32.totalorder %s97, 1
      %p608 = scmp.ne.s32.totalorder %s603, %s605
      %p609 = scmp.eq.s32.totalorder %s97, 0
      %p610 = por %p608, %p609
      %p611 = scmp.ne.s32.totalorder %s603, %s605
      %p612 = scmp.eq.s32.totalorder %s102, 1
      %p613 = por %p611, %p612
      %p614 = scmp.ne.s32.totalorder %s605, %s606
      %p615 = scmp.eq.s32.totalorder %s102, 0
      %p616 = por %p614, %p615
      %p617 = scmp.ne.s32.totalorder %s605, %s606
      %p618 = scmp.eq.s32.totalorder %s103, 1
      %p619 = por %p617, %p618
      %p621 = scmp.ne.s32.totalorder %s606, %s620
      %p622 = scmp.eq.s32.totalorder %s103, 0
      %p623 = por %p621, %p622
      %s625 = sadd.s32 %s624, 1
      %p628 = scmp.eq.s32.totalorder %s97, 1
      %p629 = scmp.ne.s32.totalorder %s624, %s626
      %p630 = scmp.eq.s32.totalorder %s97, 0
      %p631 = por %p629, %p630
      %p632 = scmp.ne.s32.totalorder %s624, %s626
      %p633 = scmp.eq.s32.totalorder %s102, 1
      %p634 = por %p632, %p633
      %p635 = scmp.ne.s32.totalorder %s626, %s627
      %p636 = scmp.eq.s32.totalorder %s102, 0
      %p637 = por %p635, %p636
      %p638 = scmp.ne.s32.totalorder %s626, %s627
      %p639 = scmp.eq.s32.totalorder %s103, 1
      %p640 = por %p638, %p639
      %p642 = scmp.ne.s32.totalorder %s627, %s641
      %p643 = scmp.eq.s32.totalorder %s103, 0
      %p644 = por %p642, %p643
      %s646 = sadd.s32 %s645, 1
      %p649 = scmp.eq.s32.totalorder %s97, 1
      %p650 = scmp.ne.s32.totalorder %s645, %s647
      %p651 = scmp.eq.s32.totalorder %s97, 0
      %p652 = por %p650, %p651
      %p653 = scmp.ne.s32.totalorder %s645, %s647
      %p654 = scmp.eq.s32.totalorder %s102, 1
      %p655 = por %p653, %p654
      %p656 = scmp.ne.s32.totalorder %s647, %s648
      %p657 = scmp.eq.s32.totalorder %s102, 0
      %p658 = por %p656, %p657
      %p659 = scmp.ne.s32.totalorder %s647, %s648
      %p660 = scmp.eq.s32.totalorder %s103, 1
      %p661 = por %p659, %p660
      %p663 = scmp.ne.s32.totalorder %s648, %s662
      %p664 = scmp.eq.s32.totalorder %s103, 0
      %p665 = por %p663, %p664
      %s667 = sadd.s32 %s666, 1
      %p670 = scmp.eq.s32.totalorder %s97, 1
      %p671 = scmp.ne.s32.totalorder %s666, %s668
      %p672 = scmp.eq.s32.totalorder %s97, 0
      %p673 = por %p671, %p672
      %p674 = scmp.ne.s32.totalorder %s666, %s668
      %p675 = scmp.eq.s32.totalorder %s102, 1
      %p676 = por %p674, %p675
      %p677 = scmp.ne.s32.totalorder %s668, %s669
      %p678 = scmp.eq.s32.totalorder %s102, 0
      %p679 = por %p677, %p678
      %p680 = scmp.ne.s32.totalorder %s668, %s669
      %p681 = scmp.eq.s32.totalorder %s103, 1
      %p682 = por %p680, %p681
      %p684 = scmp.ne.s32.totalorder %s669, %s683
      %p685 = scmp.eq.s32.totalorder %s103, 0
      %p686 = por %p684, %p685
      %s688 = sadd.s32 %s687, 1
      %p691 = scmp.eq.s32.totalorder %s97, 1
      %p692 = scmp.ne.s32.totalorder %s687, %s689
      %p693 = scmp.eq.s32.totalorder %s97, 0
      %p694 = por %p692, %p693
      %p695 = scmp.ne.s32.totalorder %s687, %s689
      %p696 = scmp.eq.s32.totalorder %s102, 1
      %p697 = por %p695, %p696
      %p698 = scmp.ne.s32.totalorder %s689, %s690
      %p699 = scmp.eq.s32.totalorder %s102, 0
      %p700 = por %p698, %p699
      %p701 = scmp.ne.s32.totalorder %s689, %s690
      %p702 = scmp.eq.s32.totalorder %s103, 1
      %p703 = por %p701, %p702
      %p705 = scmp.ne.s32.totalorder %s690, %s704
      %p706 = scmp.eq.s32.totalorder %s103, 0
      %p707 = por %p705, %p706
      %s709 = sadd.s32 %s708, 1
      %p712 = scmp.eq.s32.totalorder %s97, 1
      %p713 = scmp.ne.s32.totalorder %s708, %s710
      %p714 = scmp.eq.s32.totalorder %s97, 0
      %p715 = por %p713, %p714
      %p716 = scmp.ne.s32.totalorder %s708, %s710
      %p717 = scmp.eq.s32.totalorder %s102, 1
      %p718 = por %p716, %p717
      %p719 = scmp.ne.s32.totalorder %s710, %s711
      %p720 = scmp.eq.s32.totalorder %s102, 0
      %p721 = por %p719, %p720
      %p722 = scmp.ne.s32.totalorder %s710, %s711
      %p723 = scmp.eq.s32.totalorder %s103, 1
      %p724 = por %p722, %p723
      %p726 = scmp.ne.s32.totalorder %s711, %s725
      %p727 = scmp.eq.s32.totalorder %s103, 0
      %p728 = por %p726, %p727
      %s730 = sadd.s32 %s729, 1
      %p733 = scmp.eq.s32.totalorder %s97, 1
      %p734 = scmp.ne.s32.totalorder %s729, %s731
      %p735 = scmp.eq.s32.totalorder %s97, 0
      %p736 = por %p734, %p735
      %p737 = scmp.ne.s32.totalorder %s729, %s731
      %p738 = scmp.eq.s32.totalorder %s102, 1
      %p739 = por %p737, %p738
      %p740 = scmp.ne.s32.totalorder %s731, %s732
      %p741 = scmp.eq.s32.totalorder %s102, 0
      %p742 = por %p740, %p741
      %p743 = scmp.ne.s32.totalorder %s731, %s732
      %p744 = scmp.eq.s32.totalorder %s103, 1
      %p745 = por %p743, %p744
      %p747 = scmp.ne.s32.totalorder %s732, %s746
      %p748 = scmp.eq.s32.totalorder %s103, 0
      %p749 = por %p747, %p748
      %s751 = sadd.s32 %s750, 1
      %p754 = scmp.eq.s32.totalorder %s97, 1
      %p755 = scmp.ne.s32.totalorder %s750, %s752
      %p756 = scmp.eq.s32.totalorder %s97, 0
      %p757 = por %p755, %p756
      %p758 = scmp.ne.s32.totalorder %s750, %s752
      %p759 = scmp.eq.s32.totalorder %s102, 1
      %p760 = por %p758, %p759
      %p761 = scmp.ne.s32.totalorder %s752, %s753
      %p762 = scmp.eq.s32.totalorder %s102, 0
      %p763 = por %p761, %p762
      %p764 = scmp.ne.s32.totalorder %s752, %s753
      %p765 = scmp.eq.s32.totalorder %s103, 1
      %p766 = por %p764, %p765
      %p768 = scmp.ne.s32.totalorder %s753, %s767
      %p769 = scmp.eq.s32.totalorder %s103, 0
      %p770 = por %p768, %p769
      %s772 = sadd.s32 %s771, 1
      %p775 = scmp.eq.s32.totalorder %s97, 1
      %p776 = scmp.ne.s32.totalorder %s771, %s773
      %p777 = scmp.eq.s32.totalorder %s97, 0
      %p778 = por %p776, %p777
      %p779 = scmp.ne.s32.totalorder %s771, %s773
      %p780 = scmp.eq.s32.totalorder %s102, 1
      %p781 = por %p779, %p780
      %p782 = scmp.ne.s32.totalorder %s773, %s774
      %p783 = scmp.eq.s32.totalorder %s102, 0
      %p784 = por %p782, %p783
      %p785 = scmp.ne.s32.totalorder %s773, %s774
      %p786 = scmp.eq.s32.totalorder %s103, 1
      %p787 = por %p785, %p786
      %p789 = scmp.ne.s32.totalorder %s774, %s788
      %p790 = scmp.eq.s32.totalorder %s103, 0
      %p791 = por %p789, %p790
      %s793 = sadd.s32 %s792, 1
      %p796 = scmp.eq.s32.totalorder %s97, 1
      %p797 = scmp.ne.s32.totalorder %s792, %s794
      %p798 = scmp.eq.s32.totalorder %s97, 0
      %p799 = por %p797, %p798
      %p800 = scmp.ne.s32.totalorder %s792, %s794
      %p801 = scmp.eq.s32.totalorder %s102, 1
      %p802 = por %p800, %p801
      %p803 = scmp.ne.s32.totalorder %s794, %s795
      %p804 = scmp.eq.s32.totalorder %s102, 0
      %p805 = por %p803, %p804
      %p806 = scmp.ne.s32.totalorder %s794, %s795
      %p807 = scmp.eq.s32.totalorder %s103, 1
      %p808 = por %p806, %p807
      %p810 = scmp.ne.s32.totalorder %s795, %s809
      %p811 = scmp.eq.s32.totalorder %s103, 0
      %p812 = por %p810, %p811
      %s814 = sadd.s32 %s813, 1
      %p817 = scmp.eq.s32.totalorder %s97, 1
      %p818 = scmp.ne.s32.totalorder %s813, %s815
      %p819 = scmp.eq.s32.totalorder %s97, 0
      %p820 = por %p818, %p819
      %p821 = scmp.ne.s32.totalorder %s813, %s815
      %p822 = scmp.eq.s32.totalorder %s102, 1
      %p823 = por %p821, %p822
      %p824 = scmp.ne.s32.totalorder %s815, %s816
      %p825 = scmp.eq.s32.totalorder %s102, 0
      %p826 = por %p824, %p825
      %p827 = scmp.ne.s32.totalorder %s815, %s816
      %p828 = scmp.eq.s32.totalorder %s103, 1
      %p829 = por %p827, %p828
      %p831 = scmp.ne.s32.totalorder %s816, %s830
      %p832 = scmp.eq.s32.totalorder %s103, 0
      %p833 = por %p831, %p832
      %s835 = sadd.s32 %s834, 1
      %p838 = scmp.eq.s32.totalorder %s97, 1
      %p839 = scmp.ne.s32.totalorder %s834, %s836
      %p840 = scmp.eq.s32.totalorder %s97, 0
      %p841 = por %p839, %p840
      %p842 = scmp.ne.s32.totalorder %s834, %s836
      %p843 = scmp.eq.s32.totalorder %s102, 1
      %p844 = por %p842, %p843
      %p845 = scmp.ne.s32.totalorder %s836, %s837
      %p846 = scmp.eq.s32.totalorder %s102, 0
      %p847 = por %p845, %p846
      %p848 = scmp.ne.s32.totalorder %s836, %s837
      %p849 = scmp.eq.s32.totalorder %s103, 1
      %p850 = por %p848, %p849
      %p852 = scmp.ne.s32.totalorder %s837, %s851
      %p853 = scmp.eq.s32.totalorder %s103, 0
      %p854 = por %p852, %p853
      %s856 = sadd.s32 %s855, 1
      %p859 = scmp.eq.s32.totalorder %s97, 1
      %p860 = scmp.ne.s32.totalorder %s855, %s857
      %p861 = scmp.eq.s32.totalorder %s97, 0
      %p862 = por %p860, %p861
      %p863 = scmp.ne.s32.totalorder %s855, %s857
      %p864 = scmp.eq.s32.totalorder %s102, 1
      %p865 = por %p863, %p864
      %p866 = scmp.ne.s32.totalorder %s857, %s858
      %p867 = scmp.eq.s32.totalorder %s102, 0
      %p868 = por %p866, %p867
      %p869 = scmp.ne.s32.totalorder %s857, %s858
      %p870 = scmp.eq.s32.totalorder %s103, 1
      %p871 = por %p869, %p870
      %p873 = scmp.ne.s32.totalorder %s858, %s872
      %p874 = scmp.eq.s32.totalorder %s103, 0
      %p875 = por %p873, %p874
      %s877 = sadd.s32 %s876, 1
      %p880 = scmp.eq.s32.totalorder %s97, 1
      %p881 = scmp.ne.s32.totalorder %s876, %s878
      %p882 = scmp.eq.s32.totalorder %s97, 0
      %p883 = por %p881, %p882
      %p884 = scmp.ne.s32.totalorder %s876, %s878
      %p885 = scmp.eq.s32.totalorder %s102, 1
      %p886 = por %p884, %p885
      %p887 = scmp.ne.s32.totalorder %s878, %s879
      %p888 = scmp.eq.s32.totalorder %s102, 0
      %p889 = por %p887, %p888
      %p890 = scmp.ne.s32.totalorder %s878, %s879
      %p891 = scmp.eq.s32.totalorder %s103, 1
      %p892 = por %p890, %p891
      %p894 = scmp.ne.s32.totalorder %s879, %s893
      %p895 = scmp.eq.s32.totalorder %s103, 0
      %p896 = por %p894, %p895
      %s898 = sadd.s32 %s897, 1
      %p901 = scmp.eq.s32.totalorder %s97, 1
      %p902 = scmp.ne.s32.totalorder %s897, %s899
      %p903 = scmp.eq.s32.totalorder %s97, 0
      %p904 = por %p902, %p903
      %p905 = scmp.ne.s32.totalorder %s897, %s899
      %p906 = scmp.eq.s32.totalorder %s102, 1
      %p907 = por %p905, %p906
      %p908 = scmp.ne.s32.totalorder %s899, %s900
      %p909 = scmp.eq.s32.totalorder %s102, 0
      %p910 = por %p908, %p909
      %p911 = scmp.ne.s32.totalorder %s899, %s900
      %p912 = scmp.eq.s32.totalorder %s103, 1
      %p913 = por %p911, %p912
      %p915 = scmp.ne.s32.totalorder %s900, %s914
      %p916 = scmp.eq.s32.totalorder %s103, 0
      %p917 = por %p915, %p916
      %s919 = sadd.s32 %s918, 1
      %p922 = scmp.eq.s32.totalorder %s97, 1
      %p923 = scmp.ne.s32.totalorder %s918, %s920
      %p924 = scmp.eq.s32.totalorder %s97, 0
      %p925 = por %p923, %p924
      %p926 = scmp.ne.s32.totalorder %s918, %s920
      %p927 = scmp.eq.s32.totalorder %s102, 1
      %p928 = por %p926, %p927
      %p929 = scmp.ne.s32.totalorder %s920, %s921
      %p930 = scmp.eq.s32.totalorder %s102, 0
      %p931 = por %p929, %p930
      %p932 = scmp.ne.s32.totalorder %s920, %s921
      %p933 = scmp.eq.s32.totalorder %s103, 1
      %p934 = por %p932, %p933
      %p936 = scmp.ne.s32.totalorder %s921, %s935
      %p937 = scmp.eq.s32.totalorder %s103, 0
      %p938 = por %p936, %p937
      %s940 = sadd.s32 %s939, 1
      %p943 = scmp.eq.s32.totalorder %s97, 1
      %p944 = scmp.ne.s32.totalorder %s939, %s941
      %p945 = scmp.eq.s32.totalorder %s97, 0
      %p946 = por %p944, %p945
      %p947 = scmp.ne.s32.totalorder %s939, %s941
      %p948 = scmp.eq.s32.totalorder %s102, 1
      %p949 = por %p947, %p948
      %p950 = scmp.ne.s32.totalorder %s941, %s942
      %p951 = scmp.eq.s32.totalorder %s102, 0
      %p952 = por %p950, %p951
      %p953 = scmp.ne.s32.totalorder %s941, %s942
      %p954 = scmp.eq.s32.totalorder %s103, 1
      %p955 = por %p953, %p954
      %p957 = scmp.ne.s32.totalorder %s942, %s956
      %p958 = scmp.eq.s32.totalorder %s103, 0
      %p959 = por %p957, %p958
      %s961 = sadd.s32 %s960, 1
      %p964 = scmp.eq.s32.totalorder %s97, 1
      %p965 = scmp.ne.s32.totalorder %s960, %s962
      %p966 = scmp.eq.s32.totalorder %s97, 0
      %p967 = por %p965, %p966
      %p968 = scmp.ne.s32.totalorder %s960, %s962
      %p969 = scmp.eq.s32.totalorder %s102, 1
      %p970 = por %p968, %p969
      %p971 = scmp.ne.s32.totalorder %s962, %s963
      %p972 = scmp.eq.s32.totalorder %s102, 0
      %p973 = por %p971, %p972
      %p974 = scmp.ne.s32.totalorder %s962, %s963
      %p975 = scmp.eq.s32.totalorder %s103, 1
      %p976 = por %p974, %p975
      %p978 = scmp.ne.s32.totalorder %s963, %s977
      %p979 = scmp.eq.s32.totalorder %s103, 0
      %p980 = por %p978, %p979
      %s982 = sadd.s32 %s981, 1
      %p985 = scmp.eq.s32.totalorder %s97, 1
      %p986 = scmp.ne.s32.totalorder %s981, %s983
      %p987 = scmp.eq.s32.totalorder %s97, 0
      %p988 = por %p986, %p987
      %p989 = scmp.ne.s32.totalorder %s981, %s983
      %p990 = scmp.eq.s32.totalorder %s102, 1
      %p991 = por %p989, %p990
      %p992 = scmp.ne.s32.totalorder %s983, %s984
      %p993 = scmp.eq.s32.totalorder %s102, 0
      %p994 = por %p992, %p993
      %p995 = scmp.ne.s32.totalorder %s983, %s984
      %p996 = scmp.eq.s32.totalorder %s103, 1
      %p997 = por %p995, %p996
      %p999 = scmp.ne.s32.totalorder %s984, %s998
      %p1000 = scmp.eq.s32.totalorder %s103, 0
      %p1001 = por %p999, %p1000
      %s1003 = sadd.s32 %s1002, 1
      %p1006 = scmp.eq.s32.totalorder %s97, 1
      %p1007 = scmp.ne.s32.totalorder %s1002, %s1004
      %p1008 = scmp.eq.s32.totalorder %s97, 0
      %p1009 = por %p1007, %p1008
      %p1010 = scmp.ne.s32.totalorder %s1002, %s1004
      %p1011 = scmp.eq.s32.totalorder %s102, 1
      %p1012 = por %p1010, %p1011
      %p1013 = scmp.ne.s32.totalorder %s1004, %s1005
      %p1014 = scmp.eq.s32.totalorder %s102, 0
      %p1015 = por %p1013, %p1014
      %p1016 = scmp.ne.s32.totalorder %s1004, %s1005
      %p1017 = scmp.eq.s32.totalorder %s103, 1
      %p1018 = por %p1016, %p1017
      %p1020 = scmp.ne.s32.totalorder %s1005, %s1019
      %p1021 = scmp.eq.s32.totalorder %s103, 0
      %p1022 = por %p1020, %p1021
      %s1024 = sadd.s32 %s1023, 1
      %p1027 = scmp.eq.s32.totalorder %s97, 1
      %p1028 = scmp.ne.s32.totalorder %s1023, %s1025
      %p1029 = scmp.eq.s32.totalorder %s97, 0
      %p1030 = por %p1028, %p1029
      %p1031 = scmp.ne.s32.totalorder %s1023, %s1025
      %p1032 = scmp.eq.s32.totalorder %s102, 1
      %p1033 = por %p1031, %p1032
      %p1034 = scmp.ne.s32.totalorder %s1025, %s1026
      %p1035 = scmp.eq.s32.totalorder %s102, 0
      %p1036 = por %p1034, %p1035
      %p1037 = scmp.ne.s32.totalorder %s1025, %s1026
      %p1038 = scmp.eq.s32.totalorder %s103, 1
      %p1039 = por %p1037, %p1038
      %p1041 = scmp.ne.s32.totalorder %s1026, %s1040
      %p1042 = scmp.eq.s32.totalorder %s103, 0
      %p1043 = por %p1041, %p1042
      %s1044 = ssub.s32 %s97, %s104
      %p1045 = scmp.eq.s32.totalorder %s1044, 0
      %s1047 = sadd.s32 %s1046, 1
      %s1048 = scalar_select %p1045, %s1046, %s1047
      %p1051 = pneg %p1045
      %p1052 = scmp.eq.s32.totalorder %s97, 1
      %p1053 = por %p1051, %p1052
      %p1054 = scmp.ne.s32.totalorder %s1046, %s1049
      %p1055 = scmp.eq.s32.totalorder %s97, 0
      %p1056 = por %p1054, %p1055
      %p1057 = scmp.ne.s32.totalorder %s1046, %s1049
      %p1058 = scmp.eq.s32.totalorder %s102, 1
      %p1059 = por %p1057, %p1058
      %p1060 = scmp.ne.s32.totalorder %s1049, %s1050
      %p1061 = scmp.eq.s32.totalorder %s102, 0
      %p1062 = por %p1060, %p1061
      %p1063 = scmp.ne.s32.totalorder %s1049, %s1050
      %p1064 = scmp.eq.s32.totalorder %s103, 1
      %p1065 = por %p1063, %p1064
      %p1067 = scmp.ne.s32.totalorder %s1050, %s1066
      %p1068 = scmp.eq.s32.totalorder %s103, 0
      %p1069 = por %p1067, %p1068
      %p1070 = scmp.le.s32.totalorder 1, %s97
      %p1071 = scmp.lt.s32.totalorder %s97, 3
      %p1072 = pnand %p1070, %p1071
      %p1073 = pneg %p1072
      // Predicated region
      $region9: #{_lambda_.1} parent=5 // pred_check
        _
      $region10: #{_lambda_.1} parent=5 // pred_check_branch
        %1075 = sbr.rel (%p1072) target = $region12
      $region11: #{_lambda_.1} parent=5 // pred_region
        %s1076 = ssub.s32 %s97, 1
        // Predicated region
        $region13: #{_lambda_.1} parent=11 // pred_check
          %p1077 = pneg %p196
        $region14: #{_lambda_.1} parent=11 // pred_check_branch
          %1079 = sbr.rel (%p1077) target = $region16
        $region15: #{_lambda_.1} parent=11 // pred_region
          _
        $region16: #{_lambda_.1} parent=11 // pred_fallthru
          _
        // Predicated region
        $region17: #{_lambda_.1} parent=11 // pred_check
          %p1080 = pneg %p217
        $region18: #{_lambda_.1} parent=11 // pred_check_branch
          %1082 = sbr.rel (%p1080) target = $region20
        $region19: #{_lambda_.1} parent=11 // pred_region
          _
        $region20: #{_lambda_.1} parent=11 // pred_fallthru
          _
        // Predicated region
        $region21: #{_lambda_.1} parent=11 // pred_check
          %p1083 = pneg %p238
        $region22: #{_lambda_.1} parent=11 // pred_check_branch
          %1085 = sbr.rel (%p1083) target = $region24
        $region23: #{_lambda_.1} parent=11 // pred_region
          _
        $region24: #{_lambda_.1} parent=11 // pred_fallthru
          _
        // Predicated region
        $region25: #{_lambda_.1} parent=11 // pred_check
          %p1086 = pneg %p259
        $region26: #{_lambda_.1} parent=11 // pred_check_branch
          %1088 = sbr.rel (%p1086) target = $region28
        $region27: #{_lambda_.1} parent=11 // pred_region
          _
        $region28: #{_lambda_.1} parent=11 // pred_fallthru
          _
        // Predicated region
        $region29: #{_lambda_.1} parent=11 // pred_check
          %p1089 = pneg %p280
        $region30: #{_lambda_.1} parent=11 // pred_check_branch
          %1091 = sbr.rel (%p1089) target = $region32
        $region31: #{_lambda_.1} parent=11 // pred_region
          %1093 = vsyncadd [#allocation3], 0
          %s1095 = sshll.u32 %s15, 4
          %s1096 = int_to_ptr.hbm [resolvable:$true] %s1095
          %s1097 = sshll.u32 [#allocation2], 4
          %s1098 = int_to_ptr.vmem [resolvable:$true] %s1097
          %1100 = dma.hbm_to_vmem [thread:$0]  %s1096, 16, %s1098, [#allocation3]
        $region32: #{_lambda_.1} parent=11 // pred_fallthru
          _
        // Predicated region
        $region33: #{_lambda_.1} parent=11 // pred_check
          %p1101 = pneg %p301
        $region34: #{_lambda_.1} parent=11 // pred_check_branch
          %1103 = sbr.rel (%p1101) target = $region36
        $region35: #{_lambda_.1} parent=11 // pred_region
          %1105 = vsyncadd [#allocation5], 0
          %s1107 = sshll.u32 %s17, 4
          %s1108 = int_to_ptr.hbm [resolvable:$true] %s1107
          %s1109 = sshll.u32 [#allocation4], 4
          %s1110 = int_to_ptr.vmem [resolvable:$true] %s1109
          %1112 = dma.hbm_to_vmem [thread:$0]  %s1108, 16, %s1110, [#allocation5]
        $region36: #{_lambda_.1} parent=11 // pred_fallthru
          _
        // Predicated region
        $region37: #{_lambda_.1} parent=11 // pred_check
          %p1113 = pneg %p322
        $region38: #{_lambda_.1} parent=11 // pred_check_branch
          %1115 = sbr.rel (%p1113) target = $region40
        $region39: #{_lambda_.1} parent=11 // pred_region
          _
        $region40: #{_lambda_.1} parent=11 // pred_fallthru
          _
        // Predicated region
        $region41: #{_lambda_.1} parent=11 // pred_check
          %p1116 = pneg %p343
        $region42: #{_lambda_.1} parent=11 // pred_check_branch
          %1118 = sbr.rel (%p1116) target = $region44
        $region43: #{_lambda_.1} parent=11 // pred_region
          _
        $region44: #{_lambda_.1} parent=11 // pred_fallthru
          _
        // Predicated region
        $region45: #{_lambda_.1} parent=11 // pred_check
          %p1119 = pneg %p364
        $region46: #{_lambda_.1} parent=11 // pred_check_branch
          %1121 = sbr.rel (%p1119) target = $region48
        $region47: #{_lambda_.1} parent=11 // pred_region
          _
        $region48: #{_lambda_.1} parent=11 // pred_fallthru
          _
        // Predicated region
        $region49: #{_lambda_.1} parent=11 // pred_check
          %p1122 = pneg %p385
        $region50: #{_lambda_.1} parent=11 // pred_check_branch
          %1124 = sbr.rel (%p1122) target = $region52
        $region51: #{_lambda_.1} parent=11 // pred_region
          _
        $region52: #{_lambda_.1} parent=11 // pred_fallthru
          _
        // Predicated region
        $region53: #{_lambda_.1} parent=11 // pred_check
          %p1125 = pneg %p406
        $region54: #{_lambda_.1} parent=11 // pred_check_branch
          %1127 = sbr.rel (%p1125) target = $region56
        $region55: #{_lambda_.1} parent=11 // pred_region
          _
        $region56: #{_lambda_.1} parent=11 // pred_fallthru
          _
        // Predicated region
        $region57: #{_lambda_.1} parent=11 // pred_check
          %p1128 = pneg %p427
        $region58: #{_lambda_.1} parent=11 // pred_check_branch
          %1130 = sbr.rel (%p1128) target = $region60
        $region59: #{_lambda_.1} parent=11 // pred_region
          _
        $region60: #{_lambda_.1} parent=11 // pred_fallthru
          _
        // Predicated region
        $region61: #{_lambda_.1} parent=11 // pred_check
          %p1131 = pneg %p448
        $region62: #{_lambda_.1} parent=11 // pred_check_branch
          %1133 = sbr.rel (%p1131) target = $region64
        $region63: #{_lambda_.1} parent=11 // pred_region
          _
        $region64: #{_lambda_.1} parent=11 // pred_fallthru
          _
        // Predicated region
        $region65: #{_lambda_.1} parent=11 // pred_check
          %p1134 = pneg %p469
        $region66: #{_lambda_.1} parent=11 // pred_check_branch
          %1136 = sbr.rel (%p1134) target = $region68
        $region67: #{_lambda_.1} parent=11 // pred_region
          _
        $region68: #{_lambda_.1} parent=11 // pred_fallthru
          _
        // Predicated region
        $region69: #{_lambda_.1} parent=11 // pred_check
          %p1137 = pneg %p490
        $region70: #{_lambda_.1} parent=11 // pred_check_branch
          %1139 = sbr.rel (%p1137) target = $region72
        $region71: #{_lambda_.1} parent=11 // pred_region
          _
        $region72: #{_lambda_.1} parent=11 // pred_fallthru
          _
        // Predicated region
        $region73: #{_lambda_.1} parent=11 // pred_check
          %p1140 = pneg %p511
        $region74: #{_lambda_.1} parent=11 // pred_check_branch
          %1142 = sbr.rel (%p1140) target = $region76
        $region75: #{_lambda_.1} parent=11 // pred_region
          _
        $region76: #{_lambda_.1} parent=11 // pred_fallthru
          _
        // Predicated region
        $region77: #{_lambda_.1} parent=11 // pred_check
          %p1143 = pneg %p532
        $region78: #{_lambda_.1} parent=11 // pred_check_branch
          %1145 = sbr.rel (%p1143) target = $region80
        $region79: #{_lambda_.1} parent=11 // pred_region
          _
        $region80: #{_lambda_.1} parent=11 // pred_fallthru
          _
        // Predicated region
        $region81: #{_lambda_.1} parent=11 // pred_check
          %p1146 = pneg %p553
        $region82: #{_lambda_.1} parent=11 // pred_check_branch
          %1148 = sbr.rel (%p1146) target = $region84
        $region83: #{_lambda_.1} parent=11 // pred_region
          _
        $region84: #{_lambda_.1} parent=11 // pred_fallthru
          _
        // Predicated region
        $region85: #{_lambda_.1} parent=11 // pred_check
          %p1149 = pneg %p574
        $region86: #{_lambda_.1} parent=11 // pred_check_branch
          %1151 = sbr.rel (%p1149) target = $region88
        $region87: #{_lambda_.1} parent=11 // pred_region
          _
        $region88: #{_lambda_.1} parent=11 // pred_fallthru
          _
        // Predicated region
        $region89: #{_lambda_.1} parent=11 // pred_check
          %p1152 = pneg %p595
        $region90: #{_lambda_.1} parent=11 // pred_check_branch
          %1154 = sbr.rel (%p1152) target = $region92
        $region91: #{_lambda_.1} parent=11 // pred_region
          _
        $region92: #{_lambda_.1} parent=11 // pred_fallthru
          _
        // Predicated region
        $region93: #{_lambda_.1} parent=11 // pred_check
          %p1155 = pneg %p616
        $region94: #{_lambda_.1} parent=11 // pred_check_branch
          %1157 = sbr.rel (%p1155) target = $region96
        $region95: #{_lambda_.1} parent=11 // pred_region
          %1159 = vsyncadd [#allocation5], 0
          %s1161 = sshll.u32 %s47, 4
          %s1162 = int_to_ptr.hbm [resolvable:$true] %s1161
          %s1163 = sshll.u32 [#allocation6], 4
          %s1164 = int_to_ptr.vmem [resolvable:$true] %s1163
          %1166 = dma.hbm_to_vmem [thread:$0]  %s1162, 16, %s1164, [#allocation5]
        $region96: #{_lambda_.1} parent=11 // pred_fallthru
          _
        // Predicated region
        $region97: #{_lambda_.1} parent=11 // pred_check
          %p1167 = pneg %p637
        $region98: #{_lambda_.1} parent=11 // pred_check_branch
          %1169 = sbr.rel (%p1167) target = $region100
        $region99: #{_lambda_.1} parent=11 // pred_region
          _
        $region100: #{_lambda_.1} parent=11 // pred_fallthru
          _
        // Predicated region
        $region101: #{_lambda_.1} parent=11 // pred_check
          %p1170 = pneg %p658
        $region102: #{_lambda_.1} parent=11 // pred_check_branch
          %1172 = sbr.rel (%p1170) target = $region104
        $region103: #{_lambda_.1} parent=11 // pred_region
          _
        $region104: #{_lambda_.1} parent=11 // pred_fallthru
          _
        // Predicated region
        $region105: #{_lambda_.1} parent=11 // pred_check
          %p1173 = pneg %p679
        $region106: #{_lambda_.1} parent=11 // pred_check_branch
          %1175 = sbr.rel (%p1173) target = $region108
        $region107: #{_lambda_.1} parent=11 // pred_region
          _
        $region108: #{_lambda_.1} parent=11 // pred_fallthru
          _
        // Predicated region
        $region109: #{_lambda_.1} parent=11 // pred_check
          %p1176 = pneg %p700
        $region110: #{_lambda_.1} parent=11 // pred_check_branch
          %1178 = sbr.rel (%p1176) target = $region112
        $region111: #{_lambda_.1} parent=11 // pred_region
          _
        $region112: #{_lambda_.1} parent=11 // pred_fallthru
          _
        // Predicated region
        $region113: #{_lambda_.1} parent=11 // pred_check
          %p1179 = pneg %p721
        $region114: #{_lambda_.1} parent=11 // pred_check_branch
          %1181 = sbr.rel (%p1179) target = $region116
        $region115: #{_lambda_.1} parent=11 // pred_region
          _
        $region116: #{_lambda_.1} parent=11 // pred_fallthru
          _
        // Predicated region
        $region117: #{_lambda_.1} parent=11 // pred_check
          %p1182 = pneg %p742
        $region118: #{_lambda_.1} parent=11 // pred_check_branch
          %1184 = sbr.rel (%p1182) target = $region120
        $region119: #{_lambda_.1} parent=11 // pred_region
          _
        $region120: #{_lambda_.1} parent=11 // pred_fallthru
          _
        // Predicated region
        $region121: #{_lambda_.1} parent=11 // pred_check
          %p1185 = pneg %p763
        $region122: #{_lambda_.1} parent=11 // pred_check_branch
          %1187 = sbr.rel (%p1185) target = $region124
        $region123: #{_lambda_.1} parent=11 // pred_region
          _
        $region124: #{_lambda_.1} parent=11 // pred_fallthru
          _
        // Predicated region
        $region125: #{_lambda_.1} parent=11 // pred_check
          %p1188 = pneg %p784
        $region126: #{_lambda_.1} parent=11 // pred_check_branch
          %1190 = sbr.rel (%p1188) target = $region128
        $region127: #{_lambda_.1} parent=11 // pred_region
          _
        $region128: #{_lambda_.1} parent=11 // pred_fallthru
          _
        // Predicated region
        $region129: #{_lambda_.1} parent=11 // pred_check
          %p1191 = pneg %p805
        $region130: #{_lambda_.1} parent=11 // pred_check_branch
          %1193 = sbr.rel (%p1191) target = $region132
        $region131: #{_lambda_.1} parent=11 // pred_region
          _
        $region132: #{_lambda_.1} parent=11 // pred_fallthru
          _
        // Predicated region
        $region133: #{_lambda_.1} parent=11 // pred_check
          %p1194 = pneg %p826
        $region134: #{_lambda_.1} parent=11 // pred_check_branch
          %1196 = sbr.rel (%p1194) target = $region136
        $region135: #{_lambda_.1} parent=11 // pred_region
          _
        $region136: #{_lambda_.1} parent=11 // pred_fallthru
          _
        // Predicated region
        $region137: #{_lambda_.1} parent=11 // pred_check
          %p1197 = pneg %p847
        $region138: #{_lambda_.1} parent=11 // pred_check_branch
          %1199 = sbr.rel (%p1197) target = $region140
        $region139: #{_lambda_.1} parent=11 // pred_region
          _
        $region140: #{_lambda_.1} parent=11 // pred_fallthru
          _
        // Predicated region
        $region141: #{_lambda_.1} parent=11 // pred_check
          %p1200 = pneg %p868
        $region142: #{_lambda_.1} parent=11 // pred_check_branch
          %1202 = sbr.rel (%p1200) target = $region144
        $region143: #{_lambda_.1} parent=11 // pred_region
          _
        $region144: #{_lambda_.1} parent=11 // pred_fallthru
          _
        // Predicated region
        $region145: #{_lambda_.1} parent=11 // pred_check
          %p1203 = pneg %p889
        $region146: #{_lambda_.1} parent=11 // pred_check_branch
          %1205 = sbr.rel (%p1203) target = $region148
        $region147: #{_lambda_.1} parent=11 // pred_region
          _
        $region148: #{_lambda_.1} parent=11 // pred_fallthru
          _
        // Predicated region
        $region149: #{_lambda_.1} parent=11 // pred_check
          %p1206 = pneg %p910
        $region150: #{_lambda_.1} parent=11 // pred_check_branch
          %1208 = sbr.rel (%p1206) target = $region152
        $region151: #{_lambda_.1} parent=11 // pred_region
          _
        $region152: #{_lambda_.1} parent=11 // pred_fallthru
          _
        // Predicated region
        $region153: #{_lambda_.1} parent=11 // pred_check
          %p1209 = pneg %p931
        $region154: #{_lambda_.1} parent=11 // pred_check_branch
          %1211 = sbr.rel (%p1209) target = $region156
        $region155: #{_lambda_.1} parent=11 // pred_region
          _
        $region156: #{_lambda_.1} parent=11 // pred_fallthru
          _
        // Predicated region
        $region157: #{_lambda_.1} parent=11 // pred_check
          %p1212 = pneg %p952
        $region158: #{_lambda_.1} parent=11 // pred_check_branch
          %1214 = sbr.rel (%p1212) target = $region160
        $region159: #{_lambda_.1} parent=11 // pred_region
          _
        $region160: #{_lambda_.1} parent=11 // pred_fallthru
          _
        // Predicated region
        $region161: #{_lambda_.1} parent=11 // pred_check
          %p1215 = pneg %p973
        $region162: #{_lambda_.1} parent=11 // pred_check_branch
          %1217 = sbr.rel (%p1215) target = $region164
        $region163: #{_lambda_.1} parent=11 // pred_region
          _
        $region164: #{_lambda_.1} parent=11 // pred_fallthru
          _
        // Predicated region
        $region165: #{_lambda_.1} parent=11 // pred_check
          %p1218 = pneg %p994
        $region166: #{_lambda_.1} parent=11 // pred_check_branch
          %1220 = sbr.rel (%p1218) target = $region168
        $region167: #{_lambda_.1} parent=11 // pred_region
          _
        $region168: #{_lambda_.1} parent=11 // pred_fallthru
          _
        // Predicated region
        $region169: #{_lambda_.1} parent=11 // pred_check
          %p1221 = pneg %p1015
        $region170: #{_lambda_.1} parent=11 // pred_check_branch
          %1223 = sbr.rel (%p1221) target = $region172
        $region171: #{_lambda_.1} parent=11 // pred_region
          _
        $region172: #{_lambda_.1} parent=11 // pred_fallthru
          _
        // Predicated region
        $region173: #{_lambda_.1} parent=11 // pred_check
          %p1224 = pneg %p1036
        $region174: #{_lambda_.1} parent=11 // pred_check_branch
          %1226 = sbr.rel (%p1224) target = $region176
        $region175: #{_lambda_.1} parent=11 // pred_region
          _
        $region176: #{_lambda_.1} parent=11 // pred_fallthru
          _
      $region12: #{_lambda_.1} parent=5 // pred_fallthru
        _
      %p1227 = scmp.lt.s32.totalorder %s97, 2
      // Predicated region
      $region177: #{_lambda_.1} parent=5 // pred_check
        %p1228 = pneg %p1227
      $region178: #{_lambda_.1} parent=5 // pred_check_branch
        %1230 = sbr.rel (%p1228) target = $region180
      $region179: #{_lambda_.1} parent=5 // pred_region
        // Predicated region
        $region181: #{_lambda_.1} parent=179 // pred_check
          %p1231 = pneg %p117
        $region182: #{_lambda_.1} parent=179 // pred_check_branch
          %1233 = sbr.rel (%p1231) target = $region184
        $region183: #{_lambda_.1} parent=179 // pred_region
          %p1234 = scmp.lt.s32.totalorder %s97, 1
          %s1235 = scalar_select %p1234, %s97, 1
          %s1236 = smul.addr %s1235, 2
          %s1237 = smul.addr %s1236, 8
          %s1238 = scalar_lea.vmem %s1, %s1237
        $region184: #{_lambda_.1} parent=179 // pred_fallthru
          _
        // Predicated region
        $region185: #{_lambda_.1} parent=179 // pred_check
          %p1239 = pneg %p143
        $region186: #{_lambda_.1} parent=179 // pred_check_branch
          %1241 = sbr.rel (%p1239) target = $region188
        $region187: #{_lambda_.1} parent=179 // pred_region
          %p1242 = scmp.lt.s32.totalorder %s97, 1
          %s1243 = scalar_select %p1242, %s97, 1
          %s1244 = smul.addr %s1243, 8
          %s1245 = scalar_lea.vmem %s3, %s1244
        $region188: #{_lambda_.1} parent=179 // pred_fallthru
          _
        // Predicated region
        $region189: #{_lambda_.1} parent=179 // pred_check
          %p1246 = pneg %p169
        $region190: #{_lambda_.1} parent=179 // pred_check_branch
          %1248 = sbr.rel (%p1246) target = $region192
        $region191: #{_lambda_.1} parent=179 // pred_region
          %p1249 = scmp.lt.s32.totalorder %s97, 1
          %s1250 = scalar_select %p1249, %s97, 1
          %s1251 = scalar_lea.vmem %s5, %s1250
        $region192: #{_lambda_.1} parent=179 // pred_fallthru
          _
      $region180: #{_lambda_.1} parent=5 // pred_fallthru
        _
      %p1252 = scmp.le.s32.totalorder 1, %s97
      %p1253 = scmp.lt.s32.totalorder %s97, 3
      %p1254 = pnand %p1252, %p1253
      %p1255 = pneg %p1254
      // Predicated region
      $region193: #{_lambda_.1} parent=5 // pred_check
        _
      $region194: #{_lambda_.1} parent=5 // pred_check_branch
        %1257 = sbr.rel (%p1254) target = $region196
      $region195: #{_lambda_.1} parent=5 // pred_region
        %s1258 = ssub.s32 %s97, 1
        // Predicated region
        $region197: #{_lambda_.1} parent=195 // pred_check
          %p1259 = pneg %p280
        $region198: #{_lambda_.1} parent=195 // pred_check_branch
          %1261 = sbr.rel (%p1259) target = $region200
        $region199: #{_lambda_.1} parent=195 // pred_region
          %1263 = dma.done [#allocation3], 16
        $region200: #{_lambda_.1} parent=195 // pred_fallthru
          _
        // Predicated region
        $region201: #{_lambda_.1} parent=195 // pred_check
          %p1264 = pneg %p301
        $region202: #{_lambda_.1} parent=195 // pred_check_branch
          %1266 = sbr.rel (%p1264) target = $region204
        $region203: #{_lambda_.1} parent=195 // pred_region
          %1268 = dma.done [#allocation5], 16
        $region204: #{_lambda_.1} parent=195 // pred_fallthru
          _
        // Predicated region
        $region205: #{_lambda_.1} parent=195 // pred_check
          %p1269 = pneg %p616
        $region206: #{_lambda_.1} parent=195 // pred_check_branch
          %1271 = sbr.rel (%p1269) target = $region208
        $region207: #{_lambda_.1} parent=195 // pred_region
          %1273 = dma.done [#allocation5], 16
        $region208: #{_lambda_.1} parent=195 // pred_fallthru
          _
        %p1274 = scmp.lt.s32.totalorder %s102, 1
        %s1275 = scalar_select %p1274, %s102, 1
        %s1276 = smul.addr %s1275, 2
        %s1277 = smul.addr %s1276, 8
        %s1278 = scalar_lea.vmem %s1, %s1277
        %p1279 = pneg %p123
        %p1280 = pneg %p120
        %p1281 = scmp.lt.s32.totalorder %s102, 1
        %s1282 = scalar_select %p1281, %s102, 1
        %s1283 = smul.addr %s1282, 8
        %s1284 = scalar_lea.vmem %s3, %s1283
        %p1285 = pneg %p149
        %p1286 = pneg %p146
        %p1287 = scmp.lt.s32.totalorder %s102, 1
        %s1288 = scalar_select %p1287, %s102, 1
        %s1289 = scalar_lea.vmem %s5, %s1288
        %p1290 = pneg %p175
        %p1291 = pneg %p172
        %p1292 = pneg %p196
        %p1293 = pneg %p193
        %p1294 = pneg %p217
        %p1295 = pneg %p214
        %p1296 = pneg %p238
        %p1297 = pneg %p235
        %p1298 = pneg %p259
        %p1299 = pneg %p256
        %p1300 = pneg %p280
        %p1301 = pneg %p277
        %p1302 = pneg %p301
        %p1303 = pneg %p298
        %p1304 = pneg %p322
        %p1305 = pneg %p319
        %p1306 = pneg %p343
        %p1307 = pneg %p340
        %p1308 = pneg %p364
        %p1309 = pneg %p361
        %p1310 = pneg %p385
        %p1311 = pneg %p382
        %p1312 = pneg %p406
        %p1313 = pneg %p403
        %p1314 = pneg %p427
        %p1315 = pneg %p424
        %p1316 = pneg %p448
        %p1317 = pneg %p445
        %p1318 = pneg %p469
        %p1319 = pneg %p466
        %p1320 = pneg %p490
        %p1321 = pneg %p487
        %p1322 = pneg %p511
        %p1323 = pneg %p508
        %p1324 = pneg %p532
        %p1325 = pneg %p529
        %p1326 = pneg %p553
        %p1327 = pneg %p550
        %p1328 = pneg %p574
        %p1329 = pneg %p571
        %p1330 = pneg %p595
        %p1331 = pneg %p592
        %p1332 = pneg %p616
        %p1333 = pneg %p613
        %p1334 = pneg %p637
        %p1335 = pneg %p634
        %p1336 = pneg %p658
        %p1337 = pneg %p655
        %p1338 = pneg %p679
        %p1339 = pneg %p676
        %p1340 = pneg %p700
        %p1341 = pneg %p697
        %p1342 = pneg %p721
        %p1343 = pneg %p718
        %p1344 = pneg %p742
        %p1345 = pneg %p739
        %p1346 = pneg %p763
        %p1347 = pneg %p760
        %p1348 = pneg %p784
        %p1349 = pneg %p781
        %p1350 = pneg %p805
        %p1351 = pneg %p802
        %p1352 = pneg %p826
        %p1353 = pneg %p823
        %p1354 = pneg %p847
        %p1355 = pneg %p844
        %p1356 = pneg %p868
        %p1357 = pneg %p865
        %p1358 = pneg %p889
        %p1359 = pneg %p886
        %p1360 = pneg %p910
        %p1361 = pneg %p907
        %p1362 = pneg %p931
        %p1363 = pneg %p928
        %p1364 = pneg %p952
        %p1365 = pneg %p949
        %p1366 = pneg %p973
        %p1367 = pneg %p970
        %p1368 = pneg %p994
        %p1369 = pneg %p991
        %p1370 = pneg %p1015
        %p1371 = pneg %p1012
        %p1372 = pneg %p1036
        %p1373 = pneg %p1033
        %p1374 = pneg %p1062
        %p1375 = pneg %p1059
        %p1376 = scmp.lt.s32.totalorder %s102, 1
        %s1377 = scalar_select %p1376, %s102, 1
        %s1378 = smul.addr %s1377, 4
        %s1379 = scalar_lea.vmem %s89, %s1378
        %p1380 = scmp.lt.s32.totalorder %s102, 1
        %s1381 = scalar_select %p1380, %s102, 1
        %s1382 = smul.addr %s1381, 2
        %s1383 = smul.addr %s1382, 8
        %s1384 = scalar_lea.vmem %s1, %s1383
        %p1385 = scmp.lt.s32.totalorder %s102, 1
        %s1386 = scalar_select %p1385, %s102, 1
        %s1387 = smul.addr %s1386, 8
        %s1388 = scalar_lea.vmem %s3, %s1387
        %p1389 = scmp.lt.s32.totalorder %s102, 1
        %s1390 = scalar_select %p1389, %s102, 1
        %s1391 = scalar_lea.vmem %s5, %s1390
        %p1392 = scmp.lt.s32.totalorder %s102, 1
        %s1393 = scalar_select %p1392, %s102, 1
        %s1394 = smul.addr %s1393, 4
        %s1395 = scalar_lea.vmem %s89, %s1394
        %v1396 = vld [vmem:[%s1384] sm:$0xff]
        %v1397 = vld [vmem:[%s1384 + $0x8] sm:$0xff]
        %v1398 = vld [vmem:[%s7] sm:$0x1]
        %v1399 = vld [vmem:[%s9] sm:$0x1]
        %vm1400 = vcmask 523264
        %v1401 = vsel %vm1400, %v1396, 0.0
        %1402 = vadd.xlane.f32.xlu0 %v1401
        %v1403 = vpop.xlane.xlu0 %1402
        %v1404 = vsel %vm1400, %v1397, 0.0
        %1405 = vadd.xlane.f32.xlu0 %v1404
        %v1406 = vpop.xlane.xlu0 %1405
        %v1407 = vrcp.pop 64.0
        %v1408 = vmul.f32 64.0, %v1407
        %v1409 = vsub.f32 1.0, %v1408
        %v1410 = vmul.f32 %v1407, %v1409
        %v1411 = vadd.f32 %v1407, %v1410
        %vm1412 = vweird.f32 %v1407
        %v1413 = vsel %vm1412, %v1407, %v1411
        %v1414 = vmul.f32 %v1403, %v1413
        %v1415 = vmul.f32 %v1406, %v1413
        %v1416 = vsub.f32 %v1396, %v1414
        %v1417 = vsub.f32 %v1397, %v1415
        %v1418 = vmul.f32 %v1416, %v1416
        %v1419 = vmul.f32 %v1417, %v1417
        %v1420 = vsel %vm1400, %v1418, 0.0
        %1421 = vadd.xlane.f32.xlu0 %v1420
        %v1422 = vpop.xlane.xlu0 %1421
        %v1423 = vsel %vm1400, %v1419, 0.0
        %1424 = vadd.xlane.f32.xlu0 %v1423
        %v1425 = vpop.xlane.xlu0 %1424
        %v1426 = vmul.f32 %v1422, %v1413
        %v1427 = vmul.f32 %v1425, %v1413
        %v1428 = vadd.f32 %v1426, 1e-05
        %v1429 = vadd.f32 %v1427, 1e-05
        %v1430 = vrsqrt.pop %v1428
        %v1431 = vmul.f32 %v1430, %v1428
        %v1432 = vmul.f32 %v1431, %v1430
        %v1433 = vmul.f32 0.5, %v1432
        %v1434 = vsub.f32 1.5, %v1433
        %v1435 = vmul.f32 %v1430, %v1434
        %vm1436 = vweird.f32 %v1428
        %vm1437 = vweird.f32 %v1430
        %vm1438 = vmor %vm1436, %vm1437
        %v1439 = vsel %vm1438, %v1430, %v1435
        %v1440 = vrsqrt.pop %v1429
        %v1441 = vmul.f32 %v1440, %v1429
        %v1442 = vmul.f32 %v1441, %v1440
        %v1443 = vmul.f32 0.5, %v1442
        %v1444 = vsub.f32 1.5, %v1443
        %v1445 = vmul.f32 %v1440, %v1444
        %vm1446 = vweird.f32 %v1429
        %vm1447 = vweird.f32 %v1440
        %vm1448 = vmor %vm1446, %vm1447
        %v1449 = vsel %vm1448, %v1440, %v1445
        %v1450 = vmul.f32 %v1416, %v1439
        %v1451 = vmul.f32 %v1417, %v1449
        %v1453 = vperm.slane %v1398, 0
        %v1455 = vmul.f32 %v1450, %v1453
        %v1456 = vmul.f32 %v1451, %v1453
        %v1458 = vperm.slane %v1399, 0
        %v1460 = vadd.f32 %v1455, %v1458
        %v1461 = vadd.f32 %v1456, %v1458
        %v1462 = vld [vmem:[%s11] sm:$0xff]
        %v1463 = vld [vmem:[%s11 + $0x8] sm:$0xff]
        %v1464 = vld [vmem:[%s11 + $0x10] sm:$0xff]
        %v1465 = vld [vmem:[%s11 + $0x18] sm:$0xff]
        %v1466 = vld [vmem:[%s11 + $0x20] sm:$0xff]
        %v1467 = vld [vmem:[%s11 + $0x28] sm:$0xff]
        %v1468 = vld [vmem:[%s11 + $0x30] sm:$0xff]
        %v1469 = vld [vmem:[%s11 + $0x38] sm:$0xff]
        %v1470 = vld [vmem:[%s13] sm:$0x1]
        %v1472 = vperm.slane %v1470, 0
        %v1475 = vsel %vm1400, %v1460, 0
        %v1478 = vsel %vm1400, %v1461, 0
        %1480 = vmatpush.msra.mxu0 0.0
        %1481 = vmatpush.msra.mxu0 0.0
        %1482 = vmatpush.msra.mxu0 0.0
        %1483 = vmatpush.msra.mxu0 0.0
        %1484 = vmatpush.msra.mxu0 0.0
        %1485 = vmatpush.msra.mxu0 0.0
        %1486 = vmatpush.msra.mxu0 0.0
        %1487 = vmatpush.msra.mxu0 0.0
        %1488 = vmatpush.msra.mxu0 %v1469
        %1489 = vmatpush.msra.mxu0 %v1468
        %1490 = vmatpush.msra.mxu0 %v1467
        %1491 = vmatpush.msra.mxu0 %v1466
        %1492 = vmatpush.msra.mxu0 %v1465
        %1493 = vmatpush.msra.mxu0 %v1464
        %1494 = vmatpush.msra.mxu0 %v1463
        %1495 = vmatpush.msra.mxu0 %v1462
        %1496 = vmatmul.f32.gmra.mxu0 %v1475
        %v1497 = vpop.f32.mrf.mxu0
        %v1498 = vadd.f32 %v1472, %v1497
        %1499 = vmatmul.f32.gmra.mxu0 %v1478
        %v1500 = vpop.f32.mrf.mxu0
        %v1501 = vadd.f32 %v1472, %v1500
        %1502 = vdwg.mxu0
        %v1503 = vld [vmem:[#allocation2] sm:$0x1]
        %v1504 = vld [vmem:[#allocation4] sm:$0x1]
        %vm1505 = vcmask 392192
        %v1506 = vsel %vm1505, %v1498, 0.0
        %1507 = vadd.xlane.f32.xlu0 %v1506
        %v1508 = vpop.xlane.xlu0 %1507
        %v1509 = vsel %vm1505, %v1501, 0.0
        %1510 = vadd.xlane.f32.xlu0 %v1509
        %v1511 = vpop.xlane.xlu0 %1510
        %v1512 = vrcp.pop 48.0
        %v1513 = vmul.f32 48.0, %v1512
        %v1514 = vsub.f32 1.0, %v1513
        %v1515 = vmul.f32 %v1512, %v1514
        %v1516 = vadd.f32 %v1512, %v1515
        %vm1517 = vweird.f32 %v1512
        %v1518 = vsel %vm1517, %v1512, %v1516
        %v1519 = vmul.f32 %v1508, %v1518
        %v1520 = vmul.f32 %v1511, %v1518
        %v1521 = vsub.f32 %v1498, %v1519
        %v1522 = vsub.f32 %v1501, %v1520
        %v1523 = vmul.f32 %v1521, %v1521
        %v1524 = vmul.f32 %v1522, %v1522
        %v1525 = vsel %vm1505, %v1523, 0.0
        %1526 = vadd.xlane.f32.xlu0 %v1525
        %v1527 = vpop.xlane.xlu0 %1526
        %v1528 = vsel %vm1505, %v1524, 0.0
        %1529 = vadd.xlane.f32.xlu0 %v1528
        %v1530 = vpop.xlane.xlu0 %1529
        %v1531 = vmul.f32 %v1527, %v1518
        %v1532 = vmul.f32 %v1530, %v1518
        %v1533 = vadd.f32 %v1531, 1e-05
        %v1534 = vadd.f32 %v1532, 1e-05
        %v1535 = vrsqrt.pop %v1533
        %v1536 = vmul.f32 %v1535, %v1533
        %v1537 = vmul.f32 %v1536, %v1535
        %v1538 = vmul.f32 0.5, %v1537
        %v1539 = vsub.f32 1.5, %v1538
        %v1540 = vmul.f32 %v1535, %v1539
        %vm1541 = vweird.f32 %v1533
        %vm1542 = vweird.f32 %v1535
        %vm1543 = vmor %vm1541, %vm1542
        %v1544 = vsel %vm1543, %v1535, %v1540
        %v1545 = vrsqrt.pop %v1534
        %v1546 = vmul.f32 %v1545, %v1534
        %v1547 = vmul.f32 %v1546, %v1545
        %v1548 = vmul.f32 0.5, %v1547
        %v1549 = vsub.f32 1.5, %v1548
        %v1550 = vmul.f32 %v1545, %v1549
        %vm1551 = vweird.f32 %v1534
        %vm1552 = vweird.f32 %v1545
        %vm1553 = vmor %vm1551, %vm1552
        %v1554 = vsel %vm1553, %v1545, %v1550
        %v1555 = vmul.f32 %v1521, %v1544
        %v1556 = vmul.f32 %v1522, %v1554
        %v1558 = vperm.slane %v1503, 0
        %v1560 = vmul.f32 %v1555, %v1558
        %v1561 = vmul.f32 %v1556, %v1558
        %v1563 = vperm.slane %v1504, 0
        %v1565 = vadd.f32 %v1560, %v1563
        %v1566 = vadd.f32 %v1561, %v1563
        %v1567 = vld [vmem:[%s19] sm:$0xff]
        %v1568 = vld [vmem:[%s19 + $0x8] sm:$0xff]
        %v1569 = vadd.f32 %v1565, %v1567
        %v1570 = vadd.f32 %v1566, %v1568
        %v1571 = vld [vmem:[%s21] sm:$0xff]
        %v1572 = vld [vmem:[%s21 + $0x8] sm:$0xff]
        %v1573 = vld [vmem:[%s21 + $0x10] sm:$0xff]
        %v1574 = vld [vmem:[%s21 + $0x18] sm:$0xff]
        %v1575 = vld [vmem:[%s21 + $0x20] sm:$0xff]
        %v1576 = vld [vmem:[%s21 + $0x28] sm:$0xff]
        %v1577 = vld [vmem:[%s21 + $0x30] sm:$0xff]
        %v1578 = vld [vmem:[%s21 + $0x38] sm:$0xff]
        %v1579 = vld [vmem:[%s21 + $0x40] sm:$0xff]
        %v1580 = vld [vmem:[%s21 + $0x48] sm:$0xff]
        %v1581 = vld [vmem:[%s21 + $0x50] sm:$0xff]
        %v1582 = vld [vmem:[%s21 + $0x58] sm:$0xff]
        %v1583 = vld [vmem:[%s23] sm:$0x3]
        %v1585 = vperm.slane %v1583, 0
        %v1586 = vperm.slane %v1583, 1
        %v1590 = vsel %vm1505, %v1569, 0
        %v1593 = vsel %vm1505, %v1570, 0
        %1595 = vmatpush.msra.mxu0 0.0
        %1596 = vmatpush.msra.mxu0 0.0
        %1597 = vmatpush.msra.mxu0 0.0
        %1598 = vmatpush.msra.mxu0 0.0
        %1599 = vmatpush.msra.mxu0 0.0
        %1600 = vmatpush.msra.mxu0 0.0
        %1601 = vmatpush.msra.mxu0 0.0
        %1602 = vmatpush.msra.mxu0 0.0
        %1603 = vmatpush.msra.mxu0 0.0
        %1604 = vmatpush.msra.mxu0 0.0
        %1605 = vmatpush.msra.mxu0 %v1581
        %1606 = vmatpush.msra.mxu0 %v1579
        %1607 = vmatpush.msra.mxu0 %v1577
        %1608 = vmatpush.msra.mxu0 %v1575
        %1609 = vmatpush.msra.mxu0 %v1573
        %1610 = vmatpush.msra.mxu0 %v1571
        %1611 = vmatmul.f32.gmra.mxu0 %v1590
        %v1612 = vpop.f32.mrf.mxu0
        %v1613 = vadd.f32 %v1585, %v1612
        %1614 = vmatmul.f32.gmra.mxu0 %v1593
        %v1615 = vpop.f32.mrf.mxu0
        %v1616 = vadd.f32 %v1585, %v1615
        %1617 = vdwg.mxu0
        %1618 = vmatpush.msra.mxu0 0.0
        %1619 = vmatpush.msra.mxu0 0.0
        %1620 = vmatpush.msra.mxu0 0.0
        %1621 = vmatpush.msra.mxu0 0.0
        %1622 = vmatpush.msra.mxu0 0.0
        %1623 = vmatpush.msra.mxu0 0.0
        %1624 = vmatpush.msra.mxu0 0.0
        %1625 = vmatpush.msra.mxu0 0.0
        %1626 = vmatpush.msra.mxu0 0.0
        %1627 = vmatpush.msra.mxu0 0.0
        %1628 = vmatpush.msra.mxu0 %v1582
        %1629 = vmatpush.msra.mxu0 %v1580
        %1630 = vmatpush.msra.mxu0 %v1578
        %1631 = vmatpush.msra.mxu0 %v1576
        %1632 = vmatpush.msra.mxu0 %v1574
        %1633 = vmatpush.msra.mxu0 %v1572
        %1634 = vmatmul.f32.gmra.mxu0 %v1590
        %v1635 = vpop.f32.mrf.mxu0
        %v1636 = vadd.f32 %v1586, %v1635
        %1637 = vmatmul.f32.gmra.mxu0 %v1593
        %v1638 = vpop.f32.mrf.mxu0
        %v1639 = vadd.f32 %v1586, %v1638
        %1640 = vdwg.mxu0
        %v1641 = vld [vmem:[%s25] sm:$0xff]
        %v1642 = vld [vmem:[%s25 + $0x8] sm:$0xff]
        %v1643 = vld [vmem:[%s25 + $0x10] sm:$0xff]
        %v1644 = vld [vmem:[%s25 + $0x18] sm:$0xff]
        %v1645 = vld [vmem:[%s25 + $0x20] sm:$0xff]
        %v1646 = vld [vmem:[%s25 + $0x28] sm:$0xff]
        %v1647 = vld [vmem:[%s27] sm:$0x1]
        %1650 = vrot.lane.b32.xlu0 %v1613, 80
        %v1651 = vpop.permute.xlu0 %1650
        %1652 = vrot.lane.b32.xlu0 %v1616, 80
        %v1653 = vpop.permute.xlu0 %1652
        %vm1654 = vcmask 97280
        %v1655 = vsel %vm1654, %v1613, 0
        %v1657 = vsel %vm1654, %v1616, 0
        %v1659 = vsel %vm1654, %v1651, 0
        %v1661 = vsel %vm1654, %v1653, 0
        %1663 = vmatpush.xpose.msra.mxu0 0.0
        %1664 = vmatpush.xpose.msra.mxu0 0.0
        %1665 = vmatpush.xpose.msra.mxu0 0.0
        %1666 = vmatpush.xpose.msra.mxu0 0.0
        %1667 = vmatpush.xpose.msra.mxu0 0.0
        %1668 = vmatpush.xpose.msra.mxu0 0.0
        %1669 = vmatpush.xpose.msra.mxu0 0.0
        %1670 = vmatpush.xpose.msra.mxu0 0.0
        %1671 = vmatpush.xpose.msra.mxu0 0.0
        %1672 = vmatpush.xpose.msra.mxu0 0.0
        %1673 = vmatpush.xpose.msra.mxu0 0.0
        %1674 = vmatpush.xpose.msra.mxu0 0.0
        %1675 = vmatpush.xpose.msra.mxu0 0.0
        %1676 = vmatpush.xpose.msra.mxu0 0.0
        %1677 = vmatpush.xpose.msra.mxu0 %v1661
        %1678 = vmatpush.xpose.msra.mxu0 %v1659
        %1679 = vmatmul.f32.gmra.mxu0 %v1655
        %v1680 = vpop.f32.mrf.mxu0
        %v1681 = vadd.f32 0.0, %v1680
        %1682 = vmatmul.f32.gmra.mxu0 %v1657
        %v1683 = vpop.f32.mrf.mxu0
        %v1684 = vadd.f32 0.0, %v1683
        %1685 = vdwg.mxu0
        %v1686 = vmul.f32 %v1681, 0.28867513
        %v1687 = vmul.f32 %v1684, 0.28867513
        %vm1688 = vcmask 130048
        %v1689 = vsel %vm1688, %v1686, -inf
        %1690 = vmax.xlane.f32.xlu0 %v1689
        %v1691 = vpop.xlane.xlu0 %1690
        %v1692 = vsel %vm1688, %v1687, -inf
        %1693 = vmax.xlane.f32.xlu0 %v1692
        %v1694 = vpop.xlane.xlu0 %1693
        %v1695 = vsub.f32 %v1686, %v1691
        %v1696 = vsub.f32 %v1687, %v1694
        %v1697 = vmul.f32 %v1695, 1.442695
        %v1698 = vpow.pop %v1697
        %v1699 = vmul.f32 %v1696, 1.442695
        %v1700 = vpow.pop %v1699
        %v1701 = vsel %vm1688, %v1698, 0.0
        %1702 = vadd.xlane.f32.xlu0 %v1701
        %v1703 = vpop.xlane.xlu0 %1702
        %v1704 = vsel %vm1688, %v1700, 0.0
        %1705 = vadd.xlane.f32.xlu0 %v1704
        %v1706 = vpop.xlane.xlu0 %1705
        %v1707 = vrcp.pop %v1703
        %v1708 = vmul.f32 %v1703, %v1707
        %v1709 = vsub.f32 1.0, %v1708
        %v1710 = vmul.f32 %v1707, %v1709
        %v1711 = vadd.f32 %v1707, %v1710
        %vm1712 = vweird.f32 %v1703
        %vm1713 = vweird.f32 %v1707
        %vm1714 = vmor %vm1712, %vm1713
        %v1715 = vsel %vm1714, %v1707, %v1711
        %v1716 = vand.u32 2147483647, %v1703
        %vm1717 = vcmp.eq.f32.partialorder %v1716, 8.507059e+37
        %v1718 = vand.u32 %v1703, 2147483648
        %v1719 = vor.u32 1.1754944e-38, %v1718
        %v1720 = vsel %vm1717, %v1719, %v1715
        %v1721 = vrcp.pop %v1706
        %v1722 = vmul.f32 %v1706, %v1721
        %v1723 = vsub.f32 1.0, %v1722
        %v1724 = vmul.f32 %v1721, %v1723
        %v1725 = vadd.f32 %v1721, %v1724
        %vm1726 = vweird.f32 %v1706
        %vm1727 = vweird.f32 %v1721
        %vm1728 = vmor %vm1726, %vm1727
        %v1729 = vsel %vm1728, %v1721, %v1725
        %v1730 = vand.u32 2147483647, %v1706
        %vm1731 = vcmp.eq.f32.partialorder %v1730, 8.507059e+37
        %v1732 = vand.u32 %v1706, 2147483648
        %v1733 = vor.u32 1.1754944e-38, %v1732
        %v1734 = vsel %vm1731, %v1733, %v1729
        %v1735 = vmul.f32 %v1698, %v1720
        %v1736 = vmul.f32 %v1700, %v1734
        %1737 = vrot.lane.b32.xlu0 %v1613, 32
        %v1738 = vpop.permute.xlu0 %1737
        %1739 = vrot.lane.b32.xlu0 %v1616, 32
        %v1740 = vpop.permute.xlu0 %1739
        %v1744 = vsel %vm1688, %v1735, 0
        %v1747 = vsel %vm1688, %v1736, 0
        %1749 = vmatpush.msra.mxu0 0.0
        %1750 = vmatpush.msra.mxu0 0.0
        %1751 = vmatpush.msra.mxu0 0.0
        %1752 = vmatpush.msra.mxu0 0.0
        %1753 = vmatpush.msra.mxu0 0.0
        %1754 = vmatpush.msra.mxu0 0.0
        %1755 = vmatpush.msra.mxu0 0.0
        %1756 = vmatpush.msra.mxu0 0.0
        %1757 = vmatpush.msra.mxu0 0.0
        %1758 = vmatpush.msra.mxu0 0.0
        %1759 = vmatpush.msra.mxu0 0.0
        %1760 = vmatpush.msra.mxu0 0.0
        %1761 = vmatpush.msra.mxu0 0.0
        %1762 = vmatpush.msra.mxu0 0.0
        %1763 = vmatpush.msra.mxu0 %v1740
        %1764 = vmatpush.msra.mxu0 %v1738
        %1765 = vmatmul.f32.gmra.mxu0 %v1744
        %v1766 = vpop.f32.mrf.mxu0
        %v1767 = vadd.f32 0.0, %v1766
        %1768 = vmatmul.f32.gmra.mxu0 %v1747
        %v1769 = vpop.f32.mrf.mxu0
        %v1770 = vadd.f32 0.0, %v1769
        %1771 = vdwg.mxu0
        %1772 = vrot.lane.b32.xlu0 %v1613, 116
        %v1773 = vpop.permute.xlu0 %1772
        %1774 = vrot.lane.b32.xlu0 %v1616, 116
        %v1775 = vpop.permute.xlu0 %1774
        %1776 = vrot.lane.b32.xlu0 %v1613, 68
        %v1777 = vpop.permute.xlu0 %1776
        %1778 = vrot.lane.b32.xlu0 %v1616, 68
        %v1779 = vpop.permute.xlu0 %1778
        %v1780 = vsel %vm1654, %v1773, 0
        %v1782 = vsel %vm1654, %v1775, 0
        %v1784 = vsel %vm1654, %v1777, 0
        %v1786 = vsel %vm1654, %v1779, 0
        %1788 = vmatpush.xpose.msra.mxu0 0.0
        %1789 = vmatpush.xpose.msra.mxu0 0.0
        %1790 = vmatpush.xpose.msra.mxu0 0.0
        %1791 = vmatpush.xpose.msra.mxu0 0.0
        %1792 = vmatpush.xpose.msra.mxu0 0.0
        %1793 = vmatpush.xpose.msra.mxu0 0.0
        %1794 = vmatpush.xpose.msra.mxu0 0.0
        %1795 = vmatpush.xpose.msra.mxu0 0.0
        %1796 = vmatpush.xpose.msra.mxu0 0.0
        %1797 = vmatpush.xpose.msra.mxu0 0.0
        %1798 = vmatpush.xpose.msra.mxu0 0.0
        %1799 = vmatpush.xpose.msra.mxu0 0.0
        %1800 = vmatpush.xpose.msra.mxu0 0.0
        %1801 = vmatpush.xpose.msra.mxu0 0.0
        %1802 = vmatpush.xpose.msra.mxu0 %v1786
        %1803 = vmatpush.xpose.msra.mxu0 %v1784
        %1804 = vmatmul.f32.gmra.mxu0 %v1780
        %v1805 = vpop.f32.mrf.mxu0
        %v1806 = vadd.f32 0.0, %v1805
        %1807 = vmatmul.f32.gmra.mxu0 %v1782
        %v1808 = vpop.f32.mrf.mxu0
        %v1809 = vadd.f32 0.0, %v1808
        %1810 = vdwg.mxu0
        %v1811 = vmul.f32 %v1806, 0.28867513
        %v1812 = vmul.f32 %v1809, 0.28867513
        %v1813 = vsel %vm1688, %v1811, -inf
        %1814 = vmax.xlane.f32.xlu0 %v1813
        %v1815 = vpop.xlane.xlu0 %1814
        %v1816 = vsel %vm1688, %v1812, -inf
        %1817 = vmax.xlane.f32.xlu0 %v1816
        %v1818 = vpop.xlane.xlu0 %1817
        %v1819 = vsub.f32 %v1811, %v1815
        %v1820 = vsub.f32 %v1812, %v1818
        %v1821 = vmul.f32 %v1819, 1.442695
        %v1822 = vpow.pop %v1821
        %v1823 = vmul.f32 %v1820, 1.442695
        %v1824 = vpow.pop %v1823
        %v1825 = vsel %vm1688, %v1822, 0.0
        %1826 = vadd.xlane.f32.xlu0 %v1825
        %v1827 = vpop.xlane.xlu0 %1826
        %v1828 = vsel %vm1688, %v1824, 0.0
        %1829 = vadd.xlane.f32.xlu0 %v1828
        %v1830 = vpop.xlane.xlu0 %1829
        %v1831 = vrcp.pop %v1827
        %v1832 = vmul.f32 %v1827, %v1831
        %v1833 = vsub.f32 1.0, %v1832
        %v1834 = vmul.f32 %v1831, %v1833
        %v1835 = vadd.f32 %v1831, %v1834
        %vm1836 = vweird.f32 %v1827
        %vm1837 = vweird.f32 %v1831
        %vm1838 = vmor %vm1836, %vm1837
        %v1839 = vsel %vm1838, %v1831, %v1835
        %v1840 = vand.u32 2147483647, %v1827
        %vm1841 = vcmp.eq.f32.partialorder %v1840, 8.507059e+37
        %v1842 = vand.u32 %v1827, 2147483648
        %v1843 = vor.u32 1.1754944e-38, %v1842
        %v1844 = vsel %vm1841, %v1843, %v1839
        %v1845 = vrcp.pop %v1830
        %v1846 = vmul.f32 %v1830, %v1845
        %v1847 = vsub.f32 1.0, %v1846
        %v1848 = vmul.f32 %v1845, %v1847
        %v1849 = vadd.f32 %v1845, %v1848
        %vm1850 = vweird.f32 %v1830
        %vm1851 = vweird.f32 %v1845
        %vm1852 = vmor %vm1850, %vm1851
        %v1853 = vsel %vm1852, %v1845, %v1849
        %v1854 = vand.u32 2147483647, %v1830
        %vm1855 = vcmp.eq.f32.partialorder %v1854, 8.507059e+37
        %v1856 = vand.u32 %v1830, 2147483648
        %v1857 = vor.u32 1.1754944e-38, %v1856
        %v1858 = vsel %vm1855, %v1857, %v1853
        %v1859 = vmul.f32 %v1822, %v1844
        %v1860 = vmul.f32 %v1824, %v1858
        %1861 = vrot.lane.b32.xlu0 %v1613, 20
        %v1862 = vpop.permute.xlu0 %1861
        %1863 = vrot.lane.b32.xlu0 %v1616, 20
        %v1864 = vpop.permute.xlu0 %1863
        %v1868 = vsel %vm1688, %v1859, 0
        %v1871 = vsel %vm1688, %v1860, 0
        %1873 = vmatpush.msra.mxu0 0.0
        %1874 = vmatpush.msra.mxu0 0.0
        %1875 = vmatpush.msra.mxu0 0.0
        %1876 = vmatpush.msra.mxu0 0.0
        %1877 = vmatpush.msra.mxu0 0.0
        %1878 = vmatpush.msra.mxu0 0.0
        %1879 = vmatpush.msra.mxu0 0.0
        %1880 = vmatpush.msra.mxu0 0.0
        %1881 = vmatpush.msra.mxu0 0.0
        %1882 = vmatpush.msra.mxu0 0.0
        %1883 = vmatpush.msra.mxu0 0.0
        %1884 = vmatpush.msra.mxu0 0.0
        %1885 = vmatpush.msra.mxu0 0.0
        %1886 = vmatpush.msra.mxu0 0.0
        %1887 = vmatpush.msra.mxu0 %v1864
        %1888 = vmatpush.msra.mxu0 %v1862
        %1889 = vmatmul.f32.gmra.mxu0 %v1868
        %v1890 = vpop.f32.mrf.mxu0
        %v1891 = vadd.f32 0.0, %v1890
        %1892 = vmatmul.f32.gmra.mxu0 %v1871
        %v1893 = vpop.f32.mrf.mxu0
        %v1894 = vadd.f32 0.0, %v1893
        %1895 = vdwg.mxu0
        %1896 = vrot.lane.b32.xlu0 %v1613, 104
        %v1897 = vpop.permute.xlu0 %1896
        %1898 = vrot.lane.b32.xlu0 %v1616, 104
        %v1899 = vpop.permute.xlu0 %1898
        %1900 = vrot.lane.b32.xlu0 %v1613, 56
        %v1901 = vpop.permute.xlu0 %1900
        %1902 = vrot.lane.b32.xlu0 %v1616, 56
        %v1903 = vpop.permute.xlu0 %1902
        %v1904 = vsel %vm1654, %v1897, 0
        %v1906 = vsel %vm1654, %v1899, 0
        %v1908 = vsel %vm1654, %v1901, 0
        %v1910 = vsel %vm1654, %v1903, 0
        %1912 = vmatpush.xpose.msra.mxu0 0.0
        %1913 = vmatpush.xpose.msra.mxu0 0.0
        %1914 = vmatpush.xpose.msra.mxu0 0.0
        %1915 = vmatpush.xpose.msra.mxu0 0.0
        %1916 = vmatpush.xpose.msra.mxu0 0.0
        %1917 = vmatpush.xpose.msra.mxu0 0.0
        %1918 = vmatpush.xpose.msra.mxu0 0.0
        %1919 = vmatpush.xpose.msra.mxu0 0.0
        %1920 = vmatpush.xpose.msra.mxu0 0.0
        %1921 = vmatpush.xpose.msra.mxu0 0.0
        %1922 = vmatpush.xpose.msra.mxu0 0.0
        %1923 = vmatpush.xpose.msra.mxu0 0.0
        %1924 = vmatpush.xpose.msra.mxu0 0.0
        %1925 = vmatpush.xpose.msra.mxu0 0.0
        %1926 = vmatpush.xpose.msra.mxu0 %v1910
        %1927 = vmatpush.xpose.msra.mxu0 %v1908
        %1928 = vmatmul.f32.gmra.mxu0 %v1904
        %v1929 = vpop.f32.mrf.mxu0
        %v1930 = vadd.f32 0.0, %v1929
        %1931 = vmatmul.f32.gmra.mxu0 %v1906
        %v1932 = vpop.f32.mrf.mxu0
        %v1933 = vadd.f32 0.0, %v1932
        %1934 = vdwg.mxu0
        %v1935 = vmul.f32 %v1930, 0.28867513
        %v1936 = vmul.f32 %v1933, 0.28867513
        %v1937 = vsel %vm1688, %v1935, -inf
        %1938 = vmax.xlane.f32.xlu0 %v1937
        %v1939 = vpop.xlane.xlu0 %1938
        %v1940 = vsel %vm1688, %v1936, -inf
        %1941 = vmax.xlane.f32.xlu0 %v1940
        %v1942 = vpop.xlane.xlu0 %1941
        %v1943 = vsub.f32 %v1935, %v1939
        %v1944 = vsub.f32 %v1936, %v1942
        %v1945 = vmul.f32 %v1943, 1.442695
        %v1946 = vpow.pop %v1945
        %v1947 = vmul.f32 %v1944, 1.442695
        %v1948 = vpow.pop %v1947
        %v1949 = vsel %vm1688, %v1946, 0.0
        %1950 = vadd.xlane.f32.xlu0 %v1949
        %v1951 = vpop.xlane.xlu0 %1950
        %v1952 = vsel %vm1688, %v1948, 0.0
        %1953 = vadd.xlane.f32.xlu0 %v1952
        %v1954 = vpop.xlane.xlu0 %1953
        %v1955 = vrcp.pop %v1951
        %v1956 = vmul.f32 %v1951, %v1955
        %v1957 = vsub.f32 1.0, %v1956
        %v1958 = vmul.f32 %v1955, %v1957
        %v1959 = vadd.f32 %v1955, %v1958
        %vm1960 = vweird.f32 %v1951
        %vm1961 = vweird.f32 %v1955
        %vm1962 = vmor %vm1960, %vm1961
        %v1963 = vsel %vm1962, %v1955, %v1959
        %v1964 = vand.u32 2147483647, %v1951
        %vm1965 = vcmp.eq.f32.partialorder %v1964, 8.507059e+37
        %v1966 = vand.u32 %v1951, 2147483648
        %v1967 = vor.u32 1.1754944e-38, %v1966
        %v1968 = vsel %vm1965, %v1967, %v1963
        %v1969 = vrcp.pop %v1954
        %v1970 = vmul.f32 %v1954, %v1969
        %v1971 = vsub.f32 1.0, %v1970
        %v1972 = vmul.f32 %v1969, %v1971
        %v1973 = vadd.f32 %v1969, %v1972
        %vm1974 = vweird.f32 %v1954
        %vm1975 = vweird.f32 %v1969
        %vm1976 = vmor %vm1974, %vm1975
        %v1977 = vsel %vm1976, %v1969, %v1973
        %v1978 = vand.u32 2147483647, %v1954
        %vm1979 = vcmp.eq.f32.partialorder %v1978, 8.507059e+37
        %v1980 = vand.u32 %v1954, 2147483648
        %v1981 = vor.u32 1.1754944e-38, %v1980
        %v1982 = vsel %vm1979, %v1981, %v1977
        %v1983 = vmul.f32 %v1946, %v1968
        %v1984 = vmul.f32 %v1948, %v1982
        %1987 = vrot.lane.b32.xlu0 %v1613, 8
        %v1988 = vpop.permute.xlu0 %1987
        %1989 = vrot.lane.b32.xlu0 %v1636, 8
        %v1990 = vpop.permute.xlu0 %1989
        %1991 = vrot.lane.b32.xlu0 %v1616, 8
        %v1992 = vpop.permute.xlu0 %1991
        %1993 = vrot.lane.b32.xlu0 %v1639, 8
        %v1994 = vpop.permute.xlu0 %1993
        %vm1995 = vcmask 64512
        %v1996 = vsel %vm1995, %v1988, %v1990
        %v1997 = vsel %vm1995, %v1992, %v1994
        %v2001 = vsel %vm1688, %v1983, 0
        %v2004 = vsel %vm1688, %v1984, 0
        %2006 = vmatpush.msra.mxu0 0.0
        %2007 = vmatpush.msra.mxu0 0.0
        %2008 = vmatpush.msra.mxu0 0.0
        %2009 = vmatpush.msra.mxu0 0.0
        %2010 = vmatpush.msra.mxu0 0.0
        %2011 = vmatpush.msra.mxu0 0.0
        %2012 = vmatpush.msra.mxu0 0.0
        %2013 = vmatpush.msra.mxu0 0.0
        %2014 = vmatpush.msra.mxu0 0.0
        %2015 = vmatpush.msra.mxu0 0.0
        %2016 = vmatpush.msra.mxu0 0.0
        %2017 = vmatpush.msra.mxu0 0.0
        %2018 = vmatpush.msra.mxu0 0.0
        %2019 = vmatpush.msra.mxu0 0.0
        %2020 = vmatpush.msra.mxu0 %v1997
        %2021 = vmatpush.msra.mxu0 %v1996
        %2022 = vmatmul.f32.gmra.mxu0 %v2001
        %v2023 = vpop.f32.mrf.mxu0
        %v2024 = vadd.f32 0.0, %v2023
        %2025 = vmatmul.f32.gmra.mxu0 %v2004
        %v2026 = vpop.f32.mrf.mxu0
        %v2027 = vadd.f32 0.0, %v2026
        %2028 = vdwg.mxu0
        %2029 = vrot.lane.b32.xlu0 %v1613, 92
        %v2030 = vpop.permute.xlu0 %2029
        %2031 = vrot.lane.b32.xlu0 %v1616, 92
        %v2032 = vpop.permute.xlu0 %2031
        %2033 = vrot.lane.b32.xlu0 %v1613, 44
        %v2034 = vpop.permute.xlu0 %2033
        %2035 = vrot.lane.b32.xlu0 %v1616, 44
        %v2036 = vpop.permute.xlu0 %2035
        %v2037 = vsel %vm1654, %v2030, 0
        %v2039 = vsel %vm1654, %v2032, 0
        %v2041 = vsel %vm1654, %v2034, 0
        %v2043 = vsel %vm1654, %v2036, 0
        %2045 = vmatpush.xpose.msra.mxu0 0.0
        %2046 = vmatpush.xpose.msra.mxu0 0.0
        %2047 = vmatpush.xpose.msra.mxu0 0.0
        %2048 = vmatpush.xpose.msra.mxu0 0.0
        %2049 = vmatpush.xpose.msra.mxu0 0.0
        %2050 = vmatpush.xpose.msra.mxu0 0.0
        %2051 = vmatpush.xpose.msra.mxu0 0.0
        %2052 = vmatpush.xpose.msra.mxu0 0.0
        %2053 = vmatpush.xpose.msra.mxu0 0.0
        %2054 = vmatpush.xpose.msra.mxu0 0.0
        %2055 = vmatpush.xpose.msra.mxu0 0.0
        %2056 = vmatpush.xpose.msra.mxu0 0.0
        %2057 = vmatpush.xpose.msra.mxu0 0.0
        %2058 = vmatpush.xpose.msra.mxu0 0.0
        %2059 = vmatpush.xpose.msra.mxu0 %v2043
        %2060 = vmatpush.xpose.msra.mxu0 %v2041
        %2061 = vmatmul.f32.gmra.mxu0 %v2037
        %v2062 = vpop.f32.mrf.mxu0
        %v2063 = vadd.f32 0.0, %v2062
        %2064 = vmatmul.f32.gmra.mxu0 %v2039
        %v2065 = vpop.f32.mrf.mxu0
        %v2066 = vadd.f32 0.0, %v2065
        %2067 = vdwg.mxu0
        %v2068 = vmul.f32 %v2063, 0.28867513
        %v2069 = vmul.f32 %v2066, 0.28867513
        %v2070 = vsel %vm1688, %v2068, -inf
        %2071 = vmax.xlane.f32.xlu0 %v2070
        %v2072 = vpop.xlane.xlu0 %2071
        %v2073 = vsel %vm1688, %v2069, -inf
        %2074 = vmax.xlane.f32.xlu0 %v2073
        %v2075 = vpop.xlane.xlu0 %2074
        %v2076 = vsub.f32 %v2068, %v2072
        %v2077 = vsub.f32 %v2069, %v2075
        %v2078 = vmul.f32 %v2076, 1.442695
        %v2079 = vpow.pop %v2078
        %v2080 = vmul.f32 %v2077, 1.442695
        %v2081 = vpow.pop %v2080
        %v2082 = vsel %vm1688, %v2079, 0.0
        %2083 = vadd.xlane.f32.xlu0 %v2082
        %v2084 = vpop.xlane.xlu0 %2083
        %v2085 = vsel %vm1688, %v2081, 0.0
        %2086 = vadd.xlane.f32.xlu0 %v2085
        %v2087 = vpop.xlane.xlu0 %2086
        %v2088 = vrcp.pop %v2084
        %v2089 = vmul.f32 %v2084, %v2088
        %v2090 = vsub.f32 1.0, %v2089
        %v2091 = vmul.f32 %v2088, %v2090
        %v2092 = vadd.f32 %v2088, %v2091
        %vm2093 = vweird.f32 %v2084
        %vm2094 = vweird.f32 %v2088
        %vm2095 = vmor %vm2093, %vm2094
        %v2096 = vsel %vm2095, %v2088, %v2092
        %v2097 = vand.u32 2147483647, %v2084
        %vm2098 = vcmp.eq.f32.partialorder %v2097, 8.507059e+37
        %v2099 = vand.u32 %v2084, 2147483648
        %v2100 = vor.u32 1.1754944e-38, %v2099
        %v2101 = vsel %vm2098, %v2100, %v2096
        %v2102 = vrcp.pop %v2087
        %v2103 = vmul.f32 %v2087, %v2102
        %v2104 = vsub.f32 1.0, %v2103
        %v2105 = vmul.f32 %v2102, %v2104
        %v2106 = vadd.f32 %v2102, %v2105
        %vm2107 = vweird.f32 %v2087
        %vm2108 = vweird.f32 %v2102
        %vm2109 = vmor %vm2107, %vm2108
        %v2110 = vsel %vm2109, %v2102, %v2106
        %v2111 = vand.u32 2147483647, %v2087
        %vm2112 = vcmp.eq.f32.partialorder %v2111, 8.507059e+37
        %v2113 = vand.u32 %v2087, 2147483648
        %v2114 = vor.u32 1.1754944e-38, %v2113
        %v2115 = vsel %vm2112, %v2114, %v2110
        %v2116 = vmul.f32 %v2079, %v2101
        %v2117 = vmul.f32 %v2081, %v2115
        %2118 = vrot.lane.b32.xlu0 %v1636, 124
        %v2119 = vpop.permute.xlu0 %2118
        %2120 = vrot.lane.b32.xlu0 %v1639, 124
        %v2121 = vpop.permute.xlu0 %2120
        %v2125 = vsel %vm1688, %v2116, 0
        %v2128 = vsel %vm1688, %v2117, 0
        %2130 = vmatpush.msra.mxu0 0.0
        %2131 = vmatpush.msra.mxu0 0.0
        %2132 = vmatpush.msra.mxu0 0.0
        %2133 = vmatpush.msra.mxu0 0.0
        %2134 = vmatpush.msra.mxu0 0.0
        %2135 = vmatpush.msra.mxu0 0.0
        %2136 = vmatpush.msra.mxu0 0.0
        %2137 = vmatpush.msra.mxu0 0.0
        %2138 = vmatpush.msra.mxu0 0.0
        %2139 = vmatpush.msra.mxu0 0.0
        %2140 = vmatpush.msra.mxu0 0.0
        %2141 = vmatpush.msra.mxu0 0.0
        %2142 = vmatpush.msra.mxu0 0.0
        %2143 = vmatpush.msra.mxu0 0.0
        %2144 = vmatpush.msra.mxu0 %v2121
        %2145 = vmatpush.msra.mxu0 %v2119
        %2146 = vmatmul.f32.gmra.mxu0 %v2125
        %v2147 = vpop.f32.mrf.mxu0
        %v2148 = vadd.f32 0.0, %v2147
        %2149 = vmatmul.f32.gmra.mxu0 %v2128
        %v2150 = vpop.f32.mrf.mxu0
        %v2151 = vadd.f32 0.0, %v2150
        %2152 = vdwg.mxu0
        %2155 = vrot.lane.b32.xlu0 %v1891, 12
        %v2156 = vpop.permute.xlu0 %2155
        %2157 = vrot.lane.b32.xlu0 %v1894, 12
        %v2158 = vpop.permute.xlu0 %2157
        %2163 = vrot.lane.b32.xlu0 %v2024, 24
        %v2164 = vpop.permute.xlu0 %2163
        %2165 = vrot.lane.b32.xlu0 %v2027, 24
        %v2166 = vpop.permute.xlu0 %2165
        %2171 = vrot.lane.b32.xlu0 %v2148, 36
        %v2172 = vpop.permute.xlu0 %2171
        %2173 = vrot.lane.b32.xlu0 %v2151, 36
        %v2174 = vpop.permute.xlu0 %2173
        %v2177 = vsel %vm1654, %v1767, %v2156
        %v2178 = vsel %vm1654, %v1770, %v2158
        %vm2179 = vcmask 195584
        %v2180 = vsel %vm2179, %v2177, %v2164
        %v2181 = vsel %vm2179, %v2178, %v2166
        %vm2182 = vcmask 293888
        %v2183 = vsel %vm2182, %v2180, %v2172
        %v2184 = vsel %vm2182, %v2181, %v2174
        %v2186 = vperm.slane %v1647, 0
        %v2189 = vsel %vm1505, %v2183, 0
        %v2192 = vsel %vm1505, %v2184, 0
        %2194 = vmatpush.msra.mxu0 0.0
        %2195 = vmatpush.msra.mxu0 0.0
        %2196 = vmatpush.msra.mxu0 0.0
        %2197 = vmatpush.msra.mxu0 0.0
        %2198 = vmatpush.msra.mxu0 0.0
        %2199 = vmatpush.msra.mxu0 0.0
        %2200 = vmatpush.msra.mxu0 0.0
        %2201 = vmatpush.msra.mxu0 0.0
        %2202 = vmatpush.msra.mxu0 0.0
        %2203 = vmatpush.msra.mxu0 0.0
        %2204 = vmatpush.msra.mxu0 %v1646
        %2205 = vmatpush.msra.mxu0 %v1645
        %2206 = vmatpush.msra.mxu0 %v1644
        %2207 = vmatpush.msra.mxu0 %v1643
        %2208 = vmatpush.msra.mxu0 %v1642
        %2209 = vmatpush.msra.mxu0 %v1641
        %2210 = vmatmul.f32.gmra.mxu0 %v2189
        %v2211 = vpop.f32.mrf.mxu0
        %v2212 = vadd.f32 %v2186, %v2211
        %2213 = vmatmul.f32.gmra.mxu0 %v2192
        %v2214 = vpop.f32.mrf.mxu0
        %v2215 = vadd.f32 %v2186, %v2214
        %2216 = vdwg.mxu0
        %v2217 = vadd.f32 %v1569, %v2212
        %v2218 = vadd.f32 %v1570, %v2215
        %v2219 = vld [vmem:[%s29] sm:$0x1]
        %v2220 = vld [vmem:[%s31] sm:$0x1]
        %v2221 = vsel %vm1505, %v2217, 0.0
        %2222 = vadd.xlane.f32.xlu0 %v2221
        %v2223 = vpop.xlane.xlu0 %2222
        %v2224 = vsel %vm1505, %v2218, 0.0
        %2225 = vadd.xlane.f32.xlu0 %v2224
        %v2226 = vpop.xlane.xlu0 %2225
        %v2227 = vmul.f32 %v2223, %v1518
        %v2228 = vmul.f32 %v2226, %v1518
        %v2229 = vsub.f32 %v2217, %v2227
        %v2230 = vsub.f32 %v2218, %v2228
        %v2231 = vmul.f32 %v2229, %v2229
        %v2232 = vmul.f32 %v2230, %v2230
        %v2233 = vsel %vm1505, %v2231, 0.0
        %2234 = vadd.xlane.f32.xlu0 %v2233
        %v2235 = vpop.xlane.xlu0 %2234
        %v2236 = vsel %vm1505, %v2232, 0.0
        %2237 = vadd.xlane.f32.xlu0 %v2236
        %v2238 = vpop.xlane.xlu0 %2237
        %v2239 = vmul.f32 %v2235, %v1518
        %v2240 = vmul.f32 %v2238, %v1518
        %v2241 = vadd.f32 %v2239, 1e-05
        %v2242 = vadd.f32 %v2240, 1e-05
        %v2243 = vrsqrt.pop %v2241
        %v2244 = vmul.f32 %v2243, %v2241
        %v2245 = vmul.f32 %v2244, %v2243
        %v2246 = vmul.f32 0.5, %v2245
        %v2247 = vsub.f32 1.5, %v2246
        %v2248 = vmul.f32 %v2243, %v2247
        %vm2249 = vweird.f32 %v2241
        %vm2250 = vweird.f32 %v2243
        %vm2251 = vmor %vm2249, %vm2250
        %v2252 = vsel %vm2251, %v2243, %v2248
        %v2253 = vrsqrt.pop %v2242
        %v2254 = vmul.f32 %v2253, %v2242
        %v2255 = vmul.f32 %v2254, %v2253
        %v2256 = vmul.f32 0.5, %v2255
        %v2257 = vsub.f32 1.5, %v2256
        %v2258 = vmul.f32 %v2253, %v2257
        %vm2259 = vweird.f32 %v2242
        %vm2260 = vweird.f32 %v2253
        %vm2261 = vmor %vm2259, %vm2260
        %v2262 = vsel %vm2261, %v2253, %v2258
        %v2263 = vmul.f32 %v2229, %v2252
        %v2264 = vmul.f32 %v2230, %v2262
        %v2266 = vperm.slane %v2219, 0
        %v2268 = vmul.f32 %v2263, %v2266
        %v2269 = vmul.f32 %v2264, %v2266
        %v2271 = vperm.slane %v2220, 0
        %v2273 = vadd.f32 %v2268, %v2271
        %v2274 = vadd.f32 %v2269, %v2271
        %v2275 = vld [vmem:[%s33] sm:$0xff]
        %v2276 = vld [vmem:[%s33 + $0x8] sm:$0xff]
        %v2277 = vld [vmem:[%s33 + $0x10] sm:$0xff]
        %v2278 = vld [vmem:[%s33 + $0x18] sm:$0xff]
        %v2279 = vld [vmem:[%s33 + $0x20] sm:$0xff]
        %v2280 = vld [vmem:[%s33 + $0x28] sm:$0xff]
        %v2281 = vld [vmem:[%s35] sm:$0x1]
        %v2283 = vperm.slane %v2281, 0
        %v2286 = vsel %vm1505, %v2273, 0
        %v2289 = vsel %vm1505, %v2274, 0
        %2291 = vmatpush.msra.mxu0 0.0
        %2292 = vmatpush.msra.mxu0 0.0
        %2293 = vmatpush.msra.mxu0 0.0
        %2294 = vmatpush.msra.mxu0 0.0
        %2295 = vmatpush.msra.mxu0 0.0
        %2296 = vmatpush.msra.mxu0 0.0
        %2297 = vmatpush.msra.mxu0 0.0
        %2298 = vmatpush.msra.mxu0 0.0
        %2299 = vmatpush.msra.mxu0 0.0
        %2300 = vmatpush.msra.mxu0 0.0
        %2301 = vmatpush.msra.mxu0 %v2280
        %2302 = vmatpush.msra.mxu0 %v2279
        %2303 = vmatpush.msra.mxu0 %v2278
        %2304 = vmatpush.msra.mxu0 %v2277
        %2305 = vmatpush.msra.mxu0 %v2276
        %2306 = vmatpush.msra.mxu0 %v2275
        %2307 = vmatmul.f32.gmra.mxu0 %v2286
        %v2308 = vpop.f32.mrf.mxu0
        %v2309 = vadd.f32 %v2283, %v2308
        %2310 = vmatmul.f32.gmra.mxu0 %v2289
        %v2311 = vpop.f32.mrf.mxu0
        %v2312 = vadd.f32 %v2283, %v2311
        %2313 = vdwg.mxu0
        %v2314 = vmax.f32 %v2309, 0.0
        %v2315 = vmax.f32 %v2312, 0.0
        %v2316 = vld [vmem:[%s37] sm:$0xff]
        %v2317 = vld [vmem:[%s37 + $0x8] sm:$0xff]
        %v2318 = vld [vmem:[%s37 + $0x10] sm:$0xff]
        %v2319 = vld [vmem:[%s37 + $0x18] sm:$0xff]
        %v2320 = vld [vmem:[%s37 + $0x20] sm:$0xff]
        %v2321 = vld [vmem:[%s37 + $0x28] sm:$0xff]
        %v2322 = vld [vmem:[%s37 + $0x30] sm:$0xff]
        %v2323 = vld [vmem:[%s37 + $0x38] sm:$0xff]
        %v2324 = vld [vmem:[%s39] sm:$0x1]
        %v2326 = vperm.slane %v2324, 0
        %v2329 = vsel %vm1400, %v2314, 0
        %v2332 = vsel %vm1400, %v2315, 0
        %2334 = vmatpush.msra.mxu0 0.0
        %2335 = vmatpush.msra.mxu0 0.0
        %2336 = vmatpush.msra.mxu0 0.0
        %2337 = vmatpush.msra.mxu0 0.0
        %2338 = vmatpush.msra.mxu0 0.0
        %2339 = vmatpush.msra.mxu0 0.0
        %2340 = vmatpush.msra.mxu0 0.0
        %2341 = vmatpush.msra.mxu0 0.0
        %2342 = vmatpush.msra.mxu0 %v2323
        %2343 = vmatpush.msra.mxu0 %v2322
        %2344 = vmatpush.msra.mxu0 %v2321
        %2345 = vmatpush.msra.mxu0 %v2320
        %2346 = vmatpush.msra.mxu0 %v2319
        %2347 = vmatpush.msra.mxu0 %v2318
        %2348 = vmatpush.msra.mxu0 %v2317
        %2349 = vmatpush.msra.mxu0 %v2316
        %2350 = vmatmul.f32.gmra.mxu0 %v2329
        %v2351 = vpop.f32.mrf.mxu0
        %v2352 = vadd.f32 %v2326, %v2351
        %2353 = vmatmul.f32.gmra.mxu0 %v2332
        %v2354 = vpop.f32.mrf.mxu0
        %v2355 = vadd.f32 %v2326, %v2354
        %2356 = vdwg.mxu0
        %v2357 = vadd.f32 %v2273, %v2352
        %v2358 = vadd.f32 %v2274, %v2355
        %v2359 = vld [vmem:[%s41] sm:$0x1]
        %v2360 = vld [vmem:[%s43] sm:$0x1]
        %v2361 = vsel %vm1505, %v2357, 0.0
        %2362 = vadd.xlane.f32.xlu0 %v2361
        %v2363 = vpop.xlane.xlu0 %2362
        %v2364 = vsel %vm1505, %v2358, 0.0
        %2365 = vadd.xlane.f32.xlu0 %v2364
        %v2366 = vpop.xlane.xlu0 %2365
        %v2367 = vmul.f32 %v2363, %v1518
        %v2368 = vmul.f32 %v2366, %v1518
        %v2369 = vsub.f32 %v2357, %v2367
        %v2370 = vsub.f32 %v2358, %v2368
        %v2371 = vmul.f32 %v2369, %v2369
        %v2372 = vmul.f32 %v2370, %v2370
        %v2373 = vsel %vm1505, %v2371, 0.0
        %2374 = vadd.xlane.f32.xlu0 %v2373
        %v2375 = vpop.xlane.xlu0 %2374
        %v2376 = vsel %vm1505, %v2372, 0.0
        %2377 = vadd.xlane.f32.xlu0 %v2376
        %v2378 = vpop.xlane.xlu0 %2377
        %v2379 = vmul.f32 %v2375, %v1518
        %v2380 = vmul.f32 %v2378, %v1518
        %v2381 = vadd.f32 %v2379, 1e-05
        %v2382 = vadd.f32 %v2380, 1e-05
        %v2383 = vrsqrt.pop %v2381
        %v2384 = vmul.f32 %v2383, %v2381
        %v2385 = vmul.f32 %v2384, %v2383
        %v2386 = vmul.f32 0.5, %v2385
        %v2387 = vsub.f32 1.5, %v2386
        %v2388 = vmul.f32 %v2383, %v2387
        %vm2389 = vweird.f32 %v2381
        %vm2390 = vweird.f32 %v2383
        %vm2391 = vmor %vm2389, %vm2390
        %v2392 = vsel %vm2391, %v2383, %v2388
        %v2393 = vrsqrt.pop %v2382
        %v2394 = vmul.f32 %v2393, %v2382
        %v2395 = vmul.f32 %v2394, %v2393
        %v2396 = vmul.f32 0.5, %v2395
        %v2397 = vsub.f32 1.5, %v2396
        %v2398 = vmul.f32 %v2393, %v2397
        %vm2399 = vweird.f32 %v2382
        %vm2400 = vweird.f32 %v2393
        %vm2401 = vmor %vm2399, %vm2400
        %v2402 = vsel %vm2401, %v2393, %v2398
        %v2403 = vmul.f32 %v2369, %v2392
        %v2404 = vmul.f32 %v2370, %v2402
        %v2406 = vperm.slane %v2359, 0
        %v2408 = vmul.f32 %v2403, %v2406
        %v2409 = vmul.f32 %v2404, %v2406
        %v2411 = vperm.slane %v2360, 0
        %v2413 = vadd.f32 %v2408, %v2411
        %v2414 = vadd.f32 %v2409, %v2411
        %s2415 = scalar_lea.vmem %s21, 96
        %v2416 = vld [vmem:[%s2415] sm:$0xff]
        %v2417 = vld [vmem:[%s2415 + $0x8] sm:$0xff]
        %v2418 = vld [vmem:[%s2415 + $0x10] sm:$0xff]
        %v2419 = vld [vmem:[%s2415 + $0x18] sm:$0xff]
        %v2420 = vld [vmem:[%s2415 + $0x20] sm:$0xff]
        %v2421 = vld [vmem:[%s2415 + $0x28] sm:$0xff]
        %v2422 = vld [vmem:[%s2415 + $0x30] sm:$0xff]
        %v2423 = vld [vmem:[%s2415 + $0x38] sm:$0xff]
        %v2424 = vld [vmem:[%s2415 + $0x40] sm:$0xff]
        %v2425 = vld [vmem:[%s2415 + $0x48] sm:$0xff]
        %v2426 = vld [vmem:[%s2415 + $0x50] sm:$0xff]
        %v2427 = vld [vmem:[%s2415 + $0x58] sm:$0xff]
        %s2428 = scalar_lea.vmem %s23, 2
        %v2429 = vld [vmem:[%s2428] sm:$0x3]
        %v2431 = vperm.slane %v2429, 0
        %v2432 = vperm.slane %v2429, 1
        %v2436 = vsel %vm1505, %v2413, 0
        %v2439 = vsel %vm1505, %v2414, 0
        %2441 = vmatpush.msra.mxu0 0.0
        %2442 = vmatpush.msra.mxu0 0.0
        %2443 = vmatpush.msra.mxu0 0.0
        %2444 = vmatpush.msra.mxu0 0.0
        %2445 = vmatpush.msra.mxu0 0.0
        %2446 = vmatpush.msra.mxu0 0.0
        %2447 = vmatpush.msra.mxu0 0.0
        %2448 = vmatpush.msra.mxu0 0.0
        %2449 = vmatpush.msra.mxu0 0.0
        %2450 = vmatpush.msra.mxu0 0.0
        %2451 = vmatpush.msra.mxu0 %v2426
        %2452 = vmatpush.msra.mxu0 %v2424
        %2453 = vmatpush.msra.mxu0 %v2422
        %2454 = vmatpush.msra.mxu0 %v2420
        %2455 = vmatpush.msra.mxu0 %v2418
        %2456 = vmatpush.msra.mxu0 %v2416
        %2457 = vmatmul.f32.gmra.mxu0 %v2436
        %v2458 = vpop.f32.mrf.mxu0
        %v2459 = vadd.f32 %v2431, %v2458
        %2460 = vmatmul.f32.gmra.mxu0 %v2439
        %v2461 = vpop.f32.mrf.mxu0
        %v2462 = vadd.f32 %v2431, %v2461
        %2463 = vdwg.mxu0
        %2464 = vmatpush.msra.mxu0 0.0
        %2465 = vmatpush.msra.mxu0 0.0
        %2466 = vmatpush.msra.mxu0 0.0
        %2467 = vmatpush.msra.mxu0 0.0
        %2468 = vmatpush.msra.mxu0 0.0
        %2469 = vmatpush.msra.mxu0 0.0
        %2470 = vmatpush.msra.mxu0 0.0
        %2471 = vmatpush.msra.mxu0 0.0
        %2472 = vmatpush.msra.mxu0 0.0
        %2473 = vmatpush.msra.mxu0 0.0
        %2474 = vmatpush.msra.mxu0 %v2427
        %2475 = vmatpush.msra.mxu0 %v2425
        %2476 = vmatpush.msra.mxu0 %v2423
        %2477 = vmatpush.msra.mxu0 %v2421
        %2478 = vmatpush.msra.mxu0 %v2419
        %2479 = vmatpush.msra.mxu0 %v2417
        %2480 = vmatmul.f32.gmra.mxu0 %v2436
        %v2481 = vpop.f32.mrf.mxu0
        %v2482 = vadd.f32 %v2432, %v2481
        %2483 = vmatmul.f32.gmra.mxu0 %v2439
        %v2484 = vpop.f32.mrf.mxu0
        %v2485 = vadd.f32 %v2432, %v2484
        %2486 = vdwg.mxu0
        %s2487 = scalar_lea.vmem %s25, 48
        %v2488 = vld [vmem:[%s2487] sm:$0xff]
        %v2489 = vld [vmem:[%s2487 + $0x8] sm:$0xff]
        %v2490 = vld [vmem:[%s2487 + $0x10] sm:$0xff]
        %v2491 = vld [vmem:[%s2487 + $0x18] sm:$0xff]
        %v2492 = vld [vmem:[%s2487 + $0x20] sm:$0xff]
        %v2493 = vld [vmem:[%s2487 + $0x28] sm:$0xff]
        %s2494 = scalar_lea.vmem %s27, 1
        %v2495 = vld [vmem:[%s2494] sm:$0x1]
        %2498 = vrot.lane.b32.xlu0 %v2459, 80
        %v2499 = vpop.permute.xlu0 %2498
        %2500 = vrot.lane.b32.xlu0 %v2462, 80
        %v2501 = vpop.permute.xlu0 %2500
        %v2502 = vsel %vm1654, %v2459, 0
        %v2504 = vsel %vm1654, %v2462, 0
        %v2506 = vsel %vm1654, %v2499, 0
        %v2508 = vsel %vm1654, %v2501, 0
        %2510 = vmatpush.xpose.msra.mxu0 0.0
        %2511 = vmatpush.xpose.msra.mxu0 0.0
        %2512 = vmatpush.xpose.msra.mxu0 0.0
        %2513 = vmatpush.xpose.msra.mxu0 0.0
        %2514 = vmatpush.xpose.msra.mxu0 0.0
        %2515 = vmatpush.xpose.msra.mxu0 0.0
        %2516 = vmatpush.xpose.msra.mxu0 0.0
        %2517 = vmatpush.xpose.msra.mxu0 0.0
        %2518 = vmatpush.xpose.msra.mxu0 0.0
        %2519 = vmatpush.xpose.msra.mxu0 0.0
        %2520 = vmatpush.xpose.msra.mxu0 0.0
        %2521 = vmatpush.xpose.msra.mxu0 0.0
        %2522 = vmatpush.xpose.msra.mxu0 0.0
        %2523 = vmatpush.xpose.msra.mxu0 0.0
        %2524 = vmatpush.xpose.msra.mxu0 %v2508
        %2525 = vmatpush.xpose.msra.mxu0 %v2506
        %2526 = vmatmul.f32.gmra.mxu0 %v2502
        %v2527 = vpop.f32.mrf.mxu0
        %v2528 = vadd.f32 0.0, %v2527
        %2529 = vmatmul.f32.gmra.mxu0 %v2504
        %v2530 = vpop.f32.mrf.mxu0
        %v2531 = vadd.f32 0.0, %v2530
        %2532 = vdwg.mxu0
        %v2533 = vmul.f32 %v2528, 0.28867513
        %v2534 = vmul.f32 %v2531, 0.28867513
        %v2535 = vsel %vm1688, %v2533, -inf
        %2536 = vmax.xlane.f32.xlu0 %v2535
        %v2537 = vpop.xlane.xlu0 %2536
        %v2538 = vsel %vm1688, %v2534, -inf
        %2539 = vmax.xlane.f32.xlu0 %v2538
        %v2540 = vpop.xlane.xlu0 %2539
        %v2541 = vsub.f32 %v2533, %v2537
        %v2542 = vsub.f32 %v2534, %v2540
        %v2543 = vmul.f32 %v2541, 1.442695
        %v2544 = vpow.pop %v2543
        %v2545 = vmul.f32 %v2542, 1.442695
        %v2546 = vpow.pop %v2545
        %v2547 = vsel %vm1688, %v2544, 0.0
        %2548 = vadd.xlane.f32.xlu0 %v2547
        %v2549 = vpop.xlane.xlu0 %2548
        %v2550 = vsel %vm1688, %v2546, 0.0
        %2551 = vadd.xlane.f32.xlu0 %v2550
        %v2552 = vpop.xlane.xlu0 %2551
        %v2553 = vrcp.pop %v2549
        %v2554 = vmul.f32 %v2549, %v2553
        %v2555 = vsub.f32 1.0, %v2554
        %v2556 = vmul.f32 %v2553, %v2555
        %v2557 = vadd.f32 %v2553, %v2556
        %vm2558 = vweird.f32 %v2549
        %vm2559 = vweird.f32 %v2553
        %vm2560 = vmor %vm2558, %vm2559
        %v2561 = vsel %vm2560, %v2553, %v2557
        %v2562 = vand.u32 2147483647, %v2549
        %vm2563 = vcmp.eq.f32.partialorder %v2562, 8.507059e+37
        %v2564 = vand.u32 %v2549, 2147483648
        %v2565 = vor.u32 1.1754944e-38, %v2564
        %v2566 = vsel %vm2563, %v2565, %v2561
        %v2567 = vrcp.pop %v2552
        %v2568 = vmul.f32 %v2552, %v2567
        %v2569 = vsub.f32 1.0, %v2568
        %v2570 = vmul.f32 %v2567, %v2569
        %v2571 = vadd.f32 %v2567, %v2570
        %vm2572 = vweird.f32 %v2552
        %vm2573 = vweird.f32 %v2567
        %vm2574 = vmor %vm2572, %vm2573
        %v2575 = vsel %vm2574, %v2567, %v2571
        %v2576 = vand.u32 2147483647, %v2552
        %vm2577 = vcmp.eq.f32.partialorder %v2576, 8.507059e+37
        %v2578 = vand.u32 %v2552, 2147483648
        %v2579 = vor.u32 1.1754944e-38, %v2578
        %v2580 = vsel %vm2577, %v2579, %v2575
        %v2581 = vmul.f32 %v2544, %v2566
        %v2582 = vmul.f32 %v2546, %v2580
        %2583 = vrot.lane.b32.xlu0 %v2459, 32
        %v2584 = vpop.permute.xlu0 %2583
        %2585 = vrot.lane.b32.xlu0 %v2462, 32
        %v2586 = vpop.permute.xlu0 %2585
        %v2590 = vsel %vm1688, %v2581, 0
        %v2593 = vsel %vm1688, %v2582, 0
        %2595 = vmatpush.msra.mxu0 0.0
        %2596 = vmatpush.msra.mxu0 0.0
        %2597 = vmatpush.msra.mxu0 0.0
        %2598 = vmatpush.msra.mxu0 0.0
        %2599 = vmatpush.msra.mxu0 0.0
        %2600 = vmatpush.msra.mxu0 0.0
        %2601 = vmatpush.msra.mxu0 0.0
        %2602 = vmatpush.msra.mxu0 0.0
        %2603 = vmatpush.msra.mxu0 0.0
        %2604 = vmatpush.msra.mxu0 0.0
        %2605 = vmatpush.msra.mxu0 0.0
        %2606 = vmatpush.msra.mxu0 0.0
        %2607 = vmatpush.msra.mxu0 0.0
        %2608 = vmatpush.msra.mxu0 0.0
        %2609 = vmatpush.msra.mxu0 %v2586
        %2610 = vmatpush.msra.mxu0 %v2584
        %2611 = vmatmul.f32.gmra.mxu0 %v2590
        %v2612 = vpop.f32.mrf.mxu0
        %v2613 = vadd.f32 0.0, %v2612
        %2614 = vmatmul.f32.gmra.mxu0 %v2593
        %v2615 = vpop.f32.mrf.mxu0
        %v2616 = vadd.f32 0.0, %v2615
        %2617 = vdwg.mxu0
        %2618 = vrot.lane.b32.xlu0 %v2459, 116
        %v2619 = vpop.permute.xlu0 %2618
        %2620 = vrot.lane.b32.xlu0 %v2462, 116
        %v2621 = vpop.permute.xlu0 %2620
        %2622 = vrot.lane.b32.xlu0 %v2459, 68
        %v2623 = vpop.permute.xlu0 %2622
        %2624 = vrot.lane.b32.xlu0 %v2462, 68
        %v2625 = vpop.permute.xlu0 %2624
        %v2626 = vsel %vm1654, %v2619, 0
        %v2628 = vsel %vm1654, %v2621, 0
        %v2630 = vsel %vm1654, %v2623, 0
        %v2632 = vsel %vm1654, %v2625, 0
        %2634 = vmatpush.xpose.msra.mxu0 0.0
        %2635 = vmatpush.xpose.msra.mxu0 0.0
        %2636 = vmatpush.xpose.msra.mxu0 0.0
        %2637 = vmatpush.xpose.msra.mxu0 0.0
        %2638 = vmatpush.xpose.msra.mxu0 0.0
        %2639 = vmatpush.xpose.msra.mxu0 0.0
        %2640 = vmatpush.xpose.msra.mxu0 0.0
        %2641 = vmatpush.xpose.msra.mxu0 0.0
        %2642 = vmatpush.xpose.msra.mxu0 0.0
        %2643 = vmatpush.xpose.msra.mxu0 0.0
        %2644 = vmatpush.xpose.msra.mxu0 0.0
        %2645 = vmatpush.xpose.msra.mxu0 0.0
        %2646 = vmatpush.xpose.msra.mxu0 0.0
        %2647 = vmatpush.xpose.msra.mxu0 0.0
        %2648 = vmatpush.xpose.msra.mxu0 %v2632
        %2649 = vmatpush.xpose.msra.mxu0 %v2630
        %2650 = vmatmul.f32.gmra.mxu0 %v2626
        %v2651 = vpop.f32.mrf.mxu0
        %v2652 = vadd.f32 0.0, %v2651
        %2653 = vmatmul.f32.gmra.mxu0 %v2628
        %v2654 = vpop.f32.mrf.mxu0
        %v2655 = vadd.f32 0.0, %v2654
        %2656 = vdwg.mxu0
        %v2657 = vmul.f32 %v2652, 0.28867513
        %v2658 = vmul.f32 %v2655, 0.28867513
        %v2659 = vsel %vm1688, %v2657, -inf
        %2660 = vmax.xlane.f32.xlu0 %v2659
        %v2661 = vpop.xlane.xlu0 %2660
        %v2662 = vsel %vm1688, %v2658, -inf
        %2663 = vmax.xlane.f32.xlu0 %v2662
        %v2664 = vpop.xlane.xlu0 %2663
        %v2665 = vsub.f32 %v2657, %v2661
        %v2666 = vsub.f32 %v2658, %v2664
        %v2667 = vmul.f32 %v2665, 1.442695
        %v2668 = vpow.pop %v2667
        %v2669 = vmul.f32 %v2666, 1.442695
        %v2670 = vpow.pop %v2669
        %v2671 = vsel %vm1688, %v2668, 0.0
        %2672 = vadd.xlane.f32.xlu0 %v2671
        %v2673 = vpop.xlane.xlu0 %2672
        %v2674 = vsel %vm1688, %v2670, 0.0
        %2675 = vadd.xlane.f32.xlu0 %v2674
        %v2676 = vpop.xlane.xlu0 %2675
        %v2677 = vrcp.pop %v2673
        %v2678 = vmul.f32 %v2673, %v2677
        %v2679 = vsub.f32 1.0, %v2678
        %v2680 = vmul.f32 %v2677, %v2679
        %v2681 = vadd.f32 %v2677, %v2680
        %vm2682 = vweird.f32 %v2673
        %vm2683 = vweird.f32 %v2677
        %vm2684 = vmor %vm2682, %vm2683
        %v2685 = vsel %vm2684, %v2677, %v2681
        %v2686 = vand.u32 2147483647, %v2673
        %vm2687 = vcmp.eq.f32.partialorder %v2686, 8.507059e+37
        %v2688 = vand.u32 %v2673, 2147483648
        %v2689 = vor.u32 1.1754944e-38, %v2688
        %v2690 = vsel %vm2687, %v2689, %v2685
        %v2691 = vrcp.pop %v2676
        %v2692 = vmul.f32 %v2676, %v2691
        %v2693 = vsub.f32 1.0, %v2692
        %v2694 = vmul.f32 %v2691, %v2693
        %v2695 = vadd.f32 %v2691, %v2694
        %vm2696 = vweird.f32 %v2676
        %vm2697 = vweird.f32 %v2691
        %vm2698 = vmor %vm2696, %vm2697
        %v2699 = vsel %vm2698, %v2691, %v2695
        %v2700 = vand.u32 2147483647, %v2676
        %vm2701 = vcmp.eq.f32.partialorder %v2700, 8.507059e+37
        %v2702 = vand.u32 %v2676, 2147483648
        %v2703 = vor.u32 1.1754944e-38, %v2702
        %v2704 = vsel %vm2701, %v2703, %v2699
        %v2705 = vmul.f32 %v2668, %v2690
        %v2706 = vmul.f32 %v2670, %v2704
        %2707 = vrot.lane.b32.xlu0 %v2459, 20
        %v2708 = vpop.permute.xlu0 %2707
        %2709 = vrot.lane.b32.xlu0 %v2462, 20
        %v2710 = vpop.permute.xlu0 %2709
        %v2714 = vsel %vm1688, %v2705, 0
        %v2717 = vsel %vm1688, %v2706, 0
        %2719 = vmatpush.msra.mxu0 0.0
        %2720 = vmatpush.msra.mxu0 0.0
        %2721 = vmatpush.msra.mxu0 0.0
        %2722 = vmatpush.msra.mxu0 0.0
        %2723 = vmatpush.msra.mxu0 0.0
        %2724 = vmatpush.msra.mxu0 0.0
        %2725 = vmatpush.msra.mxu0 0.0
        %2726 = vmatpush.msra.mxu0 0.0
        %2727 = vmatpush.msra.mxu0 0.0
        %2728 = vmatpush.msra.mxu0 0.0
        %2729 = vmatpush.msra.mxu0 0.0
        %2730 = vmatpush.msra.mxu0 0.0
        %2731 = vmatpush.msra.mxu0 0.0
        %2732 = vmatpush.msra.mxu0 0.0
        %2733 = vmatpush.msra.mxu0 %v2710
        %2734 = vmatpush.msra.mxu0 %v2708
        %2735 = vmatmul.f32.gmra.mxu0 %v2714
        %v2736 = vpop.f32.mrf.mxu0
        %v2737 = vadd.f32 0.0, %v2736
        %2738 = vmatmul.f32.gmra.mxu0 %v2717
        %v2739 = vpop.f32.mrf.mxu0
        %v2740 = vadd.f32 0.0, %v2739
        %2741 = vdwg.mxu0
        %2742 = vrot.lane.b32.xlu0 %v2459, 104
        %v2743 = vpop.permute.xlu0 %2742
        %2744 = vrot.lane.b32.xlu0 %v2462, 104
        %v2745 = vpop.permute.xlu0 %2744
        %2746 = vrot.lane.b32.xlu0 %v2459, 56
        %v2747 = vpop.permute.xlu0 %2746
        %2748 = vrot.lane.b32.xlu0 %v2462, 56
        %v2749 = vpop.permute.xlu0 %2748
        %v2750 = vsel %vm1654, %v2743, 0
        %v2752 = vsel %vm1654, %v2745, 0
        %v2754 = vsel %vm1654, %v2747, 0
        %v2756 = vsel %vm1654, %v2749, 0
        %2758 = vmatpush.xpose.msra.mxu0 0.0
        %2759 = vmatpush.xpose.msra.mxu0 0.0
        %2760 = vmatpush.xpose.msra.mxu0 0.0
        %2761 = vmatpush.xpose.msra.mxu0 0.0
        %2762 = vmatpush.xpose.msra.mxu0 0.0
        %2763 = vmatpush.xpose.msra.mxu0 0.0
        %2764 = vmatpush.xpose.msra.mxu0 0.0
        %2765 = vmatpush.xpose.msra.mxu0 0.0
        %2766 = vmatpush.xpose.msra.mxu0 0.0
        %2767 = vmatpush.xpose.msra.mxu0 0.0
        %2768 = vmatpush.xpose.msra.mxu0 0.0
        %2769 = vmatpush.xpose.msra.mxu0 0.0
        %2770 = vmatpush.xpose.msra.mxu0 0.0
        %2771 = vmatpush.xpose.msra.mxu0 0.0
        %2772 = vmatpush.xpose.msra.mxu0 %v2756
        %2773 = vmatpush.xpose.msra.mxu0 %v2754
        %2774 = vmatmul.f32.gmra.mxu0 %v2750
        %v2775 = vpop.f32.mrf.mxu0
        %v2776 = vadd.f32 0.0, %v2775
        %2777 = vmatmul.f32.gmra.mxu0 %v2752
        %v2778 = vpop.f32.mrf.mxu0
        %v2779 = vadd.f32 0.0, %v2778
        %2780 = vdwg.mxu0
        %v2781 = vmul.f32 %v2776, 0.28867513
        %v2782 = vmul.f32 %v2779, 0.28867513
        %v2783 = vsel %vm1688, %v2781, -inf
        %2784 = vmax.xlane.f32.xlu0 %v2783
        %v2785 = vpop.xlane.xlu0 %2784
        %v2786 = vsel %vm1688, %v2782, -inf
        %2787 = vmax.xlane.f32.xlu0 %v2786
        %v2788 = vpop.xlane.xlu0 %2787
        %v2789 = vsub.f32 %v2781, %v2785
        %v2790 = vsub.f32 %v2782, %v2788
        %v2791 = vmul.f32 %v2789, 1.442695
        %v2792 = vpow.pop %v2791
        %v2793 = vmul.f32 %v2790, 1.442695
        %v2794 = vpow.pop %v2793
        %v2795 = vsel %vm1688, %v2792, 0.0
        %2796 = vadd.xlane.f32.xlu0 %v2795
        %v2797 = vpop.xlane.xlu0 %2796
        %v2798 = vsel %vm1688, %v2794, 0.0
        %2799 = vadd.xlane.f32.xlu0 %v2798
        %v2800 = vpop.xlane.xlu0 %2799
        %v2801 = vrcp.pop %v2797
        %v2802 = vmul.f32 %v2797, %v2801
        %v2803 = vsub.f32 1.0, %v2802
        %v2804 = vmul.f32 %v2801, %v2803
        %v2805 = vadd.f32 %v2801, %v2804
        %vm2806 = vweird.f32 %v2797
        %vm2807 = vweird.f32 %v2801
        %vm2808 = vmor %vm2806, %vm2807
        %v2809 = vsel %vm2808, %v2801, %v2805
        %v2810 = vand.u32 2147483647, %v2797
        %vm2811 = vcmp.eq.f32.partialorder %v2810, 8.507059e+37
        %v2812 = vand.u32 %v2797, 2147483648
        %v2813 = vor.u32 1.1754944e-38, %v2812
        %v2814 = vsel %vm2811, %v2813, %v2809
        %v2815 = vrcp.pop %v2800
        %v2816 = vmul.f32 %v2800, %v2815
        %v2817 = vsub.f32 1.0, %v2816
        %v2818 = vmul.f32 %v2815, %v2817
        %v2819 = vadd.f32 %v2815, %v2818
        %vm2820 = vweird.f32 %v2800
        %vm2821 = vweird.f32 %v2815
        %vm2822 = vmor %vm2820, %vm2821
        %v2823 = vsel %vm2822, %v2815, %v2819
        %v2824 = vand.u32 2147483647, %v2800
        %vm2825 = vcmp.eq.f32.partialorder %v2824, 8.507059e+37
        %v2826 = vand.u32 %v2800, 2147483648
        %v2827 = vor.u32 1.1754944e-38, %v2826
        %v2828 = vsel %vm2825, %v2827, %v2823
        %v2829 = vmul.f32 %v2792, %v2814
        %v2830 = vmul.f32 %v2794, %v2828
        %2833 = vrot.lane.b32.xlu0 %v2459, 8
        %v2834 = vpop.permute.xlu0 %2833
        %2835 = vrot.lane.b32.xlu0 %v2482, 8
        %v2836 = vpop.permute.xlu0 %2835
        %2837 = vrot.lane.b32.xlu0 %v2462, 8
        %v2838 = vpop.permute.xlu0 %2837
        %2839 = vrot.lane.b32.xlu0 %v2485, 8
        %v2840 = vpop.permute.xlu0 %2839
        %v2841 = vsel %vm1995, %v2834, %v2836
        %v2842 = vsel %vm1995, %v2838, %v2840
        %v2846 = vsel %vm1688, %v2829, 0
        %v2849 = vsel %vm1688, %v2830, 0
        %2851 = vmatpush.msra.mxu0 0.0
        %2852 = vmatpush.msra.mxu0 0.0
        %2853 = vmatpush.msra.mxu0 0.0
        %2854 = vmatpush.msra.mxu0 0.0
        %2855 = vmatpush.msra.mxu0 0.0
        %2856 = vmatpush.msra.mxu0 0.0
        %2857 = vmatpush.msra.mxu0 0.0
        %2858 = vmatpush.msra.mxu0 0.0
        %2859 = vmatpush.msra.mxu0 0.0
        %2860 = vmatpush.msra.mxu0 0.0
        %2861 = vmatpush.msra.mxu0 0.0
        %2862 = vmatpush.msra.mxu0 0.0
        %2863 = vmatpush.msra.mxu0 0.0
        %2864 = vmatpush.msra.mxu0 0.0
        %2865 = vmatpush.msra.mxu0 %v2842
        %2866 = vmatpush.msra.mxu0 %v2841
        %2867 = vmatmul.f32.gmra.mxu0 %v2846
        %v2868 = vpop.f32.mrf.mxu0
        %v2869 = vadd.f32 0.0, %v2868
        %2870 = vmatmul.f32.gmra.mxu0 %v2849
        %v2871 = vpop.f32.mrf.mxu0
        %v2872 = vadd.f32 0.0, %v2871
        %2873 = vdwg.mxu0
        %2874 = vrot.lane.b32.xlu0 %v2459, 92
        %v2875 = vpop.permute.xlu0 %2874
        %2876 = vrot.lane.b32.xlu0 %v2462, 92
        %v2877 = vpop.permute.xlu0 %2876
        %2878 = vrot.lane.b32.xlu0 %v2459, 44
        %v2879 = vpop.permute.xlu0 %2878
        %2880 = vrot.lane.b32.xlu0 %v2462, 44
        %v2881 = vpop.permute.xlu0 %2880
        %v2882 = vsel %vm1654, %v2875, 0
        %v2884 = vsel %vm1654, %v2877, 0
        %v2886 = vsel %vm1654, %v2879, 0
        %v2888 = vsel %vm1654, %v2881, 0
        %2890 = vmatpush.xpose.msra.mxu0 0.0
        %2891 = vmatpush.xpose.msra.mxu0 0.0
        %2892 = vmatpush.xpose.msra.mxu0 0.0
        %2893 = vmatpush.xpose.msra.mxu0 0.0
        %2894 = vmatpush.xpose.msra.mxu0 0.0
        %2895 = vmatpush.xpose.msra.mxu0 0.0
        %2896 = vmatpush.xpose.msra.mxu0 0.0
        %2897 = vmatpush.xpose.msra.mxu0 0.0
        %2898 = vmatpush.xpose.msra.mxu0 0.0
        %2899 = vmatpush.xpose.msra.mxu0 0.0
        %2900 = vmatpush.xpose.msra.mxu0 0.0
        %2901 = vmatpush.xpose.msra.mxu0 0.0
        %2902 = vmatpush.xpose.msra.mxu0 0.0
        %2903 = vmatpush.xpose.msra.mxu0 0.0
        %2904 = vmatpush.xpose.msra.mxu0 %v2888
        %2905 = vmatpush.xpose.msra.mxu0 %v2886
        %2906 = vmatmul.f32.gmra.mxu0 %v2882
        %v2907 = vpop.f32.mrf.mxu0
        %v2908 = vadd.f32 0.0, %v2907
        %2909 = vmatmul.f32.gmra.mxu0 %v2884
        %v2910 = vpop.f32.mrf.mxu0
        %v2911 = vadd.f32 0.0, %v2910
        %2912 = vdwg.mxu0
        %v2913 = vmul.f32 %v2908, 0.28867513
        %v2914 = vmul.f32 %v2911, 0.28867513
        %v2915 = vsel %vm1688, %v2913, -inf
        %2916 = vmax.xlane.f32.xlu0 %v2915
        %v2917 = vpop.xlane.xlu0 %2916
        %v2918 = vsel %vm1688, %v2914, -inf
        %2919 = vmax.xlane.f32.xlu0 %v2918
        %v2920 = vpop.xlane.xlu0 %2919
        %v2921 = vsub.f32 %v2913, %v2917
        %v2922 = vsub.f32 %v2914, %v2920
        %v2923 = vmul.f32 %v2921, 1.442695
        %v2924 = vpow.pop %v2923
        %v2925 = vmul.f32 %v2922, 1.442695
        %v2926 = vpow.pop %v2925
        %v2927 = vsel %vm1688, %v2924, 0.0
        %2928 = vadd.xlane.f32.xlu0 %v2927
        %v2929 = vpop.xlane.xlu0 %2928
        %v2930 = vsel %vm1688, %v2926, 0.0
        %2931 = vadd.xlane.f32.xlu0 %v2930
        %v2932 = vpop.xlane.xlu0 %2931
        %v2933 = vrcp.pop %v2929
        %v2934 = vmul.f32 %v2929, %v2933
        %v2935 = vsub.f32 1.0, %v2934
        %v2936 = vmul.f32 %v2933, %v2935
        %v2937 = vadd.f32 %v2933, %v2936
        %vm2938 = vweird.f32 %v2929
        %vm2939 = vweird.f32 %v2933
        %vm2940 = vmor %vm2938, %vm2939
        %v2941 = vsel %vm2940, %v2933, %v2937
        %v2942 = vand.u32 2147483647, %v2929
        %vm2943 = vcmp.eq.f32.partialorder %v2942, 8.507059e+37
        %v2944 = vand.u32 %v2929, 2147483648
        %v2945 = vor.u32 1.1754944e-38, %v2944
        %v2946 = vsel %vm2943, %v2945, %v2941
        %v2947 = vrcp.pop %v2932
        %v2948 = vmul.f32 %v2932, %v2947
        %v2949 = vsub.f32 1.0, %v2948
        %v2950 = vmul.f32 %v2947, %v2949
        %v2951 = vadd.f32 %v2947, %v2950
        %vm2952 = vweird.f32 %v2932
        %vm2953 = vweird.f32 %v2947
        %vm2954 = vmor %vm2952, %vm2953
        %v2955 = vsel %vm2954, %v2947, %v2951
        %v2956 = vand.u32 2147483647, %v2932
        %vm2957 = vcmp.eq.f32.partialorder %v2956, 8.507059e+37
        %v2958 = vand.u32 %v2932, 2147483648
        %v2959 = vor.u32 1.1754944e-38, %v2958
        %v2960 = vsel %vm2957, %v2959, %v2955
        %v2961 = vmul.f32 %v2924, %v2946
        %v2962 = vmul.f32 %v2926, %v2960
        %2963 = vrot.lane.b32.xlu0 %v2482, 124
        %v2964 = vpop.permute.xlu0 %2963
        %2965 = vrot.lane.b32.xlu0 %v2485, 124
        %v2966 = vpop.permute.xlu0 %2965
        %v2970 = vsel %vm1688, %v2961, 0
        %v2973 = vsel %vm1688, %v2962, 0
        %2975 = vmatpush.msra.mxu0 0.0
        %2976 = vmatpush.msra.mxu0 0.0
        %2977 = vmatpush.msra.mxu0 0.0
        %2978 = vmatpush.msra.mxu0 0.0
        %2979 = vmatpush.msra.mxu0 0.0
        %2980 = vmatpush.msra.mxu0 0.0
        %2981 = vmatpush.msra.mxu0 0.0
        %2982 = vmatpush.msra.mxu0 0.0
        %2983 = vmatpush.msra.mxu0 0.0
        %2984 = vmatpush.msra.mxu0 0.0
        %2985 = vmatpush.msra.mxu0 0.0
        %2986 = vmatpush.msra.mxu0 0.0
        %2987 = vmatpush.msra.mxu0 0.0
        %2988 = vmatpush.msra.mxu0 0.0
        %2989 = vmatpush.msra.mxu0 %v2966
        %2990 = vmatpush.msra.mxu0 %v2964
        %2991 = vmatmul.f32.gmra.mxu0 %v2970
        %v2992 = vpop.f32.mrf.mxu0
        %v2993 = vadd.f32 0.0, %v2992
        %2994 = vmatmul.f32.gmra.mxu0 %v2973
        %v2995 = vpop.f32.mrf.mxu0
        %v2996 = vadd.f32 0.0, %v2995
        %2997 = vdwg.mxu0
        %3000 = vrot.lane.b32.xlu0 %v2737, 12
        %v3001 = vpop.permute.xlu0 %3000
        %3002 = vrot.lane.b32.xlu0 %v2740, 12
        %v3003 = vpop.permute.xlu0 %3002
        %3008 = vrot.lane.b32.xlu0 %v2869, 24
        %v3009 = vpop.permute.xlu0 %3008
        %3010 = vrot.lane.b32.xlu0 %v2872, 24
        %v3011 = vpop.permute.xlu0 %3010
        %3016 = vrot.lane.b32.xlu0 %v2993, 36
        %v3017 = vpop.permute.xlu0 %3016
        %3018 = vrot.lane.b32.xlu0 %v2996, 36
        %v3019 = vpop.permute.xlu0 %3018
        %v3022 = vsel %vm1654, %v2613, %v3001
        %v3023 = vsel %vm1654, %v2616, %v3003
        %v3024 = vsel %vm2179, %v3022, %v3009
        %v3025 = vsel %vm2179, %v3023, %v3011
        %v3026 = vsel %vm2182, %v3024, %v3017
        %v3027 = vsel %vm2182, %v3025, %v3019
        %v3029 = vperm.slane %v2495, 0
        %v3032 = vsel %vm1505, %v3026, 0
        %v3035 = vsel %vm1505, %v3027, 0
        %3037 = vmatpush.msra.mxu0 0.0
        %3038 = vmatpush.msra.mxu0 0.0
        %3039 = vmatpush.msra.mxu0 0.0
        %3040 = vmatpush.msra.mxu0 0.0
        %3041 = vmatpush.msra.mxu0 0.0
        %3042 = vmatpush.msra.mxu0 0.0
        %3043 = vmatpush.msra.mxu0 0.0
        %3044 = vmatpush.msra.mxu0 0.0
        %3045 = vmatpush.msra.mxu0 0.0
        %3046 = vmatpush.msra.mxu0 0.0
        %3047 = vmatpush.msra.mxu0 %v2493
        %3048 = vmatpush.msra.mxu0 %v2492
        %3049 = vmatpush.msra.mxu0 %v2491
        %3050 = vmatpush.msra.mxu0 %v2490
        %3051 = vmatpush.msra.mxu0 %v2489
        %3052 = vmatpush.msra.mxu0 %v2488
        %3053 = vmatmul.f32.gmra.mxu0 %v3032
        %v3054 = vpop.f32.mrf.mxu0
        %v3055 = vadd.f32 %v3029, %v3054
        %3056 = vmatmul.f32.gmra.mxu0 %v3035
        %v3057 = vpop.f32.mrf.mxu0
        %v3058 = vadd.f32 %v3029, %v3057
        %3059 = vdwg.mxu0
        %v3060 = vadd.f32 %v2413, %v3055
        %v3061 = vadd.f32 %v2414, %v3058
        %s3062 = scalar_lea.vmem %s29, 1
        %v3063 = vld [vmem:[%s3062] sm:$0x1]
        %s3064 = scalar_lea.vmem %s31, 1
        %v3065 = vld [vmem:[%s3064] sm:$0x1]
        %v3066 = vsel %vm1505, %v3060, 0.0
        %3067 = vadd.xlane.f32.xlu0 %v3066
        %v3068 = vpop.xlane.xlu0 %3067
        %v3069 = vsel %vm1505, %v3061, 0.0
        %3070 = vadd.xlane.f32.xlu0 %v3069
        %v3071 = vpop.xlane.xlu0 %3070
        %v3072 = vmul.f32 %v3068, %v1518
        %v3073 = vmul.f32 %v3071, %v1518
        %v3074 = vsub.f32 %v3060, %v3072
        %v3075 = vsub.f32 %v3061, %v3073
        %v3076 = vmul.f32 %v3074, %v3074
        %v3077 = vmul.f32 %v3075, %v3075
        %v3078 = vsel %vm1505, %v3076, 0.0
        %3079 = vadd.xlane.f32.xlu0 %v3078
        %v3080 = vpop.xlane.xlu0 %3079
        %v3081 = vsel %vm1505, %v3077, 0.0
        %3082 = vadd.xlane.f32.xlu0 %v3081
        %v3083 = vpop.xlane.xlu0 %3082
        %v3084 = vmul.f32 %v3080, %v1518
        %v3085 = vmul.f32 %v3083, %v1518
        %v3086 = vadd.f32 %v3084, 1e-05
        %v3087 = vadd.f32 %v3085, 1e-05
        %v3088 = vrsqrt.pop %v3086
        %v3089 = vmul.f32 %v3088, %v3086
        %v3090 = vmul.f32 %v3089, %v3088
        %v3091 = vmul.f32 0.5, %v3090
        %v3092 = vsub.f32 1.5, %v3091
        %v3093 = vmul.f32 %v3088, %v3092
        %vm3094 = vweird.f32 %v3086
        %vm3095 = vweird.f32 %v3088
        %vm3096 = vmor %vm3094, %vm3095
        %v3097 = vsel %vm3096, %v3088, %v3093
        %v3098 = vrsqrt.pop %v3087
        %v3099 = vmul.f32 %v3098, %v3087
        %v3100 = vmul.f32 %v3099, %v3098
        %v3101 = vmul.f32 0.5, %v3100
        %v3102 = vsub.f32 1.5, %v3101
        %v3103 = vmul.f32 %v3098, %v3102
        %vm3104 = vweird.f32 %v3087
        %vm3105 = vweird.f32 %v3098
        %vm3106 = vmor %vm3104, %vm3105
        %v3107 = vsel %vm3106, %v3098, %v3103
        %v3108 = vmul.f32 %v3074, %v3097
        %v3109 = vmul.f32 %v3075, %v3107
        %v3111 = vperm.slane %v3063, 0
        %v3113 = vmul.f32 %v3108, %v3111
        %v3114 = vmul.f32 %v3109, %v3111
        %v3116 = vperm.slane %v3065, 0
        %v3118 = vadd.f32 %v3113, %v3116
        %v3119 = vadd.f32 %v3114, %v3116
        %s3120 = scalar_lea.vmem %s33, 48
        %v3121 = vld [vmem:[%s3120] sm:$0xff]
        %v3122 = vld [vmem:[%s3120 + $0x8] sm:$0xff]
        %v3123 = vld [vmem:[%s3120 + $0x10] sm:$0xff]
        %v3124 = vld [vmem:[%s3120 + $0x18] sm:$0xff]
        %v3125 = vld [vmem:[%s3120 + $0x20] sm:$0xff]
        %v3126 = vld [vmem:[%s3120 + $0x28] sm:$0xff]
        %s3127 = scalar_lea.vmem %s35, 1
        %v3128 = vld [vmem:[%s3127] sm:$0x1]
        %v3130 = vperm.slane %v3128, 0
        %v3133 = vsel %vm1505, %v3118, 0
        %v3136 = vsel %vm1505, %v3119, 0
        %3138 = vmatpush.msra.mxu0 0.0
        %3139 = vmatpush.msra.mxu0 0.0
        %3140 = vmatpush.msra.mxu0 0.0
        %3141 = vmatpush.msra.mxu0 0.0
        %3142 = vmatpush.msra.mxu0 0.0
        %3143 = vmatpush.msra.mxu0 0.0
        %3144 = vmatpush.msra.mxu0 0.0
        %3145 = vmatpush.msra.mxu0 0.0
        %3146 = vmatpush.msra.mxu0 0.0
        %3147 = vmatpush.msra.mxu0 0.0
        %3148 = vmatpush.msra.mxu0 %v3126
        %3149 = vmatpush.msra.mxu0 %v3125
        %3150 = vmatpush.msra.mxu0 %v3124
        %3151 = vmatpush.msra.mxu0 %v3123
        %3152 = vmatpush.msra.mxu0 %v3122
        %3153 = vmatpush.msra.mxu0 %v3121
        %3154 = vmatmul.f32.gmra.mxu0 %v3133
        %v3155 = vpop.f32.mrf.mxu0
        %v3156 = vadd.f32 %v3130, %v3155
        %3157 = vmatmul.f32.gmra.mxu0 %v3136
        %v3158 = vpop.f32.mrf.mxu0
        %v3159 = vadd.f32 %v3130, %v3158
        %3160 = vdwg.mxu0
        %v3161 = vmax.f32 %v3156, 0.0
        %v3162 = vmax.f32 %v3159, 0.0
        %s3163 = scalar_lea.vmem %s37, 64
        %v3164 = vld [vmem:[%s3163] sm:$0xff]
        %v3165 = vld [vmem:[%s3163 + $0x8] sm:$0xff]
        %v3166 = vld [vmem:[%s3163 + $0x10] sm:$0xff]
        %v3167 = vld [vmem:[%s3163 + $0x18] sm:$0xff]
        %v3168 = vld [vmem:[%s3163 + $0x20] sm:$0xff]
        %v3169 = vld [vmem:[%s3163 + $0x28] sm:$0xff]
        %v3170 = vld [vmem:[%s3163 + $0x30] sm:$0xff]
        %v3171 = vld [vmem:[%s3163 + $0x38] sm:$0xff]
        %s3172 = scalar_lea.vmem %s39, 1
        %v3173 = vld [vmem:[%s3172] sm:$0x1]
        %v3175 = vperm.slane %v3173, 0
        %v3178 = vsel %vm1400, %v3161, 0
        %v3181 = vsel %vm1400, %v3162, 0
        %3183 = vmatpush.msra.mxu0 0.0
        %3184 = vmatpush.msra.mxu0 0.0
        %3185 = vmatpush.msra.mxu0 0.0
        %3186 = vmatpush.msra.mxu0 0.0
        %3187 = vmatpush.msra.mxu0 0.0
        %3188 = vmatpush.msra.mxu0 0.0
        %3189 = vmatpush.msra.mxu0 0.0
        %3190 = vmatpush.msra.mxu0 0.0
        %3191 = vmatpush.msra.mxu0 %v3171
        %3192 = vmatpush.msra.mxu0 %v3170
        %3193 = vmatpush.msra.mxu0 %v3169
        %3194 = vmatpush.msra.mxu0 %v3168
        %3195 = vmatpush.msra.mxu0 %v3167
        %3196 = vmatpush.msra.mxu0 %v3166
        %3197 = vmatpush.msra.mxu0 %v3165
        %3198 = vmatpush.msra.mxu0 %v3164
        %3199 = vmatmul.f32.gmra.mxu0 %v3178
        %v3200 = vpop.f32.mrf.mxu0
        %v3201 = vadd.f32 %v3175, %v3200
        %3202 = vmatmul.f32.gmra.mxu0 %v3181
        %v3203 = vpop.f32.mrf.mxu0
        %v3204 = vadd.f32 %v3175, %v3203
        %3205 = vdwg.mxu0
        %v3206 = vadd.f32 %v3118, %v3201
        %v3207 = vadd.f32 %v3119, %v3204
        %s3208 = scalar_lea.vmem %s41, 1
        %v3209 = vld [vmem:[%s3208] sm:$0x1]
        %s3210 = scalar_lea.vmem %s43, 1
        %v3211 = vld [vmem:[%s3210] sm:$0x1]
        %v3212 = vsel %vm1505, %v3206, 0.0
        %3213 = vadd.xlane.f32.xlu0 %v3212
        %v3214 = vpop.xlane.xlu0 %3213
        %v3215 = vsel %vm1505, %v3207, 0.0
        %3216 = vadd.xlane.f32.xlu0 %v3215
        %v3217 = vpop.xlane.xlu0 %3216
        %v3218 = vmul.f32 %v3214, %v1518
        %v3219 = vmul.f32 %v3217, %v1518
        %v3220 = vsub.f32 %v3206, %v3218
        %v3221 = vsub.f32 %v3207, %v3219
        %v3222 = vmul.f32 %v3220, %v3220
        %v3223 = vmul.f32 %v3221, %v3221
        %v3224 = vsel %vm1505, %v3222, 0.0
        %3225 = vadd.xlane.f32.xlu0 %v3224
        %v3226 = vpop.xlane.xlu0 %3225
        %v3227 = vsel %vm1505, %v3223, 0.0
        %3228 = vadd.xlane.f32.xlu0 %v3227
        %v3229 = vpop.xlane.xlu0 %3228
        %v3230 = vmul.f32 %v3226, %v1518
        %v3231 = vmul.f32 %v3229, %v1518
        %v3232 = vadd.f32 %v3230, 1e-05
        %v3233 = vadd.f32 %v3231, 1e-05
        %v3234 = vrsqrt.pop %v3232
        %v3235 = vmul.f32 %v3234, %v3232
        %v3236 = vmul.f32 %v3235, %v3234
        %v3237 = vmul.f32 0.5, %v3236
        %v3238 = vsub.f32 1.5, %v3237
        %v3239 = vmul.f32 %v3234, %v3238
        %vm3240 = vweird.f32 %v3232
        %vm3241 = vweird.f32 %v3234
        %vm3242 = vmor %vm3240, %vm3241
        %v3243 = vsel %vm3242, %v3234, %v3239
        %v3244 = vrsqrt.pop %v3233
        %v3245 = vmul.f32 %v3244, %v3233
        %v3246 = vmul.f32 %v3245, %v3244
        %v3247 = vmul.f32 0.5, %v3246
        %v3248 = vsub.f32 1.5, %v3247
        %v3249 = vmul.f32 %v3244, %v3248
        %vm3250 = vweird.f32 %v3233
        %vm3251 = vweird.f32 %v3244
        %vm3252 = vmor %vm3250, %vm3251
        %v3253 = vsel %vm3252, %v3244, %v3249
        %v3254 = vmul.f32 %v3220, %v3243
        %v3255 = vmul.f32 %v3221, %v3253
        %v3257 = vperm.slane %v3209, 0
        %v3259 = vmul.f32 %v3254, %v3257
        %v3260 = vmul.f32 %v3255, %v3257
        %v3262 = vperm.slane %v3211, 0
        %v3264 = vadd.f32 %v3259, %v3262
        %v3265 = vadd.f32 %v3260, %v3262
        %v3266 = vld [vmem:[%s1388] sm:$0x1f]
        %v3267 = vld [vmem:[%s45] sm:$0x3]
        %v3268 = vld [vmem:[#allocation6] sm:$0x1]
        %v3270 = vperm.slane %v3268, 0
        %vm3272 = vcmask 15360
        %v3274 = vsel %vm3272, %v3266, 0
        %vm3276 = vcmask 1041408
        %v3278 = vsel %vm3276, %v3267, 0
        %3280 = vmatpush.msra.mxu0 0.0
        %3281 = vmatpush.msra.mxu0 0.0
        %3282 = vmatpush.msra.mxu0 0.0
        %3283 = vmatpush.msra.mxu0 0.0
        %3284 = vmatpush.msra.mxu0 0.0
        %3285 = vmatpush.msra.mxu0 0.0
        %3286 = vmatpush.msra.mxu0 0.0
        %3287 = vmatpush.msra.mxu0 0.0
        %3288 = vmatpush.msra.mxu0 0.0
        %3289 = vmatpush.msra.mxu0 0.0
        %3290 = vmatpush.msra.mxu0 0.0
        %3291 = vmatpush.msra.mxu0 0.0
        %3292 = vmatpush.msra.mxu0 0.0
        %3293 = vmatpush.msra.mxu0 0.0
        %3294 = vmatpush.msra.mxu0 0.0
        %3295 = vmatpush.msra.mxu0 %v3278
        %3296 = vmatmul.f32.gmra.mxu0 %v3274
        %v3297 = vpop.f32.mrf.mxu0
        %v3298 = vadd.f32 %v3270, %v3297
        %3299 = vdwg.mxu0
        %v3300 = vlaneseq
        %v3301 = vshrl.u32 %v3300, 7
        %vm3302 = vcmp.eq.s32.totalorder %v3301, 0
        %v3303 = vsel %vm3302, 1.0, %v3298
        %v3304 = vld [vmem:[%s1391] sm:$0x1]
        %v3306 = vperm.slane %v3304, 0
        %v3308 = vadd.f32 %v3303, %v3306
        %v3309 = vld [vmem:[%s49] sm:$0xff]
        %v3310 = vld [vmem:[%s49 + $0x8] sm:$0xff]
        %v3311 = vld [vmem:[%s49 + $0x10] sm:$0xff]
        %v3312 = vld [vmem:[%s49 + $0x18] sm:$0xff]
        %v3313 = vld [vmem:[%s49 + $0x20] sm:$0xff]
        %v3314 = vld [vmem:[%s49 + $0x28] sm:$0xff]
        %v3315 = vld [vmem:[%s49 + $0x30] sm:$0xff]
        %v3316 = vld [vmem:[%s49 + $0x38] sm:$0xff]
        %v3317 = vld [vmem:[%s49 + $0x40] sm:$0xff]
        %v3318 = vld [vmem:[%s49 + $0x48] sm:$0xff]
        %v3319 = vld [vmem:[%s49 + $0x50] sm:$0xff]
        %v3320 = vld [vmem:[%s49 + $0x58] sm:$0xff]
        %v3321 = vld [vmem:[%s51] sm:$0x3]
        %v3323 = vperm.slane %v3321, 0
        %v3324 = vperm.slane %v3321, 1
        %v3328 = vsel %vm1505, %v3308, 0
        %3330 = vmatpush.msra.mxu0 0.0
        %3331 = vmatpush.msra.mxu0 0.0
        %3332 = vmatpush.msra.mxu0 0.0
        %3333 = vmatpush.msra.mxu0 0.0
        %3334 = vmatpush.msra.mxu0 0.0
        %3335 = vmatpush.msra.mxu0 0.0
        %3336 = vmatpush.msra.mxu0 0.0
        %3337 = vmatpush.msra.mxu0 0.0
        %3338 = vmatpush.msra.mxu0 0.0
        %3339 = vmatpush.msra.mxu0 0.0
        %3340 = vmatpush.msra.mxu0 %v3319
        %3341 = vmatpush.msra.mxu0 %v3317
        %3342 = vmatpush.msra.mxu0 %v3315
        %3343 = vmatpush.msra.mxu0 %v3313
        %3344 = vmatpush.msra.mxu0 %v3311
        %3345 = vmatpush.msra.mxu0 %v3309
        %3346 = vmatmul.f32.gmra.mxu0 %v3328
        %v3347 = vpop.f32.mrf.mxu0
        %v3348 = vadd.f32 %v3323, %v3347
        %3349 = vdwg.mxu0
        %3350 = vmatpush.msra.mxu0 0.0
        %3351 = vmatpush.msra.mxu0 0.0
        %3352 = vmatpush.msra.mxu0 0.0
        %3353 = vmatpush.msra.mxu0 0.0
        %3354 = vmatpush.msra.mxu0 0.0
        %3355 = vmatpush.msra.mxu0 0.0
        %3356 = vmatpush.msra.mxu0 0.0
        %3357 = vmatpush.msra.mxu0 0.0
        %3358 = vmatpush.msra.mxu0 0.0
        %3359 = vmatpush.msra.mxu0 0.0
        %3360 = vmatpush.msra.mxu0 %v3320
        %3361 = vmatpush.msra.mxu0 %v3318
        %3362 = vmatpush.msra.mxu0 %v3316
        %3363 = vmatpush.msra.mxu0 %v3314
        %3364 = vmatpush.msra.mxu0 %v3312
        %3365 = vmatpush.msra.mxu0 %v3310
        %3366 = vmatmul.f32.gmra.mxu0 %v3328
        %v3367 = vpop.f32.mrf.mxu0
        %v3368 = vadd.f32 %v3324, %v3367
        %3369 = vdwg.mxu0
        %v3370 = vld [vmem:[%s53] sm:$0xff]
        %v3371 = vld [vmem:[%s53 + $0x8] sm:$0xff]
        %v3372 = vld [vmem:[%s53 + $0x10] sm:$0xff]
        %v3373 = vld [vmem:[%s53 + $0x18] sm:$0xff]
        %v3374 = vld [vmem:[%s53 + $0x20] sm:$0xff]
        %v3375 = vld [vmem:[%s53 + $0x28] sm:$0xff]
        %v3376 = vld [vmem:[%s55] sm:$0x1]
        %3378 = vrot.lane.b32.xlu0 %v3348, 80
        %v3379 = vpop.permute.xlu0 %3378
        %v3380 = vsel %vm1654, %v3348, 0
        %v3382 = vsel %vm1654, %v3379, 0
        %3384 = vmatpush.xpose.msra.mxu0 0.0
        %3385 = vmatpush.xpose.msra.mxu0 0.0
        %3386 = vmatpush.xpose.msra.mxu0 0.0
        %3387 = vmatpush.xpose.msra.mxu0 0.0
        %3388 = vmatpush.xpose.msra.mxu0 0.0
        %3389 = vmatpush.xpose.msra.mxu0 0.0
        %3390 = vmatpush.xpose.msra.mxu0 0.0
        %3391 = vmatpush.xpose.msra.mxu0 0.0
        %3392 = vmatpush.xpose.msra.mxu0 0.0
        %3393 = vmatpush.xpose.msra.mxu0 0.0
        %3394 = vmatpush.xpose.msra.mxu0 0.0
        %3395 = vmatpush.xpose.msra.mxu0 0.0
        %3396 = vmatpush.xpose.msra.mxu0 0.0
        %3397 = vmatpush.xpose.msra.mxu0 0.0
        %3398 = vmatpush.xpose.msra.mxu0 0.0
        %3399 = vmatpush.xpose.msra.mxu0 %v3382
        %3400 = vmatmul.f32.gmra.mxu0 %v3380
        %v3401 = vpop.f32.mrf.mxu0
        %v3402 = vadd.f32 0.0, %v3401
        %3403 = vdwg.mxu0
        %v3404 = vmul.f32 %v3402, 0.28867513
        %v3405 = vlaneseq
        %v3406 = vand.u32 %v3405, 127
        %vm3407 = vcmp.le.s32.totalorder %v3406, %v3301
        %v3408 = vsel %vm3407, %v3404, -inf
        %vm3409 = vcmask 36864
        %v3410 = vsel %vm3409, %v3408, -inf
        %3411 = vmax.xlane.f32.xlu0 %v3410
        %v3412 = vpop.xlane.xlu0 %3411
        %v3413 = vsub.f32 %v3408, %v3412
        %v3414 = vmul.f32 %v3413, 1.442695
        %v3415 = vpow.pop %v3414
        %v3416 = vsel %vm3409, %v3415, 0.0
        %3417 = vadd.xlane.f32.xlu0 %v3416
        %v3418 = vpop.xlane.xlu0 %3417
        %v3419 = vrcp.pop %v3418
        %v3420 = vmul.f32 %v3418, %v3419
        %v3421 = vsub.f32 1.0, %v3420
        %v3422 = vmul.f32 %v3419, %v3421
        %v3423 = vadd.f32 %v3419, %v3422
        %vm3424 = vweird.f32 %v3418
        %vm3425 = vweird.f32 %v3419
        %vm3426 = vmor %vm3424, %vm3425
        %v3427 = vsel %vm3426, %v3419, %v3423
        %v3428 = vand.u32 2147483647, %v3418
        %vm3429 = vcmp.eq.f32.partialorder %v3428, 8.507059e+37
        %v3430 = vand.u32 %v3418, 2147483648
        %v3431 = vor.u32 1.1754944e-38, %v3430
        %v3432 = vsel %vm3429, %v3431, %v3427
        %v3433 = vmul.f32 %v3415, %v3432
        %3434 = vrot.lane.b32.xlu0 %v3348, 32
        %v3435 = vpop.permute.xlu0 %3434
        %vm3436 = vcmask 39936
        %v3438 = vsel %vm3436, %v3433, 0
        %vm3440 = vcmask 1044480
        %v3441 = vsel %vm3440, %v3435, 0
        %3443 = vmatpush.msra.mxu0 0.0
        %3444 = vmatpush.msra.mxu0 0.0
        %3445 = vmatpush.msra.mxu0 0.0
        %3446 = vmatpush.msra.mxu0 0.0
        %3447 = vmatpush.msra.mxu0 0.0
        %3448 = vmatpush.msra.mxu0 0.0
        %3449 = vmatpush.msra.mxu0 0.0
        %3450 = vmatpush.msra.mxu0 0.0
        %3451 = vmatpush.msra.mxu0 0.0
        %3452 = vmatpush.msra.mxu0 0.0
        %3453 = vmatpush.msra.mxu0 0.0
        %3454 = vmatpush.msra.mxu0 0.0
        %3455 = vmatpush.msra.mxu0 0.0
        %3456 = vmatpush.msra.mxu0 0.0
        %3457 = vmatpush.msra.mxu0 0.0
        %3458 = vmatpush.msra.mxu0 %v3441
        %3459 = vmatmul.f32.gmra.mxu0 %v3438
        %v3460 = vpop.f32.mrf.mxu0
        %v3461 = vadd.f32 0.0, %v3460
        %3462 = vdwg.mxu0
        %3463 = vrot.lane.b32.xlu0 %v3348, 116
        %v3464 = vpop.permute.xlu0 %3463
        %3465 = vrot.lane.b32.xlu0 %v3348, 68
        %v3466 = vpop.permute.xlu0 %3465
        %v3467 = vsel %vm1654, %v3464, 0
        %v3469 = vsel %vm1654, %v3466, 0
        %3471 = vmatpush.xpose.msra.mxu0 0.0
        %3472 = vmatpush.xpose.msra.mxu0 0.0
        %3473 = vmatpush.xpose.msra.mxu0 0.0
        %3474 = vmatpush.xpose.msra.mxu0 0.0
        %3475 = vmatpush.xpose.msra.mxu0 0.0
        %3476 = vmatpush.xpose.msra.mxu0 0.0
        %3477 = vmatpush.xpose.msra.mxu0 0.0
        %3478 = vmatpush.xpose.msra.mxu0 0.0
        %3479 = vmatpush.xpose.msra.mxu0 0.0
        %3480 = vmatpush.xpose.msra.mxu0 0.0
        %3481 = vmatpush.xpose.msra.mxu0 0.0
        %3482 = vmatpush.xpose.msra.mxu0 0.0
        %3483 = vmatpush.xpose.msra.mxu0 0.0
        %3484 = vmatpush.xpose.msra.mxu0 0.0
        %3485 = vmatpush.xpose.msra.mxu0 0.0
        %3486 = vmatpush.xpose.msra.mxu0 %v3469
        %3487 = vmatmul.f32.gmra.mxu0 %v3467
        %v3488 = vpop.f32.mrf.mxu0
        %v3489 = vadd.f32 0.0, %v3488
        %3490 = vdwg.mxu0
        %v3491 = vmul.f32 %v3489, 0.28867513
        %v3492 = vsel %vm3407, %v3491, -inf
        %v3493 = vsel %vm3409, %v3492, -inf
        %3494 = vmax.xlane.f32.xlu0 %v3493
        %v3495 = vpop.xlane.xlu0 %3494
        %v3496 = vsub.f32 %v3492, %v3495
        %v3497 = vmul.f32 %v3496, 1.442695
        %v3498 = vpow.pop %v3497
        %v3499 = vsel %vm3409, %v3498, 0.0
        %3500 = vadd.xlane.f32.xlu0 %v3499
        %v3501 = vpop.xlane.xlu0 %3500
        %v3502 = vrcp.pop %v3501
        %v3503 = vmul.f32 %v3501, %v3502
        %v3504 = vsub.f32 1.0, %v3503
        %v3505 = vmul.f32 %v3502, %v3504
        %v3506 = vadd.f32 %v3502, %v3505
        %vm3507 = vweird.f32 %v3501
        %vm3508 = vweird.f32 %v3502
        %vm3509 = vmor %vm3507, %vm3508
        %v3510 = vsel %vm3509, %v3502, %v3506
        %v3511 = vand.u32 2147483647, %v3501
        %vm3512 = vcmp.eq.f32.partialorder %v3511, 8.507059e+37
        %v3513 = vand.u32 %v3501, 2147483648
        %v3514 = vor.u32 1.1754944e-38, %v3513
        %v3515 = vsel %vm3512, %v3514, %v3510
        %v3516 = vmul.f32 %v3498, %v3515
        %3517 = vrot.lane.b32.xlu0 %v3348, 20
        %v3518 = vpop.permute.xlu0 %3517
        %v3520 = vsel %vm3436, %v3516, 0
        %v3522 = vsel %vm3440, %v3518, 0
        %3524 = vmatpush.msra.mxu0 0.0
        %3525 = vmatpush.msra.mxu0 0.0
        %3526 = vmatpush.msra.mxu0 0.0
        %3527 = vmatpush.msra.mxu0 0.0
        %3528 = vmatpush.msra.mxu0 0.0
        %3529 = vmatpush.msra.mxu0 0.0
        %3530 = vmatpush.msra.mxu0 0.0
        %3531 = vmatpush.msra.mxu0 0.0
        %3532 = vmatpush.msra.mxu0 0.0
        %3533 = vmatpush.msra.mxu0 0.0
        %3534 = vmatpush.msra.mxu0 0.0
        %3535 = vmatpush.msra.mxu0 0.0
        %3536 = vmatpush.msra.mxu0 0.0
        %3537 = vmatpush.msra.mxu0 0.0
        %3538 = vmatpush.msra.mxu0 0.0
        %3539 = vmatpush.msra.mxu0 %v3522
        %3540 = vmatmul.f32.gmra.mxu0 %v3520
        %v3541 = vpop.f32.mrf.mxu0
        %v3542 = vadd.f32 0.0, %v3541
        %3543 = vdwg.mxu0
        %3544 = vrot.lane.b32.xlu0 %v3348, 104
        %v3545 = vpop.permute.xlu0 %3544
        %3546 = vrot.lane.b32.xlu0 %v3348, 56
        %v3547 = vpop.permute.xlu0 %3546
        %v3548 = vsel %vm1654, %v3545, 0
        %v3550 = vsel %vm1654, %v3547, 0
        %3552 = vmatpush.xpose.msra.mxu0 0.0
        %3553 = vmatpush.xpose.msra.mxu0 0.0
        %3554 = vmatpush.xpose.msra.mxu0 0.0
        %3555 = vmatpush.xpose.msra.mxu0 0.0
        %3556 = vmatpush.xpose.msra.mxu0 0.0
        %3557 = vmatpush.xpose.msra.mxu0 0.0
        %3558 = vmatpush.xpose.msra.mxu0 0.0
        %3559 = vmatpush.xpose.msra.mxu0 0.0
        %3560 = vmatpush.xpose.msra.mxu0 0.0
        %3561 = vmatpush.xpose.msra.mxu0 0.0
        %3562 = vmatpush.xpose.msra.mxu0 0.0
        %3563 = vmatpush.xpose.msra.mxu0 0.0
        %3564 = vmatpush.xpose.msra.mxu0 0.0
        %3565 = vmatpush.xpose.msra.mxu0 0.0
        %3566 = vmatpush.xpose.msra.mxu0 0.0
        %3567 = vmatpush.xpose.msra.mxu0 %v3550
        %3568 = vmatmul.f32.gmra.mxu0 %v3548
        %v3569 = vpop.f32.mrf.mxu0
        %v3570 = vadd.f32 0.0, %v3569
        %3571 = vdwg.mxu0
        %v3572 = vmul.f32 %v3570, 0.28867513
        %v3573 = vsel %vm3407, %v3572, -inf
        %v3574 = vsel %vm3409, %v3573, -inf
        %3575 = vmax.xlane.f32.xlu0 %v3574
        %v3576 = vpop.xlane.xlu0 %3575
        %v3577 = vsub.f32 %v3573, %v3576
        %v3578 = vmul.f32 %v3577, 1.442695
        %v3579 = vpow.pop %v3578
        %v3580 = vsel %vm3409, %v3579, 0.0
        %3581 = vadd.xlane.f32.xlu0 %v3580
        %v3582 = vpop.xlane.xlu0 %3581
        %v3583 = vrcp.pop %v3582
        %v3584 = vmul.f32 %v3582, %v3583
        %v3585 = vsub.f32 1.0, %v3584
        %v3586 = vmul.f32 %v3583, %v3585
        %v3587 = vadd.f32 %v3583, %v3586
        %vm3588 = vweird.f32 %v3582
        %vm3589 = vweird.f32 %v3583
        %vm3590 = vmor %vm3588, %vm3589
        %v3591 = vsel %vm3590, %v3583, %v3587
        %v3592 = vand.u32 2147483647, %v3582
        %vm3593 = vcmp.eq.f32.partialorder %v3592, 8.507059e+37
        %v3594 = vand.u32 %v3582, 2147483648
        %v3595 = vor.u32 1.1754944e-38, %v3594
        %v3596 = vsel %vm3593, %v3595, %v3591
        %v3597 = vmul.f32 %v3579, %v3596
        %3599 = vrot.lane.b32.xlu0 %v3348, 8
        %v3600 = vpop.permute.xlu0 %3599
        %3601 = vrot.lane.b32.xlu0 %v3368, 8
        %v3602 = vpop.permute.xlu0 %3601
        %v3603 = vsel %vm1995, %v3600, %v3602
        %v3605 = vsel %vm3436, %v3597, 0
        %v3607 = vsel %vm3440, %v3603, 0
        %3609 = vmatpush.msra.mxu0 0.0
        %3610 = vmatpush.msra.mxu0 0.0
        %3611 = vmatpush.msra.mxu0 0.0
        %3612 = vmatpush.msra.mxu0 0.0
        %3613 = vmatpush.msra.mxu0 0.0
        %3614 = vmatpush.msra.mxu0 0.0
        %3615 = vmatpush.msra.mxu0 0.0
        %3616 = vmatpush.msra.mxu0 0.0
        %3617 = vmatpush.msra.mxu0 0.0
        %3618 = vmatpush.msra.mxu0 0.0
        %3619 = vmatpush.msra.mxu0 0.0
        %3620 = vmatpush.msra.mxu0 0.0
        %3621 = vmatpush.msra.mxu0 0.0
        %3622 = vmatpush.msra.mxu0 0.0
        %3623 = vmatpush.msra.mxu0 0.0
        %3624 = vmatpush.msra.mxu0 %v3607
        %3625 = vmatmul.f32.gmra.mxu0 %v3605
        %v3626 = vpop.f32.mrf.mxu0
        %v3627 = vadd.f32 0.0, %v3626
        %3628 = vdwg.mxu0
        %3629 = vrot.lane.b32.xlu0 %v3348, 92
        %v3630 = vpop.permute.xlu0 %3629
        %3631 = vrot.lane.b32.xlu0 %v3348, 44
        %v3632 = vpop.permute.xlu0 %3631
        %v3633 = vsel %vm1654, %v3630, 0
        %v3635 = vsel %vm1654, %v3632, 0
        %3637 = vmatpush.xpose.msra.mxu0 0.0
        %3638 = vmatpush.xpose.msra.mxu0 0.0
        %3639 = vmatpush.xpose.msra.mxu0 0.0
        %3640 = vmatpush.xpose.msra.mxu0 0.0
        %3641 = vmatpush.xpose.msra.mxu0 0.0
        %3642 = vmatpush.xpose.msra.mxu0 0.0
        %3643 = vmatpush.xpose.msra.mxu0 0.0
        %3644 = vmatpush.xpose.msra.mxu0 0.0
        %3645 = vmatpush.xpose.msra.mxu0 0.0
        %3646 = vmatpush.xpose.msra.mxu0 0.0
        %3647 = vmatpush.xpose.msra.mxu0 0.0
        %3648 = vmatpush.xpose.msra.mxu0 0.0
        %3649 = vmatpush.xpose.msra.mxu0 0.0
        %3650 = vmatpush.xpose.msra.mxu0 0.0
        %3651 = vmatpush.xpose.msra.mxu0 0.0
        %3652 = vmatpush.xpose.msra.mxu0 %v3635
        %3653 = vmatmul.f32.gmra.mxu0 %v3633
        %v3654 = vpop.f32.mrf.mxu0
        %v3655 = vadd.f32 0.0, %v3654
        %3656 = vdwg.mxu0
        %v3657 = vmul.f32 %v3655, 0.28867513
        %v3658 = vsel %vm3407, %v3657, -inf
        %v3659 = vsel %vm3409, %v3658, -inf
        %3660 = vmax.xlane.f32.xlu0 %v3659
        %v3661 = vpop.xlane.xlu0 %3660
        %v3662 = vsub.f32 %v3658, %v3661
        %v3663 = vmul.f32 %v3662, 1.442695
        %v3664 = vpow.pop %v3663
        %v3665 = vsel %vm3409, %v3664, 0.0
        %3666 = vadd.xlane.f32.xlu0 %v3665
        %v3667 = vpop.xlane.xlu0 %3666
        %v3668 = vrcp.pop %v3667
        %v3669 = vmul.f32 %v3667, %v3668
        %v3670 = vsub.f32 1.0, %v3669
        %v3671 = vmul.f32 %v3668, %v3670
        %v3672 = vadd.f32 %v3668, %v3671
        %vm3673 = vweird.f32 %v3667
        %vm3674 = vweird.f32 %v3668
        %vm3675 = vmor %vm3673, %vm3674
        %v3676 = vsel %vm3675, %v3668, %v3672
        %v3677 = vand.u32 2147483647, %v3667
        %vm3678 = vcmp.eq.f32.partialorder %v3677, 8.507059e+37
        %v3679 = vand.u32 %v3667, 2147483648
        %v3680 = vor.u32 1.1754944e-38, %v3679
        %v3681 = vsel %vm3678, %v3680, %v3676
        %v3682 = vmul.f32 %v3664, %v3681
        %3683 = vrot.lane.b32.xlu0 %v3368, 124
        %v3684 = vpop.permute.xlu0 %3683
        %v3686 = vsel %vm3436, %v3682, 0
        %v3688 = vsel %vm3440, %v3684, 0
        %3690 = vmatpush.msra.mxu0 0.0
        %3691 = vmatpush.msra.mxu0 0.0
        %3692 = vmatpush.msra.mxu0 0.0
        %3693 = vmatpush.msra.mxu0 0.0
        %3694 = vmatpush.msra.mxu0 0.0
        %3695 = vmatpush.msra.mxu0 0.0
        %3696 = vmatpush.msra.mxu0 0.0
        %3697 = vmatpush.msra.mxu0 0.0
        %3698 = vmatpush.msra.mxu0 0.0
        %3699 = vmatpush.msra.mxu0 0.0
        %3700 = vmatpush.msra.mxu0 0.0
        %3701 = vmatpush.msra.mxu0 0.0
        %3702 = vmatpush.msra.mxu0 0.0
        %3703 = vmatpush.msra.mxu0 0.0
        %3704 = vmatpush.msra.mxu0 0.0
        %3705 = vmatpush.msra.mxu0 %v3688
        %3706 = vmatmul.f32.gmra.mxu0 %v3686
        %v3707 = vpop.f32.mrf.mxu0
        %v3708 = vadd.f32 0.0, %v3707
        %3709 = vdwg.mxu0
        %3711 = vrot.lane.b32.xlu0 %v3542, 12
        %v3712 = vpop.permute.xlu0 %3711
        %3715 = vrot.lane.b32.xlu0 %v3627, 24
        %v3716 = vpop.permute.xlu0 %3715
        %3719 = vrot.lane.b32.xlu0 %v3708, 36
        %v3720 = vpop.permute.xlu0 %3719
        %v3722 = vsel %vm1654, %v3461, %v3712
        %v3723 = vsel %vm2179, %v3722, %v3716
        %v3724 = vsel %vm2182, %v3723, %v3720
        %v3726 = vperm.slane %v3376, 0
        %v3729 = vsel %vm1505, %v3724, 0
        %3731 = vmatpush.msra.mxu0 0.0
        %3732 = vmatpush.msra.mxu0 0.0
        %3733 = vmatpush.msra.mxu0 0.0
        %3734 = vmatpush.msra.mxu0 0.0
        %3735 = vmatpush.msra.mxu0 0.0
        %3736 = vmatpush.msra.mxu0 0.0
        %3737 = vmatpush.msra.mxu0 0.0
        %3738 = vmatpush.msra.mxu0 0.0
        %3739 = vmatpush.msra.mxu0 0.0
        %3740 = vmatpush.msra.mxu0 0.0
        %3741 = vmatpush.msra.mxu0 %v3375
        %3742 = vmatpush.msra.mxu0 %v3374
        %3743 = vmatpush.msra.mxu0 %v3373
        %3744 = vmatpush.msra.mxu0 %v3372
        %3745 = vmatpush.msra.mxu0 %v3371
        %3746 = vmatpush.msra.mxu0 %v3370
        %3747 = vmatmul.f32.gmra.mxu0 %v3729
        %v3748 = vpop.f32.mrf.mxu0
        %v3749 = vadd.f32 %v3726, %v3748
        %3750 = vdwg.mxu0
        %v3751 = vadd.f32 %v3308, %v3749
        %v3752 = vld [vmem:[%s69] sm:$0x1]
        %v3753 = vld [vmem:[%s71] sm:$0x1]
        %vm3754 = vcmask 389120
        %v3755 = vsel %vm3754, %v3751, 0.0
        %3756 = vadd.xlane.f32.xlu0 %v3755
        %v3757 = vpop.xlane.xlu0 %3756
        %v3758 = vmul.f32 %v3757, %v1518
        %v3759 = vsub.f32 %v3751, %v3758
        %v3760 = vmul.f32 %v3759, %v3759
        %v3761 = vsel %vm3754, %v3760, 0.0
        %3762 = vadd.xlane.f32.xlu0 %v3761
        %v3763 = vpop.xlane.xlu0 %3762
        %v3764 = vmul.f32 %v3763, %v1518
        %v3765 = vadd.f32 %v3764, 1e-05
        %v3766 = vrsqrt.pop %v3765
        %v3767 = vmul.f32 %v3766, %v3765
        %v3768 = vmul.f32 %v3767, %v3766
        %v3769 = vmul.f32 0.5, %v3768
        %v3770 = vsub.f32 1.5, %v3769
        %v3771 = vmul.f32 %v3766, %v3770
        %vm3772 = vweird.f32 %v3765
        %vm3773 = vweird.f32 %v3766
        %vm3774 = vmor %vm3772, %vm3773
        %v3775 = vsel %vm3774, %v3766, %v3771
        %v3776 = vmul.f32 %v3759, %v3775
        %v3778 = vperm.slane %v3752, 0
        %v3780 = vmul.f32 %v3776, %v3778
        %v3782 = vperm.slane %v3753, 0
        %v3784 = vadd.f32 %v3780, %v3782
        %v3785 = vld [vmem:[%s57] sm:$0xff]
        %v3786 = vld [vmem:[%s57 + $0x8] sm:$0xff]
        %v3787 = vld [vmem:[%s57 + $0x10] sm:$0xff]
        %v3788 = vld [vmem:[%s57 + $0x18] sm:$0xff]
        %v3789 = vld [vmem:[%s57 + $0x20] sm:$0xff]
        %v3790 = vld [vmem:[%s57 + $0x28] sm:$0xff]
        %v3791 = vld [vmem:[%s59] sm:$0x1]
        %v3793 = vperm.slane %v3791, 0
        %v3796 = vsel %vm1505, %v3784, 0
        %3798 = vmatpush.msra.mxu0 0.0
        %3799 = vmatpush.msra.mxu0 0.0
        %3800 = vmatpush.msra.mxu0 0.0
        %3801 = vmatpush.msra.mxu0 0.0
        %3802 = vmatpush.msra.mxu0 0.0
        %3803 = vmatpush.msra.mxu0 0.0
        %3804 = vmatpush.msra.mxu0 0.0
        %3805 = vmatpush.msra.mxu0 0.0
        %3806 = vmatpush.msra.mxu0 0.0
        %3807 = vmatpush.msra.mxu0 0.0
        %3808 = vmatpush.msra.mxu0 %v3790
        %3809 = vmatpush.msra.mxu0 %v3789
        %3810 = vmatpush.msra.mxu0 %v3788
        %3811 = vmatpush.msra.mxu0 %v3787
        %3812 = vmatpush.msra.mxu0 %v3786
        %3813 = vmatpush.msra.mxu0 %v3785
        %3814 = vmatmul.f32.gmra.mxu0 %v3796
        %v3815 = vpop.f32.mrf.mxu0
        %v3816 = vadd.f32 %v3793, %v3815
        %3817 = vdwg.mxu0
        %v3818 = vld [vmem:[%s61] sm:$0xff]
        %v3819 = vld [vmem:[%s61 + $0x8] sm:$0xff]
        %v3820 = vld [vmem:[%s61 + $0x10] sm:$0xff]
        %v3821 = vld [vmem:[%s61 + $0x18] sm:$0xff]
        %v3822 = vld [vmem:[%s61 + $0x20] sm:$0xff]
        %v3823 = vld [vmem:[%s61 + $0x28] sm:$0xff]
        %v3824 = vld [vmem:[%s63] sm:$0x1]
        %v3826 = vperm.slane %v3824, 0
        %v3829 = vsel %vm1505, %v3264, 0
        %v3832 = vsel %vm1505, %v3265, 0
        %3834 = vmatpush.msra.mxu0 0.0
        %3835 = vmatpush.msra.mxu0 0.0
        %3836 = vmatpush.msra.mxu0 0.0
        %3837 = vmatpush.msra.mxu0 0.0
        %3838 = vmatpush.msra.mxu0 0.0
        %3839 = vmatpush.msra.mxu0 0.0
        %3840 = vmatpush.msra.mxu0 0.0
        %3841 = vmatpush.msra.mxu0 0.0
        %3842 = vmatpush.msra.mxu0 0.0
        %3843 = vmatpush.msra.mxu0 0.0
        %3844 = vmatpush.msra.mxu0 %v3823
        %3845 = vmatpush.msra.mxu0 %v3822
        %3846 = vmatpush.msra.mxu0 %v3821
        %3847 = vmatpush.msra.mxu0 %v3820
        %3848 = vmatpush.msra.mxu0 %v3819
        %3849 = vmatpush.msra.mxu0 %v3818
        %3850 = vmatmul.f32.gmra.mxu0 %v3829
        %v3851 = vpop.f32.mrf.mxu0
        %v3852 = vadd.f32 %v3826, %v3851
        %3853 = vmatmul.f32.gmra.mxu0 %v3832
        %v3854 = vpop.f32.mrf.mxu0
        %v3855 = vadd.f32 %v3826, %v3854
        %3856 = vdwg.mxu0
        %v3857 = vld [vmem:[%s65] sm:$0xff]
        %v3858 = vld [vmem:[%s65 + $0x8] sm:$0xff]
        %v3859 = vld [vmem:[%s65 + $0x10] sm:$0xff]
        %v3860 = vld [vmem:[%s65 + $0x18] sm:$0xff]
        %v3861 = vld [vmem:[%s65 + $0x20] sm:$0xff]
        %v3862 = vld [vmem:[%s65 + $0x28] sm:$0xff]
        %v3863 = vld [vmem:[%s67] sm:$0x1]
        %v3865 = vsel %vm1654, %v3816, 0
        %v3868 = vsel %vm1654, %v3852, 0
        %v3871 = vsel %vm1654, %v3855, 0
        %3873 = vmatpush.xpose.msra.mxu0 0.0
        %3874 = vmatpush.xpose.msra.mxu0 0.0
        %3875 = vmatpush.xpose.msra.mxu0 0.0
        %3876 = vmatpush.xpose.msra.mxu0 0.0
        %3877 = vmatpush.xpose.msra.mxu0 0.0
        %3878 = vmatpush.xpose.msra.mxu0 0.0
        %3879 = vmatpush.xpose.msra.mxu0 0.0
        %3880 = vmatpush.xpose.msra.mxu0 0.0
        %3881 = vmatpush.xpose.msra.mxu0 0.0
        %3882 = vmatpush.xpose.msra.mxu0 0.0
        %3883 = vmatpush.xpose.msra.mxu0 0.0
        %3884 = vmatpush.xpose.msra.mxu0 0.0
        %3885 = vmatpush.xpose.msra.mxu0 0.0
        %3886 = vmatpush.xpose.msra.mxu0 0.0
        %3887 = vmatpush.xpose.msra.mxu0 %v3871
        %3888 = vmatpush.xpose.msra.mxu0 %v3868
        %3889 = vmatmul.f32.gmra.mxu0 %v3865
        %v3890 = vpop.f32.mrf.mxu0
        %v3891 = vadd.f32 0.0, %v3890
        %3892 = vdwg.mxu0
        %v3893 = vmul.f32 %v3891, 0.28867513
        %vm3894 = vcmask 126976
        %v3895 = vsel %vm3894, %v3893, -inf
        %3896 = vmax.xlane.f32.xlu0 %v3895
        %v3897 = vpop.xlane.xlu0 %3896
        %v3898 = vsub.f32 %v3893, %v3897
        %v3899 = vmul.f32 %v3898, 1.442695
        %v3900 = vpow.pop %v3899
        %v3901 = vsel %vm3894, %v3900, 0.0
        %3902 = vadd.xlane.f32.xlu0 %v3901
        %v3903 = vpop.xlane.xlu0 %3902
        %v3904 = vrcp.pop %v3903
        %v3905 = vmul.f32 %v3903, %v3904
        %v3906 = vsub.f32 1.0, %v3905
        %v3907 = vmul.f32 %v3904, %v3906
        %v3908 = vadd.f32 %v3904, %v3907
        %vm3909 = vweird.f32 %v3903
        %vm3910 = vweird.f32 %v3904
        %vm3911 = vmor %vm3909, %vm3910
        %v3912 = vsel %vm3911, %v3904, %v3908
        %v3913 = vand.u32 2147483647, %v3903
        %vm3914 = vcmp.eq.f32.partialorder %v3913, 8.507059e+37
        %v3915 = vand.u32 %v3903, 2147483648
        %v3916 = vor.u32 1.1754944e-38, %v3915
        %v3917 = vsel %vm3914, %v3916, %v3912
        %v3918 = vmul.f32 %v3900, %v3917
        %3919 = vrot.lane.b32.xlu0 %v3852, 80
        %v3920 = vpop.permute.xlu0 %3919
        %3921 = vrot.lane.b32.xlu0 %v3855, 80
        %v3922 = vpop.permute.xlu0 %3921
        %v3926 = vsel %vm1688, %v3918, 0
        %3928 = vmatpush.msra.mxu0 0.0
        %3929 = vmatpush.msra.mxu0 0.0
        %3930 = vmatpush.msra.mxu0 0.0
        %3931 = vmatpush.msra.mxu0 0.0
        %3932 = vmatpush.msra.mxu0 0.0
        %3933 = vmatpush.msra.mxu0 0.0
        %3934 = vmatpush.msra.mxu0 0.0
        %3935 = vmatpush.msra.mxu0 0.0
        %3936 = vmatpush.msra.mxu0 0.0
        %3937 = vmatpush.msra.mxu0 0.0
        %3938 = vmatpush.msra.mxu0 0.0
        %3939 = vmatpush.msra.mxu0 0.0
        %3940 = vmatpush.msra.mxu0 0.0
        %3941 = vmatpush.msra.mxu0 0.0
        %3942 = vmatpush.msra.mxu0 %v3922
        %3943 = vmatpush.msra.mxu0 %v3920
        %3944 = vmatmul.f32.gmra.mxu0 %v3926
        %v3945 = vpop.f32.mrf.mxu0
        %v3946 = vadd.f32 0.0, %v3945
        %3947 = vdwg.mxu0
        %3948 = vrot.lane.b32.xlu0 %v3816, 116
        %v3949 = vpop.permute.xlu0 %3948
        %3950 = vrot.lane.b32.xlu0 %v3852, 116
        %v3951 = vpop.permute.xlu0 %3950
        %3952 = vrot.lane.b32.xlu0 %v3855, 116
        %v3953 = vpop.permute.xlu0 %3952
        %v3954 = vsel %vm1654, %v3949, 0
        %v3956 = vsel %vm1654, %v3951, 0
        %v3958 = vsel %vm1654, %v3953, 0
        %3960 = vmatpush.xpose.msra.mxu0 0.0
        %3961 = vmatpush.xpose.msra.mxu0 0.0
        %3962 = vmatpush.xpose.msra.mxu0 0.0
        %3963 = vmatpush.xpose.msra.mxu0 0.0
        %3964 = vmatpush.xpose.msra.mxu0 0.0
        %3965 = vmatpush.xpose.msra.mxu0 0.0
        %3966 = vmatpush.xpose.msra.mxu0 0.0
        %3967 = vmatpush.xpose.msra.mxu0 0.0
        %3968 = vmatpush.xpose.msra.mxu0 0.0
        %3969 = vmatpush.xpose.msra.mxu0 0.0
        %3970 = vmatpush.xpose.msra.mxu0 0.0
        %3971 = vmatpush.xpose.msra.mxu0 0.0
        %3972 = vmatpush.xpose.msra.mxu0 0.0
        %3973 = vmatpush.xpose.msra.mxu0 0.0
        %3974 = vmatpush.xpose.msra.mxu0 %v3958
        %3975 = vmatpush.xpose.msra.mxu0 %v3956
        %3976 = vmatmul.f32.gmra.mxu0 %v3954
        %v3977 = vpop.f32.mrf.mxu0
        %v3978 = vadd.f32 0.0, %v3977
        %3979 = vdwg.mxu0
        %v3980 = vmul.f32 %v3978, 0.28867513
        %v3981 = vsel %vm3894, %v3980, -inf
        %3982 = vmax.xlane.f32.xlu0 %v3981
        %v3983 = vpop.xlane.xlu0 %3982
        %v3984 = vsub.f32 %v3980, %v3983
        %v3985 = vmul.f32 %v3984, 1.442695
        %v3986 = vpow.pop %v3985
        %v3987 = vsel %vm3894, %v3986, 0.0
        %3988 = vadd.xlane.f32.xlu0 %v3987
        %v3989 = vpop.xlane.xlu0 %3988
        %v3990 = vrcp.pop %v3989
        %v3991 = vmul.f32 %v3989, %v3990
        %v3992 = vsub.f32 1.0, %v3991
        %v3993 = vmul.f32 %v3990, %v3992
        %v3994 = vadd.f32 %v3990, %v3993
        %vm3995 = vweird.f32 %v3989
        %vm3996 = vweird.f32 %v3990
        %vm3997 = vmor %vm3995, %vm3996
        %v3998 = vsel %vm3997, %v3990, %v3994
        %v3999 = vand.u32 2147483647, %v3989
        %vm4000 = vcmp.eq.f32.partialorder %v3999, 8.507059e+37
        %v4001 = vand.u32 %v3989, 2147483648
        %v4002 = vor.u32 1.1754944e-38, %v4001
        %v4003 = vsel %vm4000, %v4002, %v3998
        %v4004 = vmul.f32 %v3986, %v4003
        %4005 = vrot.lane.b32.xlu0 %v3852, 68
        %v4006 = vpop.permute.xlu0 %4005
        %4007 = vrot.lane.b32.xlu0 %v3855, 68
        %v4008 = vpop.permute.xlu0 %4007
        %v4012 = vsel %vm1688, %v4004, 0
        %4014 = vmatpush.msra.mxu0 0.0
        %4015 = vmatpush.msra.mxu0 0.0
        %4016 = vmatpush.msra.mxu0 0.0
        %4017 = vmatpush.msra.mxu0 0.0
        %4018 = vmatpush.msra.mxu0 0.0
        %4019 = vmatpush.msra.mxu0 0.0
        %4020 = vmatpush.msra.mxu0 0.0
        %4021 = vmatpush.msra.mxu0 0.0
        %4022 = vmatpush.msra.mxu0 0.0
        %4023 = vmatpush.msra.mxu0 0.0
        %4024 = vmatpush.msra.mxu0 0.0
        %4025 = vmatpush.msra.mxu0 0.0
        %4026 = vmatpush.msra.mxu0 0.0
        %4027 = vmatpush.msra.mxu0 0.0
        %4028 = vmatpush.msra.mxu0 %v4008
        %4029 = vmatpush.msra.mxu0 %v4006
        %4030 = vmatmul.f32.gmra.mxu0 %v4012
        %v4031 = vpop.f32.mrf.mxu0
        %v4032 = vadd.f32 0.0, %v4031
        %4033 = vdwg.mxu0
        %4034 = vrot.lane.b32.xlu0 %v3816, 104
        %v4035 = vpop.permute.xlu0 %4034
        %4036 = vrot.lane.b32.xlu0 %v3852, 104
        %v4037 = vpop.permute.xlu0 %4036
        %4038 = vrot.lane.b32.xlu0 %v3855, 104
        %v4039 = vpop.permute.xlu0 %4038
        %v4040 = vsel %vm1654, %v4035, 0
        %v4042 = vsel %vm1654, %v4037, 0
        %v4044 = vsel %vm1654, %v4039, 0
        %4046 = vmatpush.xpose.msra.mxu0 0.0
        %4047 = vmatpush.xpose.msra.mxu0 0.0
        %4048 = vmatpush.xpose.msra.mxu0 0.0
        %4049 = vmatpush.xpose.msra.mxu0 0.0
        %4050 = vmatpush.xpose.msra.mxu0 0.0
        %4051 = vmatpush.xpose.msra.mxu0 0.0
        %4052 = vmatpush.xpose.msra.mxu0 0.0
        %4053 = vmatpush.xpose.msra.mxu0 0.0
        %4054 = vmatpush.xpose.msra.mxu0 0.0
        %4055 = vmatpush.xpose.msra.mxu0 0.0
        %4056 = vmatpush.xpose.msra.mxu0 0.0
        %4057 = vmatpush.xpose.msra.mxu0 0.0
        %4058 = vmatpush.xpose.msra.mxu0 0.0
        %4059 = vmatpush.xpose.msra.mxu0 0.0
        %4060 = vmatpush.xpose.msra.mxu0 %v4044
        %4061 = vmatpush.xpose.msra.mxu0 %v4042
        %4062 = vmatmul.f32.gmra.mxu0 %v4040
        %v4063 = vpop.f32.mrf.mxu0
        %v4064 = vadd.f32 0.0, %v4063
        %4065 = vdwg.mxu0
        %v4066 = vmul.f32 %v4064, 0.28867513
        %v4067 = vsel %vm3894, %v4066, -inf
        %4068 = vmax.xlane.f32.xlu0 %v4067
        %v4069 = vpop.xlane.xlu0 %4068
        %v4070 = vsub.f32 %v4066, %v4069
        %v4071 = vmul.f32 %v4070, 1.442695
        %v4072 = vpow.pop %v4071
        %v4073 = vsel %vm3894, %v4072, 0.0
        %4074 = vadd.xlane.f32.xlu0 %v4073
        %v4075 = vpop.xlane.xlu0 %4074
        %v4076 = vrcp.pop %v4075
        %v4077 = vmul.f32 %v4075, %v4076
        %v4078 = vsub.f32 1.0, %v4077
        %v4079 = vmul.f32 %v4076, %v4078
        %v4080 = vadd.f32 %v4076, %v4079
        %vm4081 = vweird.f32 %v4075
        %vm4082 = vweird.f32 %v4076
        %vm4083 = vmor %vm4081, %vm4082
        %v4084 = vsel %vm4083, %v4076, %v4080
        %v4085 = vand.u32 2147483647, %v4075
        %vm4086 = vcmp.eq.f32.partialorder %v4085, 8.507059e+37
        %v4087 = vand.u32 %v4075, 2147483648
        %v4088 = vor.u32 1.1754944e-38, %v4087
        %v4089 = vsel %vm4086, %v4088, %v4084
        %v4090 = vmul.f32 %v4072, %v4089
        %4091 = vrot.lane.b32.xlu0 %v3852, 56
        %v4092 = vpop.permute.xlu0 %4091
        %4093 = vrot.lane.b32.xlu0 %v3855, 56
        %v4094 = vpop.permute.xlu0 %4093
        %v4098 = vsel %vm1688, %v4090, 0
        %4100 = vmatpush.msra.mxu0 0.0
        %4101 = vmatpush.msra.mxu0 0.0
        %4102 = vmatpush.msra.mxu0 0.0
        %4103 = vmatpush.msra.mxu0 0.0
        %4104 = vmatpush.msra.mxu0 0.0
        %4105 = vmatpush.msra.mxu0 0.0
        %4106 = vmatpush.msra.mxu0 0.0
        %4107 = vmatpush.msra.mxu0 0.0
        %4108 = vmatpush.msra.mxu0 0.0
        %4109 = vmatpush.msra.mxu0 0.0
        %4110 = vmatpush.msra.mxu0 0.0
        %4111 = vmatpush.msra.mxu0 0.0
        %4112 = vmatpush.msra.mxu0 0.0
        %4113 = vmatpush.msra.mxu0 0.0
        %4114 = vmatpush.msra.mxu0 %v4094
        %4115 = vmatpush.msra.mxu0 %v4092
        %4116 = vmatmul.f32.gmra.mxu0 %v4098
        %v4117 = vpop.f32.mrf.mxu0
        %v4118 = vadd.f32 0.0, %v4117
        %4119 = vdwg.mxu0
        %4120 = vrot.lane.b32.xlu0 %v3816, 92
        %v4121 = vpop.permute.xlu0 %4120
        %4122 = vrot.lane.b32.xlu0 %v3852, 92
        %v4123 = vpop.permute.xlu0 %4122
        %4124 = vrot.lane.b32.xlu0 %v3855, 92
        %v4125 = vpop.permute.xlu0 %4124
        %v4126 = vsel %vm1654, %v4121, 0
        %v4128 = vsel %vm1654, %v4123, 0
        %v4130 = vsel %vm1654, %v4125, 0
        %4132 = vmatpush.xpose.msra.mxu0 0.0
        %4133 = vmatpush.xpose.msra.mxu0 0.0
        %4134 = vmatpush.xpose.msra.mxu0 0.0
        %4135 = vmatpush.xpose.msra.mxu0 0.0
        %4136 = vmatpush.xpose.msra.mxu0 0.0
        %4137 = vmatpush.xpose.msra.mxu0 0.0
        %4138 = vmatpush.xpose.msra.mxu0 0.0
        %4139 = vmatpush.xpose.msra.mxu0 0.0
        %4140 = vmatpush.xpose.msra.mxu0 0.0
        %4141 = vmatpush.xpose.msra.mxu0 0.0
        %4142 = vmatpush.xpose.msra.mxu0 0.0
        %4143 = vmatpush.xpose.msra.mxu0 0.0
        %4144 = vmatpush.xpose.msra.mxu0 0.0
        %4145 = vmatpush.xpose.msra.mxu0 0.0
        %4146 = vmatpush.xpose.msra.mxu0 %v4130
        %4147 = vmatpush.xpose.msra.mxu0 %v4128
        %4148 = vmatmul.f32.gmra.mxu0 %v4126
        %v4149 = vpop.f32.mrf.mxu0
        %v4150 = vadd.f32 0.0, %v4149
        %4151 = vdwg.mxu0
        %v4152 = vmul.f32 %v4150, 0.28867513
        %v4153 = vsel %vm3894, %v4152, -inf
        %4154 = vmax.xlane.f32.xlu0 %v4153
        %v4155 = vpop.xlane.xlu0 %4154
        %v4156 = vsub.f32 %v4152, %v4155
        %v4157 = vmul.f32 %v4156, 1.442695
        %v4158 = vpow.pop %v4157
        %v4159 = vsel %vm3894, %v4158, 0.0
        %4160 = vadd.xlane.f32.xlu0 %v4159
        %v4161 = vpop.xlane.xlu0 %4160
        %v4162 = vrcp.pop %v4161
        %v4163 = vmul.f32 %v4161, %v4162
        %v4164 = vsub.f32 1.0, %v4163
        %v4165 = vmul.f32 %v4162, %v4164
        %v4166 = vadd.f32 %v4162, %v4165
        %vm4167 = vweird.f32 %v4161
        %vm4168 = vweird.f32 %v4162
        %vm4169 = vmor %vm4167, %vm4168
        %v4170 = vsel %vm4169, %v4162, %v4166
        %v4171 = vand.u32 2147483647, %v4161
        %vm4172 = vcmp.eq.f32.partialorder %v4171, 8.507059e+37
        %v4173 = vand.u32 %v4161, 2147483648
        %v4174 = vor.u32 1.1754944e-38, %v4173
        %v4175 = vsel %vm4172, %v4174, %v4170
        %v4176 = vmul.f32 %v4158, %v4175
        %4177 = vrot.lane.b32.xlu0 %v3852, 44
        %v4178 = vpop.permute.xlu0 %4177
        %4179 = vrot.lane.b32.xlu0 %v3855, 44
        %v4180 = vpop.permute.xlu0 %4179
        %v4184 = vsel %vm1688, %v4176, 0
        %4186 = vmatpush.msra.mxu0 0.0
        %4187 = vmatpush.msra.mxu0 0.0
        %4188 = vmatpush.msra.mxu0 0.0
        %4189 = vmatpush.msra.mxu0 0.0
        %4190 = vmatpush.msra.mxu0 0.0
        %4191 = vmatpush.msra.mxu0 0.0
        %4192 = vmatpush.msra.mxu0 0.0
        %4193 = vmatpush.msra.mxu0 0.0
        %4194 = vmatpush.msra.mxu0 0.0
        %4195 = vmatpush.msra.mxu0 0.0
        %4196 = vmatpush.msra.mxu0 0.0
        %4197 = vmatpush.msra.mxu0 0.0
        %4198 = vmatpush.msra.mxu0 0.0
        %4199 = vmatpush.msra.mxu0 0.0
        %4200 = vmatpush.msra.mxu0 %v4180
        %4201 = vmatpush.msra.mxu0 %v4178
        %4202 = vmatmul.f32.gmra.mxu0 %v4184
        %v4203 = vpop.f32.mrf.mxu0
        %v4204 = vadd.f32 0.0, %v4203
        %4205 = vdwg.mxu0
        %4207 = vrot.lane.b32.xlu0 %v4032, 12
        %v4208 = vpop.permute.xlu0 %4207
        %4211 = vrot.lane.b32.xlu0 %v4118, 24
        %v4212 = vpop.permute.xlu0 %4211
        %4215 = vrot.lane.b32.xlu0 %v4204, 36
        %v4216 = vpop.permute.xlu0 %4215
        %v4218 = vsel %vm1654, %v3946, %v4208
        %v4219 = vsel %vm2179, %v4218, %v4212
        %v4220 = vsel %vm2182, %v4219, %v4216
        %v4222 = vperm.slane %v3863, 0
        %v4225 = vsel %vm1505, %v4220, 0
        %4227 = vmatpush.msra.mxu0 0.0
        %4228 = vmatpush.msra.mxu0 0.0
        %4229 = vmatpush.msra.mxu0 0.0
        %4230 = vmatpush.msra.mxu0 0.0
        %4231 = vmatpush.msra.mxu0 0.0
        %4232 = vmatpush.msra.mxu0 0.0
        %4233 = vmatpush.msra.mxu0 0.0
        %4234 = vmatpush.msra.mxu0 0.0
        %4235 = vmatpush.msra.mxu0 0.0
        %4236 = vmatpush.msra.mxu0 0.0
        %4237 = vmatpush.msra.mxu0 %v3862
        %4238 = vmatpush.msra.mxu0 %v3861
        %4239 = vmatpush.msra.mxu0 %v3860
        %4240 = vmatpush.msra.mxu0 %v3859
        %4241 = vmatpush.msra.mxu0 %v3858
        %4242 = vmatpush.msra.mxu0 %v3857
        %4243 = vmatmul.f32.gmra.mxu0 %v4225
        %v4244 = vpop.f32.mrf.mxu0
        %v4245 = vadd.f32 %v4222, %v4244
        %4246 = vdwg.mxu0
        %v4247 = vadd.f32 %v3784, %v4245
        %v4248 = vld [vmem:[%s73] sm:$0x1]
        %v4249 = vld [vmem:[%s75] sm:$0x1]
        %v4250 = vsel %vm3754, %v4247, 0.0
        %4251 = vadd.xlane.f32.xlu0 %v4250
        %v4252 = vpop.xlane.xlu0 %4251
        %v4253 = vmul.f32 %v4252, %v1518
        %v4254 = vsub.f32 %v4247, %v4253
        %v4255 = vmul.f32 %v4254, %v4254
        %v4256 = vsel %vm3754, %v4255, 0.0
        %4257 = vadd.xlane.f32.xlu0 %v4256
        %v4258 = vpop.xlane.xlu0 %4257
        %v4259 = vmul.f32 %v4258, %v1518
        %v4260 = vadd.f32 %v4259, 1e-05
        %v4261 = vrsqrt.pop %v4260
        %v4262 = vmul.f32 %v4261, %v4260
        %v4263 = vmul.f32 %v4262, %v4261
        %v4264 = vmul.f32 0.5, %v4263
        %v4265 = vsub.f32 1.5, %v4264
        %v4266 = vmul.f32 %v4261, %v4265
        %vm4267 = vweird.f32 %v4260
        %vm4268 = vweird.f32 %v4261
        %vm4269 = vmor %vm4267, %vm4268
        %v4270 = vsel %vm4269, %v4261, %v4266
        %v4271 = vmul.f32 %v4254, %v4270
        %v4273 = vperm.slane %v4248, 0
        %v4275 = vmul.f32 %v4271, %v4273
        %v4277 = vperm.slane %v4249, 0
        %v4279 = vadd.f32 %v4275, %v4277
        %v4280 = vld [vmem:[%s81] sm:$0xff]
        %v4281 = vld [vmem:[%s81 + $0x8] sm:$0xff]
        %v4282 = vld [vmem:[%s81 + $0x10] sm:$0xff]
        %v4283 = vld [vmem:[%s81 + $0x18] sm:$0xff]
        %v4284 = vld [vmem:[%s81 + $0x20] sm:$0xff]
        %v4285 = vld [vmem:[%s81 + $0x28] sm:$0xff]
        %v4286 = vld [vmem:[%s83] sm:$0x1]
        %v4288 = vperm.slane %v4286, 0
        %v4291 = vsel %vm1505, %v4279, 0
        %4293 = vmatpush.msra.mxu0 0.0
        %4294 = vmatpush.msra.mxu0 0.0
        %4295 = vmatpush.msra.mxu0 0.0
        %4296 = vmatpush.msra.mxu0 0.0
        %4297 = vmatpush.msra.mxu0 0.0
        %4298 = vmatpush.msra.mxu0 0.0
        %4299 = vmatpush.msra.mxu0 0.0
        %4300 = vmatpush.msra.mxu0 0.0
        %4301 = vmatpush.msra.mxu0 0.0
        %4302 = vmatpush.msra.mxu0 0.0
        %4303 = vmatpush.msra.mxu0 %v4285
        %4304 = vmatpush.msra.mxu0 %v4284
        %4305 = vmatpush.msra.mxu0 %v4283
        %4306 = vmatpush.msra.mxu0 %v4282
        %4307 = vmatpush.msra.mxu0 %v4281
        %4308 = vmatpush.msra.mxu0 %v4280
        %4309 = vmatmul.f32.gmra.mxu0 %v4291
        %v4310 = vpop.f32.mrf.mxu0
        %v4311 = vadd.f32 %v4288, %v4310
        %4312 = vdwg.mxu0
        %v4313 = vmax.f32 %v4311, 0.0
        %v4314 = vld [vmem:[%s85] sm:$0xff]
        %v4315 = vld [vmem:[%s85 + $0x8] sm:$0xff]
        %v4316 = vld [vmem:[%s85 + $0x10] sm:$0xff]
        %v4317 = vld [vmem:[%s85 + $0x18] sm:$0xff]
        %v4318 = vld [vmem:[%s85 + $0x20] sm:$0xff]
        %v4319 = vld [vmem:[%s85 + $0x28] sm:$0xff]
        %v4320 = vld [vmem:[%s85 + $0x30] sm:$0xff]
        %v4321 = vld [vmem:[%s85 + $0x38] sm:$0xff]
        %v4322 = vld [vmem:[%s87] sm:$0x1]
        %v4324 = vperm.slane %v4322, 0
        %v4327 = vsel %vm1400, %v4313, 0
        %4329 = vmatpush.msra.mxu0 0.0
        %4330 = vmatpush.msra.mxu0 0.0
        %4331 = vmatpush.msra.mxu0 0.0
        %4332 = vmatpush.msra.mxu0 0.0
        %4333 = vmatpush.msra.mxu0 0.0
        %4334 = vmatpush.msra.mxu0 0.0
        %4335 = vmatpush.msra.mxu0 0.0
        %4336 = vmatpush.msra.mxu0 0.0
        %4337 = vmatpush.msra.mxu0 %v4321
        %4338 = vmatpush.msra.mxu0 %v4320
        %4339 = vmatpush.msra.mxu0 %v4319
        %4340 = vmatpush.msra.mxu0 %v4318
        %4341 = vmatpush.msra.mxu0 %v4317
        %4342 = vmatpush.msra.mxu0 %v4316
        %4343 = vmatpush.msra.mxu0 %v4315
        %4344 = vmatpush.msra.mxu0 %v4314
        %4345 = vmatmul.f32.gmra.mxu0 %v4327
        %v4346 = vpop.f32.mrf.mxu0
        %v4347 = vadd.f32 %v4324, %v4346
        %4348 = vdwg.mxu0
        %v4349 = vadd.f32 %v4279, %v4347
        %v4350 = vld [vmem:[%s77] sm:$0x1]
        %v4351 = vld [vmem:[%s79] sm:$0x1]
        %v4352 = vsel %vm3754, %v4349, 0.0
        %4353 = vadd.xlane.f32.xlu0 %v4352
        %v4354 = vpop.xlane.xlu0 %4353
        %v4355 = vmul.f32 %v4354, %v1518
        %v4356 = vsub.f32 %v4349, %v4355
        %v4357 = vmul.f32 %v4356, %v4356
        %v4358 = vsel %vm3754, %v4357, 0.0
        %4359 = vadd.xlane.f32.xlu0 %v4358
        %v4360 = vpop.xlane.xlu0 %4359
        %v4361 = vmul.f32 %v4360, %v1518
        %v4362 = vadd.f32 %v4361, 1e-05
        %v4363 = vrsqrt.pop %v4362
        %v4364 = vmul.f32 %v4363, %v4362
        %v4365 = vmul.f32 %v4364, %v4363
        %v4366 = vmul.f32 0.5, %v4365
        %v4367 = vsub.f32 1.5, %v4366
        %v4368 = vmul.f32 %v4363, %v4367
        %vm4369 = vweird.f32 %v4362
        %vm4370 = vweird.f32 %v4363
        %vm4371 = vmor %vm4369, %vm4370
        %v4372 = vsel %vm4371, %v4363, %v4368
        %v4373 = vmul.f32 %v4356, %v4372
        %v4375 = vperm.slane %v4350, 0
        %v4377 = vmul.f32 %v4373, %v4375
        %v4379 = vperm.slane %v4351, 0
        %v4381 = vadd.f32 %v4377, %v4379
        %s4382 = scalar_lea.vmem %s49, 96
        %v4383 = vld [vmem:[%s4382] sm:$0xff]
        %v4384 = vld [vmem:[%s4382 + $0x8] sm:$0xff]
        %v4385 = vld [vmem:[%s4382 + $0x10] sm:$0xff]
        %v4386 = vld [vmem:[%s4382 + $0x18] sm:$0xff]
        %v4387 = vld [vmem:[%s4382 + $0x20] sm:$0xff]
        %v4388 = vld [vmem:[%s4382 + $0x28] sm:$0xff]
        %v4389 = vld [vmem:[%s4382 + $0x30] sm:$0xff]
        %v4390 = vld [vmem:[%s4382 + $0x38] sm:$0xff]
        %v4391 = vld [vmem:[%s4382 + $0x40] sm:$0xff]
        %v4392 = vld [vmem:[%s4382 + $0x48] sm:$0xff]
        %v4393 = vld [vmem:[%s4382 + $0x50] sm:$0xff]
        %v4394 = vld [vmem:[%s4382 + $0x58] sm:$0xff]
        %s4395 = scalar_lea.vmem %s51, 2
        %v4396 = vld [vmem:[%s4395] sm:$0x3]
        %v4398 = vperm.slane %v4396, 0
        %v4399 = vperm.slane %v4396, 1
        %v4403 = vsel %vm1505, %v4381, 0
        %4405 = vmatpush.msra.mxu0 0.0
        %4406 = vmatpush.msra.mxu0 0.0
        %4407 = vmatpush.msra.mxu0 0.0
        %4408 = vmatpush.msra.mxu0 0.0
        %4409 = vmatpush.msra.mxu0 0.0
        %4410 = vmatpush.msra.mxu0 0.0
        %4411 = vmatpush.msra.mxu0 0.0
        %4412 = vmatpush.msra.mxu0 0.0
        %4413 = vmatpush.msra.mxu0 0.0
        %4414 = vmatpush.msra.mxu0 0.0
        %4415 = vmatpush.msra.mxu0 %v4393
        %4416 = vmatpush.msra.mxu0 %v4391
        %4417 = vmatpush.msra.mxu0 %v4389
        %4418 = vmatpush.msra.mxu0 %v4387
        %4419 = vmatpush.msra.mxu0 %v4385
        %4420 = vmatpush.msra.mxu0 %v4383
        %4421 = vmatmul.f32.gmra.mxu0 %v4403
        %v4422 = vpop.f32.mrf.mxu0
        %v4423 = vadd.f32 %v4398, %v4422
        %4424 = vdwg.mxu0
        %4425 = vmatpush.msra.mxu0 0.0
        %4426 = vmatpush.msra.mxu0 0.0
        %4427 = vmatpush.msra.mxu0 0.0
        %4428 = vmatpush.msra.mxu0 0.0
        %4429 = vmatpush.msra.mxu0 0.0
        %4430 = vmatpush.msra.mxu0 0.0
        %4431 = vmatpush.msra.mxu0 0.0
        %4432 = vmatpush.msra.mxu0 0.0
        %4433 = vmatpush.msra.mxu0 0.0
        %4434 = vmatpush.msra.mxu0 0.0
        %4435 = vmatpush.msra.mxu0 %v4394
        %4436 = vmatpush.msra.mxu0 %v4392
        %4437 = vmatpush.msra.mxu0 %v4390
        %4438 = vmatpush.msra.mxu0 %v4388
        %4439 = vmatpush.msra.mxu0 %v4386
        %4440 = vmatpush.msra.mxu0 %v4384
        %4441 = vmatmul.f32.gmra.mxu0 %v4403
        %v4442 = vpop.f32.mrf.mxu0
        %v4443 = vadd.f32 %v4399, %v4442
        %4444 = vdwg.mxu0
        %s4445 = scalar_lea.vmem %s53, 48
        %v4446 = vld [vmem:[%s4445] sm:$0xff]
        %v4447 = vld [vmem:[%s4445 + $0x8] sm:$0xff]
        %v4448 = vld [vmem:[%s4445 + $0x10] sm:$0xff]
        %v4449 = vld [vmem:[%s4445 + $0x18] sm:$0xff]
        %v4450 = vld [vmem:[%s4445 + $0x20] sm:$0xff]
        %v4451 = vld [vmem:[%s4445 + $0x28] sm:$0xff]
        %s4452 = scalar_lea.vmem %s55, 1
        %v4453 = vld [vmem:[%s4452] sm:$0x1]
        %4455 = vrot.lane.b32.xlu0 %v4423, 80
        %v4456 = vpop.permute.xlu0 %4455
        %v4457 = vsel %vm1654, %v4423, 0
        %v4459 = vsel %vm1654, %v4456, 0
        %4461 = vmatpush.xpose.msra.mxu0 0.0
        %4462 = vmatpush.xpose.msra.mxu0 0.0
        %4463 = vmatpush.xpose.msra.mxu0 0.0
        %4464 = vmatpush.xpose.msra.mxu0 0.0
        %4465 = vmatpush.xpose.msra.mxu0 0.0
        %4466 = vmatpush.xpose.msra.mxu0 0.0
        %4467 = vmatpush.xpose.msra.mxu0 0.0
        %4468 = vmatpush.xpose.msra.mxu0 0.0
        %4469 = vmatpush.xpose.msra.mxu0 0.0
        %4470 = vmatpush.xpose.msra.mxu0 0.0
        %4471 = vmatpush.xpose.msra.mxu0 0.0
        %4472 = vmatpush.xpose.msra.mxu0 0.0
        %4473 = vmatpush.xpose.msra.mxu0 0.0
        %4474 = vmatpush.xpose.msra.mxu0 0.0
        %4475 = vmatpush.xpose.msra.mxu0 0.0
        %4476 = vmatpush.xpose.msra.mxu0 %v4459
        %4477 = vmatmul.f32.gmra.mxu0 %v4457
        %v4478 = vpop.f32.mrf.mxu0
        %v4479 = vadd.f32 0.0, %v4478
        %4480 = vdwg.mxu0
        %v4481 = vmul.f32 %v4479, 0.28867513
        %v4482 = vsel %vm3407, %v4481, -inf
        %v4483 = vsel %vm3409, %v4482, -inf
        %4484 = vmax.xlane.f32.xlu0 %v4483
        %v4485 = vpop.xlane.xlu0 %4484
        %v4486 = vsub.f32 %v4482, %v4485
        %v4487 = vmul.f32 %v4486, 1.442695
        %v4488 = vpow.pop %v4487
        %v4489 = vsel %vm3409, %v4488, 0.0
        %4490 = vadd.xlane.f32.xlu0 %v4489
        %v4491 = vpop.xlane.xlu0 %4490
        %v4492 = vrcp.pop %v4491
        %v4493 = vmul.f32 %v4491, %v4492
        %v4494 = vsub.f32 1.0, %v4493
        %v4495 = vmul.f32 %v4492, %v4494
        %v4496 = vadd.f32 %v4492, %v4495
        %vm4497 = vweird.f32 %v4491
        %vm4498 = vweird.f32 %v4492
        %vm4499 = vmor %vm4497, %vm4498
        %v4500 = vsel %vm4499, %v4492, %v4496
        %v4501 = vand.u32 2147483647, %v4491
        %vm4502 = vcmp.eq.f32.partialorder %v4501, 8.507059e+37
        %v4503 = vand.u32 %v4491, 2147483648
        %v4504 = vor.u32 1.1754944e-38, %v4503
        %v4505 = vsel %vm4502, %v4504, %v4500
        %v4506 = vmul.f32 %v4488, %v4505
        %4507 = vrot.lane.b32.xlu0 %v4423, 32
        %v4508 = vpop.permute.xlu0 %4507
        %v4510 = vsel %vm3436, %v4506, 0
        %v4512 = vsel %vm3440, %v4508, 0
        %4514 = vmatpush.msra.mxu0 0.0
        %4515 = vmatpush.msra.mxu0 0.0
        %4516 = vmatpush.msra.mxu0 0.0
        %4517 = vmatpush.msra.mxu0 0.0
        %4518 = vmatpush.msra.mxu0 0.0
        %4519 = vmatpush.msra.mxu0 0.0
        %4520 = vmatpush.msra.mxu0 0.0
        %4521 = vmatpush.msra.mxu0 0.0
        %4522 = vmatpush.msra.mxu0 0.0
        %4523 = vmatpush.msra.mxu0 0.0
        %4524 = vmatpush.msra.mxu0 0.0
        %4525 = vmatpush.msra.mxu0 0.0
        %4526 = vmatpush.msra.mxu0 0.0
        %4527 = vmatpush.msra.mxu0 0.0
        %4528 = vmatpush.msra.mxu0 0.0
        %4529 = vmatpush.msra.mxu0 %v4512
        %4530 = vmatmul.f32.gmra.mxu0 %v4510
        %v4531 = vpop.f32.mrf.mxu0
        %v4532 = vadd.f32 0.0, %v4531
        %4533 = vdwg.mxu0
        %4534 = vrot.lane.b32.xlu0 %v4423, 116
        %v4535 = vpop.permute.xlu0 %4534
        %4536 = vrot.lane.b32.xlu0 %v4423, 68
        %v4537 = vpop.permute.xlu0 %4536
        %v4538 = vsel %vm1654, %v4535, 0
        %v4540 = vsel %vm1654, %v4537, 0
        %4542 = vmatpush.xpose.msra.mxu0 0.0
        %4543 = vmatpush.xpose.msra.mxu0 0.0
        %4544 = vmatpush.xpose.msra.mxu0 0.0
        %4545 = vmatpush.xpose.msra.mxu0 0.0
        %4546 = vmatpush.xpose.msra.mxu0 0.0
        %4547 = vmatpush.xpose.msra.mxu0 0.0
        %4548 = vmatpush.xpose.msra.mxu0 0.0
        %4549 = vmatpush.xpose.msra.mxu0 0.0
        %4550 = vmatpush.xpose.msra.mxu0 0.0
        %4551 = vmatpush.xpose.msra.mxu0 0.0
        %4552 = vmatpush.xpose.msra.mxu0 0.0
        %4553 = vmatpush.xpose.msra.mxu0 0.0
        %4554 = vmatpush.xpose.msra.mxu0 0.0
        %4555 = vmatpush.xpose.msra.mxu0 0.0
        %4556 = vmatpush.xpose.msra.mxu0 0.0
        %4557 = vmatpush.xpose.msra.mxu0 %v4540
        %4558 = vmatmul.f32.gmra.mxu0 %v4538
        %v4559 = vpop.f32.mrf.mxu0
        %v4560 = vadd.f32 0.0, %v4559
        %4561 = vdwg.mxu0
        %v4562 = vmul.f32 %v4560, 0.28867513
        %v4563 = vsel %vm3407, %v4562, -inf
        %v4564 = vsel %vm3409, %v4563, -inf
        %4565 = vmax.xlane.f32.xlu0 %v4564
        %v4566 = vpop.xlane.xlu0 %4565
        %v4567 = vsub.f32 %v4563, %v4566
        %v4568 = vmul.f32 %v4567, 1.442695
        %v4569 = vpow.pop %v4568
        %v4570 = vsel %vm3409, %v4569, 0.0
        %4571 = vadd.xlane.f32.xlu0 %v4570
        %v4572 = vpop.xlane.xlu0 %4571
        %v4573 = vrcp.pop %v4572
        %v4574 = vmul.f32 %v4572, %v4573
        %v4575 = vsub.f32 1.0, %v4574
        %v4576 = vmul.f32 %v4573, %v4575
        %v4577 = vadd.f32 %v4573, %v4576
        %vm4578 = vweird.f32 %v4572
        %vm4579 = vweird.f32 %v4573
        %vm4580 = vmor %vm4578, %vm4579
        %v4581 = vsel %vm4580, %v4573, %v4577
        %v4582 = vand.u32 2147483647, %v4572
        %vm4583 = vcmp.eq.f32.partialorder %v4582, 8.507059e+37
        %v4584 = vand.u32 %v4572, 2147483648
        %v4585 = vor.u32 1.1754944e-38, %v4584
        %v4586 = vsel %vm4583, %v4585, %v4581
        %v4587 = vmul.f32 %v4569, %v4586
        %4588 = vrot.lane.b32.xlu0 %v4423, 20
        %v4589 = vpop.permute.xlu0 %4588
        %v4591 = vsel %vm3436, %v4587, 0
        %v4593 = vsel %vm3440, %v4589, 0
        %4595 = vmatpush.msra.mxu0 0.0
        %4596 = vmatpush.msra.mxu0 0.0
        %4597 = vmatpush.msra.mxu0 0.0
        %4598 = vmatpush.msra.mxu0 0.0
        %4599 = vmatpush.msra.mxu0 0.0
        %4600 = vmatpush.msra.mxu0 0.0
        %4601 = vmatpush.msra.mxu0 0.0
        %4602 = vmatpush.msra.mxu0 0.0
        %4603 = vmatpush.msra.mxu0 0.0
        %4604 = vmatpush.msra.mxu0 0.0
        %4605 = vmatpush.msra.mxu0 0.0
        %4606 = vmatpush.msra.mxu0 0.0
        %4607 = vmatpush.msra.mxu0 0.0
        %4608 = vmatpush.msra.mxu0 0.0
        %4609 = vmatpush.msra.mxu0 0.0
        %4610 = vmatpush.msra.mxu0 %v4593
        %4611 = vmatmul.f32.gmra.mxu0 %v4591
        %v4612 = vpop.f32.mrf.mxu0
        %v4613 = vadd.f32 0.0, %v4612
        %4614 = vdwg.mxu0
        %4615 = vrot.lane.b32.xlu0 %v4423, 104
        %v4616 = vpop.permute.xlu0 %4615
        %4617 = vrot.lane.b32.xlu0 %v4423, 56
        %v4618 = vpop.permute.xlu0 %4617
        %v4619 = vsel %vm1654, %v4616, 0
        %v4621 = vsel %vm1654, %v4618, 0
        %4623 = vmatpush.xpose.msra.mxu0 0.0
        %4624 = vmatpush.xpose.msra.mxu0 0.0
        %4625 = vmatpush.xpose.msra.mxu0 0.0
        %4626 = vmatpush.xpose.msra.mxu0 0.0
        %4627 = vmatpush.xpose.msra.mxu0 0.0
        %4628 = vmatpush.xpose.msra.mxu0 0.0
        %4629 = vmatpush.xpose.msra.mxu0 0.0
        %4630 = vmatpush.xpose.msra.mxu0 0.0
        %4631 = vmatpush.xpose.msra.mxu0 0.0
        %4632 = vmatpush.xpose.msra.mxu0 0.0
        %4633 = vmatpush.xpose.msra.mxu0 0.0
        %4634 = vmatpush.xpose.msra.mxu0 0.0
        %4635 = vmatpush.xpose.msra.mxu0 0.0
        %4636 = vmatpush.xpose.msra.mxu0 0.0
        %4637 = vmatpush.xpose.msra.mxu0 0.0
        %4638 = vmatpush.xpose.msra.mxu0 %v4621
        %4639 = vmatmul.f32.gmra.mxu0 %v4619
        %v4640 = vpop.f32.mrf.mxu0
        %v4641 = vadd.f32 0.0, %v4640
        %4642 = vdwg.mxu0
        %v4643 = vmul.f32 %v4641, 0.28867513
        %v4644 = vsel %vm3407, %v4643, -inf
        %v4645 = vsel %vm3409, %v4644, -inf
        %4646 = vmax.xlane.f32.xlu0 %v4645
        %v4647 = vpop.xlane.xlu0 %4646
        %v4648 = vsub.f32 %v4644, %v4647
        %v4649 = vmul.f32 %v4648, 1.442695
        %v4650 = vpow.pop %v4649
        %v4651 = vsel %vm3409, %v4650, 0.0
        %4652 = vadd.xlane.f32.xlu0 %v4651
        %v4653 = vpop.xlane.xlu0 %4652
        %v4654 = vrcp.pop %v4653
        %v4655 = vmul.f32 %v4653, %v4654
        %v4656 = vsub.f32 1.0, %v4655
        %v4657 = vmul.f32 %v4654, %v4656
        %v4658 = vadd.f32 %v4654, %v4657
        %vm4659 = vweird.f32 %v4653
        %vm4660 = vweird.f32 %v4654
        %vm4661 = vmor %vm4659, %vm4660
        %v4662 = vsel %vm4661, %v4654, %v4658
        %v4663 = vand.u32 2147483647, %v4653
        %vm4664 = vcmp.eq.f32.partialorder %v4663, 8.507059e+37
        %v4665 = vand.u32 %v4653, 2147483648
        %v4666 = vor.u32 1.1754944e-38, %v4665
        %v4667 = vsel %vm4664, %v4666, %v4662
        %v4668 = vmul.f32 %v4650, %v4667
        %4670 = vrot.lane.b32.xlu0 %v4423, 8
        %v4671 = vpop.permute.xlu0 %4670
        %4672 = vrot.lane.b32.xlu0 %v4443, 8
        %v4673 = vpop.permute.xlu0 %4672
        %v4674 = vsel %vm1995, %v4671, %v4673
        %v4676 = vsel %vm3436, %v4668, 0
        %v4678 = vsel %vm3440, %v4674, 0
        %4680 = vmatpush.msra.mxu0 0.0
        %4681 = vmatpush.msra.mxu0 0.0
        %4682 = vmatpush.msra.mxu0 0.0
        %4683 = vmatpush.msra.mxu0 0.0
        %4684 = vmatpush.msra.mxu0 0.0
        %4685 = vmatpush.msra.mxu0 0.0
        %4686 = vmatpush.msra.mxu0 0.0
        %4687 = vmatpush.msra.mxu0 0.0
        %4688 = vmatpush.msra.mxu0 0.0
        %4689 = vmatpush.msra.mxu0 0.0
        %4690 = vmatpush.msra.mxu0 0.0
        %4691 = vmatpush.msra.mxu0 0.0
        %4692 = vmatpush.msra.mxu0 0.0
        %4693 = vmatpush.msra.mxu0 0.0
        %4694 = vmatpush.msra.mxu0 0.0
        %4695 = vmatpush.msra.mxu0 %v4678
        %4696 = vmatmul.f32.gmra.mxu0 %v4676
        %v4697 = vpop.f32.mrf.mxu0
        %v4698 = vadd.f32 0.0, %v4697
        %4699 = vdwg.mxu0
        %4700 = vrot.lane.b32.xlu0 %v4423, 92
        %v4701 = vpop.permute.xlu0 %4700
        %4702 = vrot.lane.b32.xlu0 %v4423, 44
        %v4703 = vpop.permute.xlu0 %4702
        %v4704 = vsel %vm1654, %v4701, 0
        %v4706 = vsel %vm1654, %v4703, 0
        %4708 = vmatpush.xpose.msra.mxu0 0.0
        %4709 = vmatpush.xpose.msra.mxu0 0.0
        %4710 = vmatpush.xpose.msra.mxu0 0.0
        %4711 = vmatpush.xpose.msra.mxu0 0.0
        %4712 = vmatpush.xpose.msra.mxu0 0.0
        %4713 = vmatpush.xpose.msra.mxu0 0.0
        %4714 = vmatpush.xpose.msra.mxu0 0.0
        %4715 = vmatpush.xpose.msra.mxu0 0.0
        %4716 = vmatpush.xpose.msra.mxu0 0.0
        %4717 = vmatpush.xpose.msra.mxu0 0.0
        %4718 = vmatpush.xpose.msra.mxu0 0.0
        %4719 = vmatpush.xpose.msra.mxu0 0.0
        %4720 = vmatpush.xpose.msra.mxu0 0.0
        %4721 = vmatpush.xpose.msra.mxu0 0.0
        %4722 = vmatpush.xpose.msra.mxu0 0.0
        %4723 = vmatpush.xpose.msra.mxu0 %v4706
        %4724 = vmatmul.f32.gmra.mxu0 %v4704
        %v4725 = vpop.f32.mrf.mxu0
        %v4726 = vadd.f32 0.0, %v4725
        %4727 = vdwg.mxu0
        %v4728 = vmul.f32 %v4726, 0.28867513
        %v4729 = vsel %vm3407, %v4728, -inf
        %v4730 = vsel %vm3409, %v4729, -inf
        %4731 = vmax.xlane.f32.xlu0 %v4730
        %v4732 = vpop.xlane.xlu0 %4731
        %v4733 = vsub.f32 %v4729, %v4732
        %v4734 = vmul.f32 %v4733, 1.442695
        %v4735 = vpow.pop %v4734
        %v4736 = vsel %vm3409, %v4735, 0.0
        %4737 = vadd.xlane.f32.xlu0 %v4736
        %v4738 = vpop.xlane.xlu0 %4737
        %v4739 = vrcp.pop %v4738
        %v4740 = vmul.f32 %v4738, %v4739
        %v4741 = vsub.f32 1.0, %v4740
        %v4742 = vmul.f32 %v4739, %v4741
        %v4743 = vadd.f32 %v4739, %v4742
        %vm4744 = vweird.f32 %v4738
        %vm4745 = vweird.f32 %v4739
        %vm4746 = vmor %vm4744, %vm4745
        %v4747 = vsel %vm4746, %v4739, %v4743
        %v4748 = vand.u32 2147483647, %v4738
        %vm4749 = vcmp.eq.f32.partialorder %v4748, 8.507059e+37
        %v4750 = vand.u32 %v4738, 2147483648
        %v4751 = vor.u32 1.1754944e-38, %v4750
        %v4752 = vsel %vm4749, %v4751, %v4747
        %v4753 = vmul.f32 %v4735, %v4752
        %4754 = vrot.lane.b32.xlu0 %v4443, 124
        %v4755 = vpop.permute.xlu0 %4754
        %v4757 = vsel %vm3436, %v4753, 0
        %v4759 = vsel %vm3440, %v4755, 0
        %4761 = vmatpush.msra.mxu0 0.0
        %4762 = vmatpush.msra.mxu0 0.0
        %4763 = vmatpush.msra.mxu0 0.0
        %4764 = vmatpush.msra.mxu0 0.0
        %4765 = vmatpush.msra.mxu0 0.0
        %4766 = vmatpush.msra.mxu0 0.0
        %4767 = vmatpush.msra.mxu0 0.0
        %4768 = vmatpush.msra.mxu0 0.0
        %4769 = vmatpush.msra.mxu0 0.0
        %4770 = vmatpush.msra.mxu0 0.0
        %4771 = vmatpush.msra.mxu0 0.0
        %4772 = vmatpush.msra.mxu0 0.0
        %4773 = vmatpush.msra.mxu0 0.0
        %4774 = vmatpush.msra.mxu0 0.0
        %4775 = vmatpush.msra.mxu0 0.0
        %4776 = vmatpush.msra.mxu0 %v4759
        %4777 = vmatmul.f32.gmra.mxu0 %v4757
        %v4778 = vpop.f32.mrf.mxu0
        %v4779 = vadd.f32 0.0, %v4778
        %4780 = vdwg.mxu0
        %4782 = vrot.lane.b32.xlu0 %v4613, 12
        %v4783 = vpop.permute.xlu0 %4782
        %4786 = vrot.lane.b32.xlu0 %v4698, 24
        %v4787 = vpop.permute.xlu0 %4786
        %4790 = vrot.lane.b32.xlu0 %v4779, 36
        %v4791 = vpop.permute.xlu0 %4790
        %v4793 = vsel %vm1654, %v4532, %v4783
        %v4794 = vsel %vm2179, %v4793, %v4787
        %v4795 = vsel %vm2182, %v4794, %v4791
        %v4797 = vperm.slane %v4453, 0
        %v4800 = vsel %vm1505, %v4795, 0
        %4802 = vmatpush.msra.mxu0 0.0
        %4803 = vmatpush.msra.mxu0 0.0
        %4804 = vmatpush.msra.mxu0 0.0
        %4805 = vmatpush.msra.mxu0 0.0
        %4806 = vmatpush.msra.mxu0 0.0
        %4807 = vmatpush.msra.mxu0 0.0
        %4808 = vmatpush.msra.mxu0 0.0
        %4809 = vmatpush.msra.mxu0 0.0
        %4810 = vmatpush.msra.mxu0 0.0
        %4811 = vmatpush.msra.mxu0 0.0
        %4812 = vmatpush.msra.mxu0 %v4451
        %4813 = vmatpush.msra.mxu0 %v4450
        %4814 = vmatpush.msra.mxu0 %v4449
        %4815 = vmatpush.msra.mxu0 %v4448
        %4816 = vmatpush.msra.mxu0 %v4447
        %4817 = vmatpush.msra.mxu0 %v4446
        %4818 = vmatmul.f32.gmra.mxu0 %v4800
        %v4819 = vpop.f32.mrf.mxu0
        %v4820 = vadd.f32 %v4797, %v4819
        %4821 = vdwg.mxu0
        %v4822 = vadd.f32 %v4381, %v4820
        %s4823 = scalar_lea.vmem %s69, 1
        %v4824 = vld [vmem:[%s4823] sm:$0x1]
        %s4825 = scalar_lea.vmem %s71, 1
        %v4826 = vld [vmem:[%s4825] sm:$0x1]
        %v4827 = vsel %vm3754, %v4822, 0.0
        %4828 = vadd.xlane.f32.xlu0 %v4827
        %v4829 = vpop.xlane.xlu0 %4828
        %v4830 = vmul.f32 %v4829, %v1518
        %v4831 = vsub.f32 %v4822, %v4830
        %v4832 = vmul.f32 %v4831, %v4831
        %v4833 = vsel %vm3754, %v4832, 0.0
        %4834 = vadd.xlane.f32.xlu0 %v4833
        %v4835 = vpop.xlane.xlu0 %4834
        %v4836 = vmul.f32 %v4835, %v1518
        %v4837 = vadd.f32 %v4836, 1e-05
        %v4838 = vrsqrt.pop %v4837
        %v4839 = vmul.f32 %v4838, %v4837
        %v4840 = vmul.f32 %v4839, %v4838
        %v4841 = vmul.f32 0.5, %v4840
        %v4842 = vsub.f32 1.5, %v4841
        %v4843 = vmul.f32 %v4838, %v4842
        %vm4844 = vweird.f32 %v4837
        %vm4845 = vweird.f32 %v4838
        %vm4846 = vmor %vm4844, %vm4845
        %v4847 = vsel %vm4846, %v4838, %v4843
        %v4848 = vmul.f32 %v4831, %v4847
        %v4850 = vperm.slane %v4824, 0
        %v4852 = vmul.f32 %v4848, %v4850
        %v4854 = vperm.slane %v4826, 0
        %v4856 = vadd.f32 %v4852, %v4854
        %s4857 = scalar_lea.vmem %s57, 48
        %v4858 = vld [vmem:[%s4857] sm:$0xff]
        %v4859 = vld [vmem:[%s4857 + $0x8] sm:$0xff]
        %v4860 = vld [vmem:[%s4857 + $0x10] sm:$0xff]
        %v4861 = vld [vmem:[%s4857 + $0x18] sm:$0xff]
        %v4862 = vld [vmem:[%s4857 + $0x20] sm:$0xff]
        %v4863 = vld [vmem:[%s4857 + $0x28] sm:$0xff]
        %s4864 = scalar_lea.vmem %s59, 1
        %v4865 = vld [vmem:[%s4864] sm:$0x1]
        %v4867 = vperm.slane %v4865, 0
        %v4870 = vsel %vm1505, %v4856, 0
        %4872 = vmatpush.msra.mxu0 0.0
        %4873 = vmatpush.msra.mxu0 0.0
        %4874 = vmatpush.msra.mxu0 0.0
        %4875 = vmatpush.msra.mxu0 0.0
        %4876 = vmatpush.msra.mxu0 0.0
        %4877 = vmatpush.msra.mxu0 0.0
        %4878 = vmatpush.msra.mxu0 0.0
        %4879 = vmatpush.msra.mxu0 0.0
        %4880 = vmatpush.msra.mxu0 0.0
        %4881 = vmatpush.msra.mxu0 0.0
        %4882 = vmatpush.msra.mxu0 %v4863
        %4883 = vmatpush.msra.mxu0 %v4862
        %4884 = vmatpush.msra.mxu0 %v4861
        %4885 = vmatpush.msra.mxu0 %v4860
        %4886 = vmatpush.msra.mxu0 %v4859
        %4887 = vmatpush.msra.mxu0 %v4858
        %4888 = vmatmul.f32.gmra.mxu0 %v4870
        %v4889 = vpop.f32.mrf.mxu0
        %v4890 = vadd.f32 %v4867, %v4889
        %4891 = vdwg.mxu0
        %s4892 = scalar_lea.vmem %s61, 48
        %v4893 = vld [vmem:[%s4892] sm:$0xff]
        %v4894 = vld [vmem:[%s4892 + $0x8] sm:$0xff]
        %v4895 = vld [vmem:[%s4892 + $0x10] sm:$0xff]
        %v4896 = vld [vmem:[%s4892 + $0x18] sm:$0xff]
        %v4897 = vld [vmem:[%s4892 + $0x20] sm:$0xff]
        %v4898 = vld [vmem:[%s4892 + $0x28] sm:$0xff]
        %s4899 = scalar_lea.vmem %s63, 1
        %v4900 = vld [vmem:[%s4899] sm:$0x1]
        %v4902 = vperm.slane %v4900, 0
        %4904 = vmatpush.msra.mxu0 0.0
        %4905 = vmatpush.msra.mxu0 0.0
        %4906 = vmatpush.msra.mxu0 0.0
        %4907 = vmatpush.msra.mxu0 0.0
        %4908 = vmatpush.msra.mxu0 0.0
        %4909 = vmatpush.msra.mxu0 0.0
        %4910 = vmatpush.msra.mxu0 0.0
        %4911 = vmatpush.msra.mxu0 0.0
        %4912 = vmatpush.msra.mxu0 0.0
        %4913 = vmatpush.msra.mxu0 0.0
        %4914 = vmatpush.msra.mxu0 %v4898
        %4915 = vmatpush.msra.mxu0 %v4897
        %4916 = vmatpush.msra.mxu0 %v4896
        %4917 = vmatpush.msra.mxu0 %v4895
        %4918 = vmatpush.msra.mxu0 %v4894
        %4919 = vmatpush.msra.mxu0 %v4893
        %4920 = vmatmul.f32.gmra.mxu0 %v3829
        %v4921 = vpop.f32.mrf.mxu0
        %v4922 = vadd.f32 %v4902, %v4921
        %4923 = vmatmul.f32.gmra.mxu0 %v3832
        %v4924 = vpop.f32.mrf.mxu0
        %v4925 = vadd.f32 %v4902, %v4924
        %4926 = vdwg.mxu0
        %s4927 = scalar_lea.vmem %s65, 48
        %v4928 = vld [vmem:[%s4927] sm:$0xff]
        %v4929 = vld [vmem:[%s4927 + $0x8] sm:$0xff]
        %v4930 = vld [vmem:[%s4927 + $0x10] sm:$0xff]
        %v4931 = vld [vmem:[%s4927 + $0x18] sm:$0xff]
        %v4932 = vld [vmem:[%s4927 + $0x20] sm:$0xff]
        %v4933 = vld [vmem:[%s4927 + $0x28] sm:$0xff]
        %s4934 = scalar_lea.vmem %s67, 1
        %v4935 = vld [vmem:[%s4934] sm:$0x1]
        %v4937 = vsel %vm1654, %v4890, 0
        %v4940 = vsel %vm1654, %v4922, 0
        %v4943 = vsel %vm1654, %v4925, 0
        %4945 = vmatpush.xpose.msra.mxu0 0.0
        %4946 = vmatpush.xpose.msra.mxu0 0.0
        %4947 = vmatpush.xpose.msra.mxu0 0.0
        %4948 = vmatpush.xpose.msra.mxu0 0.0
        %4949 = vmatpush.xpose.msra.mxu0 0.0
        %4950 = vmatpush.xpose.msra.mxu0 0.0
        %4951 = vmatpush.xpose.msra.mxu0 0.0
        %4952 = vmatpush.xpose.msra.mxu0 0.0
        %4953 = vmatpush.xpose.msra.mxu0 0.0
        %4954 = vmatpush.xpose.msra.mxu0 0.0
        %4955 = vmatpush.xpose.msra.mxu0 0.0
        %4956 = vmatpush.xpose.msra.mxu0 0.0
        %4957 = vmatpush.xpose.msra.mxu0 0.0
        %4958 = vmatpush.xpose.msra.mxu0 0.0
        %4959 = vmatpush.xpose.msra.mxu0 %v4943
        %4960 = vmatpush.xpose.msra.mxu0 %v4940
        %4961 = vmatmul.f32.gmra.mxu0 %v4937
        %v4962 = vpop.f32.mrf.mxu0
        %v4963 = vadd.f32 0.0, %v4962
        %4964 = vdwg.mxu0
        %v4965 = vmul.f32 %v4963, 0.28867513
        %v4966 = vsel %vm3894, %v4965, -inf
        %4967 = vmax.xlane.f32.xlu0 %v4966
        %v4968 = vpop.xlane.xlu0 %4967
        %v4969 = vsub.f32 %v4965, %v4968
        %v4970 = vmul.f32 %v4969, 1.442695
        %v4971 = vpow.pop %v4970
        %v4972 = vsel %vm3894, %v4971, 0.0
        %4973 = vadd.xlane.f32.xlu0 %v4972
        %v4974 = vpop.xlane.xlu0 %4973
        %v4975 = vrcp.pop %v4974
        %v4976 = vmul.f32 %v4974, %v4975
        %v4977 = vsub.f32 1.0, %v4976
        %v4978 = vmul.f32 %v4975, %v4977
        %v4979 = vadd.f32 %v4975, %v4978
        %vm4980 = vweird.f32 %v4974
        %vm4981 = vweird.f32 %v4975
        %vm4982 = vmor %vm4980, %vm4981
        %v4983 = vsel %vm4982, %v4975, %v4979
        %v4984 = vand.u32 2147483647, %v4974
        %vm4985 = vcmp.eq.f32.partialorder %v4984, 8.507059e+37
        %v4986 = vand.u32 %v4974, 2147483648
        %v4987 = vor.u32 1.1754944e-38, %v4986
        %v4988 = vsel %vm4985, %v4987, %v4983
        %v4989 = vmul.f32 %v4971, %v4988
        %4990 = vrot.lane.b32.xlu0 %v4922, 80
        %v4991 = vpop.permute.xlu0 %4990
        %4992 = vrot.lane.b32.xlu0 %v4925, 80
        %v4993 = vpop.permute.xlu0 %4992
        %v4997 = vsel %vm1688, %v4989, 0
        %4999 = vmatpush.msra.mxu0 0.0
        %5000 = vmatpush.msra.mxu0 0.0
        %5001 = vmatpush.msra.mxu0 0.0
        %5002 = vmatpush.msra.mxu0 0.0
        %5003 = vmatpush.msra.mxu0 0.0
        %5004 = vmatpush.msra.mxu0 0.0
        %5005 = vmatpush.msra.mxu0 0.0
        %5006 = vmatpush.msra.mxu0 0.0
        %5007 = vmatpush.msra.mxu0 0.0
        %5008 = vmatpush.msra.mxu0 0.0
        %5009 = vmatpush.msra.mxu0 0.0
        %5010 = vmatpush.msra.mxu0 0.0
        %5011 = vmatpush.msra.mxu0 0.0
        %5012 = vmatpush.msra.mxu0 0.0
        %5013 = vmatpush.msra.mxu0 %v4993
        %5014 = vmatpush.msra.mxu0 %v4991
        %5015 = vmatmul.f32.gmra.mxu0 %v4997
        %v5016 = vpop.f32.mrf.mxu0
        %v5017 = vadd.f32 0.0, %v5016
        %5018 = vdwg.mxu0
        %5019 = vrot.lane.b32.xlu0 %v4890, 116
        %v5020 = vpop.permute.xlu0 %5019
        %5021 = vrot.lane.b32.xlu0 %v4922, 116
        %v5022 = vpop.permute.xlu0 %5021
        %5023 = vrot.lane.b32.xlu0 %v4925, 116
        %v5024 = vpop.permute.xlu0 %5023
        %v5025 = vsel %vm1654, %v5020, 0
        %v5027 = vsel %vm1654, %v5022, 0
        %v5029 = vsel %vm1654, %v5024, 0
        %5031 = vmatpush.xpose.msra.mxu0 0.0
        %5032 = vmatpush.xpose.msra.mxu0 0.0
        %5033 = vmatpush.xpose.msra.mxu0 0.0
        %5034 = vmatpush.xpose.msra.mxu0 0.0
        %5035 = vmatpush.xpose.msra.mxu0 0.0
        %5036 = vmatpush.xpose.msra.mxu0 0.0
        %5037 = vmatpush.xpose.msra.mxu0 0.0
        %5038 = vmatpush.xpose.msra.mxu0 0.0
        %5039 = vmatpush.xpose.msra.mxu0 0.0
        %5040 = vmatpush.xpose.msra.mxu0 0.0
        %5041 = vmatpush.xpose.msra.mxu0 0.0
        %5042 = vmatpush.xpose.msra.mxu0 0.0
        %5043 = vmatpush.xpose.msra.mxu0 0.0
        %5044 = vmatpush.xpose.msra.mxu0 0.0
        %5045 = vmatpush.xpose.msra.mxu0 %v5029
        %5046 = vmatpush.xpose.msra.mxu0 %v5027
        %5047 = vmatmul.f32.gmra.mxu0 %v5025
        %v5048 = vpop.f32.mrf.mxu0
        %v5049 = vadd.f32 0.0, %v5048
        %5050 = vdwg.mxu0
        %v5051 = vmul.f32 %v5049, 0.28867513
        %v5052 = vsel %vm3894, %v5051, -inf
        %5053 = vmax.xlane.f32.xlu0 %v5052
        %v5054 = vpop.xlane.xlu0 %5053
        %v5055 = vsub.f32 %v5051, %v5054
        %v5056 = vmul.f32 %v5055, 1.442695
        %v5057 = vpow.pop %v5056
        %v5058 = vsel %vm3894, %v5057, 0.0
        %5059 = vadd.xlane.f32.xlu0 %v5058
        %v5060 = vpop.xlane.xlu0 %5059
        %v5061 = vrcp.pop %v5060
        %v5062 = vmul.f32 %v5060, %v5061
        %v5063 = vsub.f32 1.0, %v5062
        %v5064 = vmul.f32 %v5061, %v5063
        %v5065 = vadd.f32 %v5061, %v5064
        %vm5066 = vweird.f32 %v5060
        %vm5067 = vweird.f32 %v5061
        %vm5068 = vmor %vm5066, %vm5067
        %v5069 = vsel %vm5068, %v5061, %v5065
        %v5070 = vand.u32 2147483647, %v5060
        %vm5071 = vcmp.eq.f32.partialorder %v5070, 8.507059e+37
        %v5072 = vand.u32 %v5060, 2147483648
        %v5073 = vor.u32 1.1754944e-38, %v5072
        %v5074 = vsel %vm5071, %v5073, %v5069
        %v5075 = vmul.f32 %v5057, %v5074
        %5076 = vrot.lane.b32.xlu0 %v4922, 68
        %v5077 = vpop.permute.xlu0 %5076
        %5078 = vrot.lane.b32.xlu0 %v4925, 68
        %v5079 = vpop.permute.xlu0 %5078
        %v5083 = vsel %vm1688, %v5075, 0
        %5085 = vmatpush.msra.mxu0 0.0
        %5086 = vmatpush.msra.mxu0 0.0
        %5087 = vmatpush.msra.mxu0 0.0
        %5088 = vmatpush.msra.mxu0 0.0
        %5089 = vmatpush.msra.mxu0 0.0
        %5090 = vmatpush.msra.mxu0 0.0
        %5091 = vmatpush.msra.mxu0 0.0
        %5092 = vmatpush.msra.mxu0 0.0
        %5093 = vmatpush.msra.mxu0 0.0
        %5094 = vmatpush.msra.mxu0 0.0
        %5095 = vmatpush.msra.mxu0 0.0
        %5096 = vmatpush.msra.mxu0 0.0
        %5097 = vmatpush.msra.mxu0 0.0
        %5098 = vmatpush.msra.mxu0 0.0
        %5099 = vmatpush.msra.mxu0 %v5079
        %5100 = vmatpush.msra.mxu0 %v5077
        %5101 = vmatmul.f32.gmra.mxu0 %v5083
        %v5102 = vpop.f32.mrf.mxu0
        %v5103 = vadd.f32 0.0, %v5102
        %5104 = vdwg.mxu0
        %5105 = vrot.lane.b32.xlu0 %v4890, 104
        %v5106 = vpop.permute.xlu0 %5105
        %5107 = vrot.lane.b32.xlu0 %v4922, 104
        %v5108 = vpop.permute.xlu0 %5107
        %5109 = vrot.lane.b32.xlu0 %v4925, 104
        %v5110 = vpop.permute.xlu0 %5109
        %v5111 = vsel %vm1654, %v5106, 0
        %v5113 = vsel %vm1654, %v5108, 0
        %v5115 = vsel %vm1654, %v5110, 0
        %5117 = vmatpush.xpose.msra.mxu0 0.0
        %5118 = vmatpush.xpose.msra.mxu0 0.0
        %5119 = vmatpush.xpose.msra.mxu0 0.0
        %5120 = vmatpush.xpose.msra.mxu0 0.0
        %5121 = vmatpush.xpose.msra.mxu0 0.0
        %5122 = vmatpush.xpose.msra.mxu0 0.0
        %5123 = vmatpush.xpose.msra.mxu0 0.0
        %5124 = vmatpush.xpose.msra.mxu0 0.0
        %5125 = vmatpush.xpose.msra.mxu0 0.0
        %5126 = vmatpush.xpose.msra.mxu0 0.0
        %5127 = vmatpush.xpose.msra.mxu0 0.0
        %5128 = vmatpush.xpose.msra.mxu0 0.0
        %5129 = vmatpush.xpose.msra.mxu0 0.0
        %5130 = vmatpush.xpose.msra.mxu0 0.0
        %5131 = vmatpush.xpose.msra.mxu0 %v5115
        %5132 = vmatpush.xpose.msra.mxu0 %v5113
        %5133 = vmatmul.f32.gmra.mxu0 %v5111
        %v5134 = vpop.f32.mrf.mxu0
        %v5135 = vadd.f32 0.0, %v5134
        %5136 = vdwg.mxu0
        %v5137 = vmul.f32 %v5135, 0.28867513
        %v5138 = vsel %vm3894, %v5137, -inf
        %5139 = vmax.xlane.f32.xlu0 %v5138
        %v5140 = vpop.xlane.xlu0 %5139
        %v5141 = vsub.f32 %v5137, %v5140
        %v5142 = vmul.f32 %v5141, 1.442695
        %v5143 = vpow.pop %v5142
        %v5144 = vsel %vm3894, %v5143, 0.0
        %5145 = vadd.xlane.f32.xlu0 %v5144
        %v5146 = vpop.xlane.xlu0 %5145
        %v5147 = vrcp.pop %v5146
        %v5148 = vmul.f32 %v5146, %v5147
        %v5149 = vsub.f32 1.0, %v5148
        %v5150 = vmul.f32 %v5147, %v5149
        %v5151 = vadd.f32 %v5147, %v5150
        %vm5152 = vweird.f32 %v5146
        %vm5153 = vweird.f32 %v5147
        %vm5154 = vmor %vm5152, %vm5153
        %v5155 = vsel %vm5154, %v5147, %v5151
        %v5156 = vand.u32 2147483647, %v5146
        %vm5157 = vcmp.eq.f32.partialorder %v5156, 8.507059e+37
        %v5158 = vand.u32 %v5146, 2147483648
        %v5159 = vor.u32 1.1754944e-38, %v5158
        %v5160 = vsel %vm5157, %v5159, %v5155
        %v5161 = vmul.f32 %v5143, %v5160
        %5162 = vrot.lane.b32.xlu0 %v4922, 56
        %v5163 = vpop.permute.xlu0 %5162
        %5164 = vrot.lane.b32.xlu0 %v4925, 56
        %v5165 = vpop.permute.xlu0 %5164
        %v5169 = vsel %vm1688, %v5161, 0
        %5171 = vmatpush.msra.mxu0 0.0
        %5172 = vmatpush.msra.mxu0 0.0
        %5173 = vmatpush.msra.mxu0 0.0
        %5174 = vmatpush.msra.mxu0 0.0
        %5175 = vmatpush.msra.mxu0 0.0
        %5176 = vmatpush.msra.mxu0 0.0
        %5177 = vmatpush.msra.mxu0 0.0
        %5178 = vmatpush.msra.mxu0 0.0
        %5179 = vmatpush.msra.mxu0 0.0
        %5180 = vmatpush.msra.mxu0 0.0
        %5181 = vmatpush.msra.mxu0 0.0
        %5182 = vmatpush.msra.mxu0 0.0
        %5183 = vmatpush.msra.mxu0 0.0
        %5184 = vmatpush.msra.mxu0 0.0
        %5185 = vmatpush.msra.mxu0 %v5165
        %5186 = vmatpush.msra.mxu0 %v5163
        %5187 = vmatmul.f32.gmra.mxu0 %v5169
        %v5188 = vpop.f32.mrf.mxu0
        %v5189 = vadd.f32 0.0, %v5188
        %5190 = vdwg.mxu0
        %5191 = vrot.lane.b32.xlu0 %v4890, 92
        %v5192 = vpop.permute.xlu0 %5191
        %5193 = vrot.lane.b32.xlu0 %v4922, 92
        %v5194 = vpop.permute.xlu0 %5193
        %5195 = vrot.lane.b32.xlu0 %v4925, 92
        %v5196 = vpop.permute.xlu0 %5195
        %v5197 = vsel %vm1654, %v5192, 0
        %v5199 = vsel %vm1654, %v5194, 0
        %v5201 = vsel %vm1654, %v5196, 0
        %5203 = vmatpush.xpose.msra.mxu0 0.0
        %5204 = vmatpush.xpose.msra.mxu0 0.0
        %5205 = vmatpush.xpose.msra.mxu0 0.0
        %5206 = vmatpush.xpose.msra.mxu0 0.0
        %5207 = vmatpush.xpose.msra.mxu0 0.0
        %5208 = vmatpush.xpose.msra.mxu0 0.0
        %5209 = vmatpush.xpose.msra.mxu0 0.0
        %5210 = vmatpush.xpose.msra.mxu0 0.0
        %5211 = vmatpush.xpose.msra.mxu0 0.0
        %5212 = vmatpush.xpose.msra.mxu0 0.0
        %5213 = vmatpush.xpose.msra.mxu0 0.0
        %5214 = vmatpush.xpose.msra.mxu0 0.0
        %5215 = vmatpush.xpose.msra.mxu0 0.0
        %5216 = vmatpush.xpose.msra.mxu0 0.0
        %5217 = vmatpush.xpose.msra.mxu0 %v5201
        %5218 = vmatpush.xpose.msra.mxu0 %v5199
        %5219 = vmatmul.f32.gmra.mxu0 %v5197
        %v5220 = vpop.f32.mrf.mxu0
        %v5221 = vadd.f32 0.0, %v5220
        %5222 = vdwg.mxu0
        %v5223 = vmul.f32 %v5221, 0.28867513
        %v5224 = vsel %vm3894, %v5223, -inf
        %5225 = vmax.xlane.f32.xlu0 %v5224
        %v5226 = vpop.xlane.xlu0 %5225
        %v5227 = vsub.f32 %v5223, %v5226
        %v5228 = vmul.f32 %v5227, 1.442695
        %v5229 = vpow.pop %v5228
        %v5230 = vsel %vm3894, %v5229, 0.0
        %5231 = vadd.xlane.f32.xlu0 %v5230
        %v5232 = vpop.xlane.xlu0 %5231
        %v5233 = vrcp.pop %v5232
        %v5234 = vmul.f32 %v5232, %v5233
        %v5235 = vsub.f32 1.0, %v5234
        %v5236 = vmul.f32 %v5233, %v5235
        %v5237 = vadd.f32 %v5233, %v5236
        %vm5238 = vweird.f32 %v5232
        %vm5239 = vweird.f32 %v5233
        %vm5240 = vmor %vm5238, %vm5239
        %v5241 = vsel %vm5240, %v5233, %v5237
        %v5242 = vand.u32 2147483647, %v5232
        %vm5243 = vcmp.eq.f32.partialorder %v5242, 8.507059e+37
        %v5244 = vand.u32 %v5232, 2147483648
        %v5245 = vor.u32 1.1754944e-38, %v5244
        %v5246 = vsel %vm5243, %v5245, %v5241
        %v5247 = vmul.f32 %v5229, %v5246
        %5248 = vrot.lane.b32.xlu0 %v4922, 44
        %v5249 = vpop.permute.xlu0 %5248
        %5250 = vrot.lane.b32.xlu0 %v4925, 44
        %v5251 = vpop.permute.xlu0 %5250
        %v5255 = vsel %vm1688, %v5247, 0
        %5257 = vmatpush.msra.mxu0 0.0
        %5258 = vmatpush.msra.mxu0 0.0
        %5259 = vmatpush.msra.mxu0 0.0
        %5260 = vmatpush.msra.mxu0 0.0
        %5261 = vmatpush.msra.mxu0 0.0
        %5262 = vmatpush.msra.mxu0 0.0
        %5263 = vmatpush.msra.mxu0 0.0
        %5264 = vmatpush.msra.mxu0 0.0
        %5265 = vmatpush.msra.mxu0 0.0
        %5266 = vmatpush.msra.mxu0 0.0
        %5267 = vmatpush.msra.mxu0 0.0
        %5268 = vmatpush.msra.mxu0 0.0
        %5269 = vmatpush.msra.mxu0 0.0
        %5270 = vmatpush.msra.mxu0 0.0
        %5271 = vmatpush.msra.mxu0 %v5251
        %5272 = vmatpush.msra.mxu0 %v5249
        %5273 = vmatmul.f32.gmra.mxu0 %v5255
        %v5274 = vpop.f32.mrf.mxu0
        %v5275 = vadd.f32 0.0, %v5274
        %5276 = vdwg.mxu0
        %5278 = vrot.lane.b32.xlu0 %v5103, 12
        %v5279 = vpop.permute.xlu0 %5278
        %5282 = vrot.lane.b32.xlu0 %v5189, 24
        %v5283 = vpop.permute.xlu0 %5282
        %5286 = vrot.lane.b32.xlu0 %v5275, 36
        %v5287 = vpop.permute.xlu0 %5286
        %v5289 = vsel %vm1654, %v5017, %v5279
        %v5290 = vsel %vm2179, %v5289, %v5283
        %v5291 = vsel %vm2182, %v5290, %v5287
        %v5293 = vperm.slane %v4935, 0
        %v5296 = vsel %vm1505, %v5291, 0
        %5298 = vmatpush.msra.mxu0 0.0
        %5299 = vmatpush.msra.mxu0 0.0
        %5300 = vmatpush.msra.mxu0 0.0
        %5301 = vmatpush.msra.mxu0 0.0
        %5302 = vmatpush.msra.mxu0 0.0
        %5303 = vmatpush.msra.mxu0 0.0
        %5304 = vmatpush.msra.mxu0 0.0
        %5305 = vmatpush.msra.mxu0 0.0
        %5306 = vmatpush.msra.mxu0 0.0
        %5307 = vmatpush.msra.mxu0 0.0
        %5308 = vmatpush.msra.mxu0 %v4933
        %5309 = vmatpush.msra.mxu0 %v4932
        %5310 = vmatpush.msra.mxu0 %v4931
        %5311 = vmatpush.msra.mxu0 %v4930
        %5312 = vmatpush.msra.mxu0 %v4929
        %5313 = vmatpush.msra.mxu0 %v4928
        %5314 = vmatmul.f32.gmra.mxu0 %v5296
        %v5315 = vpop.f32.mrf.mxu0
        %v5316 = vadd.f32 %v5293, %v5315
        %5317 = vdwg.mxu0
        %v5318 = vadd.f32 %v4856, %v5316
        %s5319 = scalar_lea.vmem %s73, 1
        %v5320 = vld [vmem:[%s5319] sm:$0x1]
        %s5321 = scalar_lea.vmem %s75, 1
        %v5322 = vld [vmem:[%s5321] sm:$0x1]
        %v5323 = vsel %vm3754, %v5318, 0.0
        %5324 = vadd.xlane.f32.xlu0 %v5323
        %v5325 = vpop.xlane.xlu0 %5324
        %v5326 = vmul.f32 %v5325, %v1518
        %v5327 = vsub.f32 %v5318, %v5326
        %v5328 = vmul.f32 %v5327, %v5327
        %v5329 = vsel %vm3754, %v5328, 0.0
        %5330 = vadd.xlane.f32.xlu0 %v5329
        %v5331 = vpop.xlane.xlu0 %5330
        %v5332 = vmul.f32 %v5331, %v1518
        %v5333 = vadd.f32 %v5332, 1e-05
        %v5334 = vrsqrt.pop %v5333
        %v5335 = vmul.f32 %v5334, %v5333
        %v5336 = vmul.f32 %v5335, %v5334
        %v5337 = vmul.f32 0.5, %v5336
        %v5338 = vsub.f32 1.5, %v5337
        %v5339 = vmul.f32 %v5334, %v5338
        %vm5340 = vweird.f32 %v5333
        %vm5341 = vweird.f32 %v5334
        %vm5342 = vmor %vm5340, %vm5341
        %v5343 = vsel %vm5342, %v5334, %v5339
        %v5344 = vmul.f32 %v5327, %v5343
        %v5346 = vperm.slane %v5320, 0
        %v5348 = vmul.f32 %v5344, %v5346
        %v5350 = vperm.slane %v5322, 0
        %v5352 = vadd.f32 %v5348, %v5350
        %s5353 = scalar_lea.vmem %s81, 48
        %v5354 = vld [vmem:[%s5353] sm:$0xff]
        %v5355 = vld [vmem:[%s5353 + $0x8] sm:$0xff]
        %v5356 = vld [vmem:[%s5353 + $0x10] sm:$0xff]
        %v5357 = vld [vmem:[%s5353 + $0x18] sm:$0xff]
        %v5358 = vld [vmem:[%s5353 + $0x20] sm:$0xff]
        %v5359 = vld [vmem:[%s5353 + $0x28] sm:$0xff]
        %s5360 = scalar_lea.vmem %s83, 1
        %v5361 = vld [vmem:[%s5360] sm:$0x1]
        %v5363 = vperm.slane %v5361, 0
        %v5366 = vsel %vm1505, %v5352, 0
        %5368 = vmatpush.msra.mxu0 0.0
        %5369 = vmatpush.msra.mxu0 0.0
        %5370 = vmatpush.msra.mxu0 0.0
        %5371 = vmatpush.msra.mxu0 0.0
        %5372 = vmatpush.msra.mxu0 0.0
        %5373 = vmatpush.msra.mxu0 0.0
        %5374 = vmatpush.msra.mxu0 0.0
        %5375 = vmatpush.msra.mxu0 0.0
        %5376 = vmatpush.msra.mxu0 0.0
        %5377 = vmatpush.msra.mxu0 0.0
        %5378 = vmatpush.msra.mxu0 %v5359
        %5379 = vmatpush.msra.mxu0 %v5358
        %5380 = vmatpush.msra.mxu0 %v5357
        %5381 = vmatpush.msra.mxu0 %v5356
        %5382 = vmatpush.msra.mxu0 %v5355
        %5383 = vmatpush.msra.mxu0 %v5354
        %5384 = vmatmul.f32.gmra.mxu0 %v5366
        %v5385 = vpop.f32.mrf.mxu0
        %v5386 = vadd.f32 %v5363, %v5385
        %5387 = vdwg.mxu0
        %v5388 = vmax.f32 %v5386, 0.0
        %s5389 = scalar_lea.vmem %s85, 64
        %v5390 = vld [vmem:[%s5389] sm:$0xff]
        %v5391 = vld [vmem:[%s5389 + $0x8] sm:$0xff]
        %v5392 = vld [vmem:[%s5389 + $0x10] sm:$0xff]
        %v5393 = vld [vmem:[%s5389 + $0x18] sm:$0xff]
        %v5394 = vld [vmem:[%s5389 + $0x20] sm:$0xff]
        %v5395 = vld [vmem:[%s5389 + $0x28] sm:$0xff]
        %v5396 = vld [vmem:[%s5389 + $0x30] sm:$0xff]
        %v5397 = vld [vmem:[%s5389 + $0x38] sm:$0xff]
        %s5398 = scalar_lea.vmem %s87, 1
        %v5399 = vld [vmem:[%s5398] sm:$0x1]
        %v5401 = vperm.slane %v5399, 0
        %v5404 = vsel %vm1400, %v5388, 0
        %5406 = vmatpush.msra.mxu0 0.0
        %5407 = vmatpush.msra.mxu0 0.0
        %5408 = vmatpush.msra.mxu0 0.0
        %5409 = vmatpush.msra.mxu0 0.0
        %5410 = vmatpush.msra.mxu0 0.0
        %5411 = vmatpush.msra.mxu0 0.0
        %5412 = vmatpush.msra.mxu0 0.0
        %5413 = vmatpush.msra.mxu0 0.0
        %5414 = vmatpush.msra.mxu0 %v5397
        %5415 = vmatpush.msra.mxu0 %v5396
        %5416 = vmatpush.msra.mxu0 %v5395
        %5417 = vmatpush.msra.mxu0 %v5394
        %5418 = vmatpush.msra.mxu0 %v5393
        %5419 = vmatpush.msra.mxu0 %v5392
        %5420 = vmatpush.msra.mxu0 %v5391
        %5421 = vmatpush.msra.mxu0 %v5390
        %5422 = vmatmul.f32.gmra.mxu0 %v5404
        %v5423 = vpop.f32.mrf.mxu0
        %v5424 = vadd.f32 %v5401, %v5423
        %5425 = vdwg.mxu0
        %v5426 = vadd.f32 %v5352, %v5424
        %s5427 = scalar_lea.vmem %s77, 1
        %v5428 = vld [vmem:[%s5427] sm:$0x1]
        %s5429 = scalar_lea.vmem %s79, 1
        %v5430 = vld [vmem:[%s5429] sm:$0x1]
        %v5431 = vsel %vm3754, %v5426, 0.0
        %5432 = vadd.xlane.f32.xlu0 %v5431
        %v5433 = vpop.xlane.xlu0 %5432
        %v5434 = vmul.f32 %v5433, %v1518
        %v5435 = vsub.f32 %v5426, %v5434
        %v5436 = vmul.f32 %v5435, %v5435
        %v5437 = vsel %vm3754, %v5436, 0.0
        %5438 = vadd.xlane.f32.xlu0 %v5437
        %v5439 = vpop.xlane.xlu0 %5438
        %v5440 = vmul.f32 %v5439, %v1518
        %v5441 = vadd.f32 %v5440, 1e-05
        %v5442 = vrsqrt.pop %v5441
        %v5443 = vmul.f32 %v5442, %v5441
        %v5444 = vmul.f32 %v5443, %v5442
        %v5445 = vmul.f32 0.5, %v5444
        %v5446 = vsub.f32 1.5, %v5445
        %v5447 = vmul.f32 %v5442, %v5446
        %vm5448 = vweird.f32 %v5441
        %vm5449 = vweird.f32 %v5442
        %vm5450 = vmor %vm5448, %vm5449
        %v5451 = vsel %vm5450, %v5442, %v5447
        %v5452 = vmul.f32 %v5435, %v5451
        %v5454 = vperm.slane %v5428, 0
        %v5456 = vmul.f32 %v5452, %v5454
        %v5458 = vperm.slane %v5430, 0
        %v5460 = vadd.f32 %v5456, %v5458
        %vm5461 = vcmask 388096
        %5462 = vst.msk [vmem:[%s1395] sm:$0xf] %vm5461, %v5460
        %p5463 = scmp.lt.s32.totalorder %s102, 1
        %s5464 = scalar_select %p5463, %s102, 1
        %s5465 = smul.addr %s5464, 4
        %s5466 = scalar_lea.vmem %s89, %s5465
        // Predicated region
        $region209: #{_lambda_.1} parent=195 // pred_check
          %p5467 = pneg %p1059
        $region210: #{_lambda_.1} parent=195 // pred_check_branch
          %5469 = sbr.rel (%p5467) target = $region212
        $region211: #{_lambda_.1} parent=195 // pred_region
          _
        $region212: #{_lambda_.1} parent=195 // pred_fallthru
          _
      $region196: #{_lambda_.1} parent=5 // pred_fallthru
        _
      %p5470 = scmp.le.s32.totalorder 2, %s97
      // Predicated region
      $region213: #{_lambda_.1} parent=5 // pred_check
        %p5471 = pneg %p5470
      $region214: #{_lambda_.1} parent=5 // pred_check_branch
        %5473 = sbr.rel (%p5471) target = $region216
      $region215: #{_lambda_.1} parent=5 // pred_region
        %s5474 = ssub.s32 %s97, 2
        // Predicated region
        $region217: #{_lambda_.1} parent=215 // pred_check
          %p5475 = pneg %p1065
        $region218: #{_lambda_.1} parent=215 // pred_check_branch
          %5477 = sbr.rel (%p5475) target = $region220
        $region219: #{_lambda_.1} parent=215 // pred_region
          %p5478 = scmp.lt.s32.totalorder %s103, 1
          %s5479 = scalar_select %p5478, %s103, 1
          %s5480 = smul.addr %s5479, 4
          %s5481 = scalar_lea.vmem %s89, %s5480
        $region220: #{_lambda_.1} parent=215 // pred_fallthru
          _
      $region216: #{_lambda_.1} parent=5 // pred_fallthru
        _
    $region6: #{_lambda_.1} parent=1 // loop_footer
      %s101 = sadd.s32 1, %s97
    $region7: #{_lambda_.1} parent=1 // loop_footer_branch
      %96 = sbr.rel target = $region3
    $region8: #{_lambda_.1} parent=1 // loop_exit
      _
    %5482 = vsyncpa [#allocation3], 1
    %s5483 = scalar_lea.sflag [#allocation3], 1
    %5484 = vsyncpa %s5483, 1
    %5485 = vsyncpa [#allocation5], 1

</llo_original>
